<compile_context>
chip_gen: v7x
topology: tpu7x:2x2x1
jax: 0.10.0
libtpu: 0.0.40
codegen_flags: <defaults>
</compile_context>

<pallas_src>
import jax
import jax.numpy as jnp
from jax import lax
from jax.experimental import pallas as pl
from jax.experimental.pallas import tpu as pltpu

EPS = 1e-5          # nn.BatchNorm2d default eps
LANE = 128          # pad channel (last / lane) dims to a multiple of this


def _round_up(v, m):
    return ((v + m - 1) // m) * m


def _chan_pad(c):
    return max(LANE, _round_up(c, LANE))


def _vmem_limit_bytes():
    """~3/4 of the chip's physical VMEM, capped at 96 MiB (safe on v5e/v6e/v7x)."""
    try:
        cap = int(pltpu.get_tpu_info().vmem_capacity_bytes)
    except Exception:            # conservative fallback (v7x per-core size)
        cap = 64 * 1024 * 1024
    return int(min((cap * 3) // 4, 96 * 1024 * 1024))


def _pick_images_per_block(n, hw_rows, target_rows=1024):
    """Images per grid step for the 1x1 / residual passes (>= ~1024 matmul rows/block)."""
    bi = max(1, min(n, target_rows // max(hw_rows, 1)))
    while n % bi != 0:
        bi -= 1
    return bi


# ---------------------------------------------------------------------------
# pass 1: conv1 (1x1 == matmul over channels) + BN1 partial stats per block
# ---------------------------------------------------------------------------
def _conv1_kernel(x_ref, w_ref, h1_ref, st_ref):
    bi, h, w, ci = x_ref.shape
    rows = bi * h * w
    x = x_ref[...].reshape(rows, ci)                       # bf16 (pre-cast on host)
    hv = jnp.dot(x, w_ref[...], preferred_element_type=jnp.float32)
    h1_ref[...] = hv.reshape(h1_ref.shape).astype(h1_ref.dtype)
    st = jnp.concatenate([jnp.sum(hv, axis=0, keepdims=True),
                          jnp.sum(hv * hv, axis=0, keepdims=True)], axis=0)
    st_ref[...] = st.reshape(st_ref.shape)


# ---------------------------------------------------------------------------
# pass 2: bn1 + relu + conv2 (3x3, stride 1, pad 1) over one (image, H-band) block
# ---------------------------------------------------------------------------
def _make_conv2_kernel(bh, w, nb, rg):
    """bh: band height, w: image width, nb: #H-bands, rg: rows per accumulator group."""
    n_groups = bh // rg

    def kernel(mid_ref, top_ref, bot_ref, w2_ref, sc_ref, sh_ref,
               h2_ref, st_ref, pad_ref):
        b = pl.program_id(1)
        cc = mid_ref.shape[-1]
        sc = sc_ref[...].reshape(1, 1, cc)
        sh = sh_ref[...].reshape(1, 1, cc)

        def bn_relu(v):
            return jnp.maximum(v.astype(jnp.float32) * sc + sh, 0.0).astype(jnp.bfloat16)

        a_mid = bn_relu(mid_ref[...].reshape(bh, w, cc))
        zero_row = jnp.zeros((1, w, cc), jnp.bfloat16)
        # Halo rows come from the neighbouring bands (the index maps clamp at the image
        # edges); zero them at the top / bottom of the image to realize padding=1.
        a_top = jnp.where(b == 0, zero_row, bn_relu(top_ref[...].reshape(1, w, cc)))
        a_bot = jnp.where(b == nb - 1, zero_row, bn_relu(bot_ref[...].reshape(1, w, cc)))

        # Halo-padded band in VMEM scratch: 1 row top/bottom, 8 zero columns left/right
        # (interior starts at sublane offset 8 -> aligned interior store).  The scratch
        # persists across grid steps, so the zero strips are rewritten every step.
        zcol = jnp.zeros((bh + 2, 8, cc), jnp.bfloat16)
        pad_ref[:, pl.ds(0, 8), :] = zcol
        pad_ref[:, pl.ds(w + 8, 8), :] = zcol
        pad_ref[pl.ds(0, 1), pl.ds(8, w), :] = a_top
        pad_ref[pl.ds(1, bh), pl.ds(8, w), :] = a_mid
        pad_ref[pl.ds(bh + 1, 1), pl.ds(8, w), :] = a_bot

        # 9 shifted matmuls per row group, accumulated as values (registers / MRB) and
        # written exactly once per group -- no VMEM read-modify-write.
        # TODO(synk): the kw=0/2 taps read the scratch at unaligned sublane offsets
        #             (7 and 9); a pltpu.roll-based column shift would move that cost
        #             to the otherwise-idle XLU.
        s1 = jnp.zeros((1, cc), jnp.float32)
        s2 = jnp.zeros((1, cc), jnp.float32)
        for g in range(n_groups):
            acc = None
            for kh in range(3):
                for kw in range(3):
                    patch = pad_ref[pl.ds(g * rg + kh, rg), pl.ds(7 + kw, w), :]
                    t = jnp.dot(patch.reshape(rg * w, cc), w2_ref[kh, kw],
                                preferred_element_type=jnp.float32)
                    acc = t if acc is None else acc + t
            h2_ref[pl.ds(0, 1), pl.ds(g * rg, rg), :, :] = (
                acc.astype(h2_ref.dtype).reshape(1, rg, w, cc))
            s1 = s1 + jnp.sum(acc, axis=0, keepdims=True)
            s2 = s2 + jnp.sum(acc * acc, axis=0, keepdims=True)

        st = jnp.concatenate([s1, s2], axis=0)
        st_ref[...] = st.reshape(st_ref.shape)

    return kernel


# ---------------------------------------------------------------------------
# pass 3: bn2 + relu + conv3 (1x1) + BN3 partial stats per block
# ---------------------------------------------------------------------------
def _conv3_kernel(h2_ref, w_ref, sc_ref, sh_ref, h3_ref, st_ref):
    bi, h, w, ci = h2_ref.shape
    rows = bi * h * w
    a = h2_ref[...].reshape(rows, ci).astype(jnp.float32)
    a = jnp.maximum(a * sc_ref[...] + sh_ref[...], 0.0).astype(jnp.bfloat16)
    hv = jnp.dot(a, w_ref[...], preferred_element_type=jnp.float32)
    h3_ref[...] = hv.reshape(h3_ref.shape).astype(h3_ref.dtype)
    st = jnp.concatenate([jnp.sum(hv, axis=0, keepdims=True),
                          jnp.sum(hv * hv, axis=0, keepdims=True)], axis=0)
    st_ref[...] = st.reshape(st_ref.shape)


# ---------------------------------------------------------------------------
# pass 4: bn3 + identity residual + relu (emits only the real `co` channels)
# ---------------------------------------------------------------------------
def _residual_kernel(h3_ref, x_ref, sc_ref, sh_ref, o_ref):
    co = o_ref.shape[-1]
    cop = h3_ref.shape[-1]
    hv = h3_ref[...].astype(jnp.float32)
    y = hv * sc_ref[...].reshape(1, 1, 1, cop) + sh_ref[...].reshape(1, 1, 1, cop)
    # Fused channel un-padding; identity is the unpadded f32 input so the residual add
    # stays in full precision.
    o_ref[...] = jnp.maximum(y[..., :co] + x_ref[...], 0.0)


# ---------------------------------------------------------------------------
# host-side glue
# ---------------------------------------------------------------------------
def _fold_bn_stats(stats, count, gamma, beta):
    """Reduce per-block (sum, sumsq) partials; fold BN into per-channel (scale, shift)."""
    c = stats.shape[-1]
    tot = stats.reshape(-1, 2, c).sum(axis=0)
    mean = tot[0] / count
    var = jnp.maximum(tot[1] / count - mean * mean, 0.0)   # biased variance (training BN)
    inv = lax.rsqrt(var + EPS)
    scale = gamma * inv
    shift = beta - mean * scale
    return (scale.reshape(1, c).astype(jnp.float32),
            shift.reshape(1, c).astype(jnp.float32))


def bottleneck_forward_nhwc(x, w1_io, g1, b1, w2_hwio, g2, b2, w3_io, g3, b3):
    """BottleneckV1b forward, channels-last. x: (N,H,W,Cin) f32; weights in IO / HWIO."""
    n, h, w, ci = x.shape
    p = w1_io.shape[1]
    co = w3_io.shape[1]
    assert co == ci, "identity residual requires inplanes == planes * expansion"

    cip, pp, cop = _chan_pad(ci), _chan_pad(p), _chan_pad(co)
    count = float(n * h * w)

    # pass-1/3/4 blocking: several images per step when the spatial plane is small.
    bi = _pick_images_per_block(n, h * w)
    nt = n // bi
    # pass-2 blocking: H bands with a 1-row halo; value-accumulator row groups.
    bh = 8 if h % 8 == 0 else h
    nb = h // bh
    rg = bh
    while rg % 2 == 0 and rg * w > 64:     # <= ~64 matmul rows (~8 vregs) per accumulator
        rg //= 2

    vmem = _vmem_limit_bytes()
    params1 = pltpu.CompilerParams(dimension_semantics=("parallel",),
                                   vmem_limit_bytes=vmem)
    params2 = pltpu.CompilerParams(dimension_semantics=("parallel", "parallel"),
                                   vmem_limit_bytes=vmem)

    # channel padding -> lane-dense (>=128) last dims; padded channels carry zero
    # weights / gamma / beta so they stay exactly zero end-to-end.
    x_f32 = x.astype(jnp.float32)                                   # identity (pass 4)
    x_bf = jnp.pad(x_f32, ((0, 0), (0, 0), (0, 0), (0, cip - ci))).astype(jnp.bfloat16)
    w1p = jnp.pad(w1_io, ((0, cip - ci), (0, pp - p))).astype(jnp.bfloat16)
    w2p = jnp.pad(w2_hwio, ((0, 0), (0, 0), (0, pp - p), (0, pp - p))).astype(jnp.bfloat16)
    w3p = jnp.pad(w3_io, ((0, pp - p), (0, cop - co))).astype(jnp.bfloat16)
    g1p = jnp.pad(g1.reshape(-1), (0, pp - p)).astype(jnp.float32)
    b1p = jnp.pad(b1.reshape(-1), (0, pp - p)).astype(jnp.float32)
    g2p = jnp.pad(g2.reshape(-1), (0, pp - p)).astype(jnp.float32)
    b2p = jnp.pad(b2.reshape(-1), (0, pp - p)).astype(jnp.float32)
    g3p = jnp.pad(g3.reshape(-1), (0, cop - co)).astype(jnp.float32)
    b3p = jnp.pad(b3.reshape(-1), (0, cop - co)).astype(jnp.float32)

    img_block = lambda c: pl.BlockSpec((bi, h, w, c), lambda t: (t, 0, 0, 0))
    vec_spec1 = lambda c: pl.BlockSpec((1, c), lambda t: (0, 0))
    st_spec1 = lambda c: pl.BlockSpec((1, 2, c), lambda t: (t, 0, 0))

    # ---- pass 1: conv1 + BN1 partials --------------------------------------
    h1, st1 = pl.pallas_call(
        _conv1_kernel,
        grid=(nt,),
        in_specs=[img_block(cip),
                  pl.BlockSpec((cip, pp), lambda t: (0, 0))],
        out_specs=[img_block(pp), st_spec1(pp)],
        out_shape=[jax.ShapeDtypeStruct((n, h, w, pp), jnp.bfloat16),
                   jax.ShapeDtypeStruct((nt, 2, pp), jnp.float32)],
        compiler_params=params1,
    )(x_bf, w1p)
    sc1, sh1 = _fold_bn_stats(st1, count, g1p, b1p)

    # ---- pass 2: bn1+relu + conv2 (3x3, pad 1) + BN2 partials ---------------
    conv2_kernel = _make_conv2_kernel(bh=bh, w=w, nb=nb, rg=rg)
    h2, st2 = pl.pallas_call(
        conv2_kernel,
        grid=(n, nb),
        in_specs=[
            pl.BlockSpec((1, bh, w, pp), lambda i, b: (i, b, 0, 0)),
            # 1-row halos: H block size 1 -> block index == image row; clamped at the
            # image edges (the kernel zeroes the halo there).
            pl.BlockSpec((1, 1, w, pp),
                         lambda i, b: (i, jnp.where(b > 0, b * bh - 1, 0), 0, 0)),
            pl.BlockSpec((1, 1, w, pp),
                         lambda i, b: (i, jnp.where(b < nb - 1, (b + 1) * bh, h - 1), 0, 0)),
            pl.BlockSpec((3, 3, pp, pp), lambda i, b: (0, 0, 0, 0)),
            pl.BlockSpec((1, pp), lambda i, b: (0, 0)),
            pl.BlockSpec((1, pp), lambda i, b: (0, 0)),
        ],
        out_specs=[pl.BlockSpec((1, bh, w, pp), lambda i, b: (i, b, 0, 0)),
                   pl.BlockSpec((1, 1, 2, pp), lambda i, b: (i, b, 0, 0))],
        out_shape=[jax.ShapeDtypeStruct((n, h, w, pp), jnp.bfloat16),
                   jax.ShapeDtypeStruct((n, nb, 2, pp), jnp.float32)],
        scratch_shapes=[pltpu.VMEM((bh + 2, w + 16, pp), jnp.bfloat16)],
        compiler_params=params2,
    )(h1, h1, h1, w2p, sc1, sh1)
    sc2, sh2 = _fold_bn_stats(st2, count, g2p, b2p)

    # ---- pass 3: bn2+relu + conv3 + BN3 partials ----------------------------
    h3, st3 = pl.pallas_call(
        _conv3_kernel,
        grid=(nt,),
        in_specs=[img_block(pp),
                  pl.BlockSpec((pp, cop), lambda t: (0, 0)),
                  vec_spec1(pp), vec_spec1(pp)],
        out_specs=[img_block(cop), st_spec1(cop)],
        out_shape=[jax.ShapeDtypeStruct((n, h, w, cop), jnp.bfloat16),
                   jax.ShapeDtypeStruct((nt, 2, cop), jnp.float32)],
        compiler_params=params1,
    )(h2, w3p, sc2, sh2)
    sc3, sh3 = _fold_bn_stats(st3, count, g3p, b3p)

    # ---- pass 4: bn3 + residual + relu (output already un-padded to co) -----
    out = pl.pallas_call(
        _residual_kernel,
        grid=(nt,),
        in_specs=[img_block(cop), img_block(co), vec_spec1(cop), vec_spec1(cop)],
        out_specs=img_block(co),
        out_shape=jax.ShapeDtypeStruct((n, h, w, co), jnp.float32),
        compiler_params=params1,
    )(h3, x_f32, sc3, sh3)

    return out


def bottleneck_forward(x_nchw, w1_oihw, g1, b1, w2_oihw, g2, b2, w3_oihw, g3, b3):
    """NCHW entry point matching the PyTorch module's layout (OIHW conv weights).

    In a real network keep activations NHWC end-to-end and call
    bottleneck_forward_nhwc directly -- the NCHW<->NHWC transposes here are an HBM
    round trip each way and only exist to mirror the PyTorch interface.
    """
    x = jnp.transpose(x_nchw, (0, 2, 3, 1))
    w1_io = jnp.transpose(w1_oihw[:, :, 0, 0], (1, 0))
    w2_hwio = jnp.transpose(w2_oihw, (2, 3, 1, 0))
    w3_io = jnp.transpose(w3_oihw[:, :, 0, 0], (1, 0))
    out = bottleneck_forward_nhwc(x, w1_io, g1, b1, w2_hwio, g2, b2, w3_io, g3, b3)
    return jnp.transpose(out, (0, 3, 1, 2))


def bottleneck_reference(x, w1, g1, b1, w2, g2, b2, w3, g3, b3):
    """Pure-JAX f32 reference mirroring F.conv2d / F.batch_norm(training=True)."""
    def bn(h, g, b):
        mean = jnp.mean(h, axis=(0, 2, 3), keepdims=True)
        var = jnp.mean((h - mean) ** 2, axis=(0, 2, 3), keepdims=True)
        return ((h - mean) * lax.rsqrt(var + EPS) * g.reshape(1, -1, 1, 1)
                + b.reshape(1, -1, 1, 1))

    def conv(h, wt, pad):
        return lax.conv_general_dilated(
            h, wt, window_strides=(1, 1), padding=((pad, pad), (pad, pad)),
            dimension_numbers=('NCHW', 'OIHW', 'NCHW'))

    out = jax.nn.relu(bn(conv(x, w1, 0), g1, b1))
    out = jax.nn.relu(bn(conv(out, w2, 1), g2, b2))
    out = bn(conv(out, w3, 0), g3, b3)
    return jax.nn.relu(out + x)


if __name__ == "__main__":
    key = jax.random.PRNGKey(0)
    ks = jax.random.split(key, 10)

    # BottleneckV1b(inplanes=32, planes=8): expansion=4 -> out channels = 32 = inplanes,
    # so the identity residual (downsample=None) is valid.
    n, inplanes, hh, ww = 2, 32, 16, 16
    planes = 8
    cout = planes * 4

    x = jax.random.normal(ks[0], (n, inplanes, hh, ww), jnp.float32)

    # conv weights in PyTorch OIHW layout, BN affine params as (C,) vectors.
    w1 = jax.random.normal(ks[1], (planes, inplanes, 1, 1), jnp.float32) * 0.1
    w2 = jax.random.normal(ks[2], (planes, planes, 3, 3), jnp.float32) * 0.1
    w3 = jax.random.normal(ks[3], (cout, planes, 1, 1), jnp.float32) * 0.1
    g1 = 1.0 + 0.1 * jax.random.normal(ks[4], (planes,), jnp.float32)
    b1 = 0.1 * jax.random.normal(ks[5], (planes,), jnp.float32)
    g2 = 1.0 + 0.1 * jax.random.normal(ks[6], (planes,), jnp.float32)
    b2 = 0.1 * jax.random.normal(ks[7], (planes,), jnp.float32)
    g3 = 1.0 + 0.1 * jax.random.normal(ks[8], (cout,), jnp.float32)
    b3 = 0.1 * jax.random.normal(ks[9], (cout,), jnp.float32)

    out = jax.jit(bottleneck_forward)(x, w1, g1, b1, w2, g2, b2, w3, g3, b3)
    out = jax.block_until_ready(out)

    ref = bottleneck_reference(x, w1, g1, b1, w2, g2, b2, w3, g3, b3)
    assert out.shape == (n, inplanes, hh, ww)
    # bf16 MXU inputs + bf16 intermediates -> loosened tolerance vs the f32 reference.
    max_err = float(jnp.max(jnp.abs(out - ref)))
    assert jnp.allclose(out, ref, atol=5e-2, rtol=5e-2), \
        f"mismatch vs reference (max abs err {max_err})"

    print("KERNEL_OK")
</pallas_src>

<mosaic_0001>
module attributes {stable_mosaic.version = 11 : i64} {
  func.func @_conv1_kernel(%arg0: i32, %arg1: memref<2x16x16x128xbf16, #tpu.memory_space<vmem>>, %arg2: memref<128x128xbf16, #tpu.memory_space<vmem>>, %arg3: memref<2x16x16x128xbf16, #tpu.memory_space<vmem>>, %arg4: memref<1x2x128xf32, #tpu.memory_space<vmem>>) attributes {dimension_semantics = [#tpu.dimension_semantics<parallel>], iteration_bounds = array<i64: 1>, scalar_prefetch = 0 : i64, scratch_operands = 0 : i64, tpu.core_type = #tpu.core_type<tc>, window_params = [{transform_indices = @transform_0, window_bounds = array<i64: 2, 16, 16, 128>}, {pipeline_mode = #tpu.pipeline_mode<synchronous>, transform_indices = @transform_1, window_bounds = array<i64: 128, 128>}, {transform_indices = @transform_2, window_bounds = array<i64: 2, 16, 16, 128>}, {transform_indices = @transform_3, window_bounds = array<i64: 1, 2, 128>}]} {
    %c0 = arith.constant 0 : index
    %c0_0 = arith.constant 0 : index
    %c0_1 = arith.constant 0 : index
    %c0_2 = arith.constant 0 : index
    %0 = vector.load %arg1[%c0, %c0_0, %c0_1, %c0_2] : memref<2x16x16x128xbf16, #tpu.memory_space<vmem>>, vector<2x16x16x128xbf16>
    %1 = vector.shape_cast %0 : vector<2x16x16x128xbf16> to vector<512x128xbf16>
    %c0_3 = arith.constant 0 : index
    %c0_4 = arith.constant 0 : index
    %2 = vector.load %arg2[%c0_3, %c0_4] : memref<128x128xbf16, #tpu.memory_space<vmem>>, vector<128x128xbf16>
    %cst = arith.constant dense<0.000000e+00> : vector<512x128xf32>
    %3 = tpu.matmul %1, %2, %cst {dimension_numbers = #tpu.dot_dimension_numbers<[1], [0], [0], [1], [0, 0, 1, 1], [], []>} : vector<512x128xbf16>, vector<128x128xbf16>, vector<512x128xf32> -> vector<512x128xf32>
    %4 = vector.shape_cast %3 : vector<512x128xf32> to vector<2x16x16x128xf32>
    %5 = arith.truncf %4 : vector<2x16x16x128xf32> to vector<2x16x16x128xbf16>
    %c0_5 = arith.constant 0 : index
    %c0_6 = arith.constant 0 : index
    %c0_7 = arith.constant 0 : index
    %c0_8 = arith.constant 0 : index
    %6 = vector.load %arg3[%c0_5, %c0_6, %c0_7, %c0_8] : memref<2x16x16x128xbf16, #tpu.memory_space<vmem>>, vector<2x16x16x128xbf16>
    tpu.vector_store %arg3[%c0_5, %c0_6, %c0_7, %c0_8], %5 {strides = array<i32>} : memref<2x16x16x128xbf16, #tpu.memory_space<vmem>>, vector<2x16x16x128xbf16>,
    %cst_9 = arith.constant dense<0.000000e+00> : vector<128xf32>
    %7 = vector.multi_reduction <add>, %3, %cst_9 [0] : vector<512x128xf32> to vector<128xf32>
    %8 = vector.shape_cast %7 : vector<128xf32> to vector<1x128xf32>
    %9 = arith.mulf %3, %3 : vector<512x128xf32>
    %cst_10 = arith.constant dense<0.000000e+00> : vector<128xf32>
    %10 = vector.multi_reduction <add>, %9, %cst_10 [0] : vector<512x128xf32> to vector<128xf32>
    %11 = vector.shape_cast %10 : vector<128xf32> to vector<1x128xf32>
    %12 = tpu.concatenate %8, %11 in 0 : vector<1x128xf32>, vector<1x128xf32> -> vector<2x128xf32>
    %13 = vector.shape_cast %12 : vector<2x128xf32> to vector<1x2x128xf32>
    %c0_11 = arith.constant 0 : index
    %c0_12 = arith.constant 0 : index
    %c0_13 = arith.constant 0 : index
    %14 = vector.load %arg4[%c0_11, %c0_12, %c0_13] : memref<1x2x128xf32, #tpu.memory_space<vmem>>, vector<1x2x128xf32>
    tpu.vector_store %arg4[%c0_11, %c0_12, %c0_13], %13 {strides = array<i32>} : memref<1x2x128xf32, #tpu.memory_space<vmem>>, vector<1x2x128xf32>,
    return
  }
  func.func @transform_0(%arg0: i32) -> (i32, i32, i32, i32) {
    %c0_i32 = arith.constant 0 : i32
    %c0_i32_0 = arith.constant 0 : i32
    %c0_i32_1 = arith.constant 0 : i32
    %c0_i32_2 = arith.constant 0 : i32
    return %arg0, %c0_i32, %c0_i32_0, %c0_i32_1 : i32, i32, i32, i32
  }
  func.func @transform_1(%arg0: i32) -> (i32, i32) {
    %c0_i32 = arith.constant 0 : i32
    %c0_i32_0 = arith.constant 0 : i32
    %c0_i32_1 = arith.constant 0 : i32
    return %c0_i32, %c0_i32_0 : i32, i32
  }
  func.func @transform_2(%arg0: i32) -> (i32, i32, i32, i32) {
    %c0_i32 = arith.constant 0 : i32
    %c0_i32_0 = arith.constant 0 : i32
    %c0_i32_1 = arith.constant 0 : i32
    %c0_i32_2 = arith.constant 0 : i32
    return %arg0, %c0_i32, %c0_i32_0, %c0_i32_1 : i32, i32, i32, i32
  }
  func.func @transform_3(%arg0: i32) -> (i32, i32, i32) {
    %c0_i32 = arith.constant 0 : i32
    %c0_i32_0 = arith.constant 0 : i32
    %c0_i32_1 = arith.constant 0 : i32
    return %arg0, %c0_i32, %c0_i32_0 : i32, i32, i32
  }
}

module attributes {stable_mosaic.version = 11 : i64} {
  func.func @kernel(%arg0: i32, %arg1: i32, %arg2: memref<1x8x16x128xbf16, #tpu.memory_space<vmem>>, %arg3: memref<1x1x16x128xbf16, #tpu.memory_space<vmem>>, %arg4: memref<1x1x16x128xbf16, #tpu.memory_space<vmem>>, %arg5: memref<3x3x128x128xbf16, #tpu.memory_space<vmem>>, %arg6: memref<1x128xf32, #tpu.memory_space<vmem>>, %arg7: memref<1x128xf32, #tpu.memory_space<vmem>>, %arg8: memref<1x8x16x128xbf16, #tpu.memory_space<vmem>>, %arg9: memref<1x1x2x128xf32, #tpu.memory_space<vmem>>, %arg10: memref<10x32x128xbf16, #tpu.memory_space<vmem>>) attributes {dimension_semantics = [#tpu.dimension_semantics<parallel>, #tpu.dimension_semantics<parallel>], iteration_bounds = array<i64: 2, 2>, scalar_prefetch = 0 : i64, scratch_operands = 1 : i64, tpu.core_type = #tpu.core_type<tc>, window_params = [{transform_indices = @transform_0, window_bounds = array<i64: 1, 8, 16, 128>}, {transform_indices = @transform_1, window_bounds = array<i64: 1, 1, 16, 128>}, {transform_indices = @transform_2, window_bounds = array<i64: 1, 1, 16, 128>}, {pipeline_mode = #tpu.pipeline_mode<synchronous>, transform_indices = @transform_3, window_bounds = array<i64: 3, 3, 128, 128>}, {pipeline_mode = #tpu.pipeline_mode<synchronous>, transform_indices = @transform_4, window_bounds = array<i64: 1, 128>}, {pipeline_mode = #tpu.pipeline_mode<synchronous>, transform_indices = @transform_5, window_bounds = array<i64: 1, 128>}, {transform_indices = @transform_6, window_bounds = array<i64: 1, 8, 16, 128>}, {transform_indices = @transform_7, window_bounds = array<i64: 1, 1, 2, 128>}]} {
    %c0 = arith.constant 0 : index
    %c0_0 = arith.constant 0 : index
    %0 = vector.load %arg6[%c0, %c0_0] : memref<1x128xf32, #tpu.memory_space<vmem>>, vector<1x128xf32>
    %1 = vector.shape_cast %0 : vector<1x128xf32> to vector<1x1x128xf32>
    %c0_1 = arith.constant 0 : index
    %c0_2 = arith.constant 0 : index
    %2 = vector.load %arg7[%c0_1, %c0_2] : memref<1x128xf32, #tpu.memory_space<vmem>>, vector<1x128xf32>
    %3 = vector.shape_cast %2 : vector<1x128xf32> to vector<1x1x128xf32>
    %c0_3 = arith.constant 0 : index
    %c0_4 = arith.constant 0 : index
    %c0_5 = arith.constant 0 : index
    %c0_6 = arith.constant 0 : index
    %4 = vector.load %arg2[%c0_3, %c0_4, %c0_5, %c0_6] : memref<1x8x16x128xbf16, #tpu.memory_space<vmem>>, vector<1x8x16x128xbf16>
    %5 = vector.shape_cast %4 : vector<1x8x16x128xbf16> to vector<8x16x128xbf16>
    %6 = arith.extf %5 : vector<8x16x128xbf16> to vector<8x16x128xf32>
    %7 = vector.broadcast %1 : vector<1x1x128xf32> to vector<8x16x128xf32>
    %8 = arith.mulf %6, %7 : vector<8x16x128xf32>
    %9 = vector.broadcast %3 : vector<1x1x128xf32> to vector<8x16x128xf32>
    %10 = arith.addf %8, %9 : vector<8x16x128xf32>
    %cst = arith.constant 0.000000e+00 : f32
    %11 = vector.broadcast %cst : f32 to vector<8x16x128xf32>
    %12 = arith.maximumf %10, %11 : vector<8x16x128xf32>
    %13 = arith.truncf %12 : vector<8x16x128xf32> to vector<8x16x128xbf16>
    %cst_7 = arith.constant 0.000000e+00 : bf16
    %14 = vector.broadcast %cst_7 : bf16 to vector<1x16x128xbf16>
    %c0_i32 = arith.constant 0 : i32
    %15 = arith.cmpi eq, %arg1, %c0_i32 : i32
    %c0_8 = arith.constant 0 : index
    %c0_9 = arith.constant 0 : index
    %c0_10 = arith.constant 0 : index
    %c0_11 = arith.constant 0 : index
    %16 = vector.load %arg3[%c0_8, %c0_9, %c0_10, %c0_11] : memref<1x1x16x128xbf16, #tpu.memory_space<vmem>>, vector<1x1x16x128xbf16>
    %17 = vector.shape_cast %16 : vector<1x1x16x128xbf16> to vector<1x16x128xbf16>
    %18 = arith.extf %17 : vector<1x16x128xbf16> to vector<1x16x128xf32>
    %19 = vector.broadcast %1 : vector<1x1x128xf32> to vector<1x16x128xf32>
    %20 = arith.mulf %18, %19 : vector<1x16x128xf32>
    %21 = vector.broadcast %3 : vector<1x1x128xf32> to vector<1x16x128xf32>
    %22 = arith.addf %20, %21 : vector<1x16x128xf32>
    %cst_12 = arith.constant 0.000000e+00 : f32
    %23 = vector.broadcast %cst_12 : f32 to vector<1x16x128xf32>
    %24 = arith.maximumf %22, %23 : vector<1x16x128xf32>
    %25 = arith.truncf %24 : vector<1x16x128xf32> to vector<1x16x128xbf16>
    %26 = arith.select %15, %14, %25 : vector<1x16x128xbf16>
    %c1_i32 = arith.constant 1 : i32
    %27 = arith.cmpi eq, %arg1, %c1_i32 : i32
    %c0_13 = arith.constant 0 : index
    %c0_14 = arith.constant 0 : index
    %c0_15 = arith.constant 0 : index
    %c0_16 = arith.constant 0 : index
    %28 = vector.load %arg4[%c0_13, %c0_14, %c0_15, %c0_16] : memref<1x1x16x128xbf16, #tpu.memory_space<vmem>>, vector<1x1x16x128xbf16>
    %29 = vector.shape_cast %28 : vector<1x1x16x128xbf16> to vector<1x16x128xbf16>
    %30 = arith.extf %29 : vector<1x16x128xbf16> to vector<1x16x128xf32>
    %31 = vector.broadcast %1 : vector<1x1x128xf32> to vector<1x16x128xf32>
    %32 = arith.mulf %30, %31 : vector<1x16x128xf32>
    %33 = vector.broadcast %3 : vector<1x1x128xf32> to vector<1x16x128xf32>
    %34 = arith.addf %32, %33 : vector<1x16x128xf32>
    %cst_17 = arith.constant 0.000000e+00 : f32
    %35 = vector.broadcast %cst_17 : f32 to vector<1x16x128xf32>
    %36 = arith.maximumf %34, %35 : vector<1x16x128xf32>
    %37 = arith.truncf %36 : vector<1x16x128xf32> to vector<1x16x128xbf16>
    %38 = arith.select %27, %14, %37 : vector<1x16x128xbf16>
    %cst_18 = arith.constant 0.000000e+00 : bf16
    %39 = vector.broadcast %cst_18 : bf16 to vector<10x8x128xbf16>
    %c0_19 = arith.constant 0 : index
    %c0_20 = arith.constant 0 : index
    %c0_21 = arith.constant 0 : index
    %40 = vector.load %arg10[%c0_19, %c0_20, %c0_21] : memref<10x32x128xbf16, #tpu.memory_space<vmem>>, vector<10x8x128xbf16>
    tpu.vector_store %arg10[%c0_19, %c0_20, %c0_21], %39 {strides = array<i32>} : memref<10x32x128xbf16, #tpu.memory_space<vmem>>, vector<10x8x128xbf16>,
    %c0_22 = arith.constant 0 : index
    %c24 = arith.constant 24 : index
    %c0_23 = arith.constant 0 : index
    %41 = vector.load %arg10[%c0_22, %c24, %c0_23] : memref<10x32x128xbf16, #tpu.memory_space<vmem>>, vector<10x8x128xbf16>
    tpu.vector_store %arg10[%c0_22, %c24, %c0_23], %39 {strides = array<i32>} : memref<10x32x128xbf16, #tpu.memory_space<vmem>>, vector<10x8x128xbf16>,
    %c0_24 = arith.constant 0 : index
    %c8 = arith.constant 8 : index
    %c0_25 = arith.constant 0 : index
    %42 = vector.load %arg10[%c0_24, %c8, %c0_25] : memref<10x32x128xbf16, #tpu.memory_space<vmem>>, vector<1x16x128xbf16>
    tpu.vector_store %arg10[%c0_24, %c8, %c0_25], %26 {strides = array<i32>} : memref<10x32x128xbf16, #tpu.memory_space<vmem>>, vector<1x16x128xbf16>,
    %c1 = arith.constant 1 : index
    %c8_26 = arith.constant 8 : index
    %c0_27 = arith.constant 0 : index
    %43 = vector.load %arg10[%c1, %c8_26, %c0_27] : memref<10x32x128xbf16, #tpu.memory_space<vmem>>, vector<8x16x128xbf16>
    tpu.vector_store %arg10[%c1, %c8_26, %c0_27], %13 {strides = array<i32>} : memref<10x32x128xbf16, #tpu.memory_space<vmem>>, vector<8x16x128xbf16>,
    %c9 = arith.constant 9 : index
    %c8_28 = arith.constant 8 : index
    %c0_29 = arith.constant 0 : index
    %44 = vector.load %arg10[%c9, %c8_28, %c0_29] : memref<10x32x128xbf16, #tpu.memory_space<vmem>>, vector<1x16x128xbf16>
    tpu.vector_store %arg10[%c9, %c8_28, %c0_29], %38 {strides = array<i32>} : memref<10x32x128xbf16, #tpu.memory_space<vmem>>, vector<1x16x128xbf16>,
    %cst_30 = arith.constant 0.000000e+00 : f32
    %45 = vector.broadcast %cst_30 : f32 to vector<1x128xf32>
    %cst_31 = arith.constant 0.000000e+00 : f32
    %46 = vector.broadcast %cst_31 : f32 to vector<1x128xf32>
    %c0_32 = arith.constant 0 : index
    %c7 = arith.constant 7 : index
    %c0_33 = arith.constant 0 : index
    %47 = vector.load %arg10[%c0_32, %c7, %c0_33] : memref<10x32x128xbf16, #tpu.memory_space<vmem>>, vector<4x16x128xbf16>
    %48 = vector.shape_cast %47 : vector<4x16x128xbf16> to vector<64x128xbf16>
    %c0_34 = arith.constant 0 : index
    %c0_35 = arith.constant 0 : index
    %c0_36 = arith.constant 0 : index
    %c0_37 = arith.constant 0 : index
    %49 = vector.load %arg5[%c0_34, %c0_35, %c0_36, %c0_37] : memref<3x3x128x128xbf16, #tpu.memory_space<vmem>>, vector<1x1x128x128xbf16>
    %50 = vector.shape_cast %49 : vector<1x1x128x128xbf16> to vector<128x128xbf16>
    %cst_38 = arith.constant dense<0.000000e+00> : vector<64x128xf32>
    %51 = tpu.matmul %48, %50, %cst_38 {dimension_numbers = #tpu.dot_dimension_numbers<[1], [0], [0], [1], [0, 0, 1, 1], [], []>} : vector<64x128xbf16>, vector<128x128xbf16>, vector<64x128xf32> -> vector<64x128xf32>
    %c0_39 = arith.constant 0 : index
    %c8_40 = arith.constant 8 : index
    %c0_41 = arith.constant 0 : index
    %52 = vector.load %arg10[%c0_39, %c8_40, %c0_41] : memref<10x32x128xbf16, #tpu.memory_space<vmem>>, vector<4x16x128xbf16>
    %53 = vector.shape_cast %52 : vector<4x16x128xbf16> to vector<64x128xbf16>
    %c0_42 = arith.constant 0 : index
    %c1_43 = arith.constant 1 : index
    %c0_44 = arith.constant 0 : index
    %c0_45 = arith.constant 0 : index
    %54 = vector.load %arg5[%c0_42, %c1_43, %c0_44, %c0_45] : memref<3x3x128x128xbf16, #tpu.memory_space<vmem>>, vector<1x1x128x128xbf16>
    %55 = vector.shape_cast %54 : vector<1x1x128x128xbf16> to vector<128x128xbf16>
    %cst_46 = arith.constant dense<0.000000e+00> : vector<64x128xf32>
    %56 = tpu.matmul %53, %55, %cst_46 {dimension_numbers = #tpu.dot_dimension_numbers<[1], [0], [0], [1], [0, 0, 1, 1], [], []>} : vector<64x128xbf16>, vector<128x128xbf16>, vector<64x128xf32> -> vector<64x128xf32>
    %57 = arith.addf %51, %56 : vector<64x128xf32>
    %c0_47 = arith.constant 0 : index
    %c9_48 = arith.constant 9 : index
    %c0_49 = arith.constant 0 : index
    %58 = vector.load %arg10[%c0_47, %c9_48, %c0_49] : memref<10x32x128xbf16, #tpu.memory_space<vmem>>, vector<4x16x128xbf16>
    %59 = vector.shape_cast %58 : vector<4x16x128xbf16> to vector<64x128xbf16>
    %c0_50 = arith.constant 0 : index
    %c2 = arith.constant 2 : index
    %c0_51 = arith.constant 0 : index
    %c0_52 = arith.constant 0 : index
    %60 = vector.load %arg5[%c0_50, %c2, %c0_51, %c0_52] : memref<3x3x128x128xbf16, #tpu.memory_space<vmem>>, vector<1x1x128x128xbf16>
    %61 = vector.shape_cast %60 : vector<1x1x128x128xbf16> to vector<128x128xbf16>
    %cst_53 = arith.constant dense<0.000000e+00> : vector<64x128xf32>
    %62 = tpu.matmul %59, %61, %cst_53 {dimension_numbers = #tpu.dot_dimension_numbers<[1], [0], [0], [1], [0, 0, 1, 1], [], []>} : vector<64x128xbf16>, vector<128x128xbf16>, vector<64x128xf32> -> vector<64x128xf32>
    %63 = arith.addf %57, %62 : vector<64x128xf32>
    %c1_54 = arith.constant 1 : index
    %c7_55 = arith.constant 7 : index
    %c0_56 = arith.constant 0 : index
    %64 = vector.load %arg10[%c1_54, %c7_55, %c0_56] : memref<10x32x128xbf16, #tpu.memory_space<vmem>>, vector<4x16x128xbf16>
    %65 = vector.shape_cast %64 : vector<4x16x128xbf16> to vector<64x128xbf16>
    %c1_57 = arith.constant 1 : index
    %c0_58 = arith.constant 0 : index
    %c0_59 = arith.constant 0 : index
    %c0_60 = arith.constant 0 : index
    %66 = vector.load %arg5[%c1_57, %c0_58, %c0_59, %c0_60] : memref<3x3x128x128xbf16, #tpu.memory_space<vmem>>, vector<1x1x128x128xbf16>
    %67 = vector.shape_cast %66 : vector<1x1x128x128xbf16> to vector<128x128xbf16>
    %cst_61 = arith.constant dense<0.000000e+00> : vector<64x128xf32>
    %68 = tpu.matmul %65, %67, %cst_61 {dimension_numbers = #tpu.dot_dimension_numbers<[1], [0], [0], [1], [0, 0, 1, 1], [], []>} : vector<64x128xbf16>, vector<128x128xbf16>, vector<64x128xf32> -> vector<64x128xf32>
    %69 = arith.addf %63, %68 : vector<64x128xf32>
    %c1_62 = arith.constant 1 : index
    %c8_63 = arith.constant 8 : index
    %c0_64 = arith.constant 0 : index
    %70 = vector.load %arg10[%c1_62, %c8_63, %c0_64] : memref<10x32x128xbf16, #tpu.memory_space<vmem>>, vector<4x16x128xbf16>
    %71 = vector.shape_cast %70 : vector<4x16x128xbf16> to vector<64x128xbf16>
    %c1_65 = arith.constant 1 : index
    %c1_66 = arith.constant 1 : index
    %c0_67 = arith.constant 0 : index
    %c0_68 = arith.constant 0 : index
    %72 = vector.load %arg5[%c1_65, %c1_66, %c0_67, %c0_68] : memref<3x3x128x128xbf16, #tpu.memory_space<vmem>>, vector<1x1x128x128xbf16>
    %73 = vector.shape_cast %72 : vector<1x1x128x128xbf16> to vector<128x128xbf16>
    %cst_69 = arith.constant dense<0.000000e+00> : vector<64x128xf32>
    %74 = tpu.matmul %71, %73, %cst_69 {dimension_numbers = #tpu.dot_dimension_numbers<[1], [0], [0], [1], [0, 0, 1, 1], [], []>} : vector<64x128xbf16>, vector<128x128xbf16>, vector<64x128xf32> -> vector<64x128xf32>
    %75 = arith.addf %69, %74 : vector<64x128xf32>
    %c1_70 = arith.constant 1 : index
    %c9_71 = arith.constant 9 : index
    %c0_72 = arith.constant 0 : index
    %76 = vector.load %arg10[%c1_70, %c9_71, %c0_72] : memref<10x32x128xbf16, #tpu.memory_space<vmem>>, vector<4x16x128xbf16>
    %77 = vector.shape_cast %76 : vector<4x16x128xbf16> to vector<64x128xbf16>
    %c1_73 = arith.constant 1 : index
    %c2_74 = arith.constant 2 : index
    %c0_75 = arith.constant 0 : index
    %c0_76 = arith.constant 0 : index
    %78 = vector.load %arg5[%c1_73, %c2_74, %c0_75, %c0_76] : memref<3x3x128x128xbf16, #tpu.memory_space<vmem>>, vector<1x1x128x128xbf16>
    %79 = vector.shape_cast %78 : vector<1x1x128x128xbf16> to vector<128x128xbf16>
    %cst_77 = arith.constant dense<0.000000e+00> : vector<64x128xf32>
    %80 = tpu.matmul %77, %79, %cst_77 {dimension_numbers = #tpu.dot_dimension_numbers<[1], [0], [0], [1], [0, 0, 1, 1], [], []>} : vector<64x128xbf16>, vector<128x128xbf16>, vector<64x128xf32> -> vector<64x128xf32>
    %81 = arith.addf %75, %80 : vector<64x128xf32>
    %c2_78 = arith.constant 2 : index
    %c7_79 = arith.constant 7 : index
    %c0_80 = arith.constant 0 : index
    %82 = vector.load %arg10[%c2_78, %c7_79, %c0_80] : memref<10x32x128xbf16, #tpu.memory_space<vmem>>, vector<4x16x128xbf16>
    %83 = vector.shape_cast %82 : vector<4x16x128xbf16> to vector<64x128xbf16>
    %c2_81 = arith.constant 2 : index
    %c0_82 = arith.constant 0 : index
    %c0_83 = arith.constant 0 : index
    %c0_84 = arith.constant 0 : index
    %84 = vector.load %arg5[%c2_81, %c0_82, %c0_83, %c0_84] : memref<3x3x128x128xbf16, #tpu.memory_space<vmem>>, vector<1x1x128x128xbf16>
    %85 = vector.shape_cast %84 : vector<1x1x128x128xbf16> to vector<128x128xbf16>
    %cst_85 = arith.constant dense<0.000000e+00> : vector<64x128xf32>
    %86 = tpu.matmul %83, %85, %cst_85 {dimension_numbers = #tpu.dot_dimension_numbers<[1], [0], [0], [1], [0, 0, 1, 1], [], []>} : vector<64x128xbf16>, vector<128x128xbf16>, vector<64x128xf32> -> vector<64x128xf32>
    %87 = arith.addf %81, %86 : vector<64x128xf32>
    %c2_86 = arith.constant 2 : index
    %c8_87 = arith.constant 8 : index
    %c0_88 = arith.constant 0 : index
    %88 = vector.load %arg10[%c2_86, %c8_87, %c0_88] : memref<10x32x128xbf16, #tpu.memory_space<vmem>>, vector<4x16x128xbf16>
    %89 = vector.shape_cast %88 : vector<4x16x128xbf16> to vector<64x128xbf16>
    %c2_89 = arith.constant 2 : index
    %c1_90 = arith.constant 1 : index
    %c0_91 = arith.constant 0 : index
    %c0_92 = arith.constant 0 : index
    %90 = vector.load %arg5[%c2_89, %c1_90, %c0_91, %c0_92] : memref<3x3x128x128xbf16, #tpu.memory_space<vmem>>, vector<1x1x128x128xbf16>
    %91 = vector.shape_cast %90 : vector<1x1x128x128xbf16> to vector<128x128xbf16>
    %cst_93 = arith.constant dense<0.000000e+00> : vector<64x128xf32>
    %92 = tpu.matmul %89, %91, %cst_93 {dimension_numbers = #tpu.dot_dimension_numbers<[1], [0], [0], [1], [0, 0, 1, 1], [], []>} : vector<64x128xbf16>, vector<128x128xbf16>, vector<64x128xf32> -> vector<64x128xf32>
    %93 = arith.addf %87, %92 : vector<64x128xf32>
    %c2_94 = arith.constant 2 : index
    %c9_95 = arith.constant 9 : index
    %c0_96 = arith.constant 0 : index
    %94 = vector.load %arg10[%c2_94, %c9_95, %c0_96] : memref<10x32x128xbf16, #tpu.memory_space<vmem>>, vector<4x16x128xbf16>
    %95 = vector.shape_cast %94 : vector<4x16x128xbf16> to vector<64x128xbf16>
    %c2_97 = arith.constant 2 : index
    %c2_98 = arith.constant 2 : index
    %c0_99 = arith.constant 0 : index
    %c0_100 = arith.constant 0 : index
    %96 = vector.load %arg5[%c2_97, %c2_98, %c0_99, %c0_100] : memref<3x3x128x128xbf16, #tpu.memory_space<vmem>>, vector<1x1x128x128xbf16>
    %97 = vector.shape_cast %96 : vector<1x1x128x128xbf16> to vector<128x128xbf16>
    %cst_101 = arith.constant dense<0.000000e+00> : vector<64x128xf32>
    %98 = tpu.matmul %95, %97, %cst_101 {dimension_numbers = #tpu.dot_dimension_numbers<[1], [0], [0], [1], [0, 0, 1, 1], [], []>} : vector<64x128xbf16>, vector<128x128xbf16>, vector<64x128xf32> -> vector<64x128xf32>
    %99 = arith.addf %93, %98 : vector<64x128xf32>
    %100 = arith.truncf %99 : vector<64x128xf32> to vector<64x128xbf16>
    %101 = vector.shape_cast %100 : vector<64x128xbf16> to vector<1x4x16x128xbf16>
    %c0_102 = arith.constant 0 : index
    %c0_103 = arith.constant 0 : index
    %c0_104 = arith.constant 0 : index
    %c0_105 = arith.constant 0 : index
    %102 = vector.load %arg8[%c0_102, %c0_103, %c0_104, %c0_105] : memref<1x8x16x128xbf16, #tpu.memory_space<vmem>>, vector<1x4x16x128xbf16>
    tpu.vector_store %arg8[%c0_102, %c0_103, %c0_104, %c0_105], %101 {strides = array<i32>} : memref<1x8x16x128xbf16, #tpu.memory_space<vmem>>, vector<1x4x16x128xbf16>,
    %cst_106 = arith.constant dense<0.000000e+00> : vector<128xf32>
    %103 = vector.multi_reduction <add>, %99, %cst_106 [0] : vector<64x128xf32> to vector<128xf32>
    %104 = vector.shape_cast %103 : vector<128xf32> to vector<1x128xf32>
    %105 = arith.addf %45, %104 : vector<1x128xf32>
    %106 = arith.mulf %99, %99 : vector<64x128xf32>
    %cst_107 = arith.constant dense<0.000000e+00> : vector<128xf32>
    %107 = vector.multi_reduction <add>, %106, %cst_107 [0] : vector<64x128xf32> to vector<128xf32>
    %108 = vector.shape_cast %107 : vector<128xf32> to vector<1x128xf32>
    %109 = arith.addf %46, %108 : vector<1x128xf32>
    %c4 = arith.constant 4 : index
    %c7_108 = arith.constant 7 : index
    %c0_109 = arith.constant 0 : index
    %110 = vector.load %arg10[%c4, %c7_108, %c0_109] : memref<10x32x128xbf16, #tpu.memory_space<vmem>>, vector<4x16x128xbf16>
    %111 = vector.shape_cast %110 : vector<4x16x128xbf16> to vector<64x128xbf16>
    %c0_110 = arith.constant 0 : index
    %c0_111 = arith.constant 0 : index
    %c0_112 = arith.constant 0 : index
    %c0_113 = arith.constant 0 : index
    %112 = vector.load %arg5[%c0_110, %c0_111, %c0_112, %c0_113] : memref<3x3x128x128xbf16, #tpu.memory_space<vmem>>, vector<1x1x128x128xbf16>
    %113 = vector.shape_cast %112 : vector<1x1x128x128xbf16> to vector<128x128xbf16>
    %cst_114 = arith.constant dense<0.000000e+00> : vector<64x128xf32>
    %114 = tpu.matmul %111, %113, %cst_114 {dimension_numbers = #tpu.dot_dimension_numbers<[1], [0], [0], [1], [0, 0, 1, 1], [], []>} : vector<64x128xbf16>, vector<128x128xbf16>, vector<64x128xf32> -> vector<64x128xf32>
    %c4_115 = arith.constant 4 : index
    %c8_116 = arith.constant 8 : index
    %c0_117 = arith.constant 0 : index
    %115 = vector.load %arg10[%c4_115, %c8_116, %c0_117] : memref<10x32x128xbf16, #tpu.memory_space<vmem>>, vector<4x16x128xbf16>
    %116 = vector.shape_cast %115 : vector<4x16x128xbf16> to vector<64x128xbf16>
    %c0_118 = arith.constant 0 : index
    %c1_119 = arith.constant 1 : index
    %c0_120 = arith.constant 0 : index
    %c0_121 = arith.constant 0 : index
    %117 = vector.load %arg5[%c0_118, %c1_119, %c0_120, %c0_121] : memref<3x3x128x128xbf16, #tpu.memory_space<vmem>>, vector<1x1x128x128xbf16>
    %118 = vector.shape_cast %117 : vector<1x1x128x128xbf16> to vector<128x128xbf16>
    %cst_122 = arith.constant dense<0.000000e+00> : vector<64x128xf32>
    %119 = tpu.matmul %116, %118, %cst_122 {dimension_numbers = #tpu.dot_dimension_numbers<[1], [0], [0], [1], [0, 0, 1, 1], [], []>} : vector<64x128xbf16>, vector<128x128xbf16>, vector<64x128xf32> -> vector<64x128xf32>
    %120 = arith.addf %114, %119 : vector<64x128xf32>
    %c4_123 = arith.constant 4 : index
    %c9_124 = arith.constant 9 : index
    %c0_125 = arith.constant 0 : index
    %121 = vector.load %arg10[%c4_123, %c9_124, %c0_125] : memref<10x32x128xbf16, #tpu.memory_space<vmem>>, vector<4x16x128xbf16>
    %122 = vector.shape_cast %121 : vector<4x16x128xbf16> to vector<64x128xbf16>
    %c0_126 = arith.constant 0 : index
    %c2_127 = arith.constant 2 : index
    %c0_128 = arith.constant 0 : index
    %c0_129 = arith.constant 0 : index
    %123 = vector.load %arg5[%c0_126, %c2_127, %c0_128, %c0_129] : memref<3x3x128x128xbf16, #tpu.memory_space<vmem>>, vector<1x1x128x128xbf16>
    %124 = vector.shape_cast %123 : vector<1x1x128x128xbf16> to vector<128x128xbf16>
    %cst_130 = arith.constant dense<0.000000e+00> : vector<64x128xf32>
    %125 = tpu.matmul %122, %124, %cst_130 {dimension_numbers = #tpu.dot_dimension_numbers<[1], [0], [0], [1], [0, 0, 1, 1], [], []>} : vector<64x128xbf16>, vector<128x128xbf16>, vector<64x128xf32> -> vector<64x128xf32>
    %126 = arith.addf %120, %125 : vector<64x128xf32>
    %c5 = arith.constant 5 : index
    %c7_131 = arith.constant 7 : index
    %c0_132 = arith.constant 0 : index
    %127 = vector.load %arg10[%c5, %c7_131, %c0_132] : memref<10x32x128xbf16, #tpu.memory_space<vmem>>, vector<4x16x128xbf16>
    %128 = vector.shape_cast %127 : vector<4x16x128xbf16> to vector<64x128xbf16>
    %c1_133 = arith.constant 1 : index
    %c0_134 = arith.constant 0 : index
    %c0_135 = arith.constant 0 : index
    %c0_136 = arith.constant 0 : index
    %129 = vector.load %arg5[%c1_133, %c0_134, %c0_135, %c0_136] : memref<3x3x128x128xbf16, #tpu.memory_space<vmem>>, vector<1x1x128x128xbf16>
    %130 = vector.shape_cast %129 : vector<1x1x128x128xbf16> to vector<128x128xbf16>
    %cst_137 = arith.constant dense<0.000000e+00> : vector<64x128xf32>
    %131 = tpu.matmul %128, %130, %cst_137 {dimension_numbers = #tpu.dot_dimension_numbers<[1], [0], [0], [1], [0, 0, 1, 1], [], []>} : vector<64x128xbf16>, vector<128x128xbf16>, vector<64x128xf32> -> vector<64x128xf32>
    %132 = arith.addf %126, %131 : vector<64x128xf32>
    %c5_138 = arith.constant 5 : index
    %c8_139 = arith.constant 8 : index
    %c0_140 = arith.constant 0 : index
    %133 = vector.load %arg10[%c5_138, %c8_139, %c0_140] : memref<10x32x128xbf16, #tpu.memory_space<vmem>>, vector<4x16x128xbf16>
    %134 = vector.shape_cast %133 : vector<4x16x128xbf16> to vector<64x128xbf16>
    %c1_141 = arith.constant 1 : index
    %c1_142 = arith.constant 1 : index
    %c0_143 = arith.constant 0 : index
    %c0_144 = arith.constant 0 : index
    %135 = vector.load %arg5[%c1_141, %c1_142, %c0_143, %c0_144] : memref<3x3x128x128xbf16, #tpu.memory_space<vmem>>, vector<1x1x128x128xbf16>
    %136 = vector.shape_cast %135 : vector<1x1x128x128xbf16> to vector<128x128xbf16>
    %cst_145 = arith.constant dense<0.000000e+00> : vector<64x128xf32>
    %137 = tpu.matmul %134, %136, %cst_145 {dimension_numbers = #tpu.dot_dimension_numbers<[1], [0], [0], [1], [0, 0, 1, 1], [], []>} : vector<64x128xbf16>, vector<128x128xbf16>, vector<64x128xf32> -> vector<64x128xf32>
    %138 = arith.addf %132, %137 : vector<64x128xf32>
    %c5_146 = arith.constant 5 : index
    %c9_147 = arith.constant 9 : index
    %c0_148 = arith.constant 0 : index
    %139 = vector.load %arg10[%c5_146, %c9_147, %c0_148] : memref<10x32x128xbf16, #tpu.memory_space<vmem>>, vector<4x16x128xbf16>
    %140 = vector.shape_cast %139 : vector<4x16x128xbf16> to vector<64x128xbf16>
    %c1_149 = arith.constant 1 : index
    %c2_150 = arith.constant 2 : index
    %c0_151 = arith.constant 0 : index
    %c0_152 = arith.constant 0 : index
    %141 = vector.load %arg5[%c1_149, %c2_150, %c0_151, %c0_152] : memref<3x3x128x128xbf16, #tpu.memory_space<vmem>>, vector<1x1x128x128xbf16>
    %142 = vector.shape_cast %141 : vector<1x1x128x128xbf16> to vector<128x128xbf16>
    %cst_153 = arith.constant dense<0.000000e+00> : vector<64x128xf32>
    %143 = tpu.matmul %140, %142, %cst_153 {dimension_numbers = #tpu.dot_dimension_numbers<[1], [0], [0], [1], [0, 0, 1, 1], [], []>} : vector<64x128xbf16>, vector<128x128xbf16>, vector<64x128xf32> -> vector<64x128xf32>
    %144 = arith.addf %138, %143 : vector<64x128xf32>
    %c6 = arith.constant 6 : index
    %c7_154 = arith.constant 7 : index
    %c0_155 = arith.constant 0 : index
    %145 = vector.load %arg10[%c6, %c7_154, %c0_155] : memref<10x32x128xbf16, #tpu.memory_space<vmem>>, vector<4x16x128xbf16>
    %146 = vector.shape_cast %145 : vector<4x16x128xbf16> to vector<64x128xbf16>
    %c2_156 = arith.constant 2 : index
    %c0_157 = arith.constant 0 : index
    %c0_158 = arith.constant 0 : index
    %c0_159 = arith.constant 0 : index
    %147 = vector.load %arg5[%c2_156, %c0_157, %c0_158, %c0_159] : memref<3x3x128x128xbf16, #tpu.memory_space<vmem>>, vector<1x1x128x128xbf16>
    %148 = vector.shape_cast %147 : vector<1x1x128x128xbf16> to vector<128x128xbf16>
    %cst_160 = arith.constant dense<0.000000e+00> : vector<64x128xf32>
    %149 = tpu.matmul %146, %148, %cst_160 {dimension_numbers = #tpu.dot_dimension_numbers<[1], [0], [0], [1], [0, 0, 1, 1], [], []>} : vector<64x128xbf16>, vector<128x128xbf16>, vector<64x128xf32> -> vector<64x128xf32>
    %150 = arith.addf %144, %149 : vector<64x128xf32>
    %c6_161 = arith.constant 6 : index
    %c8_162 = arith.constant 8 : index
    %c0_163 = arith.constant 0 : index
    %151 = vector.load %arg10[%c6_161, %c8_162, %c0_163] : memref<10x32x128xbf16, #tpu.memory_space<vmem>>, vector<4x16x128xbf16>
    %152 = vector.shape_cast %151 : vector<4x16x128xbf16> to vector<64x128xbf16>
    %c2_164 = arith.constant 2 : index
    %c1_165 = arith.constant 1 : index
    %c0_166 = arith.constant 0 : index
    %c0_167 = arith.constant 0 : index
    %153 = vector.load %arg5[%c2_164, %c1_165, %c0_166, %c0_167] : memref<3x3x128x128xbf16, #tpu.memory_space<vmem>>, vector<1x1x128x128xbf16>
    %154 = vector.shape_cast %153 : vector<1x1x128x128xbf16> to vector<128x128xbf16>
    %cst_168 = arith.constant dense<0.000000e+00> : vector<64x128xf32>
    %155 = tpu.matmul %152, %154, %cst_168 {dimension_numbers = #tpu.dot_dimension_numbers<[1], [0], [0], [1], [0, 0, 1, 1], [], []>} : vector<64x128xbf16>, vector<128x128xbf16>, vector<64x128xf32> -> vector<64x128xf32>
    %156 = arith.addf %150, %155 : vector<64x128xf32>
    %c6_169 = arith.constant 6 : index
    %c9_170 = arith.constant 9 : index
    %c0_171 = arith.constant 0 : index
    %157 = vector.load %arg10[%c6_169, %c9_170, %c0_171] : memref<10x32x128xbf16, #tpu.memory_space<vmem>>, vector<4x16x128xbf16>
    %158 = vector.shape_cast %157 : vector<4x16x128xbf16> to vector<64x128xbf16>
    %c2_172 = arith.constant 2 : index
    %c2_173 = arith.constant 2 : index
    %c0_174 = arith.constant 0 : index
    %c0_175 = arith.constant 0 : index
    %159 = vector.load %arg5[%c2_172, %c2_173, %c0_174, %c0_175] : memref<3x3x128x128xbf16, #tpu.memory_space<vmem>>, vector<1x1x128x128xbf16>
    %160 = vector.shape_cast %159 : vector<1x1x128x128xbf16> to vector<128x128xbf16>
    %cst_176 = arith.constant dense<0.000000e+00> : vector<64x128xf32>
    %161 = tpu.matmul %158, %160, %cst_176 {dimension_numbers = #tpu.dot_dimension_numbers<[1], [0], [0], [1], [0, 0, 1, 1], [], []>} : vector<64x128xbf16>, vector<128x128xbf16>, vector<64x128xf32> -> vector<64x128xf32>
    %162 = arith.addf %156, %161 : vector<64x128xf32>
    %163 = arith.truncf %162 : vector<64x128xf32> to vector<64x128xbf16>
    %164 = vector.shape_cast %163 : vector<64x128xbf16> to vector<1x4x16x128xbf16>
    %c0_177 = arith.constant 0 : index
    %c4_178 = arith.constant 4 : index
    %c0_179 = arith.constant 0 : index
    %c0_180 = arith.constant 0 : index
    %165 = vector.load %arg8[%c0_177, %c4_178, %c0_179, %c0_180] : memref<1x8x16x128xbf16, #tpu.memory_space<vmem>>, vector<1x4x16x128xbf16>
    tpu.vector_store %arg8[%c0_177, %c4_178, %c0_179, %c0_180], %164 {strides = array<i32>} : memref<1x8x16x128xbf16, #tpu.memory_space<vmem>>, vector<1x4x16x128xbf16>,
    %cst_181 = arith.constant dense<0.000000e+00> : vector<128xf32>
    %166 = vector.multi_reduction <add>, %162, %cst_181 [0] : vector<64x128xf32> to vector<128xf32>
    %167 = vector.shape_cast %166 : vector<128xf32> to vector<1x128xf32>
    %168 = arith.addf %105, %167 : vector<1x128xf32>
    %169 = arith.mulf %162, %162 : vector<64x128xf32>
    %cst_182 = arith.constant dense<0.000000e+00> : vector<128xf32>
    %170 = vector.multi_reduction <add>, %169, %cst_182 [0] : vector<64x128xf32> to vector<128xf32>
    %171 = vector.shape_cast %170 : vector<128xf32> to vector<1x128xf32>
    %172 = arith.addf %109, %171 : vector<1x128xf32>
    %173 = tpu.concatenate %168, %172 in 0 : vector<1x128xf32>, vector<1x128xf32> -> vector<2x128xf32>
    %174 = vector.shape_cast %173 : vector<2x128xf32> to vector<1x1x2x128xf32>
    %c0_183 = arith.constant 0 : index
    %c0_184 = arith.constant 0 : index
    %c0_185 = arith.constant 0 : index
    %c0_186 = arith.constant 0 : index
    %175 = vector.load %arg9[%c0_183, %c0_184, %c0_185, %c0_186] : memref<1x1x2x128xf32, #tpu.memory_space<vmem>>, vector<1x1x2x128xf32>
    tpu.vector_store %arg9[%c0_183, %c0_184, %c0_185, %c0_186], %174 {strides = array<i32>} : memref<1x1x2x128xf32, #tpu.memory_space<vmem>>, vector<1x1x2x128xf32>,
    return
  }
  func.func @transform_0(%arg0: i32, %arg1: i32) -> (i32, i32, i32, i32) {
    %c0_i32 = arith.constant 0 : i32
    %c0_i32_0 = arith.constant 0 : i32
    %c0_i32_1 = arith.constant 0 : i32
    return %arg0, %arg1, %c0_i32, %c0_i32_0 : i32, i32, i32, i32
  }
  func.func @transform_1(%arg0: i32, %arg1: i32) -> (i32, i32, i32, i32) {
    %c0_i32 = arith.constant 0 : i32
    %0 = arith.cmpi sgt, %arg1, %c0_i32 : i32
    %c8_i32 = arith.constant 8 : i32
    %1 = arith.muli %arg1, %c8_i32 : i32
    %c1_i32 = arith.constant 1 : i32
    %2 = arith.subi %1, %c1_i32 : i32
    %c0_i32_0 = arith.constant 0 : i32
    %3 = arith.select %0, %2, %c0_i32_0 : i32
    %c0_i32_1 = arith.constant 0 : i32
    %c0_i32_2 = arith.constant 0 : i32
    %c0_i32_3 = arith.constant 0 : i32
    return %arg0, %3, %c0_i32_1, %c0_i32_2 : i32, i32, i32, i32
  }
  func.func @transform_2(%arg0: i32, %arg1: i32) -> (i32, i32, i32, i32) {
    %c1_i32 = arith.constant 1 : i32
    %0 = arith.cmpi slt, %arg1, %c1_i32 : i32
    %c1_i32_0 = arith.constant 1 : i32
    %1 = arith.addi %arg1, %c1_i32_0 : i32
    %c8_i32 = arith.constant 8 : i32
    %2 = arith.muli %1, %c8_i32 : i32
    %c15_i32 = arith.constant 15 : i32
    %3 = arith.select %0, %2, %c15_i32 : i32
    %c0_i32 = arith.constant 0 : i32
    %c0_i32_1 = arith.constant 0 : i32
    %c0_i32_2 = arith.constant 0 : i32
    return %arg0, %3, %c0_i32, %c0_i32_1 : i32, i32, i32, i32
  }
  func.func @transform_3(%arg0: i32, %arg1: i32) -> (i32, i32, i32, i32) {
    %c0_i32 = arith.constant 0 : i32
    %c0_i32_0 = arith.constant 0 : i32
    %c0_i32_1 = arith.constant 0 : i32
    %c0_i32_2 = arith.constant 0 : i32
    %c0_i32_3 = arith.constant 0 : i32
    return %c0_i32, %c0_i32_0, %c0_i32_1, %c0_i32_2 : i32, i32, i32, i32
  }
  func.func @transform_4(%arg0: i32, %arg1: i32) -> (i32, i32) {
    %c0_i32 = arith.constant 0 : i32
    %c0_i32_0 = arith.constant 0 : i32
    %c0_i32_1 = arith.constant 0 : i32
    return %c0_i32, %c0_i32_0 : i32, i32
  }
  func.func @transform_5(%arg0: i32, %arg1: i32) -> (i32, i32) {
    %c0_i32 = arith.constant 0 : i32
    %c0_i32_0 = arith.constant 0 : i32
    %c0_i32_1 = arith.constant 0 : i32
    return %c0_i32, %c0_i32_0 : i32, i32
  }
  func.func @transform_6(%arg0: i32, %arg1: i32) -> (i32, i32, i32, i32) {
    %c0_i32 = arith.constant 0 : i32
    %c0_i32_0 = arith.constant 0 : i32
    %c0_i32_1 = arith.constant 0 : i32
    return %arg0, %arg1, %c0_i32, %c0_i32_0 : i32, i32, i32, i32
  }
  func.func @transform_7(%arg0: i32, %arg1: i32) -> (i32, i32, i32, i32) {
    %c0_i32 = arith.constant 0 : i32
    %c0_i32_0 = arith.constant 0 : i32
    %c0_i32_1 = arith.constant 0 : i32
    return %arg0, %arg1, %c0_i32, %c0_i32_0 : i32, i32, i32, i32
  }
}

module attributes {stable_mosaic.version = 11 : i64} {
  func.func @_conv3_kernel(%arg0: i32, %arg1: memref<2x16x16x128xbf16, #tpu.memory_space<vmem>>, %arg2: memref<128x128xbf16, #tpu.memory_space<vmem>>, %arg3: memref<1x128xf32, #tpu.memory_space<vmem>>, %arg4: memref<1x128xf32, #tpu.memory_space<vmem>>, %arg5: memref<2x16x16x128xbf16, #tpu.memory_space<vmem>>, %arg6: memref<1x2x128xf32, #tpu.memory_space<vmem>>) attributes {dimension_semantics = [#tpu.dimension_semantics<parallel>], iteration_bounds = array<i64: 1>, scalar_prefetch = 0 : i64, scratch_operands = 0 : i64, tpu.core_type = #tpu.core_type<tc>, window_params = [{transform_indices = @transform_0, window_bounds = array<i64: 2, 16, 16, 128>}, {pipeline_mode = #tpu.pipeline_mode<synchronous>, transform_indices = @transform_1, window_bounds = array<i64: 128, 128>}, {pipeline_mode = #tpu.pipeline_mode<synchronous>, transform_indices = @transform_2, window_bounds = array<i64: 1, 128>}, {pipeline_mode = #tpu.pipeline_mode<synchronous>, transform_indices = @transform_3, window_bounds = array<i64: 1, 128>}, {transform_indices = @transform_4, window_bounds = array<i64: 2, 16, 16, 128>}, {transform_indices = @transform_5, window_bounds = array<i64: 1, 2, 128>}]} {
    %c0 = arith.constant 0 : index
    %c0_0 = arith.constant 0 : index
    %c0_1 = arith.constant 0 : index
    %c0_2 = arith.constant 0 : index
    %0 = vector.load %arg1[%c0, %c0_0, %c0_1, %c0_2] : memref<2x16x16x128xbf16, #tpu.memory_space<vmem>>, vector<2x16x16x128xbf16>
    %1 = vector.shape_cast %0 : vector<2x16x16x128xbf16> to vector<512x128xbf16>
    %2 = arith.extf %1 : vector<512x128xbf16> to vector<512x128xf32>
    %c0_3 = arith.constant 0 : index
    %c0_4 = arith.constant 0 : index
    %3 = vector.load %arg3[%c0_3, %c0_4] : memref<1x128xf32, #tpu.memory_space<vmem>>, vector<1x128xf32>
    %4 = vector.broadcast %3 : vector<1x128xf32> to vector<512x128xf32>
    %5 = arith.mulf %2, %4 : vector<512x128xf32>
    %c0_5 = arith.constant 0 : index
    %c0_6 = arith.constant 0 : index
    %6 = vector.load %arg4[%c0_5, %c0_6] : memref<1x128xf32, #tpu.memory_space<vmem>>, vector<1x128xf32>
    %7 = vector.broadcast %6 : vector<1x128xf32> to vector<512x128xf32>
    %8 = arith.addf %5, %7 : vector<512x128xf32>
    %cst = arith.constant 0.000000e+00 : f32
    %9 = vector.broadcast %cst : f32 to vector<512x128xf32>
    %10 = arith.maximumf %8, %9 : vector<512x128xf32>
    %11 = arith.truncf %10 : vector<512x128xf32> to vector<512x128xbf16>
    %c0_7 = arith.constant 0 : index
    %c0_8 = arith.constant 0 : index
    %12 = vector.load %arg2[%c0_7, %c0_8] : memref<128x128xbf16, #tpu.memory_space<vmem>>, vector<128x128xbf16>
    %cst_9 = arith.constant dense<0.000000e+00> : vector<512x128xf32>
    %13 = tpu.matmul %11, %12, %cst_9 {dimension_numbers = #tpu.dot_dimension_numbers<[1], [0], [0], [1], [0, 0, 1, 1], [], []>} : vector<512x128xbf16>, vector<128x128xbf16>, vector<512x128xf32> -> vector<512x128xf32>
    %14 = vector.shape_cast %13 : vector<512x128xf32> to vector<2x16x16x128xf32>
    %15 = arith.truncf %14 : vector<2x16x16x128xf32> to vector<2x16x16x128xbf16>
    %c0_10 = arith.constant 0 : index
    %c0_11 = arith.constant 0 : index
    %c0_12 = arith.constant 0 : index
    %c0_13 = arith.constant 0 : index
    %16 = vector.load %arg5[%c0_10, %c0_11, %c0_12, %c0_13] : memref<2x16x16x128xbf16, #tpu.memory_space<vmem>>, vector<2x16x16x128xbf16>
    tpu.vector_store %arg5[%c0_10, %c0_11, %c0_12, %c0_13], %15 {strides = array<i32>} : memref<2x16x16x128xbf16, #tpu.memory_space<vmem>>, vector<2x16x16x128xbf16>,
    %cst_14 = arith.constant dense<0.000000e+00> : vector<128xf32>
    %17 = vector.multi_reduction <add>, %13, %cst_14 [0] : vector<512x128xf32> to vector<128xf32>
    %18 = vector.shape_cast %17 : vector<128xf32> to vector<1x128xf32>
    %19 = arith.mulf %13, %13 : vector<512x128xf32>
    %cst_15 = arith.constant dense<0.000000e+00> : vector<128xf32>
    %20 = vector.multi_reduction <add>, %19, %cst_15 [0] : vector<512x128xf32> to vector<128xf32>
    %21 = vector.shape_cast %20 : vector<128xf32> to vector<1x128xf32>
    %22 = tpu.concatenate %18, %21 in 0 : vector<1x128xf32>, vector<1x128xf32> -> vector<2x128xf32>
    %23 = vector.shape_cast %22 : vector<2x128xf32> to vector<1x2x128xf32>
    %c0_16 = arith.constant 0 : index
    %c0_17 = arith.constant 0 : index
    %c0_18 = arith.constant 0 : index
    %24 = vector.load %arg6[%c0_16, %c0_17, %c0_18] : memref<1x2x128xf32, #tpu.memory_space<vmem>>, vector<1x2x128xf32>
    tpu.vector_store %arg6[%c0_16, %c0_17, %c0_18], %23 {strides = array<i32>} : memref<1x2x128xf32, #tpu.memory_space<vmem>>, vector<1x2x128xf32>,
    return
  }
  func.func @transform_0(%arg0: i32) -> (i32, i32, i32, i32) {
    %c0_i32 = arith.constant 0 : i32
    %c0_i32_0 = arith.constant 0 : i32
    %c0_i32_1 = arith.constant 0 : i32
    %c0_i32_2 = arith.constant 0 : i32
    return %arg0, %c0_i32, %c0_i32_0, %c0_i32_1 : i32, i32, i32, i32
  }
  func.func @transform_1(%arg0: i32) -> (i32, i32) {
    %c0_i32 = arith.constant 0 : i32
    %c0_i32_0 = arith.constant 0 : i32
    %c0_i32_1 = arith.constant 0 : i32
    return %c0_i32, %c0_i32_0 : i32, i32
  }
  func.func @transform_2(%arg0: i32) -> (i32, i32) {
    %c0_i32 = arith.constant 0 : i32
    %c0_i32_0 = arith.constant 0 : i32
    %c0_i32_1 = arith.constant 0 : i32
    return %c0_i32, %c0_i32_0 : i32, i32
  }
  func.func @transform_3(%arg0: i32) -> (i32, i32) {
    %c0_i32 = arith.constant 0 : i32
    %c0_i32_0 = arith.constant 0 : i32
    %c0_i32_1 = arith.constant 0 : i32
    return %c0_i32, %c0_i32_0 : i32, i32
  }
  func.func @transform_4(%arg0: i32) -> (i32, i32, i32, i32) {
    %c0_i32 = arith.constant 0 : i32
    %c0_i32_0 = arith.constant 0 : i32
    %c0_i32_1 = arith.constant 0 : i32
    %c0_i32_2 = arith.constant 0 : i32
    return %arg0, %c0_i32, %c0_i32_0, %c0_i32_1 : i32, i32, i32, i32
  }
  func.func @transform_5(%arg0: i32) -> (i32, i32, i32) {
    %c0_i32 = arith.constant 0 : i32
    %c0_i32_0 = arith.constant 0 : i32
    %c0_i32_1 = arith.constant 0 : i32
    return %arg0, %c0_i32, %c0_i32_0 : i32, i32, i32
  }
}

module attributes {stable_mosaic.version = 11 : i64} {
  func.func @_residual_kernel(%arg0: i32, %arg1: memref<2x16x16x128xbf16, #tpu.memory_space<vmem>>, %arg2: memref<2x16x16x32xf32, #tpu.memory_space<vmem>>, %arg3: memref<1x128xf32, #tpu.memory_space<vmem>>, %arg4: memref<1x128xf32, #tpu.memory_space<vmem>>, %arg5: memref<2x16x16x32xf32, #tpu.memory_space<vmem>>) attributes {dimension_semantics = [#tpu.dimension_semantics<parallel>], iteration_bounds = array<i64: 1>, scalar_prefetch = 0 : i64, scratch_operands = 0 : i64, tpu.core_type = #tpu.core_type<tc>, window_params = [{transform_indices = @transform_0, window_bounds = array<i64: 2, 16, 16, 128>}, {transform_indices = @transform_1, window_bounds = array<i64: 2, 16, 16, 32>}, {pipeline_mode = #tpu.pipeline_mode<synchronous>, transform_indices = @transform_2, window_bounds = array<i64: 1, 128>}, {pipeline_mode = #tpu.pipeline_mode<synchronous>, transform_indices = @transform_3, window_bounds = array<i64: 1, 128>}, {transform_indices = @transform_4, window_bounds = array<i64: 2, 16, 16, 32>}]} {
    %c0 = arith.constant 0 : index
    %c0_0 = arith.constant 0 : index
    %c0_1 = arith.constant 0 : index
    %c0_2 = arith.constant 0 : index
    %0 = vector.load %arg1[%c0, %c0_0, %c0_1, %c0_2] : memref<2x16x16x128xbf16, #tpu.memory_space<vmem>>, vector<2x16x16x128xbf16>
    %1 = arith.extf %0 : vector<2x16x16x128xbf16> to vector<2x16x16x128xf32>
    %c0_3 = arith.constant 0 : index
    %c0_4 = arith.constant 0 : index
    %2 = vector.load %arg3[%c0_3, %c0_4] : memref<1x128xf32, #tpu.memory_space<vmem>>, vector<1x128xf32>
    %3 = vector.shape_cast %2 : vector<1x128xf32> to vector<1x1x1x128xf32>
    %4 = vector.broadcast %3 : vector<1x1x1x128xf32> to vector<2x16x16x128xf32>
    %5 = arith.mulf %1, %4 : vector<2x16x16x128xf32>
    %c0_5 = arith.constant 0 : index
    %c0_6 = arith.constant 0 : index
    %6 = vector.load %arg4[%c0_5, %c0_6] : memref<1x128xf32, #tpu.memory_space<vmem>>, vector<1x128xf32>
    %7 = vector.shape_cast %6 : vector<1x128xf32> to vector<1x1x1x128xf32>
    %8 = vector.broadcast %7 : vector<1x1x1x128xf32> to vector<2x16x16x128xf32>
    %9 = arith.addf %5, %8 : vector<2x16x16x128xf32>
    %10 = vector.extract_strided_slice %9 {offsets = [0, 0, 0, 0], sizes = [2, 16, 16, 32], strides = [1, 1, 1, 1]} : vector<2x16x16x128xf32> to vector<2x16x16x32xf32>
    %c0_7 = arith.constant 0 : index
    %c0_8 = arith.constant 0 : index
    %c0_9 = arith.constant 0 : index
    %c0_10 = arith.constant 0 : index
    %11 = vector.load %arg2[%c0_7, %c0_8, %c0_9, %c0_10] : memref<2x16x16x32xf32, #tpu.memory_space<vmem>>, vector<2x16x16x32xf32>
    %12 = arith.addf %10, %11 : vector<2x16x16x32xf32>
    %cst = arith.constant 0.000000e+00 : f32
    %13 = vector.broadcast %cst : f32 to vector<2x16x16x32xf32>
    %14 = arith.maximumf %12, %13 : vector<2x16x16x32xf32>
    %c0_11 = arith.constant 0 : index
    %c0_12 = arith.constant 0 : index
    %c0_13 = arith.constant 0 : index
    %c0_14 = arith.constant 0 : index
    %15 = vector.load %arg5[%c0_11, %c0_12, %c0_13, %c0_14] : memref<2x16x16x32xf32, #tpu.memory_space<vmem>>, vector<2x16x16x32xf32>
    tpu.vector_store %arg5[%c0_11, %c0_12, %c0_13, %c0_14], %14 {strides = array<i32>} : memref<2x16x16x32xf32, #tpu.memory_space<vmem>>, vector<2x16x16x32xf32>,
    return
  }
  func.func @transform_0(%arg0: i32) -> (i32, i32, i32, i32) {
    %c0_i32 = arith.constant 0 : i32
    %c0_i32_0 = arith.constant 0 : i32
    %c0_i32_1 = arith.constant 0 : i32
    %c0_i32_2 = arith.constant 0 : i32
    return %arg0, %c0_i32, %c0_i32_0, %c0_i32_1 : i32, i32, i32, i32
  }
  func.func @transform_1(%arg0: i32) -> (i32, i32, i32, i32) {
    %c0_i32 = arith.constant 0 : i32
    %c0_i32_0 = arith.constant 0 : i32
    %c0_i32_1 = arith.constant 0 : i32
    %c0_i32_2 = arith.constant 0 : i32
    return %arg0, %c0_i32, %c0_i32_0, %c0_i32_1 : i32, i32, i32, i32
  }
  func.func @transform_2(%arg0: i32) -> (i32, i32) {
    %c0_i32 = arith.constant 0 : i32
    %c0_i32_0 = arith.constant 0 : i32
    %c0_i32_1 = arith.constant 0 : i32
    return %c0_i32, %c0_i32_0 : i32, i32
  }
  func.func @transform_3(%arg0: i32) -> (i32, i32) {
    %c0_i32 = arith.constant 0 : i32
    %c0_i32_0 = arith.constant 0 : i32
    %c0_i32_1 = arith.constant 0 : i32
    return %c0_i32, %c0_i32_0 : i32, i32
  }
  func.func @transform_4(%arg0: i32) -> (i32, i32, i32, i32) {
    %c0_i32 = arith.constant 0 : i32
    %c0_i32_0 = arith.constant 0 : i32
    %c0_i32_1 = arith.constant 0 : i32
    %c0_i32_2 = arith.constant 0 : i32
    return %arg0, %c0_i32, %c0_i32_0, %c0_i32_1 : i32, i32, i32, i32
  }
}

</mosaic_0001>

<llo_original>
// kernel: bottleneck_forward.4
$region0: #{bottleneck_forward.4}
  #allocation0 [shape = 'u32[]', space=smem, size = 0x4, offset = 0x4, fixed_abs, tag = 'smem constant byte address 0x4 - core index']
  #allocation1 [shape = 'u32[144,128]{1,0:T(1,128)}', space=vmem, size = 0x12000, scoped, tag = 'internal scratch']
  %s0 = inlined_call_operand.vmem [shape: bf16[2,16,16,128], index: 0, kind: input, shape index: {}]
  %s1 = inlined_call_operand.vmem [shape: bf16[128,128], index: 1, kind: input, shape index: {}]
  %s2 = inlined_call_operand.vmem [shape: bf16[2,16,16,128], index: 2, kind: output, shape index: {0}]
  %s3 = inlined_call_operand.vmem [shape: f32[1,2,128], index: 3, kind: output, shape index: {1}]
  %4 = xla_tuple %s2, %s3
  %s5 = sld [smem:[#allocation0]]
  $region26: #{bottleneck_forward.4} parent=0
    _
  %s7 = ssub.s32 1, %s5
  %s8 = scalar_select 0, %s7, %s5
  // Predicated region
  $region2: #{bottleneck_forward.4} parent=0 // pred_check
    _
  $region3: #{bottleneck_forward.4} parent=0 // pred_check_branch
    %10 = sbr.rel (0) target = $region5
  $region4: #{bottleneck_forward.4} parent=0 // pred_region
    _
  $region5: #{bottleneck_forward.4} parent=0 // pred_fallthru
    _
  // Predicated region
  $region6: #{bottleneck_forward.4} parent=0 // pred_check
    _
  $region7: #{bottleneck_forward.4} parent=0 // pred_check_branch
    %12 = sbr.rel (0) target = $region9
  $region8: #{bottleneck_forward.4} parent=0 // pred_region
    _
  $region9: #{bottleneck_forward.4} parent=0 // pred_fallthru
    _
  %v14 = vld [vmem:[%s0] sm:$0xf]
  %v15 = vld [vmem:[%s0 + $0x4] sm:$0xf]
  %v16 = vld [vmem:[%s0 + $0x8] sm:$0xf]
  %v17 = vld [vmem:[%s0 + $0xc] sm:$0xf]
  %v18 = vld [vmem:[%s0 + $0x10] sm:$0xf]
  %v19 = vld [vmem:[%s0 + $0x14] sm:$0xf]
  %v20 = vld [vmem:[%s0 + $0x18] sm:$0xf]
  %v21 = vld [vmem:[%s0 + $0x1c] sm:$0xf]
  %v22 = vld [vmem:[%s0 + $0x20] sm:$0xf]
  %v23 = vld [vmem:[%s0 + $0x24] sm:$0xf]
  %v24 = vld [vmem:[%s0 + $0x28] sm:$0xf]
  %v25 = vld [vmem:[%s0 + $0x2c] sm:$0xf]
  %v26 = vld [vmem:[%s0 + $0x30] sm:$0xf]
  %v27 = vld [vmem:[%s0 + $0x34] sm:$0xf]
  %v28 = vld [vmem:[%s0 + $0x38] sm:$0xf]
  %v29 = vld [vmem:[%s0 + $0x3c] sm:$0xf]
  %v30 = vld [vmem:[%s0 + $0x40] sm:$0xf]
  %v31 = vld [vmem:[%s0 + $0x44] sm:$0xf]
  %v32 = vld [vmem:[%s0 + $0x48] sm:$0xf]
  %v33 = vld [vmem:[%s0 + $0x4c] sm:$0xf]
  %v34 = vld [vmem:[%s0 + $0x50] sm:$0xf]
  %v35 = vld [vmem:[%s0 + $0x54] sm:$0xf]
  %v36 = vld [vmem:[%s0 + $0x58] sm:$0xf]
  %v37 = vld [vmem:[%s0 + $0x5c] sm:$0xf]
  %v38 = vld [vmem:[%s0 + $0x60] sm:$0xf]
  %v39 = vld [vmem:[%s0 + $0x64] sm:$0xf]
  %v40 = vld [vmem:[%s0 + $0x68] sm:$0xf]
  %v41 = vld [vmem:[%s0 + $0x6c] sm:$0xf]
  %v42 = vld [vmem:[%s0 + $0x70] sm:$0xf]
  %v43 = vld [vmem:[%s0 + $0x74] sm:$0xf]
  %v44 = vld [vmem:[%s0 + $0x78] sm:$0xf]
  %v45 = vld [vmem:[%s0 + $0x7c] sm:$0xf]
  %v46 = vld [vmem:[%s0 + $0x80] sm:$0xf]
  %v47 = vld [vmem:[%s0 + $0x84] sm:$0xf]
  %v48 = vld [vmem:[%s0 + $0x88] sm:$0xf]
  %v49 = vld [vmem:[%s0 + $0x8c] sm:$0xf]
  %v50 = vld [vmem:[%s0 + $0x90] sm:$0xf]
  %v51 = vld [vmem:[%s0 + $0x94] sm:$0xf]
  %v52 = vld [vmem:[%s0 + $0x98] sm:$0xf]
  %v53 = vld [vmem:[%s0 + $0x9c] sm:$0xf]
  %v54 = vld [vmem:[%s0 + $0xa0] sm:$0xf]
  %v55 = vld [vmem:[%s0 + $0xa4] sm:$0xf]
  %v56 = vld [vmem:[%s0 + $0xa8] sm:$0xf]
  %v57 = vld [vmem:[%s0 + $0xac] sm:$0xf]
  %v58 = vld [vmem:[%s0 + $0xb0] sm:$0xf]
  %v59 = vld [vmem:[%s0 + $0xb4] sm:$0xf]
  %v60 = vld [vmem:[%s0 + $0xb8] sm:$0xf]
  %v61 = vld [vmem:[%s0 + $0xbc] sm:$0xf]
  %v62 = vld [vmem:[%s0 + $0xc0] sm:$0xf]
  %v63 = vld [vmem:[%s0 + $0xc4] sm:$0xf]
  %v64 = vld [vmem:[%s0 + $0xc8] sm:$0xf]
  %v65 = vld [vmem:[%s0 + $0xcc] sm:$0xf]
  %v66 = vld [vmem:[%s0 + $0xd0] sm:$0xf]
  %v67 = vld [vmem:[%s0 + $0xd4] sm:$0xf]
  %v68 = vld [vmem:[%s0 + $0xd8] sm:$0xf]
  %v69 = vld [vmem:[%s0 + $0xdc] sm:$0xf]
  %v70 = vld [vmem:[%s0 + $0xe0] sm:$0xf]
  %v71 = vld [vmem:[%s0 + $0xe4] sm:$0xf]
  %v72 = vld [vmem:[%s0 + $0xe8] sm:$0xf]
  %v73 = vld [vmem:[%s0 + $0xec] sm:$0xf]
  %v74 = vld [vmem:[%s0 + $0xf0] sm:$0xf]
  %v75 = vld [vmem:[%s0 + $0xf4] sm:$0xf]
  %v76 = vld [vmem:[%s0 + $0xf8] sm:$0xf]
  %v77 = vld [vmem:[%s0 + $0xfc] sm:$0xf]
  %v78 = vld [vmem:[%s1] sm:$0xf]
  %v79 = vld [vmem:[%s1 + $0x4] sm:$0xf]
  %v80 = vld [vmem:[%s1 + $0x8] sm:$0xf]
  %v81 = vld [vmem:[%s1 + $0xc] sm:$0xf]
  %v82 = vld [vmem:[%s1 + $0x10] sm:$0xf]
  %v83 = vld [vmem:[%s1 + $0x14] sm:$0xf]
  %v84 = vld [vmem:[%s1 + $0x18] sm:$0xf]
  %v85 = vld [vmem:[%s1 + $0x1c] sm:$0xf]
  %v86 = vld [vmem:[%s1 + $0x20] sm:$0xf]
  %v87 = vld [vmem:[%s1 + $0x24] sm:$0xf]
  %v88 = vld [vmem:[%s1 + $0x28] sm:$0xf]
  %v89 = vld [vmem:[%s1 + $0x2c] sm:$0xf]
  %v90 = vld [vmem:[%s1 + $0x30] sm:$0xf]
  %v91 = vld [vmem:[%s1 + $0x34] sm:$0xf]
  %v92 = vld [vmem:[%s1 + $0x38] sm:$0xf]
  %v93 = vld [vmem:[%s1 + $0x3c] sm:$0xf]
  %v158 = vunpack.c.l.b16 %v14
  %v159 = vunpack.c.l.b16 %v15
  %v160 = vunpack.c.l.b16 %v16
  %v161 = vunpack.c.l.b16 %v17
  %v162 = vunpack.c.l.b16 %v18
  %v163 = vunpack.c.l.b16 %v19
  %v164 = vunpack.c.l.b16 %v20
  %v165 = vunpack.c.l.b16 %v21
  %v166 = vunpack.c.l.b16 %v22
  %v167 = vunpack.c.l.b16 %v23
  %v168 = vunpack.c.l.b16 %v24
  %v169 = vunpack.c.l.b16 %v25
  %v170 = vunpack.c.l.b16 %v26
  %v171 = vunpack.c.l.b16 %v27
  %v172 = vunpack.c.l.b16 %v28
  %v173 = vunpack.c.l.b16 %v29
  %v174 = vunpack.c.l.b16 %v30
  %v175 = vunpack.c.l.b16 %v31
  %v176 = vunpack.c.l.b16 %v32
  %v177 = vunpack.c.l.b16 %v33
  %v178 = vunpack.c.l.b16 %v34
  %v179 = vunpack.c.l.b16 %v35
  %v180 = vunpack.c.l.b16 %v36
  %v181 = vunpack.c.l.b16 %v37
  %v182 = vunpack.c.l.b16 %v38
  %v183 = vunpack.c.l.b16 %v39
  %v184 = vunpack.c.l.b16 %v40
  %v185 = vunpack.c.l.b16 %v41
  %v186 = vunpack.c.l.b16 %v42
  %v187 = vunpack.c.l.b16 %v43
  %v188 = vunpack.c.l.b16 %v44
  %v189 = vunpack.c.l.b16 %v45
  %v190 = vunpack.c.l.b16 %v46
  %v191 = vunpack.c.l.b16 %v47
  %v192 = vunpack.c.l.b16 %v48
  %v193 = vunpack.c.l.b16 %v49
  %v194 = vunpack.c.l.b16 %v50
  %v195 = vunpack.c.l.b16 %v51
  %v196 = vunpack.c.l.b16 %v52
  %v197 = vunpack.c.l.b16 %v53
  %v198 = vunpack.c.l.b16 %v54
  %v199 = vunpack.c.l.b16 %v55
  %v200 = vunpack.c.l.b16 %v56
  %v201 = vunpack.c.l.b16 %v57
  %v202 = vunpack.c.l.b16 %v58
  %v203 = vunpack.c.l.b16 %v59
  %v204 = vunpack.c.l.b16 %v60
  %v205 = vunpack.c.l.b16 %v61
  %v206 = vunpack.c.l.b16 %v62
  %v207 = vunpack.c.l.b16 %v63
  %v208 = vunpack.c.l.b16 %v64
  %v209 = vunpack.c.l.b16 %v65
  %v210 = vunpack.c.l.b16 %v66
  %v211 = vunpack.c.l.b16 %v67
  %v212 = vunpack.c.l.b16 %v68
  %v213 = vunpack.c.l.b16 %v69
  %v214 = vunpack.c.l.b16 %v70
  %v215 = vunpack.c.l.b16 %v71
  %v216 = vunpack.c.l.b16 %v72
  %v217 = vunpack.c.l.b16 %v73
  %v218 = vunpack.c.l.b16 %v74
  %v219 = vunpack.c.l.b16 %v75
  %v220 = vunpack.c.l.b16 %v76
  %v221 = vunpack.c.l.b16 %v77
  %v222 = vpack.c.b16 %v159, %v158
  %v223 = vpack.c.b16 %v161, %v160
  %v224 = vpack.c.b16 %v163, %v162
  %v225 = vpack.c.b16 %v165, %v164
  %v226 = vpack.c.b16 %v167, %v166
  %v227 = vpack.c.b16 %v169, %v168
  %v228 = vpack.c.b16 %v171, %v170
  %v229 = vpack.c.b16 %v173, %v172
  %v230 = vpack.c.b16 %v175, %v174
  %v231 = vpack.c.b16 %v177, %v176
  %v232 = vpack.c.b16 %v179, %v178
  %v233 = vpack.c.b16 %v181, %v180
  %v234 = vpack.c.b16 %v183, %v182
  %v235 = vpack.c.b16 %v185, %v184
  %v236 = vpack.c.b16 %v187, %v186
  %v237 = vpack.c.b16 %v189, %v188
  %v238 = vpack.c.b16 %v191, %v190
  %v239 = vpack.c.b16 %v193, %v192
  %v240 = vpack.c.b16 %v195, %v194
  %v241 = vpack.c.b16 %v197, %v196
  %v242 = vpack.c.b16 %v199, %v198
  %v243 = vpack.c.b16 %v201, %v200
  %v244 = vpack.c.b16 %v203, %v202
  %v245 = vpack.c.b16 %v205, %v204
  %v246 = vpack.c.b16 %v207, %v206
  %v247 = vpack.c.b16 %v209, %v208
  %v248 = vpack.c.b16 %v211, %v210
  %v249 = vpack.c.b16 %v213, %v212
  %v250 = vpack.c.b16 %v215, %v214
  %v251 = vpack.c.b16 %v217, %v216
  %v252 = vpack.c.b16 %v219, %v218
  %v253 = vpack.c.b16 %v221, %v220
  %v302 = vunpack.c.l.b16 %v78
  %v303 = vunpack.c.l.b16 %v79
  %v304 = vunpack.c.l.b16 %v80
  %v305 = vunpack.c.l.b16 %v81
  %v306 = vunpack.c.l.b16 %v82
  %v307 = vunpack.c.l.b16 %v83
  %v308 = vunpack.c.l.b16 %v84
  %v309 = vunpack.c.l.b16 %v85
  %v310 = vunpack.c.l.b16 %v86
  %v311 = vunpack.c.l.b16 %v87
  %v312 = vunpack.c.l.b16 %v88
  %v313 = vunpack.c.l.b16 %v89
  %v314 = vunpack.c.l.b16 %v90
  %v315 = vunpack.c.l.b16 %v91
  %v316 = vunpack.c.l.b16 %v92
  %v317 = vunpack.c.l.b16 %v93
  %v318 = vpack.c.b16 %v303, %v302
  %v319 = vpack.c.b16 %v305, %v304
  %v320 = vpack.c.b16 %v307, %v306
  %v321 = vpack.c.b16 %v309, %v308
  %v322 = vpack.c.b16 %v311, %v310
  %v323 = vpack.c.b16 %v313, %v312
  %v324 = vpack.c.b16 %v315, %v314
  %v325 = vpack.c.b16 %v317, %v316
  %334 = vmatprep.subr.bf16.mxu0 0
  %335 = vmatpush1.bf16.msra.mxu0 %v318
  %336 = vmatprep.subr.bf16.mxu0 0
  %337 = vmatpush1.bf16.msra.mxu0 %v319
  %338 = vmatprep.subr.bf16.mxu0 0
  %339 = vmatpush1.bf16.msra.mxu0 %v320
  %340 = vmatprep.subr.bf16.mxu0 0
  %341 = vmatpush1.bf16.msra.mxu0 %v321
  %342 = vmatprep.subr.bf16.mxu0 0
  %343 = vmatpush1.bf16.msra.mxu0 %v322
  %344 = vmatprep.subr.bf16.mxu0 0
  %345 = vmatpush1.bf16.msra.mxu0 %v323
  %346 = vmatprep.subr.bf16.mxu0 0
  %347 = vmatpush1.bf16.msra.mxu0 %v324
  %348 = vmatprep.subr.bf16.mxu0 0
  %349 = vmatpush1.bf16.msra.mxu0 %v325
  %350 = vmatprep.subr.bf16.mxu0 0
  %351 = vmatpush1.bf16.msra.mxu0 0
  %352 = vmatprep.subr.bf16.mxu0 0
  %353 = vmatpush1.bf16.msra.mxu0 0
  %354 = vmatprep.subr.bf16.mxu0 0
  %355 = vmatpush1.bf16.msra.mxu0 0
  %356 = vmatprep.subr.bf16.mxu0 0
  %357 = vmatpush1.bf16.msra.mxu0 0
  %358 = vmatprep.subr.bf16.mxu0 0
  %359 = vmatpush1.bf16.msra.mxu0 0
  %360 = vmatprep.subr.bf16.mxu0 0
  %361 = vmatpush1.bf16.msra.mxu0 0
  %362 = vmatprep.subr.bf16.mxu0 0
  %363 = vmatpush1.bf16.msra.mxu0 0
  %364 = vmatprep.subr.bf16.mxu0 0
  %365 = vmatpush1.bf16.msra.mxu0 0
  %366 = vmatprep.mubr.bf16.mxu0 0
  %367 = vmatmul.mubr.bf16.gmra.mrb[0].mxu0 %v222
  %v368 = vpop.f32.mrb[0].mxu0
  %v369 = vadd.f32 0.0, %v368
  %v370 = vpop.f32.mrb[0].mxu0
  %v371 = vpop.f32.mrb[0].mxu0
  %v372 = vadd.f32 0.0, %v371
  %v373 = vpop.f32.mrb[0].mxu0
  %374 = vmatprep.mubr.bf16.mxu0 0
  %375 = vmatmul.mubr.bf16.gmra.mrb[0].mxu0 %v223
  %v376 = vpop.f32.mrb[0].mxu0
  %v377 = vadd.f32 0.0, %v376
  %v378 = vpop.f32.mrb[0].mxu0
  %v379 = vpop.f32.mrb[0].mxu0
  %v380 = vadd.f32 0.0, %v379
  %v381 = vpop.f32.mrb[0].mxu0
  %382 = vmatprep.mubr.bf16.mxu0 0
  %383 = vmatmul.mubr.bf16.gmra.mrb[0].mxu0 %v224
  %v384 = vpop.f32.mrb[0].mxu0
  %v385 = vadd.f32 0.0, %v384
  %v386 = vpop.f32.mrb[0].mxu0
  %v387 = vpop.f32.mrb[0].mxu0
  %v388 = vadd.f32 0.0, %v387
  %v389 = vpop.f32.mrb[0].mxu0
  %390 = vmatprep.mubr.bf16.mxu0 0
  %391 = vmatmul.mubr.bf16.gmra.mrb[0].mxu0 %v225
  %v392 = vpop.f32.mrb[0].mxu0
  %v393 = vadd.f32 0.0, %v392
  %v394 = vpop.f32.mrb[0].mxu0
  %v395 = vpop.f32.mrb[0].mxu0
  %v396 = vadd.f32 0.0, %v395
  %v397 = vpop.f32.mrb[0].mxu0
  %398 = vmatprep.mubr.bf16.mxu0 0
  %399 = vmatmul.mubr.bf16.gmra.mrb[0].mxu0 %v226
  %v400 = vpop.f32.mrb[0].mxu0
  %v401 = vadd.f32 0.0, %v400
  %v402 = vpop.f32.mrb[0].mxu0
  %v403 = vpop.f32.mrb[0].mxu0
  %v404 = vadd.f32 0.0, %v403
  %v405 = vpop.f32.mrb[0].mxu0
  %406 = vmatprep.mubr.bf16.mxu0 0
  %407 = vmatmul.mubr.bf16.gmra.mrb[0].mxu0 %v227
  %v408 = vpop.f32.mrb[0].mxu0
  %v409 = vadd.f32 0.0, %v408
  %v410 = vpop.f32.mrb[0].mxu0
  %v411 = vpop.f32.mrb[0].mxu0
  %v412 = vadd.f32 0.0, %v411
  %v413 = vpop.f32.mrb[0].mxu0
  %414 = vmatprep.mubr.bf16.mxu0 0
  %415 = vmatmul.mubr.bf16.gmra.mrb[0].mxu0 %v228
  %v416 = vpop.f32.mrb[0].mxu0
  %v417 = vadd.f32 0.0, %v416
  %v418 = vpop.f32.mrb[0].mxu0
  %v419 = vpop.f32.mrb[0].mxu0
  %v420 = vadd.f32 0.0, %v419
  %v421 = vpop.f32.mrb[0].mxu0
  %422 = vmatprep.mubr.bf16.mxu0 0
  %423 = vmatmul.mubr.bf16.gmra.mrb[0].mxu0 %v229
  %v424 = vpop.f32.mrb[0].mxu0
  %v425 = vadd.f32 0.0, %v424
  %v426 = vpop.f32.mrb[0].mxu0
  %v427 = vpop.f32.mrb[0].mxu0
  %v428 = vadd.f32 0.0, %v427
  %v429 = vpop.f32.mrb[0].mxu0
  %430 = vmatprep.mubr.bf16.mxu0 0
  %431 = vmatmul.mubr.bf16.gmra.mrb[0].mxu0 %v230
  %v432 = vpop.f32.mrb[0].mxu0
  %v433 = vadd.f32 0.0, %v432
  %v434 = vpop.f32.mrb[0].mxu0
  %v435 = vpop.f32.mrb[0].mxu0
  %v436 = vadd.f32 0.0, %v435
  %v437 = vpop.f32.mrb[0].mxu0
  %438 = vmatprep.mubr.bf16.mxu0 0
  %439 = vmatmul.mubr.bf16.gmra.mrb[0].mxu0 %v231
  %v440 = vpop.f32.mrb[0].mxu0
  %v441 = vadd.f32 0.0, %v440
  %v442 = vpop.f32.mrb[0].mxu0
  %v443 = vpop.f32.mrb[0].mxu0
  %v444 = vadd.f32 0.0, %v443
  %v445 = vpop.f32.mrb[0].mxu0
  %446 = vmatprep.mubr.bf16.mxu0 0
  %447 = vmatmul.mubr.bf16.gmra.mrb[0].mxu0 %v232
  %v448 = vpop.f32.mrb[0].mxu0
  %v449 = vadd.f32 0.0, %v448
  %v450 = vpop.f32.mrb[0].mxu0
  %v451 = vpop.f32.mrb[0].mxu0
  %v452 = vadd.f32 0.0, %v451
  %v453 = vpop.f32.mrb[0].mxu0
  %454 = vmatprep.mubr.bf16.mxu0 0
  %455 = vmatmul.mubr.bf16.gmra.mrb[0].mxu0 %v233
  %v456 = vpop.f32.mrb[0].mxu0
  %v457 = vadd.f32 0.0, %v456
  %v458 = vpop.f32.mrb[0].mxu0
  %v459 = vpop.f32.mrb[0].mxu0
  %v460 = vadd.f32 0.0, %v459
  %v461 = vpop.f32.mrb[0].mxu0
  %462 = vmatprep.mubr.bf16.mxu0 0
  %463 = vmatmul.mubr.bf16.gmra.mrb[0].mxu0 %v234
  %v464 = vpop.f32.mrb[0].mxu0
  %v465 = vadd.f32 0.0, %v464
  %v466 = vpop.f32.mrb[0].mxu0
  %v467 = vpop.f32.mrb[0].mxu0
  %v468 = vadd.f32 0.0, %v467
  %v469 = vpop.f32.mrb[0].mxu0
  %470 = vmatprep.mubr.bf16.mxu0 0
  %471 = vmatmul.mubr.bf16.gmra.mrb[0].mxu0 %v235
  %v472 = vpop.f32.mrb[0].mxu0
  %v473 = vadd.f32 0.0, %v472
  %v474 = vpop.f32.mrb[0].mxu0
  %v475 = vpop.f32.mrb[0].mxu0
  %v476 = vadd.f32 0.0, %v475
  %v477 = vpop.f32.mrb[0].mxu0
  %478 = vmatprep.mubr.bf16.mxu0 0
  %479 = vmatmul.mubr.bf16.gmra.mrb[0].mxu0 %v236
  %v480 = vpop.f32.mrb[0].mxu0
  %v481 = vadd.f32 0.0, %v480
  %v482 = vpop.f32.mrb[0].mxu0
  %v483 = vpop.f32.mrb[0].mxu0
  %v484 = vadd.f32 0.0, %v483
  %v485 = vpop.f32.mrb[0].mxu0
  %486 = vmatprep.mubr.bf16.mxu0 0
  %487 = vmatmul.mubr.bf16.gmra.mrb[0].mxu0 %v237
  %v488 = vpop.f32.mrb[0].mxu0
  %v489 = vadd.f32 0.0, %v488
  %v490 = vpop.f32.mrb[0].mxu0
  %v491 = vpop.f32.mrb[0].mxu0
  %v492 = vadd.f32 0.0, %v491
  %v493 = vpop.f32.mrb[0].mxu0
  %494 = vmatprep.mubr.bf16.mxu0 0
  %495 = vmatmul.mubr.bf16.gmra.mrb[0].mxu0 %v238
  %v496 = vpop.f32.mrb[0].mxu0
  %v497 = vadd.f32 0.0, %v496
  %v498 = vpop.f32.mrb[0].mxu0
  %v499 = vpop.f32.mrb[0].mxu0
  %v500 = vadd.f32 0.0, %v499
  %v501 = vpop.f32.mrb[0].mxu0
  %502 = vmatprep.mubr.bf16.mxu0 0
  %503 = vmatmul.mubr.bf16.gmra.mrb[0].mxu0 %v239
  %v504 = vpop.f32.mrb[0].mxu0
  %v505 = vadd.f32 0.0, %v504
  %v506 = vpop.f32.mrb[0].mxu0
  %v507 = vpop.f32.mrb[0].mxu0
  %v508 = vadd.f32 0.0, %v507
  %v509 = vpop.f32.mrb[0].mxu0
  %510 = vmatprep.mubr.bf16.mxu0 0
  %511 = vmatmul.mubr.bf16.gmra.mrb[0].mxu0 %v240
  %v512 = vpop.f32.mrb[0].mxu0
  %v513 = vadd.f32 0.0, %v512
  %v514 = vpop.f32.mrb[0].mxu0
  %v515 = vpop.f32.mrb[0].mxu0
  %v516 = vadd.f32 0.0, %v515
  %v517 = vpop.f32.mrb[0].mxu0
  %518 = vmatprep.mubr.bf16.mxu0 0
  %519 = vmatmul.mubr.bf16.gmra.mrb[0].mxu0 %v241
  %v520 = vpop.f32.mrb[0].mxu0
  %v521 = vadd.f32 0.0, %v520
  %v522 = vpop.f32.mrb[0].mxu0
  %v523 = vpop.f32.mrb[0].mxu0
  %v524 = vadd.f32 0.0, %v523
  %v525 = vpop.f32.mrb[0].mxu0
  %526 = vmatprep.mubr.bf16.mxu0 0
  %527 = vmatmul.mubr.bf16.gmra.mrb[0].mxu0 %v242
  %v528 = vpop.f32.mrb[0].mxu0
  %v529 = vadd.f32 0.0, %v528
  %v530 = vpop.f32.mrb[0].mxu0
  %v531 = vpop.f32.mrb[0].mxu0
  %v532 = vadd.f32 0.0, %v531
  %v533 = vpop.f32.mrb[0].mxu0
  %534 = vmatprep.mubr.bf16.mxu0 0
  %535 = vmatmul.mubr.bf16.gmra.mrb[0].mxu0 %v243
  %v536 = vpop.f32.mrb[0].mxu0
  %v537 = vadd.f32 0.0, %v536
  %v538 = vpop.f32.mrb[0].mxu0
  %v539 = vpop.f32.mrb[0].mxu0
  %v540 = vadd.f32 0.0, %v539
  %v541 = vpop.f32.mrb[0].mxu0
  %542 = vmatprep.mubr.bf16.mxu0 0
  %543 = vmatmul.mubr.bf16.gmra.mrb[0].mxu0 %v244
  %v544 = vpop.f32.mrb[0].mxu0
  %v545 = vadd.f32 0.0, %v544
  %v546 = vpop.f32.mrb[0].mxu0
  %v547 = vpop.f32.mrb[0].mxu0
  %v548 = vadd.f32 0.0, %v547
  %v549 = vpop.f32.mrb[0].mxu0
  %550 = vmatprep.mubr.bf16.mxu0 0
  %551 = vmatmul.mubr.bf16.gmra.mrb[0].mxu0 %v245
  %v552 = vpop.f32.mrb[0].mxu0
  %v553 = vadd.f32 0.0, %v552
  %v554 = vpop.f32.mrb[0].mxu0
  %v555 = vpop.f32.mrb[0].mxu0
  %v556 = vadd.f32 0.0, %v555
  %v557 = vpop.f32.mrb[0].mxu0
  %558 = vmatprep.mubr.bf16.mxu0 0
  %559 = vmatmul.mubr.bf16.gmra.mrb[0].mxu0 %v246
  %v560 = vpop.f32.mrb[0].mxu0
  %v561 = vadd.f32 0.0, %v560
  %v562 = vpop.f32.mrb[0].mxu0
  %v563 = vpop.f32.mrb[0].mxu0
  %v564 = vadd.f32 0.0, %v563
  %v565 = vpop.f32.mrb[0].mxu0
  %566 = vmatprep.mubr.bf16.mxu0 0
  %567 = vmatmul.mubr.bf16.gmra.mrb[0].mxu0 %v247
  %v568 = vpop.f32.mrb[0].mxu0
  %v569 = vadd.f32 0.0, %v568
  %v570 = vpop.f32.mrb[0].mxu0
  %v571 = vpop.f32.mrb[0].mxu0
  %v572 = vadd.f32 0.0, %v571
  %v573 = vpop.f32.mrb[0].mxu0
  %574 = vmatprep.mubr.bf16.mxu0 0
  %575 = vmatmul.mubr.bf16.gmra.mrb[0].mxu0 %v248
  %v576 = vpop.f32.mrb[0].mxu0
  %v577 = vadd.f32 0.0, %v576
  %v578 = vpop.f32.mrb[0].mxu0
  %v579 = vpop.f32.mrb[0].mxu0
  %v580 = vadd.f32 0.0, %v579
  %v581 = vpop.f32.mrb[0].mxu0
  %582 = vmatprep.mubr.bf16.mxu0 0
  %583 = vmatmul.mubr.bf16.gmra.mrb[0].mxu0 %v249
  %v584 = vpop.f32.mrb[0].mxu0
  %v585 = vadd.f32 0.0, %v584
  %v586 = vpop.f32.mrb[0].mxu0
  %v587 = vpop.f32.mrb[0].mxu0
  %v588 = vadd.f32 0.0, %v587
  %v589 = vpop.f32.mrb[0].mxu0
  %590 = vmatprep.mubr.bf16.mxu0 0
  %591 = vmatmul.mubr.bf16.gmra.mrb[0].mxu0 %v250
  %v592 = vpop.f32.mrb[0].mxu0
  %v593 = vadd.f32 0.0, %v592
  %v594 = vpop.f32.mrb[0].mxu0
  %v595 = vpop.f32.mrb[0].mxu0
  %v596 = vadd.f32 0.0, %v595
  %v597 = vpop.f32.mrb[0].mxu0
  %598 = vmatprep.mubr.bf16.mxu0 0
  %599 = vmatmul.mubr.bf16.gmra.mrb[0].mxu0 %v251
  %v600 = vpop.f32.mrb[0].mxu0
  %v601 = vadd.f32 0.0, %v600
  %v602 = vpop.f32.mrb[0].mxu0
  %v603 = vpop.f32.mrb[0].mxu0
  %v604 = vadd.f32 0.0, %v603
  %v605 = vpop.f32.mrb[0].mxu0
  %606 = vmatprep.mubr.bf16.mxu0 0
  %607 = vmatmul.mubr.bf16.gmra.mrb[0].mxu0 %v252
  %v608 = vpop.f32.mrb[0].mxu0
  %v609 = vadd.f32 0.0, %v608
  %v610 = vpop.f32.mrb[0].mxu0
  %v611 = vpop.f32.mrb[0].mxu0
  %v612 = vadd.f32 0.0, %v611
  %v613 = vpop.f32.mrb[0].mxu0
  %614 = vmatprep.mubr.bf16.mxu0 0
  %615 = vmatmul.mubr.bf16.gmra.mrb[0].mxu0 %v253
  %v616 = vpop.f32.mrb[0].mxu0
  %v617 = vadd.f32 0.0, %v616
  %v618 = vpop.f32.mrb[0].mxu0
  %v619 = vpop.f32.mrb[0].mxu0
  %v620 = vadd.f32 0.0, %v619
  %v621 = vpop.f32.mrb[0].mxu0
  %622 = vdwg.mxu0
  %v623 = vpack.c.bf16 %v372, %v369
  %v624 = vpack.c.bf16 %v380, %v377
  %v625 = vpack.c.bf16 %v388, %v385
  %v626 = vpack.c.bf16 %v396, %v393
  %v627 = vpack.c.bf16 %v404, %v401
  %v628 = vpack.c.bf16 %v412, %v409
  %v629 = vpack.c.bf16 %v420, %v417
  %v630 = vpack.c.bf16 %v428, %v425
  %v631 = vpack.c.bf16 %v436, %v433
  %v632 = vpack.c.bf16 %v444, %v441
  %v633 = vpack.c.bf16 %v452, %v449
  %v634 = vpack.c.bf16 %v460, %v457
  %v635 = vpack.c.bf16 %v468, %v465
  %v636 = vpack.c.bf16 %v476, %v473
  %v637 = vpack.c.bf16 %v484, %v481
  %v638 = vpack.c.bf16 %v492, %v489
  %v639 = vpack.c.bf16 %v500, %v497
  %v640 = vpack.c.bf16 %v508, %v505
  %v641 = vpack.c.bf16 %v516, %v513
  %v642 = vpack.c.bf16 %v524, %v521
  %v643 = vpack.c.bf16 %v532, %v529
  %v644 = vpack.c.bf16 %v540, %v537
  %v645 = vpack.c.bf16 %v548, %v545
  %v646 = vpack.c.bf16 %v556, %v553
  %v647 = vpack.c.bf16 %v564, %v561
  %v648 = vpack.c.bf16 %v572, %v569
  %v649 = vpack.c.bf16 %v580, %v577
  %v650 = vpack.c.bf16 %v588, %v585
  %v651 = vpack.c.bf16 %v596, %v593
  %v652 = vpack.c.bf16 %v604, %v601
  %v653 = vpack.c.bf16 %v612, %v609
  %v654 = vpack.c.bf16 %v620, %v617
  %v687 = vunpack.c.l.b16 %v623
  %v688 = vunpack.c.h.b16 %v623
  %v689 = vunpack.c.l.b16 %v624
  %v690 = vunpack.c.h.b16 %v624
  %v691 = vunpack.c.l.b16 %v625
  %v692 = vunpack.c.h.b16 %v625
  %v693 = vunpack.c.l.b16 %v626
  %v694 = vunpack.c.h.b16 %v626
  %v695 = vunpack.c.l.b16 %v627
  %v696 = vunpack.c.h.b16 %v627
  %v697 = vunpack.c.l.b16 %v628
  %v698 = vunpack.c.h.b16 %v628
  %v699 = vunpack.c.l.b16 %v629
  %v700 = vunpack.c.h.b16 %v629
  %v701 = vunpack.c.l.b16 %v630
  %v702 = vunpack.c.h.b16 %v630
  %v703 = vunpack.c.l.b16 %v631
  %v704 = vunpack.c.h.b16 %v631
  %v705 = vunpack.c.l.b16 %v632
  %v706 = vunpack.c.h.b16 %v632
  %v707 = vunpack.c.l.b16 %v633
  %v708 = vunpack.c.h.b16 %v633
  %v709 = vunpack.c.l.b16 %v634
  %v710 = vunpack.c.h.b16 %v634
  %v711 = vunpack.c.l.b16 %v635
  %v712 = vunpack.c.h.b16 %v635
  %v713 = vunpack.c.l.b16 %v636
  %v714 = vunpack.c.h.b16 %v636
  %v715 = vunpack.c.l.b16 %v637
  %v716 = vunpack.c.h.b16 %v637
  %v717 = vunpack.c.l.b16 %v638
  %v718 = vunpack.c.h.b16 %v638
  %v719 = vunpack.c.l.b16 %v639
  %v720 = vunpack.c.h.b16 %v639
  %v721 = vunpack.c.l.b16 %v640
  %v722 = vunpack.c.h.b16 %v640
  %v723 = vunpack.c.l.b16 %v641
  %v724 = vunpack.c.h.b16 %v641
  %v725 = vunpack.c.l.b16 %v642
  %v726 = vunpack.c.h.b16 %v642
  %v727 = vunpack.c.l.b16 %v643
  %v728 = vunpack.c.h.b16 %v643
  %v729 = vunpack.c.l.b16 %v644
  %v730 = vunpack.c.h.b16 %v644
  %v731 = vunpack.c.l.b16 %v645
  %v732 = vunpack.c.h.b16 %v645
  %v733 = vunpack.c.l.b16 %v646
  %v734 = vunpack.c.h.b16 %v646
  %v735 = vunpack.c.l.b16 %v647
  %v736 = vunpack.c.h.b16 %v647
  %v737 = vunpack.c.l.b16 %v648
  %v738 = vunpack.c.h.b16 %v648
  %v739 = vunpack.c.l.b16 %v649
  %v740 = vunpack.c.h.b16 %v649
  %v741 = vunpack.c.l.b16 %v650
  %v742 = vunpack.c.h.b16 %v650
  %v743 = vunpack.c.l.b16 %v651
  %v744 = vunpack.c.h.b16 %v651
  %v745 = vunpack.c.l.b16 %v652
  %v746 = vunpack.c.h.b16 %v652
  %v747 = vunpack.c.l.b16 %v653
  %v748 = vunpack.c.h.b16 %v653
  %v749 = vunpack.c.l.b16 %v654
  %v750 = vunpack.c.h.b16 %v654
  %v751 = vpack.c.b16 %v687, %v687
  %v752 = vpack.c.b16 %v688, %v688
  %v753 = vpack.c.b16 %v689, %v689
  %v754 = vpack.c.b16 %v690, %v690
  %v755 = vpack.c.b16 %v691, %v691
  %v756 = vpack.c.b16 %v692, %v692
  %v757 = vpack.c.b16 %v693, %v693
  %v758 = vpack.c.b16 %v694, %v694
  %v759 = vpack.c.b16 %v695, %v695
  %v760 = vpack.c.b16 %v696, %v696
  %v761 = vpack.c.b16 %v697, %v697
  %v762 = vpack.c.b16 %v698, %v698
  %v763 = vpack.c.b16 %v699, %v699
  %v764 = vpack.c.b16 %v700, %v700
  %v765 = vpack.c.b16 %v701, %v701
  %v766 = vpack.c.b16 %v702, %v702
  %v767 = vpack.c.b16 %v703, %v703
  %v768 = vpack.c.b16 %v704, %v704
  %v769 = vpack.c.b16 %v705, %v705
  %v770 = vpack.c.b16 %v706, %v706
  %v771 = vpack.c.b16 %v707, %v707
  %v772 = vpack.c.b16 %v708, %v708
  %v773 = vpack.c.b16 %v709, %v709
  %v774 = vpack.c.b16 %v710, %v710
  %v775 = vpack.c.b16 %v711, %v711
  %v776 = vpack.c.b16 %v712, %v712
  %v777 = vpack.c.b16 %v713, %v713
  %v778 = vpack.c.b16 %v714, %v714
  %v779 = vpack.c.b16 %v715, %v715
  %v780 = vpack.c.b16 %v716, %v716
  %v781 = vpack.c.b16 %v717, %v717
  %v782 = vpack.c.b16 %v718, %v718
  %v783 = vpack.c.b16 %v719, %v719
  %v784 = vpack.c.b16 %v720, %v720
  %v785 = vpack.c.b16 %v721, %v721
  %v786 = vpack.c.b16 %v722, %v722
  %v787 = vpack.c.b16 %v723, %v723
  %v788 = vpack.c.b16 %v724, %v724
  %v789 = vpack.c.b16 %v725, %v725
  %v790 = vpack.c.b16 %v726, %v726
  %v791 = vpack.c.b16 %v727, %v727
  %v792 = vpack.c.b16 %v728, %v728
  %v793 = vpack.c.b16 %v729, %v729
  %v794 = vpack.c.b16 %v730, %v730
  %v795 = vpack.c.b16 %v731, %v731
  %v796 = vpack.c.b16 %v732, %v732
  %v797 = vpack.c.b16 %v733, %v733
  %v798 = vpack.c.b16 %v734, %v734
  %v799 = vpack.c.b16 %v735, %v735
  %v800 = vpack.c.b16 %v736, %v736
  %v801 = vpack.c.b16 %v737, %v737
  %v802 = vpack.c.b16 %v738, %v738
  %v803 = vpack.c.b16 %v739, %v739
  %v804 = vpack.c.b16 %v740, %v740
  %v805 = vpack.c.b16 %v741, %v741
  %v806 = vpack.c.b16 %v742, %v742
  %v807 = vpack.c.b16 %v743, %v743
  %v808 = vpack.c.b16 %v744, %v744
  %v809 = vpack.c.b16 %v745, %v745
  %v810 = vpack.c.b16 %v746, %v746
  %v811 = vpack.c.b16 %v747, %v747
  %v812 = vpack.c.b16 %v748, %v748
  %v813 = vpack.c.b16 %v749, %v749
  %v814 = vpack.c.b16 %v750, %v750
  %879 = vst [vmem:[%s2] sm:$0xf] %v751
  %880 = vst [vmem:[%s2 + $0x4] sm:$0xf] %v752
  %881 = vst [vmem:[%s2 + $0x8] sm:$0xf] %v753
  %882 = vst [vmem:[%s2 + $0xc] sm:$0xf] %v754
  %883 = vst [vmem:[%s2 + $0x10] sm:$0xf] %v755
  %884 = vst [vmem:[%s2 + $0x14] sm:$0xf] %v756
  %885 = vst [vmem:[%s2 + $0x18] sm:$0xf] %v757
  %886 = vst [vmem:[%s2 + $0x1c] sm:$0xf] %v758
  %887 = vst [vmem:[%s2 + $0x20] sm:$0xf] %v759
  %888 = vst [vmem:[%s2 + $0x24] sm:$0xf] %v760
  %889 = vst [vmem:[%s2 + $0x28] sm:$0xf] %v761
  %890 = vst [vmem:[%s2 + $0x2c] sm:$0xf] %v762
  %891 = vst [vmem:[%s2 + $0x30] sm:$0xf] %v763
  %892 = vst [vmem:[%s2 + $0x34] sm:$0xf] %v764
  %893 = vst [vmem:[%s2 + $0x38] sm:$0xf] %v765
  %894 = vst [vmem:[%s2 + $0x3c] sm:$0xf] %v766
  %895 = vst [vmem:[%s2 + $0x40] sm:$0xf] %v767
  %896 = vst [vmem:[%s2 + $0x44] sm:$0xf] %v768
  %897 = vst [vmem:[%s2 + $0x48] sm:$0xf] %v769
  %898 = vst [vmem:[%s2 + $0x4c] sm:$0xf] %v770
  %899 = vst [vmem:[%s2 + $0x50] sm:$0xf] %v771
  %900 = vst [vmem:[%s2 + $0x54] sm:$0xf] %v772
  %901 = vst [vmem:[%s2 + $0x58] sm:$0xf] %v773
  %902 = vst [vmem:[%s2 + $0x5c] sm:$0xf] %v774
  %903 = vst [vmem:[%s2 + $0x60] sm:$0xf] %v775
  %904 = vst [vmem:[%s2 + $0x64] sm:$0xf] %v776
  %905 = vst [vmem:[%s2 + $0x68] sm:$0xf] %v777
  %906 = vst [vmem:[%s2 + $0x6c] sm:$0xf] %v778
  %907 = vst [vmem:[%s2 + $0x70] sm:$0xf] %v779
  %908 = vst [vmem:[%s2 + $0x74] sm:$0xf] %v780
  %909 = vst [vmem:[%s2 + $0x78] sm:$0xf] %v781
  %910 = vst [vmem:[%s2 + $0x7c] sm:$0xf] %v782
  %911 = vst [vmem:[%s2 + $0x80] sm:$0xf] %v783
  %912 = vst [vmem:[%s2 + $0x84] sm:$0xf] %v784
  %913 = vst [vmem:[%s2 + $0x88] sm:$0xf] %v785
  %914 = vst [vmem:[%s2 + $0x8c] sm:$0xf] %v786
  %915 = vst [vmem:[%s2 + $0x90] sm:$0xf] %v787
  %916 = vst [vmem:[%s2 + $0x94] sm:$0xf] %v788
  %917 = vst [vmem:[%s2 + $0x98] sm:$0xf] %v789
  %918 = vst [vmem:[%s2 + $0x9c] sm:$0xf] %v790
  %919 = vst [vmem:[%s2 + $0xa0] sm:$0xf] %v791
  %920 = vst [vmem:[%s2 + $0xa4] sm:$0xf] %v792
  %921 = vst [vmem:[%s2 + $0xa8] sm:$0xf] %v793
  %922 = vst [vmem:[%s2 + $0xac] sm:$0xf] %v794
  %923 = vst [vmem:[%s2 + $0xb0] sm:$0xf] %v795
  %924 = vst [vmem:[%s2 + $0xb4] sm:$0xf] %v796
  %925 = vst [vmem:[%s2 + $0xb8] sm:$0xf] %v797
  %926 = vst [vmem:[%s2 + $0xbc] sm:$0xf] %v798
  %927 = vst [vmem:[%s2 + $0xc0] sm:$0xf] %v799
  %928 = vst [vmem:[%s2 + $0xc4] sm:$0xf] %v800
  %929 = vst [vmem:[%s2 + $0xc8] sm:$0xf] %v801
  %930 = vst [vmem:[%s2 + $0xcc] sm:$0xf] %v802
  %931 = vst [vmem:[%s2 + $0xd0] sm:$0xf] %v803
  %932 = vst [vmem:[%s2 + $0xd4] sm:$0xf] %v804
  %933 = vst [vmem:[%s2 + $0xd8] sm:$0xf] %v805
  %934 = vst [vmem:[%s2 + $0xdc] sm:$0xf] %v806
  %935 = vst [vmem:[%s2 + $0xe0] sm:$0xf] %v807
  %936 = vst [vmem:[%s2 + $0xe4] sm:$0xf] %v808
  %937 = vst [vmem:[%s2 + $0xe8] sm:$0xf] %v809
  %938 = vst [vmem:[%s2 + $0xec] sm:$0xf] %v810
  %939 = vst [vmem:[%s2 + $0xf0] sm:$0xf] %v811
  %940 = vst [vmem:[%s2 + $0xf4] sm:$0xf] %v812
  %941 = vst [vmem:[%s2 + $0xf8] sm:$0xf] %v813
  %942 = vst [vmem:[%s2 + $0xfc] sm:$0xf] %v814
  %v943 = vadd.f32 %v369, %v372
  %v944 = vadd.f32 %v943, %v377
  %v945 = vadd.f32 %v944, %v380
  %v946 = vadd.f32 %v945, %v385
  %v947 = vadd.f32 %v946, %v388
  %v948 = vadd.f32 %v947, %v393
  %v949 = vadd.f32 %v948, %v396
  %v950 = vadd.f32 %v949, %v401
  %v951 = vadd.f32 %v950, %v404
  %v952 = vadd.f32 %v951, %v409
  %v953 = vadd.f32 %v952, %v412
  %v954 = vadd.f32 %v953, %v417
  %v955 = vadd.f32 %v954, %v420
  %v956 = vadd.f32 %v955, %v425
  %v957 = vadd.f32 %v956, %v428
  %v958 = vadd.f32 %v957, %v433
  %v959 = vadd.f32 %v958, %v436
  %v960 = vadd.f32 %v959, %v441
  %v961 = vadd.f32 %v960, %v444
  %v962 = vadd.f32 %v961, %v449
  %v963 = vadd.f32 %v962, %v452
  %v964 = vadd.f32 %v963, %v457
  %v965 = vadd.f32 %v964, %v460
  %v966 = vadd.f32 %v965, %v465
  %v967 = vadd.f32 %v966, %v468
  %v968 = vadd.f32 %v967, %v473
  %v969 = vadd.f32 %v968, %v476
  %v970 = vadd.f32 %v969, %v481
  %v971 = vadd.f32 %v970, %v484
  %v972 = vadd.f32 %v971, %v489
  %v973 = vadd.f32 %v972, %v492
  %v974 = vadd.f32 %v973, %v497
  %v975 = vadd.f32 %v974, %v500
  %v976 = vadd.f32 %v975, %v505
  %v977 = vadd.f32 %v976, %v508
  %v978 = vadd.f32 %v977, %v513
  %v979 = vadd.f32 %v978, %v516
  %v980 = vadd.f32 %v979, %v521
  %v981 = vadd.f32 %v980, %v524
  %v982 = vadd.f32 %v981, %v529
  %v983 = vadd.f32 %v982, %v532
  %v984 = vadd.f32 %v983, %v537
  %v985 = vadd.f32 %v984, %v540
  %v986 = vadd.f32 %v985, %v545
  %v987 = vadd.f32 %v986, %v548
  %v988 = vadd.f32 %v987, %v553
  %v989 = vadd.f32 %v988, %v556
  %v990 = vadd.f32 %v989, %v561
  %v991 = vadd.f32 %v990, %v564
  %v992 = vadd.f32 %v991, %v569
  %v993 = vadd.f32 %v992, %v572
  %v994 = vadd.f32 %v993, %v577
  %v995 = vadd.f32 %v994, %v580
  %v996 = vadd.f32 %v995, %v585
  %v997 = vadd.f32 %v996, %v588
  %v998 = vadd.f32 %v997, %v593
  %v999 = vadd.f32 %v998, %v596
  %v1000 = vadd.f32 %v999, %v601
  %v1001 = vadd.f32 %v1000, %v604
  %v1002 = vadd.f32 %v1001, %v609
  %v1003 = vadd.f32 %v1002, %v612
  %v1004 = vadd.f32 %v1003, %v617
  %v1005 = vadd.f32 %v1004, %v620
  %v1006 = vrot.slane %v1005, 4
  %v1007 = vadd.f32 %v1005, %v1006
  %v1008 = vrot.slane %v1007, 2
  %v1009 = vadd.f32 %v1007, %v1008
  %v1010 = vrot.slane %v1009, 1
  %v1011 = vadd.f32 %v1009, %v1010
  %v1012 = vmul.f32 %v369, %v369
  %v1013 = vmul.f32 %v372, %v372
  %v1014 = vmul.f32 %v377, %v377
  %v1015 = vmul.f32 %v380, %v380
  %v1016 = vmul.f32 %v385, %v385
  %v1017 = vmul.f32 %v388, %v388
  %v1018 = vmul.f32 %v393, %v393
  %v1019 = vmul.f32 %v396, %v396
  %v1020 = vmul.f32 %v401, %v401
  %v1021 = vmul.f32 %v404, %v404
  %v1022 = vmul.f32 %v409, %v409
  %v1023 = vmul.f32 %v412, %v412
  %v1024 = vmul.f32 %v417, %v417
  %v1025 = vmul.f32 %v420, %v420
  %v1026 = vmul.f32 %v425, %v425
  %v1027 = vmul.f32 %v428, %v428
  %v1028 = vmul.f32 %v433, %v433
  %v1029 = vmul.f32 %v436, %v436
  %v1030 = vmul.f32 %v441, %v441
  %v1031 = vmul.f32 %v444, %v444
  %v1032 = vmul.f32 %v449, %v449
  %v1033 = vmul.f32 %v452, %v452
  %v1034 = vmul.f32 %v457, %v457
  %v1035 = vmul.f32 %v460, %v460
  %v1036 = vmul.f32 %v465, %v465
  %v1037 = vmul.f32 %v468, %v468
  %v1038 = vmul.f32 %v473, %v473
  %v1039 = vmul.f32 %v476, %v476
  %v1040 = vmul.f32 %v481, %v481
  %v1041 = vmul.f32 %v484, %v484
  %v1042 = vmul.f32 %v489, %v489
  %v1043 = vmul.f32 %v492, %v492
  %v1044 = vmul.f32 %v497, %v497
  %v1045 = vmul.f32 %v500, %v500
  %v1046 = vmul.f32 %v505, %v505
  %v1047 = vmul.f32 %v508, %v508
  %v1048 = vmul.f32 %v513, %v513
  %v1049 = vmul.f32 %v516, %v516
  %v1050 = vmul.f32 %v521, %v521
  %v1051 = vmul.f32 %v524, %v524
  %v1052 = vmul.f32 %v529, %v529
  %v1053 = vmul.f32 %v532, %v532
  %v1054 = vmul.f32 %v537, %v537
  %v1055 = vmul.f32 %v540, %v540
  %v1056 = vmul.f32 %v545, %v545
  %v1057 = vmul.f32 %v548, %v548
  %v1058 = vmul.f32 %v553, %v553
  %v1059 = vmul.f32 %v556, %v556
  %v1060 = vmul.f32 %v561, %v561
  %v1061 = vmul.f32 %v564, %v564
  %v1062 = vmul.f32 %v569, %v569
  %v1063 = vmul.f32 %v572, %v572
  %v1064 = vmul.f32 %v577, %v577
  %v1065 = vmul.f32 %v580, %v580
  %v1066 = vmul.f32 %v585, %v585
  %v1067 = vmul.f32 %v588, %v588
  %v1068 = vmul.f32 %v593, %v593
  %v1069 = vmul.f32 %v596, %v596
  %v1070 = vmul.f32 %v601, %v601
  %v1071 = vmul.f32 %v604, %v604
  %v1072 = vmul.f32 %v609, %v609
  %v1073 = vmul.f32 %v612, %v612
  %v1074 = vmul.f32 %v617, %v617
  %v1075 = vmul.f32 %v620, %v620
  %v1076 = vadd.f32 %v1012, %v1013
  %v1077 = vadd.f32 %v1076, %v1014
  %v1078 = vadd.f32 %v1077, %v1015
  %v1079 = vadd.f32 %v1078, %v1016
  %v1080 = vadd.f32 %v1079, %v1017
  %v1081 = vadd.f32 %v1080, %v1018
  %v1082 = vadd.f32 %v1081, %v1019
  %v1083 = vadd.f32 %v1082, %v1020
  %v1084 = vadd.f32 %v1083, %v1021
  %v1085 = vadd.f32 %v1084, %v1022
  %v1086 = vadd.f32 %v1085, %v1023
  %v1087 = vadd.f32 %v1086, %v1024
  %v1088 = vadd.f32 %v1087, %v1025
  %v1089 = vadd.f32 %v1088, %v1026
  %v1090 = vadd.f32 %v1089, %v1027
  %v1091 = vadd.f32 %v1090, %v1028
  %v1092 = vadd.f32 %v1091, %v1029
  %v1093 = vadd.f32 %v1092, %v1030
  %v1094 = vadd.f32 %v1093, %v1031
  %v1095 = vadd.f32 %v1094, %v1032
  %v1096 = vadd.f32 %v1095, %v1033
  %v1097 = vadd.f32 %v1096, %v1034
  %v1098 = vadd.f32 %v1097, %v1035
  %v1099 = vadd.f32 %v1098, %v1036
  %v1100 = vadd.f32 %v1099, %v1037
  %v1101 = vadd.f32 %v1100, %v1038
  %v1102 = vadd.f32 %v1101, %v1039
  %v1103 = vadd.f32 %v1102, %v1040
  %v1104 = vadd.f32 %v1103, %v1041
  %v1105 = vadd.f32 %v1104, %v1042
  %v1106 = vadd.f32 %v1105, %v1043
  %v1107 = vadd.f32 %v1106, %v1044
  %v1108 = vadd.f32 %v1107, %v1045
  %v1109 = vadd.f32 %v1108, %v1046
  %v1110 = vadd.f32 %v1109, %v1047
  %v1111 = vadd.f32 %v1110, %v1048
  %v1112 = vadd.f32 %v1111, %v1049
  %v1113 = vadd.f32 %v1112, %v1050
  %v1114 = vadd.f32 %v1113, %v1051
  %v1115 = vadd.f32 %v1114, %v1052
  %v1116 = vadd.f32 %v1115, %v1053
  %v1117 = vadd.f32 %v1116, %v1054
  %v1118 = vadd.f32 %v1117, %v1055
  %v1119 = vadd.f32 %v1118, %v1056
  %v1120 = vadd.f32 %v1119, %v1057
  %v1121 = vadd.f32 %v1120, %v1058
  %v1122 = vadd.f32 %v1121, %v1059
  %v1123 = vadd.f32 %v1122, %v1060
  %v1124 = vadd.f32 %v1123, %v1061
  %v1125 = vadd.f32 %v1124, %v1062
  %v1126 = vadd.f32 %v1125, %v1063
  %v1127 = vadd.f32 %v1126, %v1064
  %v1128 = vadd.f32 %v1127, %v1065
  %v1129 = vadd.f32 %v1128, %v1066
  %v1130 = vadd.f32 %v1129, %v1067
  %v1131 = vadd.f32 %v1130, %v1068
  %v1132 = vadd.f32 %v1131, %v1069
  %v1133 = vadd.f32 %v1132, %v1070
  %v1134 = vadd.f32 %v1133, %v1071
  %v1135 = vadd.f32 %v1134, %v1072
  %v1136 = vadd.f32 %v1135, %v1073
  %v1137 = vadd.f32 %v1136, %v1074
  %v1138 = vadd.f32 %v1137, %v1075
  %v1139 = vrot.slane %v1138, 4
  %v1140 = vadd.f32 %v1138, %v1139
  %v1141 = vrot.slane %v1140, 2
  %v1142 = vadd.f32 %v1140, %v1141
  %v1143 = vrot.slane %v1142, 1
  %v1144 = vadd.f32 %v1142, %v1143
  %vm1145 = vcmask 1040384
  %v1146 = vsel %vm1145, %v1011, %v1144
  %1147 = vst [vmem:[%s3] sm:$0x3] %v1146
  // Predicated region
  $region10: #{bottleneck_forward.4} parent=0 // pred_check
    _
  $region11: #{bottleneck_forward.4} parent=0 // pred_check_branch
    %1149 = sbr.rel (0) target = $region13
  $region12: #{bottleneck_forward.4} parent=0 // pred_region
    _
  $region13: #{bottleneck_forward.4} parent=0 // pred_fallthru
    _
  // Predicated region
  $region14: #{bottleneck_forward.4} parent=0 // pred_check
    _
  $region15: #{bottleneck_forward.4} parent=0 // pred_check_branch
    %1151 = sbr.rel (0) target = $region17
  $region16: #{bottleneck_forward.4} parent=0 // pred_region
    _
  $region17: #{bottleneck_forward.4} parent=0 // pred_fallthru
    _
  // Predicated region
  $region18: #{bottleneck_forward.4} parent=0 // pred_check
    _
  $region19: #{bottleneck_forward.4} parent=0 // pred_check_branch
    %1153 = sbr.rel (0) target = $region21
  $region20: #{bottleneck_forward.4} parent=0 // pred_region
    _
  $region21: #{bottleneck_forward.4} parent=0 // pred_fallthru
    _
  // Predicated region
  $region22: #{bottleneck_forward.4} parent=0 // pred_check
    _
  $region23: #{bottleneck_forward.4} parent=0 // pred_check_branch
    %1155 = sbr.rel (0) target = $region25
  $region24: #{bottleneck_forward.4} parent=0 // pred_region
    _
  $region25: #{bottleneck_forward.4} parent=0 // pred_fallthru
    _

// kernel: bottleneck_forward.7
$region0: #{bottleneck_forward.7}
  #allocation0 [shape = 'u32[]', space=smem, size = 0x4, offset = 0x4, fixed_abs, tag = 'smem constant byte address 0x4 - core index']
  #allocation1 [shape = 'u32[144,128]{1,0:T(1,128)}', space=vmem, size = 0x12000, scoped, tag = 'internal scratch']
  %s0 = inlined_call_operand.vmem [shape: bf16[2,16,16,128], index: 0, kind: input, shape index: {}]
  %s1 = inlined_call_operand.vmem [shape: f32[2,16,16,32], index: 1, kind: input, shape index: {}]
  %s2 = inlined_call_operand.vmem [shape: f32[1,128], index: 2, kind: input, shape index: {}]
  %s3 = inlined_call_operand.vmem [shape: f32[1,128], index: 3, kind: input, shape index: {}]
  %s4 = inlined_call_operand.hbm [shape: f32[2,16,16,32], index: 4, kind: output, shape index: {}]
  %s5 = sld [smem:[#allocation0]]
  $region26: #{bottleneck_forward.7} parent=0
    _
  %s7 = ssub.s32 1, %s5
  %s8 = scalar_select 0, %s7, %s5
  $region1: #{bottleneck_forward.7} parent=0
    #allocation2 [shape = 'u8[262144]{0}', space=vmem, size = 0x40000, scoped, tag = 'output window, operand 0, single buffered']
    #allocation3 [shape = 's32[1]{0}', space=sflag, size = 0x4, scoped, tag = 'scoped memory for bottleneck_forward.7']
    %9 = vsyncpa [#allocation3], 0
    // Predicated region
    $region2: #{bottleneck_forward.7} parent=1 // pred_check
      _
    $region3: #{bottleneck_forward.7} parent=1 // pred_check_branch
      %11 = sbr.rel (0) target = $region5
    $region4: #{bottleneck_forward.7} parent=1 // pred_region
      _
    $region5: #{bottleneck_forward.7} parent=1 // pred_fallthru
      _
    // Predicated region
    $region6: #{bottleneck_forward.7} parent=1 // pred_check
      _
    $region7: #{bottleneck_forward.7} parent=1 // pred_check_branch
      %13 = sbr.rel (0) target = $region9
    $region8: #{bottleneck_forward.7} parent=1 // pred_region
      _
    $region9: #{bottleneck_forward.7} parent=1 // pred_fallthru
      _
    // Predicated region
    $region10: #{bottleneck_forward.7} parent=1 // pred_check
      _
    $region11: #{bottleneck_forward.7} parent=1 // pred_check_branch
      %15 = sbr.rel (0) target = $region13
    $region12: #{bottleneck_forward.7} parent=1 // pred_region
      _
    $region13: #{bottleneck_forward.7} parent=1 // pred_fallthru
      _
    // Predicated region
    $region14: #{bottleneck_forward.7} parent=1 // pred_check
      _
    $region15: #{bottleneck_forward.7} parent=1 // pred_check_branch
      %17 = sbr.rel (0) target = $region17
    $region16: #{bottleneck_forward.7} parent=1 // pred_region
      _
    $region17: #{bottleneck_forward.7} parent=1 // pred_fallthru
      _
    %v18 = vld [vmem:[%s0] sm:$0xf]
    %v19 = vld [vmem:[%s0 + $0x4] sm:$0xf]
    %v20 = vld [vmem:[%s0 + $0x8] sm:$0xf]
    %v21 = vld [vmem:[%s0 + $0xc] sm:$0xf]
    %v22 = vld [vmem:[%s0 + $0x10] sm:$0xf]
    %v23 = vld [vmem:[%s0 + $0x14] sm:$0xf]
    %v24 = vld [vmem:[%s0 + $0x18] sm:$0xf]
    %v25 = vld [vmem:[%s0 + $0x1c] sm:$0xf]
    %v26 = vld [vmem:[%s0 + $0x20] sm:$0xf]
    %v27 = vld [vmem:[%s0 + $0x24] sm:$0xf]
    %v28 = vld [vmem:[%s0 + $0x28] sm:$0xf]
    %v29 = vld [vmem:[%s0 + $0x2c] sm:$0xf]
    %v30 = vld [vmem:[%s0 + $0x30] sm:$0xf]
    %v31 = vld [vmem:[%s0 + $0x34] sm:$0xf]
    %v32 = vld [vmem:[%s0 + $0x38] sm:$0xf]
    %v33 = vld [vmem:[%s0 + $0x3c] sm:$0xf]
    %v34 = vld [vmem:[%s0 + $0x40] sm:$0xf]
    %v35 = vld [vmem:[%s0 + $0x44] sm:$0xf]
    %v36 = vld [vmem:[%s0 + $0x48] sm:$0xf]
    %v37 = vld [vmem:[%s0 + $0x4c] sm:$0xf]
    %v38 = vld [vmem:[%s0 + $0x50] sm:$0xf]
    %v39 = vld [vmem:[%s0 + $0x54] sm:$0xf]
    %v40 = vld [vmem:[%s0 + $0x58] sm:$0xf]
    %v41 = vld [vmem:[%s0 + $0x5c] sm:$0xf]
    %v42 = vld [vmem:[%s0 + $0x60] sm:$0xf]
    %v43 = vld [vmem:[%s0 + $0x64] sm:$0xf]
    %v44 = vld [vmem:[%s0 + $0x68] sm:$0xf]
    %v45 = vld [vmem:[%s0 + $0x6c] sm:$0xf]
    %v46 = vld [vmem:[%s0 + $0x70] sm:$0xf]
    %v47 = vld [vmem:[%s0 + $0x74] sm:$0xf]
    %v48 = vld [vmem:[%s0 + $0x78] sm:$0xf]
    %v49 = vld [vmem:[%s0 + $0x7c] sm:$0xf]
    %v50 = vld [vmem:[%s0 + $0x80] sm:$0xf]
    %v51 = vld [vmem:[%s0 + $0x84] sm:$0xf]
    %v52 = vld [vmem:[%s0 + $0x88] sm:$0xf]
    %v53 = vld [vmem:[%s0 + $0x8c] sm:$0xf]
    %v54 = vld [vmem:[%s0 + $0x90] sm:$0xf]
    %v55 = vld [vmem:[%s0 + $0x94] sm:$0xf]
    %v56 = vld [vmem:[%s0 + $0x98] sm:$0xf]
    %v57 = vld [vmem:[%s0 + $0x9c] sm:$0xf]
    %v58 = vld [vmem:[%s0 + $0xa0] sm:$0xf]
    %v59 = vld [vmem:[%s0 + $0xa4] sm:$0xf]
    %v60 = vld [vmem:[%s0 + $0xa8] sm:$0xf]
    %v61 = vld [vmem:[%s0 + $0xac] sm:$0xf]
    %v62 = vld [vmem:[%s0 + $0xb0] sm:$0xf]
    %v63 = vld [vmem:[%s0 + $0xb4] sm:$0xf]
    %v64 = vld [vmem:[%s0 + $0xb8] sm:$0xf]
    %v65 = vld [vmem:[%s0 + $0xbc] sm:$0xf]
    %v66 = vld [vmem:[%s0 + $0xc0] sm:$0xf]
    %v67 = vld [vmem:[%s0 + $0xc4] sm:$0xf]
    %v68 = vld [vmem:[%s0 + $0xc8] sm:$0xf]
    %v69 = vld [vmem:[%s0 + $0xcc] sm:$0xf]
    %v70 = vld [vmem:[%s0 + $0xd0] sm:$0xf]
    %v71 = vld [vmem:[%s0 + $0xd4] sm:$0xf]
    %v72 = vld [vmem:[%s0 + $0xd8] sm:$0xf]
    %v73 = vld [vmem:[%s0 + $0xdc] sm:$0xf]
    %v74 = vld [vmem:[%s0 + $0xe0] sm:$0xf]
    %v75 = vld [vmem:[%s0 + $0xe4] sm:$0xf]
    %v76 = vld [vmem:[%s0 + $0xe8] sm:$0xf]
    %v77 = vld [vmem:[%s0 + $0xec] sm:$0xf]
    %v78 = vld [vmem:[%s0 + $0xf0] sm:$0xf]
    %v79 = vld [vmem:[%s0 + $0xf4] sm:$0xf]
    %v80 = vld [vmem:[%s0 + $0xf8] sm:$0xf]
    %v81 = vld [vmem:[%s0 + $0xfc] sm:$0xf]
    %v82 = vunpack.c.l.bf16 %v18
    %v83 = vunpack.c.l.bf16 %v19
    %v84 = vunpack.c.l.bf16 %v20
    %v85 = vunpack.c.l.bf16 %v21
    %v86 = vunpack.c.l.bf16 %v22
    %v87 = vunpack.c.l.bf16 %v23
    %v88 = vunpack.c.l.bf16 %v24
    %v89 = vunpack.c.l.bf16 %v25
    %v90 = vunpack.c.l.bf16 %v26
    %v91 = vunpack.c.l.bf16 %v27
    %v92 = vunpack.c.l.bf16 %v28
    %v93 = vunpack.c.l.bf16 %v29
    %v94 = vunpack.c.l.bf16 %v30
    %v95 = vunpack.c.l.bf16 %v31
    %v96 = vunpack.c.l.bf16 %v32
    %v97 = vunpack.c.l.bf16 %v33
    %v98 = vunpack.c.l.bf16 %v34
    %v99 = vunpack.c.l.bf16 %v35
    %v100 = vunpack.c.l.bf16 %v36
    %v101 = vunpack.c.l.bf16 %v37
    %v102 = vunpack.c.l.bf16 %v38
    %v103 = vunpack.c.l.bf16 %v39
    %v104 = vunpack.c.l.bf16 %v40
    %v105 = vunpack.c.l.bf16 %v41
    %v106 = vunpack.c.l.bf16 %v42
    %v107 = vunpack.c.l.bf16 %v43
    %v108 = vunpack.c.l.bf16 %v44
    %v109 = vunpack.c.l.bf16 %v45
    %v110 = vunpack.c.l.bf16 %v46
    %v111 = vunpack.c.l.bf16 %v47
    %v112 = vunpack.c.l.bf16 %v48
    %v113 = vunpack.c.l.bf16 %v49
    %v114 = vunpack.c.l.bf16 %v50
    %v115 = vunpack.c.l.bf16 %v51
    %v116 = vunpack.c.l.bf16 %v52
    %v117 = vunpack.c.l.bf16 %v53
    %v118 = vunpack.c.l.bf16 %v54
    %v119 = vunpack.c.l.bf16 %v55
    %v120 = vunpack.c.l.bf16 %v56
    %v121 = vunpack.c.l.bf16 %v57
    %v122 = vunpack.c.l.bf16 %v58
    %v123 = vunpack.c.l.bf16 %v59
    %v124 = vunpack.c.l.bf16 %v60
    %v125 = vunpack.c.l.bf16 %v61
    %v126 = vunpack.c.l.bf16 %v62
    %v127 = vunpack.c.l.bf16 %v63
    %v128 = vunpack.c.l.bf16 %v64
    %v129 = vunpack.c.l.bf16 %v65
    %v130 = vunpack.c.l.bf16 %v66
    %v131 = vunpack.c.l.bf16 %v67
    %v132 = vunpack.c.l.bf16 %v68
    %v133 = vunpack.c.l.bf16 %v69
    %v134 = vunpack.c.l.bf16 %v70
    %v135 = vunpack.c.l.bf16 %v71
    %v136 = vunpack.c.l.bf16 %v72
    %v137 = vunpack.c.l.bf16 %v73
    %v138 = vunpack.c.l.bf16 %v74
    %v139 = vunpack.c.l.bf16 %v75
    %v140 = vunpack.c.l.bf16 %v76
    %v141 = vunpack.c.l.bf16 %v77
    %v142 = vunpack.c.l.bf16 %v78
    %v143 = vunpack.c.l.bf16 %v79
    %v144 = vunpack.c.l.bf16 %v80
    %v145 = vunpack.c.l.bf16 %v81
    %v146 = vld [vmem:[%s2] sm:$0x1]
    %v148 = vlaneseq
    %v149 = vshrl.u32 %v148, 7
    %v150 = vsub.s32 0, %v149
    %v151 = vrot.slane %v146, %v150
    %v153 = vmul.f32 %v82, %v151
    %v154 = vmul.f32 %v83, %v151
    %v155 = vmul.f32 %v84, %v151
    %v156 = vmul.f32 %v85, %v151
    %v157 = vmul.f32 %v86, %v151
    %v158 = vmul.f32 %v87, %v151
    %v159 = vmul.f32 %v88, %v151
    %v160 = vmul.f32 %v89, %v151
    %v161 = vmul.f32 %v90, %v151
    %v162 = vmul.f32 %v91, %v151
    %v163 = vmul.f32 %v92, %v151
    %v164 = vmul.f32 %v93, %v151
    %v165 = vmul.f32 %v94, %v151
    %v166 = vmul.f32 %v95, %v151
    %v167 = vmul.f32 %v96, %v151
    %v168 = vmul.f32 %v97, %v151
    %v169 = vmul.f32 %v98, %v151
    %v170 = vmul.f32 %v99, %v151
    %v171 = vmul.f32 %v100, %v151
    %v172 = vmul.f32 %v101, %v151
    %v173 = vmul.f32 %v102, %v151
    %v174 = vmul.f32 %v103, %v151
    %v175 = vmul.f32 %v104, %v151
    %v176 = vmul.f32 %v105, %v151
    %v177 = vmul.f32 %v106, %v151
    %v178 = vmul.f32 %v107, %v151
    %v179 = vmul.f32 %v108, %v151
    %v180 = vmul.f32 %v109, %v151
    %v181 = vmul.f32 %v110, %v151
    %v182 = vmul.f32 %v111, %v151
    %v183 = vmul.f32 %v112, %v151
    %v184 = vmul.f32 %v113, %v151
    %v185 = vmul.f32 %v114, %v151
    %v186 = vmul.f32 %v115, %v151
    %v187 = vmul.f32 %v116, %v151
    %v188 = vmul.f32 %v117, %v151
    %v189 = vmul.f32 %v118, %v151
    %v190 = vmul.f32 %v119, %v151
    %v191 = vmul.f32 %v120, %v151
    %v192 = vmul.f32 %v121, %v151
    %v193 = vmul.f32 %v122, %v151
    %v194 = vmul.f32 %v123, %v151
    %v195 = vmul.f32 %v124, %v151
    %v196 = vmul.f32 %v125, %v151
    %v197 = vmul.f32 %v126, %v151
    %v198 = vmul.f32 %v127, %v151
    %v199 = vmul.f32 %v128, %v151
    %v200 = vmul.f32 %v129, %v151
    %v201 = vmul.f32 %v130, %v151
    %v202 = vmul.f32 %v131, %v151
    %v203 = vmul.f32 %v132, %v151
    %v204 = vmul.f32 %v133, %v151
    %v205 = vmul.f32 %v134, %v151
    %v206 = vmul.f32 %v135, %v151
    %v207 = vmul.f32 %v136, %v151
    %v208 = vmul.f32 %v137, %v151
    %v209 = vmul.f32 %v138, %v151
    %v210 = vmul.f32 %v139, %v151
    %v211 = vmul.f32 %v140, %v151
    %v212 = vmul.f32 %v141, %v151
    %v213 = vmul.f32 %v142, %v151
    %v214 = vmul.f32 %v143, %v151
    %v215 = vmul.f32 %v144, %v151
    %v216 = vmul.f32 %v145, %v151
    %v217 = vld [vmem:[%s3] sm:$0x1]
    %v219 = vlaneseq
    %v220 = vshrl.u32 %v219, 7
    %v221 = vsub.s32 0, %v220
    %v222 = vrot.slane %v217, %v221
    %v224 = vadd.f32 %v153, %v222
    %v225 = vadd.f32 %v154, %v222
    %v226 = vadd.f32 %v155, %v222
    %v227 = vadd.f32 %v156, %v222
    %v228 = vadd.f32 %v157, %v222
    %v229 = vadd.f32 %v158, %v222
    %v230 = vadd.f32 %v159, %v222
    %v231 = vadd.f32 %v160, %v222
    %v232 = vadd.f32 %v161, %v222
    %v233 = vadd.f32 %v162, %v222
    %v234 = vadd.f32 %v163, %v222
    %v235 = vadd.f32 %v164, %v222
    %v236 = vadd.f32 %v165, %v222
    %v237 = vadd.f32 %v166, %v222
    %v238 = vadd.f32 %v167, %v222
    %v239 = vadd.f32 %v168, %v222
    %v240 = vadd.f32 %v169, %v222
    %v241 = vadd.f32 %v170, %v222
    %v242 = vadd.f32 %v171, %v222
    %v243 = vadd.f32 %v172, %v222
    %v244 = vadd.f32 %v173, %v222
    %v245 = vadd.f32 %v174, %v222
    %v246 = vadd.f32 %v175, %v222
    %v247 = vadd.f32 %v176, %v222
    %v248 = vadd.f32 %v177, %v222
    %v249 = vadd.f32 %v178, %v222
    %v250 = vadd.f32 %v179, %v222
    %v251 = vadd.f32 %v180, %v222
    %v252 = vadd.f32 %v181, %v222
    %v253 = vadd.f32 %v182, %v222
    %v254 = vadd.f32 %v183, %v222
    %v255 = vadd.f32 %v184, %v222
    %v256 = vadd.f32 %v185, %v222
    %v257 = vadd.f32 %v186, %v222
    %v258 = vadd.f32 %v187, %v222
    %v259 = vadd.f32 %v188, %v222
    %v260 = vadd.f32 %v189, %v222
    %v261 = vadd.f32 %v190, %v222
    %v262 = vadd.f32 %v191, %v222
    %v263 = vadd.f32 %v192, %v222
    %v264 = vadd.f32 %v193, %v222
    %v265 = vadd.f32 %v194, %v222
    %v266 = vadd.f32 %v195, %v222
    %v267 = vadd.f32 %v196, %v222
    %v268 = vadd.f32 %v197, %v222
    %v269 = vadd.f32 %v198, %v222
    %v270 = vadd.f32 %v199, %v222
    %v271 = vadd.f32 %v200, %v222
    %v272 = vadd.f32 %v201, %v222
    %v273 = vadd.f32 %v202, %v222
    %v274 = vadd.f32 %v203, %v222
    %v275 = vadd.f32 %v204, %v222
    %v276 = vadd.f32 %v205, %v222
    %v277 = vadd.f32 %v206, %v222
    %v278 = vadd.f32 %v207, %v222
    %v279 = vadd.f32 %v208, %v222
    %v280 = vadd.f32 %v209, %v222
    %v281 = vadd.f32 %v210, %v222
    %v282 = vadd.f32 %v211, %v222
    %v283 = vadd.f32 %v212, %v222
    %v284 = vadd.f32 %v213, %v222
    %v285 = vadd.f32 %v214, %v222
    %v286 = vadd.f32 %v215, %v222
    %v287 = vadd.f32 %v216, %v222
    %v288 = vld [vmem:[%s1] sm:$0xff]
    %v289 = vld [vmem:[%s1 + $0x8] sm:$0xff]
    %v290 = vld [vmem:[%s1 + $0x10] sm:$0xff]
    %v291 = vld [vmem:[%s1 + $0x18] sm:$0xff]
    %v292 = vld [vmem:[%s1 + $0x20] sm:$0xff]
    %v293 = vld [vmem:[%s1 + $0x28] sm:$0xff]
    %v294 = vld [vmem:[%s1 + $0x30] sm:$0xff]
    %v295 = vld [vmem:[%s1 + $0x38] sm:$0xff]
    %v296 = vld [vmem:[%s1 + $0x40] sm:$0xff]
    %v297 = vld [vmem:[%s1 + $0x48] sm:$0xff]
    %v298 = vld [vmem:[%s1 + $0x50] sm:$0xff]
    %v299 = vld [vmem:[%s1 + $0x58] sm:$0xff]
    %v300 = vld [vmem:[%s1 + $0x60] sm:$0xff]
    %v301 = vld [vmem:[%s1 + $0x68] sm:$0xff]
    %v302 = vld [vmem:[%s1 + $0x70] sm:$0xff]
    %v303 = vld [vmem:[%s1 + $0x78] sm:$0xff]
    %v304 = vld [vmem:[%s1 + $0x80] sm:$0xff]
    %v305 = vld [vmem:[%s1 + $0x88] sm:$0xff]
    %v306 = vld [vmem:[%s1 + $0x90] sm:$0xff]
    %v307 = vld [vmem:[%s1 + $0x98] sm:$0xff]
    %v308 = vld [vmem:[%s1 + $0xa0] sm:$0xff]
    %v309 = vld [vmem:[%s1 + $0xa8] sm:$0xff]
    %v310 = vld [vmem:[%s1 + $0xb0] sm:$0xff]
    %v311 = vld [vmem:[%s1 + $0xb8] sm:$0xff]
    %v312 = vld [vmem:[%s1 + $0xc0] sm:$0xff]
    %v313 = vld [vmem:[%s1 + $0xc8] sm:$0xff]
    %v314 = vld [vmem:[%s1 + $0xd0] sm:$0xff]
    %v315 = vld [vmem:[%s1 + $0xd8] sm:$0xff]
    %v316 = vld [vmem:[%s1 + $0xe0] sm:$0xff]
    %v317 = vld [vmem:[%s1 + $0xe8] sm:$0xff]
    %v318 = vld [vmem:[%s1 + $0xf0] sm:$0xff]
    %v319 = vld [vmem:[%s1 + $0xf8] sm:$0xff]
    %v320 = vld [vmem:[%s1 + $0x100] sm:$0xff]
    %v321 = vld [vmem:[%s1 + $0x108] sm:$0xff]
    %v322 = vld [vmem:[%s1 + $0x110] sm:$0xff]
    %v323 = vld [vmem:[%s1 + $0x118] sm:$0xff]
    %v324 = vld [vmem:[%s1 + $0x120] sm:$0xff]
    %v325 = vld [vmem:[%s1 + $0x128] sm:$0xff]
    %v326 = vld [vmem:[%s1 + $0x130] sm:$0xff]
    %v327 = vld [vmem:[%s1 + $0x138] sm:$0xff]
    %v328 = vld [vmem:[%s1 + $0x140] sm:$0xff]
    %v329 = vld [vmem:[%s1 + $0x148] sm:$0xff]
    %v330 = vld [vmem:[%s1 + $0x150] sm:$0xff]
    %v331 = vld [vmem:[%s1 + $0x158] sm:$0xff]
    %v332 = vld [vmem:[%s1 + $0x160] sm:$0xff]
    %v333 = vld [vmem:[%s1 + $0x168] sm:$0xff]
    %v334 = vld [vmem:[%s1 + $0x170] sm:$0xff]
    %v335 = vld [vmem:[%s1 + $0x178] sm:$0xff]
    %v336 = vld [vmem:[%s1 + $0x180] sm:$0xff]
    %v337 = vld [vmem:[%s1 + $0x188] sm:$0xff]
    %v338 = vld [vmem:[%s1 + $0x190] sm:$0xff]
    %v339 = vld [vmem:[%s1 + $0x198] sm:$0xff]
    %v340 = vld [vmem:[%s1 + $0x1a0] sm:$0xff]
    %v341 = vld [vmem:[%s1 + $0x1a8] sm:$0xff]
    %v342 = vld [vmem:[%s1 + $0x1b0] sm:$0xff]
    %v343 = vld [vmem:[%s1 + $0x1b8] sm:$0xff]
    %v344 = vld [vmem:[%s1 + $0x1c0] sm:$0xff]
    %v345 = vld [vmem:[%s1 + $0x1c8] sm:$0xff]
    %v346 = vld [vmem:[%s1 + $0x1d0] sm:$0xff]
    %v347 = vld [vmem:[%s1 + $0x1d8] sm:$0xff]
    %v348 = vld [vmem:[%s1 + $0x1e0] sm:$0xff]
    %v349 = vld [vmem:[%s1 + $0x1e8] sm:$0xff]
    %v350 = vld [vmem:[%s1 + $0x1f0] sm:$0xff]
    %v351 = vld [vmem:[%s1 + $0x1f8] sm:$0xff]
    %v352 = vadd.f32 %v224, %v288
    %v353 = vadd.f32 %v225, %v289
    %v354 = vadd.f32 %v226, %v290
    %v355 = vadd.f32 %v227, %v291
    %v356 = vadd.f32 %v228, %v292
    %v357 = vadd.f32 %v229, %v293
    %v358 = vadd.f32 %v230, %v294
    %v359 = vadd.f32 %v231, %v295
    %v360 = vadd.f32 %v232, %v296
    %v361 = vadd.f32 %v233, %v297
    %v362 = vadd.f32 %v234, %v298
    %v363 = vadd.f32 %v235, %v299
    %v364 = vadd.f32 %v236, %v300
    %v365 = vadd.f32 %v237, %v301
    %v366 = vadd.f32 %v238, %v302
    %v367 = vadd.f32 %v239, %v303
    %v368 = vadd.f32 %v240, %v304
    %v369 = vadd.f32 %v241, %v305
    %v370 = vadd.f32 %v242, %v306
    %v371 = vadd.f32 %v243, %v307
    %v372 = vadd.f32 %v244, %v308
    %v373 = vadd.f32 %v245, %v309
    %v374 = vadd.f32 %v246, %v310
    %v375 = vadd.f32 %v247, %v311
    %v376 = vadd.f32 %v248, %v312
    %v377 = vadd.f32 %v249, %v313
    %v378 = vadd.f32 %v250, %v314
    %v379 = vadd.f32 %v251, %v315
    %v380 = vadd.f32 %v252, %v316
    %v381 = vadd.f32 %v253, %v317
    %v382 = vadd.f32 %v254, %v318
    %v383 = vadd.f32 %v255, %v319
    %v384 = vadd.f32 %v256, %v320
    %v385 = vadd.f32 %v257, %v321
    %v386 = vadd.f32 %v258, %v322
    %v387 = vadd.f32 %v259, %v323
    %v388 = vadd.f32 %v260, %v324
    %v389 = vadd.f32 %v261, %v325
    %v390 = vadd.f32 %v262, %v326
    %v391 = vadd.f32 %v263, %v327
    %v392 = vadd.f32 %v264, %v328
    %v393 = vadd.f32 %v265, %v329
    %v394 = vadd.f32 %v266, %v330
    %v395 = vadd.f32 %v267, %v331
    %v396 = vadd.f32 %v268, %v332
    %v397 = vadd.f32 %v269, %v333
    %v398 = vadd.f32 %v270, %v334
    %v399 = vadd.f32 %v271, %v335
    %v400 = vadd.f32 %v272, %v336
    %v401 = vadd.f32 %v273, %v337
    %v402 = vadd.f32 %v274, %v338
    %v403 = vadd.f32 %v275, %v339
    %v404 = vadd.f32 %v276, %v340
    %v405 = vadd.f32 %v277, %v341
    %v406 = vadd.f32 %v278, %v342
    %v407 = vadd.f32 %v279, %v343
    %v408 = vadd.f32 %v280, %v344
    %v409 = vadd.f32 %v281, %v345
    %v410 = vadd.f32 %v282, %v346
    %v411 = vadd.f32 %v283, %v347
    %v412 = vadd.f32 %v284, %v348
    %v413 = vadd.f32 %v285, %v349
    %v414 = vadd.f32 %v286, %v350
    %v415 = vadd.f32 %v287, %v351
    %v416 = vmax.f32 %v352, 0.0
    %v417 = vmax.f32 %v353, 0.0
    %v418 = vmax.f32 %v354, 0.0
    %v419 = vmax.f32 %v355, 0.0
    %v420 = vmax.f32 %v356, 0.0
    %v421 = vmax.f32 %v357, 0.0
    %v422 = vmax.f32 %v358, 0.0
    %v423 = vmax.f32 %v359, 0.0
    %v424 = vmax.f32 %v360, 0.0
    %v425 = vmax.f32 %v361, 0.0
    %v426 = vmax.f32 %v362, 0.0
    %v427 = vmax.f32 %v363, 0.0
    %v428 = vmax.f32 %v364, 0.0
    %v429 = vmax.f32 %v365, 0.0
    %v430 = vmax.f32 %v366, 0.0
    %v431 = vmax.f32 %v367, 0.0
    %v432 = vmax.f32 %v368, 0.0
    %v433 = vmax.f32 %v369, 0.0
    %v434 = vmax.f32 %v370, 0.0
    %v435 = vmax.f32 %v371, 0.0
    %v436 = vmax.f32 %v372, 0.0
    %v437 = vmax.f32 %v373, 0.0
    %v438 = vmax.f32 %v374, 0.0
    %v439 = vmax.f32 %v375, 0.0
    %v440 = vmax.f32 %v376, 0.0
    %v441 = vmax.f32 %v377, 0.0
    %v442 = vmax.f32 %v378, 0.0
    %v443 = vmax.f32 %v379, 0.0
    %v444 = vmax.f32 %v380, 0.0
    %v445 = vmax.f32 %v381, 0.0
    %v446 = vmax.f32 %v382, 0.0
    %v447 = vmax.f32 %v383, 0.0
    %v448 = vmax.f32 %v384, 0.0
    %v449 = vmax.f32 %v385, 0.0
    %v450 = vmax.f32 %v386, 0.0
    %v451 = vmax.f32 %v387, 0.0
    %v452 = vmax.f32 %v388, 0.0
    %v453 = vmax.f32 %v389, 0.0
    %v454 = vmax.f32 %v390, 0.0
    %v455 = vmax.f32 %v391, 0.0
    %v456 = vmax.f32 %v392, 0.0
    %v457 = vmax.f32 %v393, 0.0
    %v458 = vmax.f32 %v394, 0.0
    %v459 = vmax.f32 %v395, 0.0
    %v460 = vmax.f32 %v396, 0.0
    %v461 = vmax.f32 %v397, 0.0
    %v462 = vmax.f32 %v398, 0.0
    %v463 = vmax.f32 %v399, 0.0
    %v464 = vmax.f32 %v400, 0.0
    %v465 = vmax.f32 %v401, 0.0
    %v466 = vmax.f32 %v402, 0.0
    %v467 = vmax.f32 %v403, 0.0
    %v468 = vmax.f32 %v404, 0.0
    %v469 = vmax.f32 %v405, 0.0
    %v470 = vmax.f32 %v406, 0.0
    %v471 = vmax.f32 %v407, 0.0
    %v472 = vmax.f32 %v408, 0.0
    %v473 = vmax.f32 %v409, 0.0
    %v474 = vmax.f32 %v410, 0.0
    %v475 = vmax.f32 %v411, 0.0
    %v476 = vmax.f32 %v412, 0.0
    %v477 = vmax.f32 %v413, 0.0
    %v478 = vmax.f32 %v414, 0.0
    %v479 = vmax.f32 %v415, 0.0
    %vm480 = vcmask 261120
    %481 = vst.msk [vmem:[#allocation2] sm:$0xff] %vm480, %v416
    %482 = vst.msk [vmem:[#allocation2 + $0x8] sm:$0xff] %vm480, %v417
    %483 = vst.msk [vmem:[#allocation2 + $0x10] sm:$0xff] %vm480, %v418
    %484 = vst.msk [vmem:[#allocation2 + $0x18] sm:$0xff] %vm480, %v419
    %485 = vst.msk [vmem:[#allocation2 + $0x20] sm:$0xff] %vm480, %v420
    %486 = vst.msk [vmem:[#allocation2 + $0x28] sm:$0xff] %vm480, %v421
    %487 = vst.msk [vmem:[#allocation2 + $0x30] sm:$0xff] %vm480, %v422
    %488 = vst.msk [vmem:[#allocation2 + $0x38] sm:$0xff] %vm480, %v423
    %489 = vst.msk [vmem:[#allocation2 + $0x40] sm:$0xff] %vm480, %v424
    %490 = vst.msk [vmem:[#allocation2 + $0x48] sm:$0xff] %vm480, %v425
    %491 = vst.msk [vmem:[#allocation2 + $0x50] sm:$0xff] %vm480, %v426
    %492 = vst.msk [vmem:[#allocation2 + $0x58] sm:$0xff] %vm480, %v427
    %493 = vst.msk [vmem:[#allocation2 + $0x60] sm:$0xff] %vm480, %v428
    %494 = vst.msk [vmem:[#allocation2 + $0x68] sm:$0xff] %vm480, %v429
    %495 = vst.msk [vmem:[#allocation2 + $0x70] sm:$0xff] %vm480, %v430
    %496 = vst.msk [vmem:[#allocation2 + $0x78] sm:$0xff] %vm480, %v431
    %497 = vst.msk [vmem:[#allocation2 + $0x80] sm:$0xff] %vm480, %v432
    %498 = vst.msk [vmem:[#allocation2 + $0x88] sm:$0xff] %vm480, %v433
    %499 = vst.msk [vmem:[#allocation2 + $0x90] sm:$0xff] %vm480, %v434
    %500 = vst.msk [vmem:[#allocation2 + $0x98] sm:$0xff] %vm480, %v435
    %501 = vst.msk [vmem:[#allocation2 + $0xa0] sm:$0xff] %vm480, %v436
    %502 = vst.msk [vmem:[#allocation2 + $0xa8] sm:$0xff] %vm480, %v437
    %503 = vst.msk [vmem:[#allocation2 + $0xb0] sm:$0xff] %vm480, %v438
    %504 = vst.msk [vmem:[#allocation2 + $0xb8] sm:$0xff] %vm480, %v439
    %505 = vst.msk [vmem:[#allocation2 + $0xc0] sm:$0xff] %vm480, %v440
    %506 = vst.msk [vmem:[#allocation2 + $0xc8] sm:$0xff] %vm480, %v441
    %507 = vst.msk [vmem:[#allocation2 + $0xd0] sm:$0xff] %vm480, %v442
    %508 = vst.msk [vmem:[#allocation2 + $0xd8] sm:$0xff] %vm480, %v443
    %509 = vst.msk [vmem:[#allocation2 + $0xe0] sm:$0xff] %vm480, %v444
    %510 = vst.msk [vmem:[#allocation2 + $0xe8] sm:$0xff] %vm480, %v445
    %511 = vst.msk [vmem:[#allocation2 + $0xf0] sm:$0xff] %vm480, %v446
    %512 = vst.msk [vmem:[#allocation2 + $0xf8] sm:$0xff] %vm480, %v447
    %513 = vst.msk [vmem:[#allocation2 + $0x100] sm:$0xff] %vm480, %v448
    %514 = vst.msk [vmem:[#allocation2 + $0x108] sm:$0xff] %vm480, %v449
    %515 = vst.msk [vmem:[#allocation2 + $0x110] sm:$0xff] %vm480, %v450
    %516 = vst.msk [vmem:[#allocation2 + $0x118] sm:$0xff] %vm480, %v451
    %517 = vst.msk [vmem:[#allocation2 + $0x120] sm:$0xff] %vm480, %v452
    %518 = vst.msk [vmem:[#allocation2 + $0x128] sm:$0xff] %vm480, %v453
    %519 = vst.msk [vmem:[#allocation2 + $0x130] sm:$0xff] %vm480, %v454
    %520 = vst.msk [vmem:[#allocation2 + $0x138] sm:$0xff] %vm480, %v455
    %521 = vst.msk [vmem:[#allocation2 + $0x140] sm:$0xff] %vm480, %v456
    %522 = vst.msk [vmem:[#allocation2 + $0x148] sm:$0xff] %vm480, %v457
    %523 = vst.msk [vmem:[#allocation2 + $0x150] sm:$0xff] %vm480, %v458
    %524 = vst.msk [vmem:[#allocation2 + $0x158] sm:$0xff] %vm480, %v459
    %525 = vst.msk [vmem:[#allocation2 + $0x160] sm:$0xff] %vm480, %v460
    %526 = vst.msk [vmem:[#allocation2 + $0x168] sm:$0xff] %vm480, %v461
    %527 = vst.msk [vmem:[#allocation2 + $0x170] sm:$0xff] %vm480, %v462
    %528 = vst.msk [vmem:[#allocation2 + $0x178] sm:$0xff] %vm480, %v463
    %529 = vst.msk [vmem:[#allocation2 + $0x180] sm:$0xff] %vm480, %v464
    %530 = vst.msk [vmem:[#allocation2 + $0x188] sm:$0xff] %vm480, %v465
    %531 = vst.msk [vmem:[#allocation2 + $0x190] sm:$0xff] %vm480, %v466
    %532 = vst.msk [vmem:[#allocation2 + $0x198] sm:$0xff] %vm480, %v467
    %533 = vst.msk [vmem:[#allocation2 + $0x1a0] sm:$0xff] %vm480, %v468
    %534 = vst.msk [vmem:[#allocation2 + $0x1a8] sm:$0xff] %vm480, %v469
    %535 = vst.msk [vmem:[#allocation2 + $0x1b0] sm:$0xff] %vm480, %v470
    %536 = vst.msk [vmem:[#allocation2 + $0x1b8] sm:$0xff] %vm480, %v471
    %537 = vst.msk [vmem:[#allocation2 + $0x1c0] sm:$0xff] %vm480, %v472
    %538 = vst.msk [vmem:[#allocation2 + $0x1c8] sm:$0xff] %vm480, %v473
    %539 = vst.msk [vmem:[#allocation2 + $0x1d0] sm:$0xff] %vm480, %v474
    %540 = vst.msk [vmem:[#allocation2 + $0x1d8] sm:$0xff] %vm480, %v475
    %541 = vst.msk [vmem:[#allocation2 + $0x1e0] sm:$0xff] %vm480, %v476
    %542 = vst.msk [vmem:[#allocation2 + $0x1e8] sm:$0xff] %vm480, %v477
    %543 = vst.msk [vmem:[#allocation2 + $0x1f0] sm:$0xff] %vm480, %v478
    %544 = vst.msk [vmem:[#allocation2 + $0x1f8] sm:$0xff] %vm480, %v479
    // Predicated region
    $region18: #{bottleneck_forward.7} parent=1 // pred_check
      _
    $region19: #{bottleneck_forward.7} parent=1 // pred_check_branch
      %546 = sbr.rel (0) target = $region21
    $region20: #{bottleneck_forward.7} parent=1 // pred_region
      %s548 = ssub.s32 8192, 8192
      %549 = vsyncadd [#allocation3], %s548
      %s550 = sshll.u32 [#allocation2], 4
      %s551 = int_to_ptr.vmem [resolvable:$true] %s550
      %556 = dma.vmem_to_hbm [thread:$0]  %s551, 8192, %s4, [#allocation3], 128, 128, 8
    $region21: #{bottleneck_forward.7} parent=1 // pred_fallthru
      _
    // Predicated region
    $region22: #{bottleneck_forward.7} parent=1 // pred_check
      _
    $region23: #{bottleneck_forward.7} parent=1 // pred_check_branch
      %558 = sbr.rel (0) target = $region25
    $region24: #{bottleneck_forward.7} parent=1 // pred_region
      %559 = dma.done [#allocation3], 8192
    $region25: #{bottleneck_forward.7} parent=1 // pred_fallthru
      _
    %560 = vsyncpa [#allocation3], 1

// kernel: bottleneck_forward.6
$region0: #{bottleneck_forward.6}
  #allocation0 [shape = 'u32[]', space=smem, size = 0x4, offset = 0x4, fixed_abs, tag = 'smem constant byte address 0x4 - core index']
  #allocation1 [shape = 'u32[144,128]{1,0:T(1,128)}', space=vmem, size = 0x12000, scoped, tag = 'internal scratch']
  %s0 = inlined_call_operand.vmem [shape: bf16[2,16,16,128], index: 0, kind: input, shape index: {}]
  %s1 = inlined_call_operand.vmem [shape: bf16[128,128], index: 1, kind: input, shape index: {}]
  %s2 = inlined_call_operand.vmem [shape: f32[1,128], index: 2, kind: input, shape index: {}]
  %s3 = inlined_call_operand.vmem [shape: f32[1,128], index: 3, kind: input, shape index: {}]
  %s4 = inlined_call_operand.vmem [shape: bf16[2,16,16,128], index: 4, kind: output, shape index: {0}]
  %s5 = inlined_call_operand.vmem [shape: f32[1,2,128], index: 5, kind: output, shape index: {1}]
  %6 = xla_tuple %s4, %s5
  %s7 = sld [smem:[#allocation0]]
  $region34: #{bottleneck_forward.6} parent=0
    _
  %s9 = ssub.s32 1, %s7
  %s10 = scalar_select 0, %s9, %s7
  // Predicated region
  $region2: #{bottleneck_forward.6} parent=0 // pred_check
    _
  $region3: #{bottleneck_forward.6} parent=0 // pred_check_branch
    %12 = sbr.rel (0) target = $region5
  $region4: #{bottleneck_forward.6} parent=0 // pred_region
    _
  $region5: #{bottleneck_forward.6} parent=0 // pred_fallthru
    _
  // Predicated region
  $region6: #{bottleneck_forward.6} parent=0 // pred_check
    _
  $region7: #{bottleneck_forward.6} parent=0 // pred_check_branch
    %14 = sbr.rel (0) target = $region9
  $region8: #{bottleneck_forward.6} parent=0 // pred_region
    _
  $region9: #{bottleneck_forward.6} parent=0 // pred_fallthru
    _
  // Predicated region
  $region10: #{bottleneck_forward.6} parent=0 // pred_check
    _
  $region11: #{bottleneck_forward.6} parent=0 // pred_check_branch
    %16 = sbr.rel (0) target = $region13
  $region12: #{bottleneck_forward.6} parent=0 // pred_region
    _
  $region13: #{bottleneck_forward.6} parent=0 // pred_fallthru
    _
  // Predicated region
  $region14: #{bottleneck_forward.6} parent=0 // pred_check
    _
  $region15: #{bottleneck_forward.6} parent=0 // pred_check_branch
    %18 = sbr.rel (0) target = $region17
  $region16: #{bottleneck_forward.6} parent=0 // pred_region
    _
  $region17: #{bottleneck_forward.6} parent=0 // pred_fallthru
    _
  %v20 = vld [vmem:[%s0] sm:$0xf]
  %v21 = vld [vmem:[%s0 + $0x4] sm:$0xf]
  %v22 = vld [vmem:[%s0 + $0x8] sm:$0xf]
  %v23 = vld [vmem:[%s0 + $0xc] sm:$0xf]
  %v24 = vld [vmem:[%s0 + $0x10] sm:$0xf]
  %v25 = vld [vmem:[%s0 + $0x14] sm:$0xf]
  %v26 = vld [vmem:[%s0 + $0x18] sm:$0xf]
  %v27 = vld [vmem:[%s0 + $0x1c] sm:$0xf]
  %v28 = vld [vmem:[%s0 + $0x20] sm:$0xf]
  %v29 = vld [vmem:[%s0 + $0x24] sm:$0xf]
  %v30 = vld [vmem:[%s0 + $0x28] sm:$0xf]
  %v31 = vld [vmem:[%s0 + $0x2c] sm:$0xf]
  %v32 = vld [vmem:[%s0 + $0x30] sm:$0xf]
  %v33 = vld [vmem:[%s0 + $0x34] sm:$0xf]
  %v34 = vld [vmem:[%s0 + $0x38] sm:$0xf]
  %v35 = vld [vmem:[%s0 + $0x3c] sm:$0xf]
  %v36 = vld [vmem:[%s0 + $0x40] sm:$0xf]
  %v37 = vld [vmem:[%s0 + $0x44] sm:$0xf]
  %v38 = vld [vmem:[%s0 + $0x48] sm:$0xf]
  %v39 = vld [vmem:[%s0 + $0x4c] sm:$0xf]
  %v40 = vld [vmem:[%s0 + $0x50] sm:$0xf]
  %v41 = vld [vmem:[%s0 + $0x54] sm:$0xf]
  %v42 = vld [vmem:[%s0 + $0x58] sm:$0xf]
  %v43 = vld [vmem:[%s0 + $0x5c] sm:$0xf]
  %v44 = vld [vmem:[%s0 + $0x60] sm:$0xf]
  %v45 = vld [vmem:[%s0 + $0x64] sm:$0xf]
  %v46 = vld [vmem:[%s0 + $0x68] sm:$0xf]
  %v47 = vld [vmem:[%s0 + $0x6c] sm:$0xf]
  %v48 = vld [vmem:[%s0 + $0x70] sm:$0xf]
  %v49 = vld [vmem:[%s0 + $0x74] sm:$0xf]
  %v50 = vld [vmem:[%s0 + $0x78] sm:$0xf]
  %v51 = vld [vmem:[%s0 + $0x7c] sm:$0xf]
  %v52 = vld [vmem:[%s0 + $0x80] sm:$0xf]
  %v53 = vld [vmem:[%s0 + $0x84] sm:$0xf]
  %v54 = vld [vmem:[%s0 + $0x88] sm:$0xf]
  %v55 = vld [vmem:[%s0 + $0x8c] sm:$0xf]
  %v56 = vld [vmem:[%s0 + $0x90] sm:$0xf]
  %v57 = vld [vmem:[%s0 + $0x94] sm:$0xf]
  %v58 = vld [vmem:[%s0 + $0x98] sm:$0xf]
  %v59 = vld [vmem:[%s0 + $0x9c] sm:$0xf]
  %v60 = vld [vmem:[%s0 + $0xa0] sm:$0xf]
  %v61 = vld [vmem:[%s0 + $0xa4] sm:$0xf]
  %v62 = vld [vmem:[%s0 + $0xa8] sm:$0xf]
  %v63 = vld [vmem:[%s0 + $0xac] sm:$0xf]
  %v64 = vld [vmem:[%s0 + $0xb0] sm:$0xf]
  %v65 = vld [vmem:[%s0 + $0xb4] sm:$0xf]
  %v66 = vld [vmem:[%s0 + $0xb8] sm:$0xf]
  %v67 = vld [vmem:[%s0 + $0xbc] sm:$0xf]
  %v68 = vld [vmem:[%s0 + $0xc0] sm:$0xf]
  %v69 = vld [vmem:[%s0 + $0xc4] sm:$0xf]
  %v70 = vld [vmem:[%s0 + $0xc8] sm:$0xf]
  %v71 = vld [vmem:[%s0 + $0xcc] sm:$0xf]
  %v72 = vld [vmem:[%s0 + $0xd0] sm:$0xf]
  %v73 = vld [vmem:[%s0 + $0xd4] sm:$0xf]
  %v74 = vld [vmem:[%s0 + $0xd8] sm:$0xf]
  %v75 = vld [vmem:[%s0 + $0xdc] sm:$0xf]
  %v76 = vld [vmem:[%s0 + $0xe0] sm:$0xf]
  %v77 = vld [vmem:[%s0 + $0xe4] sm:$0xf]
  %v78 = vld [vmem:[%s0 + $0xe8] sm:$0xf]
  %v79 = vld [vmem:[%s0 + $0xec] sm:$0xf]
  %v80 = vld [vmem:[%s0 + $0xf0] sm:$0xf]
  %v81 = vld [vmem:[%s0 + $0xf4] sm:$0xf]
  %v82 = vld [vmem:[%s0 + $0xf8] sm:$0xf]
  %v83 = vld [vmem:[%s0 + $0xfc] sm:$0xf]
  %v84 = vunpack.c.l.bf16 %v20
  %v85 = vunpack.c.l.bf16 %v21
  %v86 = vunpack.c.l.bf16 %v22
  %v87 = vunpack.c.l.bf16 %v23
  %v88 = vunpack.c.l.bf16 %v24
  %v89 = vunpack.c.l.bf16 %v25
  %v90 = vunpack.c.l.bf16 %v26
  %v91 = vunpack.c.l.bf16 %v27
  %v92 = vunpack.c.l.bf16 %v28
  %v93 = vunpack.c.l.bf16 %v29
  %v94 = vunpack.c.l.bf16 %v30
  %v95 = vunpack.c.l.bf16 %v31
  %v96 = vunpack.c.l.bf16 %v32
  %v97 = vunpack.c.l.bf16 %v33
  %v98 = vunpack.c.l.bf16 %v34
  %v99 = vunpack.c.l.bf16 %v35
  %v100 = vunpack.c.l.bf16 %v36
  %v101 = vunpack.c.l.bf16 %v37
  %v102 = vunpack.c.l.bf16 %v38
  %v103 = vunpack.c.l.bf16 %v39
  %v104 = vunpack.c.l.bf16 %v40
  %v105 = vunpack.c.l.bf16 %v41
  %v106 = vunpack.c.l.bf16 %v42
  %v107 = vunpack.c.l.bf16 %v43
  %v108 = vunpack.c.l.bf16 %v44
  %v109 = vunpack.c.l.bf16 %v45
  %v110 = vunpack.c.l.bf16 %v46
  %v111 = vunpack.c.l.bf16 %v47
  %v112 = vunpack.c.l.bf16 %v48
  %v113 = vunpack.c.l.bf16 %v49
  %v114 = vunpack.c.l.bf16 %v50
  %v115 = vunpack.c.l.bf16 %v51
  %v116 = vunpack.c.l.bf16 %v52
  %v117 = vunpack.c.l.bf16 %v53
  %v118 = vunpack.c.l.bf16 %v54
  %v119 = vunpack.c.l.bf16 %v55
  %v120 = vunpack.c.l.bf16 %v56
  %v121 = vunpack.c.l.bf16 %v57
  %v122 = vunpack.c.l.bf16 %v58
  %v123 = vunpack.c.l.bf16 %v59
  %v124 = vunpack.c.l.bf16 %v60
  %v125 = vunpack.c.l.bf16 %v61
  %v126 = vunpack.c.l.bf16 %v62
  %v127 = vunpack.c.l.bf16 %v63
  %v128 = vunpack.c.l.bf16 %v64
  %v129 = vunpack.c.l.bf16 %v65
  %v130 = vunpack.c.l.bf16 %v66
  %v131 = vunpack.c.l.bf16 %v67
  %v132 = vunpack.c.l.bf16 %v68
  %v133 = vunpack.c.l.bf16 %v69
  %v134 = vunpack.c.l.bf16 %v70
  %v135 = vunpack.c.l.bf16 %v71
  %v136 = vunpack.c.l.bf16 %v72
  %v137 = vunpack.c.l.bf16 %v73
  %v138 = vunpack.c.l.bf16 %v74
  %v139 = vunpack.c.l.bf16 %v75
  %v140 = vunpack.c.l.bf16 %v76
  %v141 = vunpack.c.l.bf16 %v77
  %v142 = vunpack.c.l.bf16 %v78
  %v143 = vunpack.c.l.bf16 %v79
  %v144 = vunpack.c.l.bf16 %v80
  %v145 = vunpack.c.l.bf16 %v81
  %v146 = vunpack.c.l.bf16 %v82
  %v147 = vunpack.c.l.bf16 %v83
  %v148 = vld [vmem:[%s2] sm:$0x1]
  %v150 = vlaneseq
  %v151 = vshrl.u32 %v150, 7
  %v152 = vsub.s32 0, %v151
  %v153 = vrot.slane %v148, %v152
  %v155 = vmul.f32 %v84, %v153
  %v156 = vmul.f32 %v85, %v153
  %v157 = vmul.f32 %v86, %v153
  %v158 = vmul.f32 %v87, %v153
  %v159 = vmul.f32 %v88, %v153
  %v160 = vmul.f32 %v89, %v153
  %v161 = vmul.f32 %v90, %v153
  %v162 = vmul.f32 %v91, %v153
  %v163 = vmul.f32 %v92, %v153
  %v164 = vmul.f32 %v93, %v153
  %v165 = vmul.f32 %v94, %v153
  %v166 = vmul.f32 %v95, %v153
  %v167 = vmul.f32 %v96, %v153
  %v168 = vmul.f32 %v97, %v153
  %v169 = vmul.f32 %v98, %v153
  %v170 = vmul.f32 %v99, %v153
  %v171 = vmul.f32 %v100, %v153
  %v172 = vmul.f32 %v101, %v153
  %v173 = vmul.f32 %v102, %v153
  %v174 = vmul.f32 %v103, %v153
  %v175 = vmul.f32 %v104, %v153
  %v176 = vmul.f32 %v105, %v153
  %v177 = vmul.f32 %v106, %v153
  %v178 = vmul.f32 %v107, %v153
  %v179 = vmul.f32 %v108, %v153
  %v180 = vmul.f32 %v109, %v153
  %v181 = vmul.f32 %v110, %v153
  %v182 = vmul.f32 %v111, %v153
  %v183 = vmul.f32 %v112, %v153
  %v184 = vmul.f32 %v113, %v153
  %v185 = vmul.f32 %v114, %v153
  %v186 = vmul.f32 %v115, %v153
  %v187 = vmul.f32 %v116, %v153
  %v188 = vmul.f32 %v117, %v153
  %v189 = vmul.f32 %v118, %v153
  %v190 = vmul.f32 %v119, %v153
  %v191 = vmul.f32 %v120, %v153
  %v192 = vmul.f32 %v121, %v153
  %v193 = vmul.f32 %v122, %v153
  %v194 = vmul.f32 %v123, %v153
  %v195 = vmul.f32 %v124, %v153
  %v196 = vmul.f32 %v125, %v153
  %v197 = vmul.f32 %v126, %v153
  %v198 = vmul.f32 %v127, %v153
  %v199 = vmul.f32 %v128, %v153
  %v200 = vmul.f32 %v129, %v153
  %v201 = vmul.f32 %v130, %v153
  %v202 = vmul.f32 %v131, %v153
  %v203 = vmul.f32 %v132, %v153
  %v204 = vmul.f32 %v133, %v153
  %v205 = vmul.f32 %v134, %v153
  %v206 = vmul.f32 %v135, %v153
  %v207 = vmul.f32 %v136, %v153
  %v208 = vmul.f32 %v137, %v153
  %v209 = vmul.f32 %v138, %v153
  %v210 = vmul.f32 %v139, %v153
  %v211 = vmul.f32 %v140, %v153
  %v212 = vmul.f32 %v141, %v153
  %v213 = vmul.f32 %v142, %v153
  %v214 = vmul.f32 %v143, %v153
  %v215 = vmul.f32 %v144, %v153
  %v216 = vmul.f32 %v145, %v153
  %v217 = vmul.f32 %v146, %v153
  %v218 = vmul.f32 %v147, %v153
  %v219 = vld [vmem:[%s3] sm:$0x1]
  %v221 = vlaneseq
  %v222 = vshrl.u32 %v221, 7
  %v223 = vsub.s32 0, %v222
  %v224 = vrot.slane %v219, %v223
  %v226 = vadd.f32 %v155, %v224
  %v227 = vadd.f32 %v156, %v224
  %v228 = vadd.f32 %v157, %v224
  %v229 = vadd.f32 %v158, %v224
  %v230 = vadd.f32 %v159, %v224
  %v231 = vadd.f32 %v160, %v224
  %v232 = vadd.f32 %v161, %v224
  %v233 = vadd.f32 %v162, %v224
  %v234 = vadd.f32 %v163, %v224
  %v235 = vadd.f32 %v164, %v224
  %v236 = vadd.f32 %v165, %v224
  %v237 = vadd.f32 %v166, %v224
  %v238 = vadd.f32 %v167, %v224
  %v239 = vadd.f32 %v168, %v224
  %v240 = vadd.f32 %v169, %v224
  %v241 = vadd.f32 %v170, %v224
  %v242 = vadd.f32 %v171, %v224
  %v243 = vadd.f32 %v172, %v224
  %v244 = vadd.f32 %v173, %v224
  %v245 = vadd.f32 %v174, %v224
  %v246 = vadd.f32 %v175, %v224
  %v247 = vadd.f32 %v176, %v224
  %v248 = vadd.f32 %v177, %v224
  %v249 = vadd.f32 %v178, %v224
  %v250 = vadd.f32 %v179, %v224
  %v251 = vadd.f32 %v180, %v224
  %v252 = vadd.f32 %v181, %v224
  %v253 = vadd.f32 %v182, %v224
  %v254 = vadd.f32 %v183, %v224
  %v255 = vadd.f32 %v184, %v224
  %v256 = vadd.f32 %v185, %v224
  %v257 = vadd.f32 %v186, %v224
  %v258 = vadd.f32 %v187, %v224
  %v259 = vadd.f32 %v188, %v224
  %v260 = vadd.f32 %v189, %v224
  %v261 = vadd.f32 %v190, %v224
  %v262 = vadd.f32 %v191, %v224
  %v263 = vadd.f32 %v192, %v224
  %v264 = vadd.f32 %v193, %v224
  %v265 = vadd.f32 %v194, %v224
  %v266 = vadd.f32 %v195, %v224
  %v267 = vadd.f32 %v196, %v224
  %v268 = vadd.f32 %v197, %v224
  %v269 = vadd.f32 %v198, %v224
  %v270 = vadd.f32 %v199, %v224
  %v271 = vadd.f32 %v200, %v224
  %v272 = vadd.f32 %v201, %v224
  %v273 = vadd.f32 %v202, %v224
  %v274 = vadd.f32 %v203, %v224
  %v275 = vadd.f32 %v204, %v224
  %v276 = vadd.f32 %v205, %v224
  %v277 = vadd.f32 %v206, %v224
  %v278 = vadd.f32 %v207, %v224
  %v279 = vadd.f32 %v208, %v224
  %v280 = vadd.f32 %v209, %v224
  %v281 = vadd.f32 %v210, %v224
  %v282 = vadd.f32 %v211, %v224
  %v283 = vadd.f32 %v212, %v224
  %v284 = vadd.f32 %v213, %v224
  %v285 = vadd.f32 %v214, %v224
  %v286 = vadd.f32 %v215, %v224
  %v287 = vadd.f32 %v216, %v224
  %v288 = vadd.f32 %v217, %v224
  %v289 = vadd.f32 %v218, %v224
  %v290 = vmax.f32 %v226, 0.0
  %v291 = vmax.f32 %v227, 0.0
  %v292 = vmax.f32 %v228, 0.0
  %v293 = vmax.f32 %v229, 0.0
  %v294 = vmax.f32 %v230, 0.0
  %v295 = vmax.f32 %v231, 0.0
  %v296 = vmax.f32 %v232, 0.0
  %v297 = vmax.f32 %v233, 0.0
  %v298 = vmax.f32 %v234, 0.0
  %v299 = vmax.f32 %v235, 0.0
  %v300 = vmax.f32 %v236, 0.0
  %v301 = vmax.f32 %v237, 0.0
  %v302 = vmax.f32 %v238, 0.0
  %v303 = vmax.f32 %v239, 0.0
  %v304 = vmax.f32 %v240, 0.0
  %v305 = vmax.f32 %v241, 0.0
  %v306 = vmax.f32 %v242, 0.0
  %v307 = vmax.f32 %v243, 0.0
  %v308 = vmax.f32 %v244, 0.0
  %v309 = vmax.f32 %v245, 0.0
  %v310 = vmax.f32 %v246, 0.0
  %v311 = vmax.f32 %v247, 0.0
  %v312 = vmax.f32 %v248, 0.0
  %v313 = vmax.f32 %v249, 0.0
  %v314 = vmax.f32 %v250, 0.0
  %v315 = vmax.f32 %v251, 0.0
  %v316 = vmax.f32 %v252, 0.0
  %v317 = vmax.f32 %v253, 0.0
  %v318 = vmax.f32 %v254, 0.0
  %v319 = vmax.f32 %v255, 0.0
  %v320 = vmax.f32 %v256, 0.0
  %v321 = vmax.f32 %v257, 0.0
  %v322 = vmax.f32 %v258, 0.0
  %v323 = vmax.f32 %v259, 0.0
  %v324 = vmax.f32 %v260, 0.0
  %v325 = vmax.f32 %v261, 0.0
  %v326 = vmax.f32 %v262, 0.0
  %v327 = vmax.f32 %v263, 0.0
  %v328 = vmax.f32 %v264, 0.0
  %v329 = vmax.f32 %v265, 0.0
  %v330 = vmax.f32 %v266, 0.0
  %v331 = vmax.f32 %v267, 0.0
  %v332 = vmax.f32 %v268, 0.0
  %v333 = vmax.f32 %v269, 0.0
  %v334 = vmax.f32 %v270, 0.0
  %v335 = vmax.f32 %v271, 0.0
  %v336 = vmax.f32 %v272, 0.0
  %v337 = vmax.f32 %v273, 0.0
  %v338 = vmax.f32 %v274, 0.0
  %v339 = vmax.f32 %v275, 0.0
  %v340 = vmax.f32 %v276, 0.0
  %v341 = vmax.f32 %v277, 0.0
  %v342 = vmax.f32 %v278, 0.0
  %v343 = vmax.f32 %v279, 0.0
  %v344 = vmax.f32 %v280, 0.0
  %v345 = vmax.f32 %v281, 0.0
  %v346 = vmax.f32 %v282, 0.0
  %v347 = vmax.f32 %v283, 0.0
  %v348 = vmax.f32 %v284, 0.0
  %v349 = vmax.f32 %v285, 0.0
  %v350 = vmax.f32 %v286, 0.0
  %v351 = vmax.f32 %v287, 0.0
  %v352 = vmax.f32 %v288, 0.0
  %v353 = vmax.f32 %v289, 0.0
  %v354 = vpack.c.bf16 %v291, %v290
  %v355 = vpack.c.bf16 %v293, %v292
  %v356 = vpack.c.bf16 %v295, %v294
  %v357 = vpack.c.bf16 %v297, %v296
  %v358 = vpack.c.bf16 %v299, %v298
  %v359 = vpack.c.bf16 %v301, %v300
  %v360 = vpack.c.bf16 %v303, %v302
  %v361 = vpack.c.bf16 %v305, %v304
  %v362 = vpack.c.bf16 %v307, %v306
  %v363 = vpack.c.bf16 %v309, %v308
  %v364 = vpack.c.bf16 %v311, %v310
  %v365 = vpack.c.bf16 %v313, %v312
  %v366 = vpack.c.bf16 %v315, %v314
  %v367 = vpack.c.bf16 %v317, %v316
  %v368 = vpack.c.bf16 %v319, %v318
  %v369 = vpack.c.bf16 %v321, %v320
  %v370 = vpack.c.bf16 %v323, %v322
  %v371 = vpack.c.bf16 %v325, %v324
  %v372 = vpack.c.bf16 %v327, %v326
  %v373 = vpack.c.bf16 %v329, %v328
  %v374 = vpack.c.bf16 %v331, %v330
  %v375 = vpack.c.bf16 %v333, %v332
  %v376 = vpack.c.bf16 %v335, %v334
  %v377 = vpack.c.bf16 %v337, %v336
  %v378 = vpack.c.bf16 %v339, %v338
  %v379 = vpack.c.bf16 %v341, %v340
  %v380 = vpack.c.bf16 %v343, %v342
  %v381 = vpack.c.bf16 %v345, %v344
  %v382 = vpack.c.bf16 %v347, %v346
  %v383 = vpack.c.bf16 %v349, %v348
  %v384 = vpack.c.bf16 %v351, %v350
  %v385 = vpack.c.bf16 %v353, %v352
  %v386 = vld [vmem:[%s1] sm:$0xf]
  %v387 = vld [vmem:[%s1 + $0x4] sm:$0xf]
  %v388 = vld [vmem:[%s1 + $0x8] sm:$0xf]
  %v389 = vld [vmem:[%s1 + $0xc] sm:$0xf]
  %v390 = vld [vmem:[%s1 + $0x10] sm:$0xf]
  %v391 = vld [vmem:[%s1 + $0x14] sm:$0xf]
  %v392 = vld [vmem:[%s1 + $0x18] sm:$0xf]
  %v393 = vld [vmem:[%s1 + $0x1c] sm:$0xf]
  %v394 = vld [vmem:[%s1 + $0x20] sm:$0xf]
  %v395 = vld [vmem:[%s1 + $0x24] sm:$0xf]
  %v396 = vld [vmem:[%s1 + $0x28] sm:$0xf]
  %v397 = vld [vmem:[%s1 + $0x2c] sm:$0xf]
  %v398 = vld [vmem:[%s1 + $0x30] sm:$0xf]
  %v399 = vld [vmem:[%s1 + $0x34] sm:$0xf]
  %v400 = vld [vmem:[%s1 + $0x38] sm:$0xf]
  %v401 = vld [vmem:[%s1 + $0x3c] sm:$0xf]
  %v418 = vunpack.c.l.b16 %v386
  %v419 = vunpack.c.l.b16 %v387
  %v420 = vunpack.c.l.b16 %v388
  %v421 = vunpack.c.l.b16 %v389
  %v422 = vunpack.c.l.b16 %v390
  %v423 = vunpack.c.l.b16 %v391
  %v424 = vunpack.c.l.b16 %v392
  %v425 = vunpack.c.l.b16 %v393
  %v426 = vunpack.c.l.b16 %v394
  %v427 = vunpack.c.l.b16 %v395
  %v428 = vunpack.c.l.b16 %v396
  %v429 = vunpack.c.l.b16 %v397
  %v430 = vunpack.c.l.b16 %v398
  %v431 = vunpack.c.l.b16 %v399
  %v432 = vunpack.c.l.b16 %v400
  %v433 = vunpack.c.l.b16 %v401
  %v434 = vpack.c.b16 %v419, %v418
  %v435 = vpack.c.b16 %v421, %v420
  %v436 = vpack.c.b16 %v423, %v422
  %v437 = vpack.c.b16 %v425, %v424
  %v438 = vpack.c.b16 %v427, %v426
  %v439 = vpack.c.b16 %v429, %v428
  %v440 = vpack.c.b16 %v431, %v430
  %v441 = vpack.c.b16 %v433, %v432
  %450 = vmatprep.subr.bf16.mxu0 0
  %451 = vmatpush1.bf16.msra.mxu0 %v434
  %452 = vmatprep.subr.bf16.mxu0 0
  %453 = vmatpush1.bf16.msra.mxu0 %v435
  %454 = vmatprep.subr.bf16.mxu0 0
  %455 = vmatpush1.bf16.msra.mxu0 %v436
  %456 = vmatprep.subr.bf16.mxu0 0
  %457 = vmatpush1.bf16.msra.mxu0 %v437
  %458 = vmatprep.subr.bf16.mxu0 0
  %459 = vmatpush1.bf16.msra.mxu0 %v438
  %460 = vmatprep.subr.bf16.mxu0 0
  %461 = vmatpush1.bf16.msra.mxu0 %v439
  %462 = vmatprep.subr.bf16.mxu0 0
  %463 = vmatpush1.bf16.msra.mxu0 %v440
  %464 = vmatprep.subr.bf16.mxu0 0
  %465 = vmatpush1.bf16.msra.mxu0 %v441
  %466 = vmatprep.subr.bf16.mxu0 0
  %467 = vmatpush1.bf16.msra.mxu0 0
  %468 = vmatprep.subr.bf16.mxu0 0
  %469 = vmatpush1.bf16.msra.mxu0 0
  %470 = vmatprep.subr.bf16.mxu0 0
  %471 = vmatpush1.bf16.msra.mxu0 0
  %472 = vmatprep.subr.bf16.mxu0 0
  %473 = vmatpush1.bf16.msra.mxu0 0
  %474 = vmatprep.subr.bf16.mxu0 0
  %475 = vmatpush1.bf16.msra.mxu0 0
  %476 = vmatprep.subr.bf16.mxu0 0
  %477 = vmatpush1.bf16.msra.mxu0 0
  %478 = vmatprep.subr.bf16.mxu0 0
  %479 = vmatpush1.bf16.msra.mxu0 0
  %480 = vmatprep.subr.bf16.mxu0 0
  %481 = vmatpush1.bf16.msra.mxu0 0
  %482 = vmatprep.mubr.bf16.mxu0 0
  %483 = vmatmul.mubr.bf16.gmra.mrb[0].mxu0 %v354
  %v484 = vpop.f32.mrb[0].mxu0
  %v485 = vadd.f32 0.0, %v484
  %v486 = vpop.f32.mrb[0].mxu0
  %v487 = vpop.f32.mrb[0].mxu0
  %v488 = vadd.f32 0.0, %v487
  %v489 = vpop.f32.mrb[0].mxu0
  %490 = vmatprep.mubr.bf16.mxu0 0
  %491 = vmatmul.mubr.bf16.gmra.mrb[0].mxu0 %v355
  %v492 = vpop.f32.mrb[0].mxu0
  %v493 = vadd.f32 0.0, %v492
  %v494 = vpop.f32.mrb[0].mxu0
  %v495 = vpop.f32.mrb[0].mxu0
  %v496 = vadd.f32 0.0, %v495
  %v497 = vpop.f32.mrb[0].mxu0
  %498 = vmatprep.mubr.bf16.mxu0 0
  %499 = vmatmul.mubr.bf16.gmra.mrb[0].mxu0 %v356
  %v500 = vpop.f32.mrb[0].mxu0
  %v501 = vadd.f32 0.0, %v500
  %v502 = vpop.f32.mrb[0].mxu0
  %v503 = vpop.f32.mrb[0].mxu0
  %v504 = vadd.f32 0.0, %v503
  %v505 = vpop.f32.mrb[0].mxu0
  %506 = vmatprep.mubr.bf16.mxu0 0
  %507 = vmatmul.mubr.bf16.gmra.mrb[0].mxu0 %v357
  %v508 = vpop.f32.mrb[0].mxu0
  %v509 = vadd.f32 0.0, %v508
  %v510 = vpop.f32.mrb[0].mxu0
  %v511 = vpop.f32.mrb[0].mxu0
  %v512 = vadd.f32 0.0, %v511
  %v513 = vpop.f32.mrb[0].mxu0
  %514 = vmatprep.mubr.bf16.mxu0 0
  %515 = vmatmul.mubr.bf16.gmra.mrb[0].mxu0 %v358
  %v516 = vpop.f32.mrb[0].mxu0
  %v517 = vadd.f32 0.0, %v516
  %v518 = vpop.f32.mrb[0].mxu0
  %v519 = vpop.f32.mrb[0].mxu0
  %v520 = vadd.f32 0.0, %v519
  %v521 = vpop.f32.mrb[0].mxu0
  %522 = vmatprep.mubr.bf16.mxu0 0
  %523 = vmatmul.mubr.bf16.gmra.mrb[0].mxu0 %v359
  %v524 = vpop.f32.mrb[0].mxu0
  %v525 = vadd.f32 0.0, %v524
  %v526 = vpop.f32.mrb[0].mxu0
  %v527 = vpop.f32.mrb[0].mxu0
  %v528 = vadd.f32 0.0, %v527
  %v529 = vpop.f32.mrb[0].mxu0
  %530 = vmatprep.mubr.bf16.mxu0 0
  %531 = vmatmul.mubr.bf16.gmra.mrb[0].mxu0 %v360
  %v532 = vpop.f32.mrb[0].mxu0
  %v533 = vadd.f32 0.0, %v532
  %v534 = vpop.f32.mrb[0].mxu0
  %v535 = vpop.f32.mrb[0].mxu0
  %v536 = vadd.f32 0.0, %v535
  %v537 = vpop.f32.mrb[0].mxu0
  %538 = vmatprep.mubr.bf16.mxu0 0
  %539 = vmatmul.mubr.bf16.gmra.mrb[0].mxu0 %v361
  %v540 = vpop.f32.mrb[0].mxu0
  %v541 = vadd.f32 0.0, %v540
  %v542 = vpop.f32.mrb[0].mxu0
  %v543 = vpop.f32.mrb[0].mxu0
  %v544 = vadd.f32 0.0, %v543
  %v545 = vpop.f32.mrb[0].mxu0
  %546 = vmatprep.mubr.bf16.mxu0 0
  %547 = vmatmul.mubr.bf16.gmra.mrb[0].mxu0 %v362
  %v548 = vpop.f32.mrb[0].mxu0
  %v549 = vadd.f32 0.0, %v548
  %v550 = vpop.f32.mrb[0].mxu0
  %v551 = vpop.f32.mrb[0].mxu0
  %v552 = vadd.f32 0.0, %v551
  %v553 = vpop.f32.mrb[0].mxu0
  %554 = vmatprep.mubr.bf16.mxu0 0
  %555 = vmatmul.mubr.bf16.gmra.mrb[0].mxu0 %v363
  %v556 = vpop.f32.mrb[0].mxu0
  %v557 = vadd.f32 0.0, %v556
  %v558 = vpop.f32.mrb[0].mxu0
  %v559 = vpop.f32.mrb[0].mxu0
  %v560 = vadd.f32 0.0, %v559
  %v561 = vpop.f32.mrb[0].mxu0
  %562 = vmatprep.mubr.bf16.mxu0 0
  %563 = vmatmul.mubr.bf16.gmra.mrb[0].mxu0 %v364
  %v564 = vpop.f32.mrb[0].mxu0
  %v565 = vadd.f32 0.0, %v564
  %v566 = vpop.f32.mrb[0].mxu0
  %v567 = vpop.f32.mrb[0].mxu0
  %v568 = vadd.f32 0.0, %v567
  %v569 = vpop.f32.mrb[0].mxu0
  %570 = vmatprep.mubr.bf16.mxu0 0
  %571 = vmatmul.mubr.bf16.gmra.mrb[0].mxu0 %v365
  %v572 = vpop.f32.mrb[0].mxu0
  %v573 = vadd.f32 0.0, %v572
  %v574 = vpop.f32.mrb[0].mxu0
  %v575 = vpop.f32.mrb[0].mxu0
  %v576 = vadd.f32 0.0, %v575
  %v577 = vpop.f32.mrb[0].mxu0
  %578 = vmatprep.mubr.bf16.mxu0 0
  %579 = vmatmul.mubr.bf16.gmra.mrb[0].mxu0 %v366
  %v580 = vpop.f32.mrb[0].mxu0
  %v581 = vadd.f32 0.0, %v580
  %v582 = vpop.f32.mrb[0].mxu0
  %v583 = vpop.f32.mrb[0].mxu0
  %v584 = vadd.f32 0.0, %v583
  %v585 = vpop.f32.mrb[0].mxu0
  %586 = vmatprep.mubr.bf16.mxu0 0
  %587 = vmatmul.mubr.bf16.gmra.mrb[0].mxu0 %v367
  %v588 = vpop.f32.mrb[0].mxu0
  %v589 = vadd.f32 0.0, %v588
  %v590 = vpop.f32.mrb[0].mxu0
  %v591 = vpop.f32.mrb[0].mxu0
  %v592 = vadd.f32 0.0, %v591
  %v593 = vpop.f32.mrb[0].mxu0
  %594 = vmatprep.mubr.bf16.mxu0 0
  %595 = vmatmul.mubr.bf16.gmra.mrb[0].mxu0 %v368
  %v596 = vpop.f32.mrb[0].mxu0
  %v597 = vadd.f32 0.0, %v596
  %v598 = vpop.f32.mrb[0].mxu0
  %v599 = vpop.f32.mrb[0].mxu0
  %v600 = vadd.f32 0.0, %v599
  %v601 = vpop.f32.mrb[0].mxu0
  %602 = vmatprep.mubr.bf16.mxu0 0
  %603 = vmatmul.mubr.bf16.gmra.mrb[0].mxu0 %v369
  %v604 = vpop.f32.mrb[0].mxu0
  %v605 = vadd.f32 0.0, %v604
  %v606 = vpop.f32.mrb[0].mxu0
  %v607 = vpop.f32.mrb[0].mxu0
  %v608 = vadd.f32 0.0, %v607
  %v609 = vpop.f32.mrb[0].mxu0
  %610 = vmatprep.mubr.bf16.mxu0 0
  %611 = vmatmul.mubr.bf16.gmra.mrb[0].mxu0 %v370
  %v612 = vpop.f32.mrb[0].mxu0
  %v613 = vadd.f32 0.0, %v612
  %v614 = vpop.f32.mrb[0].mxu0
  %v615 = vpop.f32.mrb[0].mxu0
  %v616 = vadd.f32 0.0, %v615
  %v617 = vpop.f32.mrb[0].mxu0
  %618 = vmatprep.mubr.bf16.mxu0 0
  %619 = vmatmul.mubr.bf16.gmra.mrb[0].mxu0 %v371
  %v620 = vpop.f32.mrb[0].mxu0
  %v621 = vadd.f32 0.0, %v620
  %v622 = vpop.f32.mrb[0].mxu0
  %v623 = vpop.f32.mrb[0].mxu0
  %v624 = vadd.f32 0.0, %v623
  %v625 = vpop.f32.mrb[0].mxu0
  %626 = vmatprep.mubr.bf16.mxu0 0
  %627 = vmatmul.mubr.bf16.gmra.mrb[0].mxu0 %v372
  %v628 = vpop.f32.mrb[0].mxu0
  %v629 = vadd.f32 0.0, %v628
  %v630 = vpop.f32.mrb[0].mxu0
  %v631 = vpop.f32.mrb[0].mxu0
  %v632 = vadd.f32 0.0, %v631
  %v633 = vpop.f32.mrb[0].mxu0
  %634 = vmatprep.mubr.bf16.mxu0 0
  %635 = vmatmul.mubr.bf16.gmra.mrb[0].mxu0 %v373
  %v636 = vpop.f32.mrb[0].mxu0
  %v637 = vadd.f32 0.0, %v636
  %v638 = vpop.f32.mrb[0].mxu0
  %v639 = vpop.f32.mrb[0].mxu0
  %v640 = vadd.f32 0.0, %v639
  %v641 = vpop.f32.mrb[0].mxu0
  %642 = vmatprep.mubr.bf16.mxu0 0
  %643 = vmatmul.mubr.bf16.gmra.mrb[0].mxu0 %v374
  %v644 = vpop.f32.mrb[0].mxu0
  %v645 = vadd.f32 0.0, %v644
  %v646 = vpop.f32.mrb[0].mxu0
  %v647 = vpop.f32.mrb[0].mxu0
  %v648 = vadd.f32 0.0, %v647
  %v649 = vpop.f32.mrb[0].mxu0
  %650 = vmatprep.mubr.bf16.mxu0 0
  %651 = vmatmul.mubr.bf16.gmra.mrb[0].mxu0 %v375
  %v652 = vpop.f32.mrb[0].mxu0
  %v653 = vadd.f32 0.0, %v652
  %v654 = vpop.f32.mrb[0].mxu0
  %v655 = vpop.f32.mrb[0].mxu0
  %v656 = vadd.f32 0.0, %v655
  %v657 = vpop.f32.mrb[0].mxu0
  %658 = vmatprep.mubr.bf16.mxu0 0
  %659 = vmatmul.mubr.bf16.gmra.mrb[0].mxu0 %v376
  %v660 = vpop.f32.mrb[0].mxu0
  %v661 = vadd.f32 0.0, %v660
  %v662 = vpop.f32.mrb[0].mxu0
  %v663 = vpop.f32.mrb[0].mxu0
  %v664 = vadd.f32 0.0, %v663
  %v665 = vpop.f32.mrb[0].mxu0
  %666 = vmatprep.mubr.bf16.mxu0 0
  %667 = vmatmul.mubr.bf16.gmra.mrb[0].mxu0 %v377
  %v668 = vpop.f32.mrb[0].mxu0
  %v669 = vadd.f32 0.0, %v668
  %v670 = vpop.f32.mrb[0].mxu0
  %v671 = vpop.f32.mrb[0].mxu0
  %v672 = vadd.f32 0.0, %v671
  %v673 = vpop.f32.mrb[0].mxu0
  %674 = vmatprep.mubr.bf16.mxu0 0
  %675 = vmatmul.mubr.bf16.gmra.mrb[0].mxu0 %v378
  %v676 = vpop.f32.mrb[0].mxu0
  %v677 = vadd.f32 0.0, %v676
  %v678 = vpop.f32.mrb[0].mxu0
  %v679 = vpop.f32.mrb[0].mxu0
  %v680 = vadd.f32 0.0, %v679
  %v681 = vpop.f32.mrb[0].mxu0
  %682 = vmatprep.mubr.bf16.mxu0 0
  %683 = vmatmul.mubr.bf16.gmra.mrb[0].mxu0 %v379
  %v684 = vpop.f32.mrb[0].mxu0
  %v685 = vadd.f32 0.0, %v684
  %v686 = vpop.f32.mrb[0].mxu0
  %v687 = vpop.f32.mrb[0].mxu0
  %v688 = vadd.f32 0.0, %v687
  %v689 = vpop.f32.mrb[0].mxu0
  %690 = vmatprep.mubr.bf16.mxu0 0
  %691 = vmatmul.mubr.bf16.gmra.mrb[0].mxu0 %v380
  %v692 = vpop.f32.mrb[0].mxu0
  %v693 = vadd.f32 0.0, %v692
  %v694 = vpop.f32.mrb[0].mxu0
  %v695 = vpop.f32.mrb[0].mxu0
  %v696 = vadd.f32 0.0, %v695
  %v697 = vpop.f32.mrb[0].mxu0
  %698 = vmatprep.mubr.bf16.mxu0 0
  %699 = vmatmul.mubr.bf16.gmra.mrb[0].mxu0 %v381
  %v700 = vpop.f32.mrb[0].mxu0
  %v701 = vadd.f32 0.0, %v700
  %v702 = vpop.f32.mrb[0].mxu0
  %v703 = vpop.f32.mrb[0].mxu0
  %v704 = vadd.f32 0.0, %v703
  %v705 = vpop.f32.mrb[0].mxu0
  %706 = vmatprep.mubr.bf16.mxu0 0
  %707 = vmatmul.mubr.bf16.gmra.mrb[0].mxu0 %v382
  %v708 = vpop.f32.mrb[0].mxu0
  %v709 = vadd.f32 0.0, %v708
  %v710 = vpop.f32.mrb[0].mxu0
  %v711 = vpop.f32.mrb[0].mxu0
  %v712 = vadd.f32 0.0, %v711
  %v713 = vpop.f32.mrb[0].mxu0
  %714 = vmatprep.mubr.bf16.mxu0 0
  %715 = vmatmul.mubr.bf16.gmra.mrb[0].mxu0 %v383
  %v716 = vpop.f32.mrb[0].mxu0
  %v717 = vadd.f32 0.0, %v716
  %v718 = vpop.f32.mrb[0].mxu0
  %v719 = vpop.f32.mrb[0].mxu0
  %v720 = vadd.f32 0.0, %v719
  %v721 = vpop.f32.mrb[0].mxu0
  %722 = vmatprep.mubr.bf16.mxu0 0
  %723 = vmatmul.mubr.bf16.gmra.mrb[0].mxu0 %v384
  %v724 = vpop.f32.mrb[0].mxu0
  %v725 = vadd.f32 0.0, %v724
  %v726 = vpop.f32.mrb[0].mxu0
  %v727 = vpop.f32.mrb[0].mxu0
  %v728 = vadd.f32 0.0, %v727
  %v729 = vpop.f32.mrb[0].mxu0
  %730 = vmatprep.mubr.bf16.mxu0 0
  %731 = vmatmul.mubr.bf16.gmra.mrb[0].mxu0 %v385
  %v732 = vpop.f32.mrb[0].mxu0
  %v733 = vadd.f32 0.0, %v732
  %v734 = vpop.f32.mrb[0].mxu0
  %v735 = vpop.f32.mrb[0].mxu0
  %v736 = vadd.f32 0.0, %v735
  %v737 = vpop.f32.mrb[0].mxu0
  %738 = vdwg.mxu0
  %v739 = vpack.c.bf16 %v488, %v485
  %v740 = vpack.c.bf16 %v496, %v493
  %v741 = vpack.c.bf16 %v504, %v501
  %v742 = vpack.c.bf16 %v512, %v509
  %v743 = vpack.c.bf16 %v520, %v517
  %v744 = vpack.c.bf16 %v528, %v525
  %v745 = vpack.c.bf16 %v536, %v533
  %v746 = vpack.c.bf16 %v544, %v541
  %v747 = vpack.c.bf16 %v552, %v549
  %v748 = vpack.c.bf16 %v560, %v557
  %v749 = vpack.c.bf16 %v568, %v565
  %v750 = vpack.c.bf16 %v576, %v573
  %v751 = vpack.c.bf16 %v584, %v581
  %v752 = vpack.c.bf16 %v592, %v589
  %v753 = vpack.c.bf16 %v600, %v597
  %v754 = vpack.c.bf16 %v608, %v605
  %v755 = vpack.c.bf16 %v616, %v613
  %v756 = vpack.c.bf16 %v624, %v621
  %v757 = vpack.c.bf16 %v632, %v629
  %v758 = vpack.c.bf16 %v640, %v637
  %v759 = vpack.c.bf16 %v648, %v645
  %v760 = vpack.c.bf16 %v656, %v653
  %v761 = vpack.c.bf16 %v664, %v661
  %v762 = vpack.c.bf16 %v672, %v669
  %v763 = vpack.c.bf16 %v680, %v677
  %v764 = vpack.c.bf16 %v688, %v685
  %v765 = vpack.c.bf16 %v696, %v693
  %v766 = vpack.c.bf16 %v704, %v701
  %v767 = vpack.c.bf16 %v712, %v709
  %v768 = vpack.c.bf16 %v720, %v717
  %v769 = vpack.c.bf16 %v728, %v725
  %v770 = vpack.c.bf16 %v736, %v733
  %v803 = vunpack.c.l.b16 %v739
  %v804 = vunpack.c.h.b16 %v739
  %v805 = vunpack.c.l.b16 %v740
  %v806 = vunpack.c.h.b16 %v740
  %v807 = vunpack.c.l.b16 %v741
  %v808 = vunpack.c.h.b16 %v741
  %v809 = vunpack.c.l.b16 %v742
  %v810 = vunpack.c.h.b16 %v742
  %v811 = vunpack.c.l.b16 %v743
  %v812 = vunpack.c.h.b16 %v743
  %v813 = vunpack.c.l.b16 %v744
  %v814 = vunpack.c.h.b16 %v744
  %v815 = vunpack.c.l.b16 %v745
  %v816 = vunpack.c.h.b16 %v745
  %v817 = vunpack.c.l.b16 %v746
  %v818 = vunpack.c.h.b16 %v746
  %v819 = vunpack.c.l.b16 %v747
  %v820 = vunpack.c.h.b16 %v747
  %v821 = vunpack.c.l.b16 %v748
  %v822 = vunpack.c.h.b16 %v748
  %v823 = vunpack.c.l.b16 %v749
  %v824 = vunpack.c.h.b16 %v749
  %v825 = vunpack.c.l.b16 %v750
  %v826 = vunpack.c.h.b16 %v750
  %v827 = vunpack.c.l.b16 %v751
  %v828 = vunpack.c.h.b16 %v751
  %v829 = vunpack.c.l.b16 %v752
  %v830 = vunpack.c.h.b16 %v752
  %v831 = vunpack.c.l.b16 %v753
  %v832 = vunpack.c.h.b16 %v753
  %v833 = vunpack.c.l.b16 %v754
  %v834 = vunpack.c.h.b16 %v754
  %v835 = vunpack.c.l.b16 %v755
  %v836 = vunpack.c.h.b16 %v755
  %v837 = vunpack.c.l.b16 %v756
  %v838 = vunpack.c.h.b16 %v756
  %v839 = vunpack.c.l.b16 %v757
  %v840 = vunpack.c.h.b16 %v757
  %v841 = vunpack.c.l.b16 %v758
  %v842 = vunpack.c.h.b16 %v758
  %v843 = vunpack.c.l.b16 %v759
  %v844 = vunpack.c.h.b16 %v759
  %v845 = vunpack.c.l.b16 %v760
  %v846 = vunpack.c.h.b16 %v760
  %v847 = vunpack.c.l.b16 %v761
  %v848 = vunpack.c.h.b16 %v761
  %v849 = vunpack.c.l.b16 %v762
  %v850 = vunpack.c.h.b16 %v762
  %v851 = vunpack.c.l.b16 %v763
  %v852 = vunpack.c.h.b16 %v763
  %v853 = vunpack.c.l.b16 %v764
  %v854 = vunpack.c.h.b16 %v764
  %v855 = vunpack.c.l.b16 %v765
  %v856 = vunpack.c.h.b16 %v765
  %v857 = vunpack.c.l.b16 %v766
  %v858 = vunpack.c.h.b16 %v766
  %v859 = vunpack.c.l.b16 %v767
  %v860 = vunpack.c.h.b16 %v767
  %v861 = vunpack.c.l.b16 %v768
  %v862 = vunpack.c.h.b16 %v768
  %v863 = vunpack.c.l.b16 %v769
  %v864 = vunpack.c.h.b16 %v769
  %v865 = vunpack.c.l.b16 %v770
  %v866 = vunpack.c.h.b16 %v770
  %v867 = vpack.c.b16 %v803, %v803
  %v868 = vpack.c.b16 %v804, %v804
  %v869 = vpack.c.b16 %v805, %v805
  %v870 = vpack.c.b16 %v806, %v806
  %v871 = vpack.c.b16 %v807, %v807
  %v872 = vpack.c.b16 %v808, %v808
  %v873 = vpack.c.b16 %v809, %v809
  %v874 = vpack.c.b16 %v810, %v810
  %v875 = vpack.c.b16 %v811, %v811
  %v876 = vpack.c.b16 %v812, %v812
  %v877 = vpack.c.b16 %v813, %v813
  %v878 = vpack.c.b16 %v814, %v814
  %v879 = vpack.c.b16 %v815, %v815
  %v880 = vpack.c.b16 %v816, %v816
  %v881 = vpack.c.b16 %v817, %v817
  %v882 = vpack.c.b16 %v818, %v818
  %v883 = vpack.c.b16 %v819, %v819
  %v884 = vpack.c.b16 %v820, %v820
  %v885 = vpack.c.b16 %v821, %v821
  %v886 = vpack.c.b16 %v822, %v822
  %v887 = vpack.c.b16 %v823, %v823
  %v888 = vpack.c.b16 %v824, %v824
  %v889 = vpack.c.b16 %v825, %v825
  %v890 = vpack.c.b16 %v826, %v826
  %v891 = vpack.c.b16 %v827, %v827
  %v892 = vpack.c.b16 %v828, %v828
  %v893 = vpack.c.b16 %v829, %v829
  %v894 = vpack.c.b16 %v830, %v830
  %v895 = vpack.c.b16 %v831, %v831
  %v896 = vpack.c.b16 %v832, %v832
  %v897 = vpack.c.b16 %v833, %v833
  %v898 = vpack.c.b16 %v834, %v834
  %v899 = vpack.c.b16 %v835, %v835
  %v900 = vpack.c.b16 %v836, %v836
  %v901 = vpack.c.b16 %v837, %v837
  %v902 = vpack.c.b16 %v838, %v838
  %v903 = vpack.c.b16 %v839, %v839
  %v904 = vpack.c.b16 %v840, %v840
  %v905 = vpack.c.b16 %v841, %v841
  %v906 = vpack.c.b16 %v842, %v842
  %v907 = vpack.c.b16 %v843, %v843
  %v908 = vpack.c.b16 %v844, %v844
  %v909 = vpack.c.b16 %v845, %v845
  %v910 = vpack.c.b16 %v846, %v846
  %v911 = vpack.c.b16 %v847, %v847
  %v912 = vpack.c.b16 %v848, %v848
  %v913 = vpack.c.b16 %v849, %v849
  %v914 = vpack.c.b16 %v850, %v850
  %v915 = vpack.c.b16 %v851, %v851
  %v916 = vpack.c.b16 %v852, %v852
  %v917 = vpack.c.b16 %v853, %v853
  %v918 = vpack.c.b16 %v854, %v854
  %v919 = vpack.c.b16 %v855, %v855
  %v920 = vpack.c.b16 %v856, %v856
  %v921 = vpack.c.b16 %v857, %v857
  %v922 = vpack.c.b16 %v858, %v858
  %v923 = vpack.c.b16 %v859, %v859
  %v924 = vpack.c.b16 %v860, %v860
  %v925 = vpack.c.b16 %v861, %v861
  %v926 = vpack.c.b16 %v862, %v862
  %v927 = vpack.c.b16 %v863, %v863
  %v928 = vpack.c.b16 %v864, %v864
  %v929 = vpack.c.b16 %v865, %v865
  %v930 = vpack.c.b16 %v866, %v866
  %995 = vst [vmem:[%s4] sm:$0xf] %v867
  %996 = vst [vmem:[%s4 + $0x4] sm:$0xf] %v868
  %997 = vst [vmem:[%s4 + $0x8] sm:$0xf] %v869
  %998 = vst [vmem:[%s4 + $0xc] sm:$0xf] %v870
  %999 = vst [vmem:[%s4 + $0x10] sm:$0xf] %v871
  %1000 = vst [vmem:[%s4 + $0x14] sm:$0xf] %v872
  %1001 = vst [vmem:[%s4 + $0x18] sm:$0xf] %v873
  %1002 = vst [vmem:[%s4 + $0x1c] sm:$0xf] %v874
  %1003 = vst [vmem:[%s4 + $0x20] sm:$0xf] %v875
  %1004 = vst [vmem:[%s4 + $0x24] sm:$0xf] %v876
  %1005 = vst [vmem:[%s4 + $0x28] sm:$0xf] %v877
  %1006 = vst [vmem:[%s4 + $0x2c] sm:$0xf] %v878
  %1007 = vst [vmem:[%s4 + $0x30] sm:$0xf] %v879
  %1008 = vst [vmem:[%s4 + $0x34] sm:$0xf] %v880
  %1009 = vst [vmem:[%s4 + $0x38] sm:$0xf] %v881
  %1010 = vst [vmem:[%s4 + $0x3c] sm:$0xf] %v882
  %1011 = vst [vmem:[%s4 + $0x40] sm:$0xf] %v883
  %1012 = vst [vmem:[%s4 + $0x44] sm:$0xf] %v884
  %1013 = vst [vmem:[%s4 + $0x48] sm:$0xf] %v885
  %1014 = vst [vmem:[%s4 + $0x4c] sm:$0xf] %v886
  %1015 = vst [vmem:[%s4 + $0x50] sm:$0xf] %v887
  %1016 = vst [vmem:[%s4 + $0x54] sm:$0xf] %v888
  %1017 = vst [vmem:[%s4 + $0x58] sm:$0xf] %v889
  %1018 = vst [vmem:[%s4 + $0x5c] sm:$0xf] %v890
  %1019 = vst [vmem:[%s4 + $0x60] sm:$0xf] %v891
  %1020 = vst [vmem:[%s4 + $0x64] sm:$0xf] %v892
  %1021 = vst [vmem:[%s4 + $0x68] sm:$0xf] %v893
  %1022 = vst [vmem:[%s4 + $0x6c] sm:$0xf] %v894
  %1023 = vst [vmem:[%s4 + $0x70] sm:$0xf] %v895
  %1024 = vst [vmem:[%s4 + $0x74] sm:$0xf] %v896
  %1025 = vst [vmem:[%s4 + $0x78] sm:$0xf] %v897
  %1026 = vst [vmem:[%s4 + $0x7c] sm:$0xf] %v898
  %1027 = vst [vmem:[%s4 + $0x80] sm:$0xf] %v899
  %1028 = vst [vmem:[%s4 + $0x84] sm:$0xf] %v900
  %1029 = vst [vmem:[%s4 + $0x88] sm:$0xf] %v901
  %1030 = vst [vmem:[%s4 + $0x8c] sm:$0xf] %v902
  %1031 = vst [vmem:[%s4 + $0x90] sm:$0xf] %v903
  %1032 = vst [vmem:[%s4 + $0x94] sm:$0xf] %v904
  %1033 = vst [vmem:[%s4 + $0x98] sm:$0xf] %v905
  %1034 = vst [vmem:[%s4 + $0x9c] sm:$0xf] %v906
  %1035 = vst [vmem:[%s4 + $0xa0] sm:$0xf] %v907
  %1036 = vst [vmem:[%s4 + $0xa4] sm:$0xf] %v908
  %1037 = vst [vmem:[%s4 + $0xa8] sm:$0xf] %v909
  %1038 = vst [vmem:[%s4 + $0xac] sm:$0xf] %v910
  %1039 = vst [vmem:[%s4 + $0xb0] sm:$0xf] %v911
  %1040 = vst [vmem:[%s4 + $0xb4] sm:$0xf] %v912
  %1041 = vst [vmem:[%s4 + $0xb8] sm:$0xf] %v913
  %1042 = vst [vmem:[%s4 + $0xbc] sm:$0xf] %v914
  %1043 = vst [vmem:[%s4 + $0xc0] sm:$0xf] %v915
  %1044 = vst [vmem:[%s4 + $0xc4] sm:$0xf] %v916
  %1045 = vst [vmem:[%s4 + $0xc8] sm:$0xf] %v917
  %1046 = vst [vmem:[%s4 + $0xcc] sm:$0xf] %v918
  %1047 = vst [vmem:[%s4 + $0xd0] sm:$0xf] %v919
  %1048 = vst [vmem:[%s4 + $0xd4] sm:$0xf] %v920
  %1049 = vst [vmem:[%s4 + $0xd8] sm:$0xf] %v921
  %1050 = vst [vmem:[%s4 + $0xdc] sm:$0xf] %v922
  %1051 = vst [vmem:[%s4 + $0xe0] sm:$0xf] %v923
  %1052 = vst [vmem:[%s4 + $0xe4] sm:$0xf] %v924
  %1053 = vst [vmem:[%s4 + $0xe8] sm:$0xf] %v925
  %1054 = vst [vmem:[%s4 + $0xec] sm:$0xf] %v926
  %1055 = vst [vmem:[%s4 + $0xf0] sm:$0xf] %v927
  %1056 = vst [vmem:[%s4 + $0xf4] sm:$0xf] %v928
  %1057 = vst [vmem:[%s4 + $0xf8] sm:$0xf] %v929
  %1058 = vst [vmem:[%s4 + $0xfc] sm:$0xf] %v930
  %v1059 = vadd.f32 %v485, %v488
  %v1060 = vadd.f32 %v1059, %v493
  %v1061 = vadd.f32 %v1060, %v496
  %v1062 = vadd.f32 %v1061, %v501
  %v1063 = vadd.f32 %v1062, %v504
  %v1064 = vadd.f32 %v1063, %v509
  %v1065 = vadd.f32 %v1064, %v512
  %v1066 = vadd.f32 %v1065, %v517
  %v1067 = vadd.f32 %v1066, %v520
  %v1068 = vadd.f32 %v1067, %v525
  %v1069 = vadd.f32 %v1068, %v528
  %v1070 = vadd.f32 %v1069, %v533
  %v1071 = vadd.f32 %v1070, %v536
  %v1072 = vadd.f32 %v1071, %v541
  %v1073 = vadd.f32 %v1072, %v544
  %v1074 = vadd.f32 %v1073, %v549
  %v1075 = vadd.f32 %v1074, %v552
  %v1076 = vadd.f32 %v1075, %v557
  %v1077 = vadd.f32 %v1076, %v560
  %v1078 = vadd.f32 %v1077, %v565
  %v1079 = vadd.f32 %v1078, %v568
  %v1080 = vadd.f32 %v1079, %v573
  %v1081 = vadd.f32 %v1080, %v576
  %v1082 = vadd.f32 %v1081, %v581
  %v1083 = vadd.f32 %v1082, %v584
  %v1084 = vadd.f32 %v1083, %v589
  %v1085 = vadd.f32 %v1084, %v592
  %v1086 = vadd.f32 %v1085, %v597
  %v1087 = vadd.f32 %v1086, %v600
  %v1088 = vadd.f32 %v1087, %v605
  %v1089 = vadd.f32 %v1088, %v608
  %v1090 = vadd.f32 %v1089, %v613
  %v1091 = vadd.f32 %v1090, %v616
  %v1092 = vadd.f32 %v1091, %v621
  %v1093 = vadd.f32 %v1092, %v624
  %v1094 = vadd.f32 %v1093, %v629
  %v1095 = vadd.f32 %v1094, %v632
  %v1096 = vadd.f32 %v1095, %v637
  %v1097 = vadd.f32 %v1096, %v640
  %v1098 = vadd.f32 %v1097, %v645
  %v1099 = vadd.f32 %v1098, %v648
  %v1100 = vadd.f32 %v1099, %v653
  %v1101 = vadd.f32 %v1100, %v656
  %v1102 = vadd.f32 %v1101, %v661
  %v1103 = vadd.f32 %v1102, %v664
  %v1104 = vadd.f32 %v1103, %v669
  %v1105 = vadd.f32 %v1104, %v672
  %v1106 = vadd.f32 %v1105, %v677
  %v1107 = vadd.f32 %v1106, %v680
  %v1108 = vadd.f32 %v1107, %v685
  %v1109 = vadd.f32 %v1108, %v688
  %v1110 = vadd.f32 %v1109, %v693
  %v1111 = vadd.f32 %v1110, %v696
  %v1112 = vadd.f32 %v1111, %v701
  %v1113 = vadd.f32 %v1112, %v704
  %v1114 = vadd.f32 %v1113, %v709
  %v1115 = vadd.f32 %v1114, %v712
  %v1116 = vadd.f32 %v1115, %v717
  %v1117 = vadd.f32 %v1116, %v720
  %v1118 = vadd.f32 %v1117, %v725
  %v1119 = vadd.f32 %v1118, %v728
  %v1120 = vadd.f32 %v1119, %v733
  %v1121 = vadd.f32 %v1120, %v736
  %v1122 = vrot.slane %v1121, 4
  %v1123 = vadd.f32 %v1121, %v1122
  %v1124 = vrot.slane %v1123, 2
  %v1125 = vadd.f32 %v1123, %v1124
  %v1126 = vrot.slane %v1125, 1
  %v1127 = vadd.f32 %v1125, %v1126
  %v1128 = vmul.f32 %v485, %v485
  %v1129 = vmul.f32 %v488, %v488
  %v1130 = vmul.f32 %v493, %v493
  %v1131 = vmul.f32 %v496, %v496
  %v1132 = vmul.f32 %v501, %v501
  %v1133 = vmul.f32 %v504, %v504
  %v1134 = vmul.f32 %v509, %v509
  %v1135 = vmul.f32 %v512, %v512
  %v1136 = vmul.f32 %v517, %v517
  %v1137 = vmul.f32 %v520, %v520
  %v1138 = vmul.f32 %v525, %v525
  %v1139 = vmul.f32 %v528, %v528
  %v1140 = vmul.f32 %v533, %v533
  %v1141 = vmul.f32 %v536, %v536
  %v1142 = vmul.f32 %v541, %v541
  %v1143 = vmul.f32 %v544, %v544
  %v1144 = vmul.f32 %v549, %v549
  %v1145 = vmul.f32 %v552, %v552
  %v1146 = vmul.f32 %v557, %v557
  %v1147 = vmul.f32 %v560, %v560
  %v1148 = vmul.f32 %v565, %v565
  %v1149 = vmul.f32 %v568, %v568
  %v1150 = vmul.f32 %v573, %v573
  %v1151 = vmul.f32 %v576, %v576
  %v1152 = vmul.f32 %v581, %v581
  %v1153 = vmul.f32 %v584, %v584
  %v1154 = vmul.f32 %v589, %v589
  %v1155 = vmul.f32 %v592, %v592
  %v1156 = vmul.f32 %v597, %v597
  %v1157 = vmul.f32 %v600, %v600
  %v1158 = vmul.f32 %v605, %v605
  %v1159 = vmul.f32 %v608, %v608
  %v1160 = vmul.f32 %v613, %v613
  %v1161 = vmul.f32 %v616, %v616
  %v1162 = vmul.f32 %v621, %v621
  %v1163 = vmul.f32 %v624, %v624
  %v1164 = vmul.f32 %v629, %v629
  %v1165 = vmul.f32 %v632, %v632
  %v1166 = vmul.f32 %v637, %v637
  %v1167 = vmul.f32 %v640, %v640
  %v1168 = vmul.f32 %v645, %v645
  %v1169 = vmul.f32 %v648, %v648
  %v1170 = vmul.f32 %v653, %v653
  %v1171 = vmul.f32 %v656, %v656
  %v1172 = vmul.f32 %v661, %v661
  %v1173 = vmul.f32 %v664, %v664
  %v1174 = vmul.f32 %v669, %v669
  %v1175 = vmul.f32 %v672, %v672
  %v1176 = vmul.f32 %v677, %v677
  %v1177 = vmul.f32 %v680, %v680
  %v1178 = vmul.f32 %v685, %v685
  %v1179 = vmul.f32 %v688, %v688
  %v1180 = vmul.f32 %v693, %v693
  %v1181 = vmul.f32 %v696, %v696
  %v1182 = vmul.f32 %v701, %v701
  %v1183 = vmul.f32 %v704, %v704
  %v1184 = vmul.f32 %v709, %v709
  %v1185 = vmul.f32 %v712, %v712
  %v1186 = vmul.f32 %v717, %v717
  %v1187 = vmul.f32 %v720, %v720
  %v1188 = vmul.f32 %v725, %v725
  %v1189 = vmul.f32 %v728, %v728
  %v1190 = vmul.f32 %v733, %v733
  %v1191 = vmul.f32 %v736, %v736
  %v1192 = vadd.f32 %v1128, %v1129
  %v1193 = vadd.f32 %v1192, %v1130
  %v1194 = vadd.f32 %v1193, %v1131
  %v1195 = vadd.f32 %v1194, %v1132
  %v1196 = vadd.f32 %v1195, %v1133
  %v1197 = vadd.f32 %v1196, %v1134
  %v1198 = vadd.f32 %v1197, %v1135
  %v1199 = vadd.f32 %v1198, %v1136
  %v1200 = vadd.f32 %v1199, %v1137
  %v1201 = vadd.f32 %v1200, %v1138
  %v1202 = vadd.f32 %v1201, %v1139
  %v1203 = vadd.f32 %v1202, %v1140
  %v1204 = vadd.f32 %v1203, %v1141
  %v1205 = vadd.f32 %v1204, %v1142
  %v1206 = vadd.f32 %v1205, %v1143
  %v1207 = vadd.f32 %v1206, %v1144
  %v1208 = vadd.f32 %v1207, %v1145
  %v1209 = vadd.f32 %v1208, %v1146
  %v1210 = vadd.f32 %v1209, %v1147
  %v1211 = vadd.f32 %v1210, %v1148
  %v1212 = vadd.f32 %v1211, %v1149
  %v1213 = vadd.f32 %v1212, %v1150
  %v1214 = vadd.f32 %v1213, %v1151
  %v1215 = vadd.f32 %v1214, %v1152
  %v1216 = vadd.f32 %v1215, %v1153
  %v1217 = vadd.f32 %v1216, %v1154
  %v1218 = vadd.f32 %v1217, %v1155
  %v1219 = vadd.f32 %v1218, %v1156
  %v1220 = vadd.f32 %v1219, %v1157
  %v1221 = vadd.f32 %v1220, %v1158
  %v1222 = vadd.f32 %v1221, %v1159
  %v1223 = vadd.f32 %v1222, %v1160
  %v1224 = vadd.f32 %v1223, %v1161
  %v1225 = vadd.f32 %v1224, %v1162
  %v1226 = vadd.f32 %v1225, %v1163
  %v1227 = vadd.f32 %v1226, %v1164
  %v1228 = vadd.f32 %v1227, %v1165
  %v1229 = vadd.f32 %v1228, %v1166
  %v1230 = vadd.f32 %v1229, %v1167
  %v1231 = vadd.f32 %v1230, %v1168
  %v1232 = vadd.f32 %v1231, %v1169
  %v1233 = vadd.f32 %v1232, %v1170
  %v1234 = vadd.f32 %v1233, %v1171
  %v1235 = vadd.f32 %v1234, %v1172
  %v1236 = vadd.f32 %v1235, %v1173
  %v1237 = vadd.f32 %v1236, %v1174
  %v1238 = vadd.f32 %v1237, %v1175
  %v1239 = vadd.f32 %v1238, %v1176
  %v1240 = vadd.f32 %v1239, %v1177
  %v1241 = vadd.f32 %v1240, %v1178
  %v1242 = vadd.f32 %v1241, %v1179
  %v1243 = vadd.f32 %v1242, %v1180
  %v1244 = vadd.f32 %v1243, %v1181
  %v1245 = vadd.f32 %v1244, %v1182
  %v1246 = vadd.f32 %v1245, %v1183
  %v1247 = vadd.f32 %v1246, %v1184
  %v1248 = vadd.f32 %v1247, %v1185
  %v1249 = vadd.f32 %v1248, %v1186
  %v1250 = vadd.f32 %v1249, %v1187
  %v1251 = vadd.f32 %v1250, %v1188
  %v1252 = vadd.f32 %v1251, %v1189
  %v1253 = vadd.f32 %v1252, %v1190
  %v1254 = vadd.f32 %v1253, %v1191
  %v1255 = vrot.slane %v1254, 4
  %v1256 = vadd.f32 %v1254, %v1255
  %v1257 = vrot.slane %v1256, 2
  %v1258 = vadd.f32 %v1256, %v1257
  %v1259 = vrot.slane %v1258, 1
  %v1260 = vadd.f32 %v1258, %v1259
  %vm1261 = vcmask 1040384
  %v1262 = vsel %vm1261, %v1127, %v1260
  %1263 = vst [vmem:[%s5] sm:$0x3] %v1262
  // Predicated region
  $region18: #{bottleneck_forward.6} parent=0 // pred_check
    _
  $region19: #{bottleneck_forward.6} parent=0 // pred_check_branch
    %1265 = sbr.rel (0) target = $region21
  $region20: #{bottleneck_forward.6} parent=0 // pred_region
    _
  $region21: #{bottleneck_forward.6} parent=0 // pred_fallthru
    _
  // Predicated region
  $region22: #{bottleneck_forward.6} parent=0 // pred_check
    _
  $region23: #{bottleneck_forward.6} parent=0 // pred_check_branch
    %1267 = sbr.rel (0) target = $region25
  $region24: #{bottleneck_forward.6} parent=0 // pred_region
    _
  $region25: #{bottleneck_forward.6} parent=0 // pred_fallthru
    _
  // Predicated region
  $region26: #{bottleneck_forward.6} parent=0 // pred_check
    _
  $region27: #{bottleneck_forward.6} parent=0 // pred_check_branch
    %1269 = sbr.rel (0) target = $region29
  $region28: #{bottleneck_forward.6} parent=0 // pred_region
    _
  $region29: #{bottleneck_forward.6} parent=0 // pred_fallthru
    _
  // Predicated region
  $region30: #{bottleneck_forward.6} parent=0 // pred_check
    _
  $region31: #{bottleneck_forward.6} parent=0 // pred_check_branch
    %1271 = sbr.rel (0) target = $region33
  $region32: #{bottleneck_forward.6} parent=0 // pred_region
    _
  $region33: #{bottleneck_forward.6} parent=0 // pred_fallthru
    _

// kernel: bottleneck_forward.5
$region0: #{bottleneck_forward.5}
  #allocation0 [shape = 'u32[]', space=smem, size = 0x4, offset = 0x4, fixed_abs, tag = 'smem constant byte address 0x4 - core index']
  #allocation1 [shape = 'u32[144,128]{1,0:T(1,128)}', space=vmem, size = 0x12000, scoped, tag = 'internal scratch']
  #allocation2 [shape = 'bf16[10,32,128]{2,1,0:T(16,128)(2,1)}', space=vmem, size = 0x14000, scoped, tag = 'scratch operand']
  %s0 = inlined_call_operand.vmem [shape: bf16[2,16,16,128], index: 0, kind: input, shape index: {}, may-alias: {0,1,2}]
  %s1 = inlined_call_operand.vmem [shape: bf16[2,16,16,128], index: 1, kind: input, shape index: {}, may-alias: {0,1,2}]
  %s2 = inlined_call_operand.vmem [shape: bf16[2,16,16,128], index: 2, kind: input, shape index: {}, may-alias: {0,1,2}]
  %s3 = inlined_call_operand.vmem [shape: bf16[3,3,128,128], index: 3, kind: input, shape index: {}]
  %s4 = inlined_call_operand.vmem [shape: f32[1,128], index: 4, kind: input, shape index: {}]
  %s5 = inlined_call_operand.vmem [shape: f32[1,128], index: 5, kind: input, shape index: {}]
  %s6 = inlined_call_operand.vmem [shape: bf16[2,16,16,128], index: 6, kind: output, shape index: {0}]
  %s7 = inlined_call_operand.vmem [shape: f32[2,2,2,128], index: 7, kind: output, shape index: {1}]
  %8 = xla_tuple %s6, %s7
  %s9 = sld [smem:[#allocation0]]
  $region65: #{bottleneck_forward.5} parent=0
    _
  %s11 = ssub.s32 1, %s9
  %s12 = scalar_select 0, %s11, %s9
  loop: start=0, step=1, limit=6
  $region2: #{bottleneck_forward.5} parent=0 // loop_pre_header
    _
  $region3: #{bottleneck_forward.5} parent=0 // loop_header
    %s14 = sphi 0, %s18
    %p15 = scmp.ge.s32.totalorder %s14, 6
    %s21 = sphi 0, %s33
    %s22 = sphi 0, %s29
    %s23 = sphi 0, %s21
    %s24 = sphi 0, %s22
    %s25 = sphi 0, %s23
    %s26 = sphi 0, %s24
    %s38 = sphi 0, %s40
    %s41 = sphi 0, %s38
    %s42 = sphi 0, %s41
    %s58 = sphi 0, %s42
    %s74 = sphi 0, %s76
    %s77 = sphi 0, %s74
    %s78 = sphi 0, %s77
    %s94 = sphi 0, %s78
    %s110 = sphi 0, %s112
    %s113 = sphi 0, %s110
    %s114 = sphi 0, %s113
    %s130 = sphi 0, %s114
    %s134 = sphi 0, %s134
    %s136 = sphi 0, %s134
    %s137 = sphi 0, %s136
    %s151 = sphi 0, %s137
    %s155 = sphi 0, %s155
    %s157 = sphi 0, %s155
    %s158 = sphi 0, %s157
    %s172 = sphi 0, %s158
    %s176 = sphi 0, %s176
    %s178 = sphi 0, %s176
    %s179 = sphi 0, %s178
    %s193 = sphi 0, %s179
    %s201 = sphi 0, %s203
    %s204 = sphi 0, %s201
    %s205 = sphi 0, %s204
    %s221 = sphi 0, %s205
    %s229 = sphi 0, %s231
    %s232 = sphi 0, %s229
    %s233 = sphi 0, %s232
    %s249 = sphi 0, %s233
  $region4: #{bottleneck_forward.5} parent=0 // loop_header_branch
    %17 = sbr.rel (%p15) target = $region8
  $region5: #{bottleneck_forward.5} parent=0 // loop_body
    %s19 = ssub.s32 %s14, 1
    %s20 = ssub.s32 %s14, 2
    %s27 = sadd.s32 1, %s22
    %p28 = scmp.ge.s32.totalorder %s27, 2
    %s29 = scalar_select %p28, 0, %s27
    %s30 = sadd.s32 1, %s21
    %s31 = scalar_select %p28, %s30, %s21
    %p32 = scmp.ge.s32.totalorder %s31, 2
    %s33 = scalar_select %p32, 0, %s31
    %s34 = ssub.s32 %s21, %s33
    %s35 = ssub.s32 %s22, %s29
    %s36 = sor.u32 %s34, %s35
    %p37 = scmp.eq.s32.totalorder %s36, 0
    %s39 = sadd.s32 %s38, 1
    %s40 = scalar_select %p37, %s38, %s39
    %p43 = pneg %p37
    %p44 = scmp.eq.s32.totalorder %s14, 3
    %p45 = por %p43, %p44
    %p46 = scmp.ne.s32.totalorder %s38, %s41
    %p47 = scmp.eq.s32.totalorder %s14, 0
    %p48 = por %p46, %p47
    %p49 = scmp.ne.s32.totalorder %s38, %s41
    %p50 = scmp.eq.s32.totalorder %s19, 3
    %p51 = por %p49, %p50
    %p52 = scmp.ne.s32.totalorder %s41, %s42
    %p53 = scmp.eq.s32.totalorder %s19, 0
    %p54 = por %p52, %p53
    %p55 = scmp.ne.s32.totalorder %s41, %s42
    %p56 = scmp.eq.s32.totalorder %s20, 3
    %p57 = por %p55, %p56
    %p59 = scmp.ne.s32.totalorder %s42, %s58
    %p60 = scmp.eq.s32.totalorder %s20, 0
    %p61 = por %p59, %p60
    %p62 = scmp.gt.s32.totalorder %s22, 0
    %s63 = smul.u32 %s22, 8
    %s64 = ssub.s32 %s63, 1
    %s65 = scalar_select %p62, %s64, 0
    %p66 = scmp.gt.s32.totalorder %s29, 0
    %s67 = smul.u32 %s29, 8
    %s68 = ssub.s32 %s67, 1
    %s69 = scalar_select %p66, %s68, 0
    %s70 = ssub.s32 %s21, %s33
    %s71 = ssub.s32 %s65, %s69
    %s72 = sor.u32 %s70, %s71
    %p73 = scmp.eq.s32.totalorder %s72, 0
    %s75 = sadd.s32 %s74, 1
    %s76 = scalar_select %p73, %s74, %s75
    %p79 = pneg %p73
    %p80 = scmp.eq.s32.totalorder %s14, 3
    %p81 = por %p79, %p80
    %p82 = scmp.ne.s32.totalorder %s74, %s77
    %p83 = scmp.eq.s32.totalorder %s14, 0
    %p84 = por %p82, %p83
    %p85 = scmp.ne.s32.totalorder %s74, %s77
    %p86 = scmp.eq.s32.totalorder %s19, 3
    %p87 = por %p85, %p86
    %p88 = scmp.ne.s32.totalorder %s77, %s78
    %p89 = scmp.eq.s32.totalorder %s19, 0
    %p90 = por %p88, %p89
    %p91 = scmp.ne.s32.totalorder %s77, %s78
    %p92 = scmp.eq.s32.totalorder %s20, 3
    %p93 = por %p91, %p92
    %p95 = scmp.ne.s32.totalorder %s78, %s94
    %p96 = scmp.eq.s32.totalorder %s20, 0
    %p97 = por %p95, %p96
    %p98 = scmp.lt.s32.totalorder %s22, 1
    %s99 = sadd.s32 %s22, 1
    %s100 = smul.u32 %s99, 8
    %s101 = scalar_select %p98, %s100, 15
    %p102 = scmp.lt.s32.totalorder %s29, 1
    %s103 = sadd.s32 %s29, 1
    %s104 = smul.u32 %s103, 8
    %s105 = scalar_select %p102, %s104, 15
    %s106 = ssub.s32 %s21, %s33
    %s107 = ssub.s32 %s101, %s105
    %s108 = sor.u32 %s106, %s107
    %p109 = scmp.eq.s32.totalorder %s108, 0
    %s111 = sadd.s32 %s110, 1
    %s112 = scalar_select %p109, %s110, %s111
    %p115 = pneg %p109
    %p116 = scmp.eq.s32.totalorder %s14, 3
    %p117 = por %p115, %p116
    %p118 = scmp.ne.s32.totalorder %s110, %s113
    %p119 = scmp.eq.s32.totalorder %s14, 0
    %p120 = por %p118, %p119
    %p121 = scmp.ne.s32.totalorder %s110, %s113
    %p122 = scmp.eq.s32.totalorder %s19, 3
    %p123 = por %p121, %p122
    %p124 = scmp.ne.s32.totalorder %s113, %s114
    %p125 = scmp.eq.s32.totalorder %s19, 0
    %p126 = por %p124, %p125
    %p127 = scmp.ne.s32.totalorder %s113, %s114
    %p128 = scmp.eq.s32.totalorder %s20, 3
    %p129 = por %p127, %p128
    %p131 = scmp.ne.s32.totalorder %s114, %s130
    %p132 = scmp.eq.s32.totalorder %s20, 0
    %p133 = por %p131, %p132
    %s135 = sadd.s32 %s134, 1
    %p138 = scmp.eq.s32.totalorder %s14, 3
    %p139 = scmp.ne.s32.totalorder %s134, %s136
    %p140 = scmp.eq.s32.totalorder %s14, 0
    %p141 = por %p139, %p140
    %p142 = scmp.ne.s32.totalorder %s134, %s136
    %p143 = scmp.eq.s32.totalorder %s19, 3
    %p144 = por %p142, %p143
    %p145 = scmp.ne.s32.totalorder %s136, %s137
    %p146 = scmp.eq.s32.totalorder %s19, 0
    %p147 = por %p145, %p146
    %p148 = scmp.ne.s32.totalorder %s136, %s137
    %p149 = scmp.eq.s32.totalorder %s20, 3
    %p150 = por %p148, %p149
    %p152 = scmp.ne.s32.totalorder %s137, %s151
    %p153 = scmp.eq.s32.totalorder %s20, 0
    %p154 = por %p152, %p153
    %s156 = sadd.s32 %s155, 1
    %p159 = scmp.eq.s32.totalorder %s14, 3
    %p160 = scmp.ne.s32.totalorder %s155, %s157
    %p161 = scmp.eq.s32.totalorder %s14, 0
    %p162 = por %p160, %p161
    %p163 = scmp.ne.s32.totalorder %s155, %s157
    %p164 = scmp.eq.s32.totalorder %s19, 3
    %p165 = por %p163, %p164
    %p166 = scmp.ne.s32.totalorder %s157, %s158
    %p167 = scmp.eq.s32.totalorder %s19, 0
    %p168 = por %p166, %p167
    %p169 = scmp.ne.s32.totalorder %s157, %s158
    %p170 = scmp.eq.s32.totalorder %s20, 3
    %p171 = por %p169, %p170
    %p173 = scmp.ne.s32.totalorder %s158, %s172
    %p174 = scmp.eq.s32.totalorder %s20, 0
    %p175 = por %p173, %p174
    %s177 = sadd.s32 %s176, 1
    %p180 = scmp.eq.s32.totalorder %s14, 3
    %p181 = scmp.ne.s32.totalorder %s176, %s178
    %p182 = scmp.eq.s32.totalorder %s14, 0
    %p183 = por %p181, %p182
    %p184 = scmp.ne.s32.totalorder %s176, %s178
    %p185 = scmp.eq.s32.totalorder %s19, 3
    %p186 = por %p184, %p185
    %p187 = scmp.ne.s32.totalorder %s178, %s179
    %p188 = scmp.eq.s32.totalorder %s19, 0
    %p189 = por %p187, %p188
    %p190 = scmp.ne.s32.totalorder %s178, %s179
    %p191 = scmp.eq.s32.totalorder %s20, 3
    %p192 = por %p190, %p191
    %p194 = scmp.ne.s32.totalorder %s179, %s193
    %p195 = scmp.eq.s32.totalorder %s20, 0
    %p196 = por %p194, %p195
    %s197 = ssub.s32 %s21, %s33
    %s198 = ssub.s32 %s22, %s29
    %s199 = sor.u32 %s197, %s198
    %p200 = scmp.eq.s32.totalorder %s199, 0
    %s202 = sadd.s32 %s201, 1
    %s203 = scalar_select %p200, %s201, %s202
    %p206 = pneg %p200
    %p207 = scmp.eq.s32.totalorder %s14, 3
    %p208 = por %p206, %p207
    %p209 = scmp.ne.s32.totalorder %s201, %s204
    %p210 = scmp.eq.s32.totalorder %s14, 0
    %p211 = por %p209, %p210
    %p212 = scmp.ne.s32.totalorder %s201, %s204
    %p213 = scmp.eq.s32.totalorder %s19, 3
    %p214 = por %p212, %p213
    %p215 = scmp.ne.s32.totalorder %s204, %s205
    %p216 = scmp.eq.s32.totalorder %s19, 0
    %p217 = por %p215, %p216
    %p218 = scmp.ne.s32.totalorder %s204, %s205
    %p219 = scmp.eq.s32.totalorder %s20, 3
    %p220 = por %p218, %p219
    %p222 = scmp.ne.s32.totalorder %s205, %s221
    %p223 = scmp.eq.s32.totalorder %s20, 0
    %p224 = por %p222, %p223
    %s225 = ssub.s32 %s21, %s33
    %s226 = ssub.s32 %s22, %s29
    %s227 = sor.u32 %s225, %s226
    %p228 = scmp.eq.s32.totalorder %s227, 0
    %s230 = sadd.s32 %s229, 1
    %s231 = scalar_select %p228, %s229, %s230
    %p234 = pneg %p228
    %p235 = scmp.eq.s32.totalorder %s14, 3
    %p236 = por %p234, %p235
    %p237 = scmp.ne.s32.totalorder %s229, %s232
    %p238 = scmp.eq.s32.totalorder %s14, 0
    %p239 = por %p237, %p238
    %p240 = scmp.ne.s32.totalorder %s229, %s232
    %p241 = scmp.eq.s32.totalorder %s19, 3
    %p242 = por %p240, %p241
    %p243 = scmp.ne.s32.totalorder %s232, %s233
    %p244 = scmp.eq.s32.totalorder %s19, 0
    %p245 = por %p243, %p244
    %p246 = scmp.ne.s32.totalorder %s232, %s233
    %p247 = scmp.eq.s32.totalorder %s20, 3
    %p248 = por %p246, %p247
    %p250 = scmp.ne.s32.totalorder %s233, %s249
    %p251 = scmp.eq.s32.totalorder %s20, 0
    %p252 = por %p250, %p251
    %p253 = scmp.le.s32.totalorder 1, %s14
    %p254 = scmp.lt.s32.totalorder %s14, 5
    %p255 = pnand %p253, %p254
    %p256 = pneg %p255
    // Predicated region
    $region9: #{bottleneck_forward.5} parent=5 // pred_check
      _
    $region10: #{bottleneck_forward.5} parent=5 // pred_check_branch
      %258 = sbr.rel (%p255) target = $region12
    $region11: #{bottleneck_forward.5} parent=5 // pred_region
      %s259 = ssub.s32 %s14, 1
      // Predicated region
      $region13: #{bottleneck_forward.5} parent=11 // pred_check
        %p260 = pneg %p147
      $region14: #{bottleneck_forward.5} parent=11 // pred_check_branch
        %262 = sbr.rel (%p260) target = $region16
      $region15: #{bottleneck_forward.5} parent=11 // pred_region
        _
      $region16: #{bottleneck_forward.5} parent=11 // pred_fallthru
        _
      // Predicated region
      $region17: #{bottleneck_forward.5} parent=11 // pred_check
        %p263 = pneg %p168
      $region18: #{bottleneck_forward.5} parent=11 // pred_check_branch
        %265 = sbr.rel (%p263) target = $region20
      $region19: #{bottleneck_forward.5} parent=11 // pred_region
        _
      $region20: #{bottleneck_forward.5} parent=11 // pred_fallthru
        _
      // Predicated region
      $region21: #{bottleneck_forward.5} parent=11 // pred_check
        %p266 = pneg %p189
      $region22: #{bottleneck_forward.5} parent=11 // pred_check_branch
        %268 = sbr.rel (%p266) target = $region24
      $region23: #{bottleneck_forward.5} parent=11 // pred_region
        _
      $region24: #{bottleneck_forward.5} parent=11 // pred_fallthru
        _
    $region12: #{bottleneck_forward.5} parent=5 // pred_fallthru
      _
    %p269 = scmp.lt.s32.totalorder %s14, 4
    // Predicated region
    $region25: #{bottleneck_forward.5} parent=5 // pred_check
      %p270 = pneg %p269
    $region26: #{bottleneck_forward.5} parent=5 // pred_check_branch
      %272 = sbr.rel (%p270) target = $region28
    $region27: #{bottleneck_forward.5} parent=5 // pred_region
      // Predicated region
      $region29: #{bottleneck_forward.5} parent=27 // pred_check
        %p273 = pneg %p48
      $region30: #{bottleneck_forward.5} parent=27 // pred_check_branch
        %275 = sbr.rel (%p273) target = $region32
      $region31: #{bottleneck_forward.5} parent=27 // pred_region
        %s276 = smul.u32 8, %s22
        %p277 = scmp.lt.s32.totalorder %s21, 1
        %s278 = scalar_select %p277, %s21, 1
        %p279 = scmp.lt.s32.totalorder %s276, 15
        %s280 = scalar_select %p279, %s276, 15
        %s281 = smul.addr %s280, 2
        %s282 = smul.addr %s278, 32
        %s283 = sadd.s32 %s281, %s282
        %s284 = smul.addr %s283, 4
        %s285 = scalar_lea.vmem %s0, %s284
        %s286 = smul.u32 8, %s22
      $region32: #{bottleneck_forward.5} parent=27 // pred_fallthru
        _
      // Predicated region
      $region33: #{bottleneck_forward.5} parent=27 // pred_check
        %p287 = pneg %p84
      $region34: #{bottleneck_forward.5} parent=27 // pred_check_branch
        %289 = sbr.rel (%p287) target = $region36
      $region35: #{bottleneck_forward.5} parent=27 // pred_region
        %p290 = scmp.gt.s32.totalorder %s22, 0
        %s291 = smul.u32 %s22, 8
        %s292 = ssub.s32 %s291, 1
        %s293 = scalar_select %p290, %s292, 0
        %p294 = scmp.lt.s32.totalorder %s21, 1
        %s295 = scalar_select %p294, %s21, 1
        %p296 = scmp.lt.s32.totalorder %s293, 15
        %s297 = scalar_select %p296, %s293, 15
        %s298 = smul.addr %s297, 2
        %s299 = smul.addr %s295, 32
        %s300 = sadd.s32 %s298, %s299
        %s301 = smul.addr %s300, 4
        %s302 = scalar_lea.vmem %s1, %s301
        %p303 = scmp.gt.s32.totalorder %s22, 0
        %s304 = smul.u32 %s22, 8
        %s305 = ssub.s32 %s304, 1
        %s306 = scalar_select %p303, %s305, 0
      $region36: #{bottleneck_forward.5} parent=27 // pred_fallthru
        _
      // Predicated region
      $region37: #{bottleneck_forward.5} parent=27 // pred_check
        %p307 = pneg %p120
      $region38: #{bottleneck_forward.5} parent=27 // pred_check_branch
        %309 = sbr.rel (%p307) target = $region40
      $region39: #{bottleneck_forward.5} parent=27 // pred_region
        %p310 = scmp.lt.s32.totalorder %s22, 1
        %s311 = sadd.s32 %s22, 1
        %s312 = smul.u32 %s311, 8
        %s313 = scalar_select %p310, %s312, 15
        %p314 = scmp.lt.s32.totalorder %s21, 1
        %s315 = scalar_select %p314, %s21, 1
        %p316 = scmp.lt.s32.totalorder %s313, 15
        %s317 = scalar_select %p316, %s313, 15
        %s318 = smul.addr %s317, 2
        %s319 = smul.addr %s315, 32
        %s320 = sadd.s32 %s318, %s319
        %s321 = smul.addr %s320, 4
        %s322 = scalar_lea.vmem %s2, %s321
        %p323 = scmp.lt.s32.totalorder %s22, 1
        %s324 = sadd.s32 %s22, 1
        %s325 = smul.u32 %s324, 8
        %s326 = scalar_select %p323, %s325, 15
      $region40: #{bottleneck_forward.5} parent=27 // pred_fallthru
        _
    $region28: #{bottleneck_forward.5} parent=5 // pred_fallthru
      _
    %p327 = scmp.le.s32.totalorder 1, %s14
    %p328 = scmp.lt.s32.totalorder %s14, 5
    %p329 = pnand %p327, %p328
    %p330 = pneg %p329
    // Predicated region
    $region41: #{bottleneck_forward.5} parent=5 // pred_check
      _
    $region42: #{bottleneck_forward.5} parent=5 // pred_check_branch
      %332 = sbr.rel (%p329) target = $region44
    $region43: #{bottleneck_forward.5} parent=5 // pred_region
      %s333 = ssub.s32 %s14, 1
      %s334 = smul.u32 8, %s24
      %p335 = scmp.lt.s32.totalorder %s23, 1
      %s336 = scalar_select %p335, %s23, 1
      %p337 = scmp.lt.s32.totalorder %s334, 15
      %s338 = scalar_select %p337, %s334, 15
      %s339 = smul.addr %s338, 2
      %s340 = smul.addr %s336, 32
      %s341 = sadd.s32 %s339, %s340
      %s342 = smul.addr %s341, 4
      %s343 = scalar_lea.vmem %s0, %s342
      %p344 = pneg %p54
      %p345 = pneg %p51
      %p346 = scmp.gt.s32.totalorder %s24, 0
      %s347 = smul.u32 %s24, 8
      %s348 = ssub.s32 %s347, 1
      %s349 = scalar_select %p346, %s348, 0
      %p350 = scmp.lt.s32.totalorder %s23, 1
      %s351 = scalar_select %p350, %s23, 1
      %p352 = scmp.lt.s32.totalorder %s349, 15
      %s353 = scalar_select %p352, %s349, 15
      %s354 = smul.addr %s353, 2
      %s355 = smul.addr %s351, 32
      %s356 = sadd.s32 %s354, %s355
      %s357 = smul.addr %s356, 4
      %s358 = scalar_lea.vmem %s1, %s357
      %p359 = pneg %p90
      %p360 = pneg %p87
      %p361 = scmp.lt.s32.totalorder %s24, 1
      %s362 = sadd.s32 %s24, 1
      %s363 = smul.u32 %s362, 8
      %s364 = scalar_select %p361, %s363, 15
      %p365 = scmp.lt.s32.totalorder %s23, 1
      %s366 = scalar_select %p365, %s23, 1
      %p367 = scmp.lt.s32.totalorder %s364, 15
      %s368 = scalar_select %p367, %s364, 15
      %s369 = smul.addr %s368, 2
      %s370 = smul.addr %s366, 32
      %s371 = sadd.s32 %s369, %s370
      %s372 = smul.addr %s371, 4
      %s373 = scalar_lea.vmem %s2, %s372
      %p374 = pneg %p126
      %p375 = pneg %p123
      %p376 = pneg %p147
      %p377 = pneg %p144
      %p378 = pneg %p168
      %p379 = pneg %p165
      %p380 = pneg %p189
      %p381 = pneg %p186
      %p382 = pneg %p217
      %p383 = pneg %p214
      %s384 = smul.u32 8, %s24
      %p385 = scmp.lt.s32.totalorder %s23, 1
      %s386 = scalar_select %p385, %s23, 1
      %p387 = scmp.lt.s32.totalorder %s384, 15
      %s388 = scalar_select %p387, %s384, 15
      %s389 = smul.addr %s388, 2
      %s390 = smul.addr %s386, 32
      %s391 = sadd.s32 %s389, %s390
      %s392 = smul.addr %s391, 4
      %s393 = scalar_lea.vmem %s6, %s392
      %p394 = pneg %p245
      %p395 = pneg %p242
      %p396 = scmp.lt.s32.totalorder %s23, 1
      %s397 = scalar_select %p396, %s23, 1
      %p398 = scmp.lt.s32.totalorder %s24, 1
      %s399 = scalar_select %p398, %s24, 1
      %s400 = smul.addr %s397, 2
      %s401 = sadd.s32 %s399, %s400
      %s402 = smul.addr %s401, 2
      %s403 = scalar_lea.vmem %s7, %s402
      %s404 = smul.u32 8, %s24
      %p405 = scmp.lt.s32.totalorder %s23, 1
      %s406 = scalar_select %p405, %s23, 1
      %p407 = scmp.lt.s32.totalorder %s404, 15
      %s408 = scalar_select %p407, %s404, 15
      %s409 = smul.addr %s408, 2
      %s410 = smul.addr %s406, 32
      %s411 = sadd.s32 %s409, %s410
      %s412 = smul.addr %s411, 4
      %s413 = scalar_lea.vmem %s0, %s412
      %s414 = smul.u32 8, %s24
      %p415 = scmp.gt.s32.totalorder %s24, 0
      %s416 = smul.u32 %s24, 8
      %s417 = ssub.s32 %s416, 1
      %s418 = scalar_select %p415, %s417, 0
      %p419 = scmp.lt.s32.totalorder %s23, 1
      %s420 = scalar_select %p419, %s23, 1
      %p421 = scmp.lt.s32.totalorder %s418, 15
      %s422 = scalar_select %p421, %s418, 15
      %s423 = smul.addr %s422, 2
      %s424 = smul.addr %s420, 32
      %s425 = sadd.s32 %s423, %s424
      %s426 = smul.addr %s425, 4
      %s427 = scalar_lea.vmem %s1, %s426
      %p428 = scmp.gt.s32.totalorder %s24, 0
      %s429 = smul.u32 %s24, 8
      %s430 = ssub.s32 %s429, 1
      %s431 = scalar_select %p428, %s430, 0
      %p432 = scmp.lt.s32.totalorder %s24, 1
      %s433 = sadd.s32 %s24, 1
      %s434 = smul.u32 %s433, 8
      %s435 = scalar_select %p432, %s434, 15
      %p436 = scmp.lt.s32.totalorder %s23, 1
      %s437 = scalar_select %p436, %s23, 1
      %p438 = scmp.lt.s32.totalorder %s435, 15
      %s439 = scalar_select %p438, %s435, 15
      %s440 = smul.addr %s439, 2
      %s441 = smul.addr %s437, 32
      %s442 = sadd.s32 %s440, %s441
      %s443 = smul.addr %s442, 4
      %s444 = scalar_lea.vmem %s2, %s443
      %p445 = scmp.lt.s32.totalorder %s24, 1
      %s446 = sadd.s32 %s24, 1
      %s447 = smul.u32 %s446, 8
      %s448 = scalar_select %p445, %s447, 15
      %s449 = smul.u32 8, %s24
      %p450 = scmp.lt.s32.totalorder %s23, 1
      %s451 = scalar_select %p450, %s23, 1
      %p452 = scmp.lt.s32.totalorder %s449, 15
      %s453 = scalar_select %p452, %s449, 15
      %s454 = smul.addr %s453, 2
      %s455 = smul.addr %s451, 32
      %s456 = sadd.s32 %s454, %s455
      %s457 = smul.addr %s456, 4
      %s458 = scalar_lea.vmem %s6, %s457
      %s459 = smul.u32 8, %s24
      %p460 = scmp.lt.s32.totalorder %s23, 1
      %s461 = scalar_select %p460, %s23, 1
      %p462 = scmp.lt.s32.totalorder %s24, 1
      %s463 = scalar_select %p462, %s24, 1
      %s464 = smul.addr %s461, 2
      %s465 = sadd.s32 %s463, %s464
      %s466 = smul.addr %s465, 2
      %s467 = scalar_lea.vmem %s7, %s466
      %v469 = vld [vmem:[%s4] sm:$0x1]
      %v470 = vld [vmem:[%s5] sm:$0x1]
      %v471 = vld [vmem:[%s413] sm:$0xf]
      %v472 = vld [vmem:[%s413 + $0x4] sm:$0xf]
      %v473 = vld [vmem:[%s413 + $0x8] sm:$0xf]
      %v474 = vld [vmem:[%s413 + $0xc] sm:$0xf]
      %v475 = vld [vmem:[%s413 + $0x10] sm:$0xf]
      %v476 = vld [vmem:[%s413 + $0x14] sm:$0xf]
      %v477 = vld [vmem:[%s413 + $0x18] sm:$0xf]
      %v478 = vld [vmem:[%s413 + $0x1c] sm:$0xf]
      %v479 = vld [vmem:[%s413 + $0x20] sm:$0xf]
      %v480 = vld [vmem:[%s413 + $0x24] sm:$0xf]
      %v481 = vld [vmem:[%s413 + $0x28] sm:$0xf]
      %v482 = vld [vmem:[%s413 + $0x2c] sm:$0xf]
      %v483 = vld [vmem:[%s413 + $0x30] sm:$0xf]
      %v484 = vld [vmem:[%s413 + $0x34] sm:$0xf]
      %v485 = vld [vmem:[%s413 + $0x38] sm:$0xf]
      %v486 = vld [vmem:[%s413 + $0x3c] sm:$0xf]
      %v487 = vunpack.c.l.bf16 %v471
      %v488 = vunpack.c.l.bf16 %v472
      %v489 = vunpack.c.l.bf16 %v473
      %v490 = vunpack.c.l.bf16 %v474
      %v491 = vunpack.c.l.bf16 %v475
      %v492 = vunpack.c.l.bf16 %v476
      %v493 = vunpack.c.l.bf16 %v477
      %v494 = vunpack.c.l.bf16 %v478
      %v495 = vunpack.c.l.bf16 %v479
      %v496 = vunpack.c.l.bf16 %v480
      %v497 = vunpack.c.l.bf16 %v481
      %v498 = vunpack.c.l.bf16 %v482
      %v499 = vunpack.c.l.bf16 %v483
      %v500 = vunpack.c.l.bf16 %v484
      %v501 = vunpack.c.l.bf16 %v485
      %v502 = vunpack.c.l.bf16 %v486
      %v504 = vlaneseq
      %v505 = vshrl.u32 %v504, 7
      %v506 = vsub.s32 0, %v505
      %v507 = vrot.slane %v469, %v506
      %v509 = vmul.f32 %v487, %v507
      %v510 = vmul.f32 %v488, %v507
      %v511 = vmul.f32 %v489, %v507
      %v512 = vmul.f32 %v490, %v507
      %v513 = vmul.f32 %v491, %v507
      %v514 = vmul.f32 %v492, %v507
      %v515 = vmul.f32 %v493, %v507
      %v516 = vmul.f32 %v494, %v507
      %v517 = vmul.f32 %v495, %v507
      %v518 = vmul.f32 %v496, %v507
      %v519 = vmul.f32 %v497, %v507
      %v520 = vmul.f32 %v498, %v507
      %v521 = vmul.f32 %v499, %v507
      %v522 = vmul.f32 %v500, %v507
      %v523 = vmul.f32 %v501, %v507
      %v524 = vmul.f32 %v502, %v507
      %v526 = vlaneseq
      %v527 = vshrl.u32 %v526, 7
      %v528 = vsub.s32 0, %v527
      %v529 = vrot.slane %v470, %v528
      %v531 = vadd.f32 %v509, %v529
      %v532 = vadd.f32 %v510, %v529
      %v533 = vadd.f32 %v511, %v529
      %v534 = vadd.f32 %v512, %v529
      %v535 = vadd.f32 %v513, %v529
      %v536 = vadd.f32 %v514, %v529
      %v537 = vadd.f32 %v515, %v529
      %v538 = vadd.f32 %v516, %v529
      %v539 = vadd.f32 %v517, %v529
      %v540 = vadd.f32 %v518, %v529
      %v541 = vadd.f32 %v519, %v529
      %v542 = vadd.f32 %v520, %v529
      %v543 = vadd.f32 %v521, %v529
      %v544 = vadd.f32 %v522, %v529
      %v545 = vadd.f32 %v523, %v529
      %v546 = vadd.f32 %v524, %v529
      %v547 = vmax.f32 %v531, 0.0
      %v548 = vmax.f32 %v532, 0.0
      %v549 = vmax.f32 %v533, 0.0
      %v550 = vmax.f32 %v534, 0.0
      %v551 = vmax.f32 %v535, 0.0
      %v552 = vmax.f32 %v536, 0.0
      %v553 = vmax.f32 %v537, 0.0
      %v554 = vmax.f32 %v538, 0.0
      %v555 = vmax.f32 %v539, 0.0
      %v556 = vmax.f32 %v540, 0.0
      %v557 = vmax.f32 %v541, 0.0
      %v558 = vmax.f32 %v542, 0.0
      %v559 = vmax.f32 %v543, 0.0
      %v560 = vmax.f32 %v544, 0.0
      %v561 = vmax.f32 %v545, 0.0
      %v562 = vmax.f32 %v546, 0.0
      %v563 = vpack.c.bf16 %v548, %v547
      %v564 = vpack.c.bf16 %v550, %v549
      %v565 = vpack.c.bf16 %v552, %v551
      %v566 = vpack.c.bf16 %v554, %v553
      %v567 = vpack.c.bf16 %v556, %v555
      %v568 = vpack.c.bf16 %v558, %v557
      %v569 = vpack.c.bf16 %v560, %v559
      %v570 = vpack.c.bf16 %v562, %v561
      %p571 = scmp.eq.s32.totalorder %s24, 0
      %v572 = vld [vmem:[%s427] sm:$0xf]
      %v573 = vld [vmem:[%s427 + $0x4] sm:$0xf]
      %v574 = vunpack.c.l.bf16 %v572
      %v575 = vunpack.c.l.bf16 %v573
      %v576 = vmul.f32 %v574, %v507
      %v577 = vmul.f32 %v575, %v507
      %v578 = vadd.f32 %v576, %v529
      %v579 = vadd.f32 %v577, %v529
      %v580 = vmax.f32 %v578, 0.0
      %v581 = vmax.f32 %v579, 0.0
      %v582 = vpack.c.bf16 %v581, %v580
      %s583 = scalar_select %p571, 1, 0
      %v584 = vstv %s583
      %vm585 = vcmp.eq.s32.totalorder %v584, 1
      %v586 = vsel %vm585, 0, %v582
      %p587 = scmp.eq.s32.totalorder %s24, 1
      %v588 = vld [vmem:[%s444] sm:$0xf]
      %v589 = vld [vmem:[%s444 + $0x4] sm:$0xf]
      %v590 = vunpack.c.l.bf16 %v588
      %v591 = vunpack.c.l.bf16 %v589
      %v592 = vmul.f32 %v590, %v507
      %v593 = vmul.f32 %v591, %v507
      %v594 = vadd.f32 %v592, %v529
      %v595 = vadd.f32 %v593, %v529
      %v596 = vmax.f32 %v594, 0.0
      %v597 = vmax.f32 %v595, 0.0
      %v598 = vpack.c.bf16 %v597, %v596
      %s599 = scalar_select %p587, 1, 0
      %v600 = vstv %s599
      %vm601 = vcmp.eq.s32.totalorder %v600, 1
      %v602 = vsel %vm601, 0, %v598
      %603 = vst [vmem:[#allocation2] sm:$0xf] 0
      %604 = vst [vmem:[#allocation2 + $0x10] sm:$0xf] 0
      %605 = vst [vmem:[#allocation2 + $0x20] sm:$0xf] 0
      %606 = vst [vmem:[#allocation2 + $0x30] sm:$0xf] 0
      %607 = vst [vmem:[#allocation2 + $0x40] sm:$0xf] 0
      %608 = vst [vmem:[#allocation2 + $0x50] sm:$0xf] 0
      %609 = vst [vmem:[#allocation2 + $0x60] sm:$0xf] 0
      %610 = vst [vmem:[#allocation2 + $0x70] sm:$0xf] 0
      %611 = vst [vmem:[#allocation2 + $0x80] sm:$0xf] 0
      %612 = vst [vmem:[#allocation2 + $0x90] sm:$0xf] 0
      %613 = vst [vmem:[#allocation2 + $0x8] sm:$0xf0] 0
      %614 = vst [vmem:[#allocation2 + $0x18] sm:$0xf0] 0
      %615 = vst [vmem:[#allocation2 + $0x28] sm:$0xf0] 0
      %616 = vst [vmem:[#allocation2 + $0x38] sm:$0xf0] 0
      %617 = vst [vmem:[#allocation2 + $0x48] sm:$0xf0] 0
      %618 = vst [vmem:[#allocation2 + $0x58] sm:$0xf0] 0
      %619 = vst [vmem:[#allocation2 + $0x68] sm:$0xf0] 0
      %620 = vst [vmem:[#allocation2 + $0x78] sm:$0xf0] 0
      %621 = vst [vmem:[#allocation2 + $0x88] sm:$0xf0] 0
      %622 = vst [vmem:[#allocation2 + $0x98] sm:$0xf0] 0
      %v624 = vrot.slane %v586, 4
      %626 = vst [vmem:[#allocation2] sm:$0xf0] %v624
      %627 = vst [vmem:[#allocation2 + $0x8] sm:$0xf] %v624
      %v636 = vrot.slane %v563, 4
      %v637 = vrot.slane %v564, 4
      %v638 = vrot.slane %v565, 4
      %v639 = vrot.slane %v566, 4
      %v640 = vrot.slane %v567, 4
      %v641 = vrot.slane %v568, 4
      %v642 = vrot.slane %v569, 4
      %v643 = vrot.slane %v570, 4
      %s652 = scalar_lea.vmem [#allocation2], 16
      %653 = vst [vmem:[%s652] sm:$0xf0] %v636
      %654 = vst [vmem:[%s652 + $0x8] sm:$0xf] %v636
      %655 = vst [vmem:[%s652 + $0x10] sm:$0xf0] %v637
      %656 = vst [vmem:[%s652 + $0x18] sm:$0xf] %v637
      %657 = vst [vmem:[%s652 + $0x20] sm:$0xf0] %v638
      %658 = vst [vmem:[%s652 + $0x28] sm:$0xf] %v638
      %659 = vst [vmem:[%s652 + $0x30] sm:$0xf0] %v639
      %660 = vst [vmem:[%s652 + $0x38] sm:$0xf] %v639
      %661 = vst [vmem:[%s652 + $0x40] sm:$0xf0] %v640
      %662 = vst [vmem:[%s652 + $0x48] sm:$0xf] %v640
      %663 = vst [vmem:[%s652 + $0x50] sm:$0xf0] %v641
      %664 = vst [vmem:[%s652 + $0x58] sm:$0xf] %v641
      %665 = vst [vmem:[%s652 + $0x60] sm:$0xf0] %v642
      %666 = vst [vmem:[%s652 + $0x68] sm:$0xf] %v642
      %667 = vst [vmem:[%s652 + $0x70] sm:$0xf0] %v643
      %668 = vst [vmem:[%s652 + $0x78] sm:$0xf] %v643
      %v670 = vrot.slane %v602, 4
      %s672 = scalar_lea.vmem [#allocation2], 144
      %673 = vst [vmem:[%s672] sm:$0xf0] %v670
      %674 = vst [vmem:[%s672 + $0x8] sm:$0xf] %v670
      %v675 = vld [vmem:[#allocation2] sm:$0xf8]
      %v676 = vld [vmem:[#allocation2 + $0x8] sm:$0xf]
      %v677 = vld [vmem:[#allocation2 + $0x10] sm:$0xf8]
      %v678 = vld [vmem:[#allocation2 + $0x18] sm:$0xf]
      %v679 = vld [vmem:[#allocation2 + $0x20] sm:$0xf8]
      %v680 = vld [vmem:[#allocation2 + $0x28] sm:$0xf]
      %v681 = vld [vmem:[#allocation2 + $0x30] sm:$0xf8]
      %v682 = vld [vmem:[#allocation2 + $0x38] sm:$0xf]
      %vm683 = vsmask.f32 4352
      %v685 = vshrl.u32 %v675, 16
      %v687 = vrot.slane %v685, 3
      %v688 = vshll.u32 %v675, 16
      %v690 = vrot.slane %v688, 4
      %v691 = vor.u32 %v687, %v690
      %v693 = vshrl.u32 %v676, 16
      %v695 = vrot.slane %v693, 3
      %v696 = vshll.u32 %v676, 16
      %v698 = vrot.slane %v696, 4
      %v699 = vor.u32 %v695, %v698
      %v700 = vsel %vm683, %v691, %v699
      %v702 = vshrl.u32 %v677, 16
      %v704 = vrot.slane %v702, 3
      %v705 = vshll.u32 %v677, 16
      %v707 = vrot.slane %v705, 4
      %v708 = vor.u32 %v704, %v707
      %v710 = vshrl.u32 %v678, 16
      %v712 = vrot.slane %v710, 3
      %v713 = vshll.u32 %v678, 16
      %v715 = vrot.slane %v713, 4
      %v716 = vor.u32 %v712, %v715
      %v717 = vsel %vm683, %v708, %v716
      %v719 = vshrl.u32 %v679, 16
      %v721 = vrot.slane %v719, 3
      %v722 = vshll.u32 %v679, 16
      %v724 = vrot.slane %v722, 4
      %v725 = vor.u32 %v721, %v724
      %v727 = vshrl.u32 %v680, 16
      %v729 = vrot.slane %v727, 3
      %v730 = vshll.u32 %v680, 16
      %v732 = vrot.slane %v730, 4
      %v733 = vor.u32 %v729, %v732
      %v734 = vsel %vm683, %v725, %v733
      %v736 = vshrl.u32 %v681, 16
      %v738 = vrot.slane %v736, 3
      %v739 = vshll.u32 %v681, 16
      %v741 = vrot.slane %v739, 4
      %v742 = vor.u32 %v738, %v741
      %v744 = vshrl.u32 %v682, 16
      %v746 = vrot.slane %v744, 3
      %v747 = vshll.u32 %v682, 16
      %v749 = vrot.slane %v747, 4
      %v750 = vor.u32 %v746, %v749
      %v751 = vsel %vm683, %v742, %v750
      %v756 = vld [vmem:[%s3] sm:$0xf]
      %v757 = vld [vmem:[%s3 + $0x4] sm:$0xf]
      %v758 = vld [vmem:[%s3 + $0x8] sm:$0xf]
      %v759 = vld [vmem:[%s3 + $0xc] sm:$0xf]
      %v760 = vld [vmem:[%s3 + $0x10] sm:$0xf]
      %v761 = vld [vmem:[%s3 + $0x14] sm:$0xf]
      %v762 = vld [vmem:[%s3 + $0x18] sm:$0xf]
      %v763 = vld [vmem:[%s3 + $0x1c] sm:$0xf]
      %v764 = vld [vmem:[%s3 + $0x20] sm:$0xf]
      %v765 = vld [vmem:[%s3 + $0x24] sm:$0xf]
      %v766 = vld [vmem:[%s3 + $0x28] sm:$0xf]
      %v767 = vld [vmem:[%s3 + $0x2c] sm:$0xf]
      %v768 = vld [vmem:[%s3 + $0x30] sm:$0xf]
      %v769 = vld [vmem:[%s3 + $0x34] sm:$0xf]
      %v770 = vld [vmem:[%s3 + $0x38] sm:$0xf]
      %v771 = vld [vmem:[%s3 + $0x3c] sm:$0xf]
      %v772 = vld [vmem:[#allocation2] sm:$0xf0]
      %v773 = vld [vmem:[#allocation2 + $0x10] sm:$0xf0]
      %v774 = vld [vmem:[#allocation2 + $0x20] sm:$0xf0]
      %v775 = vld [vmem:[#allocation2 + $0x30] sm:$0xf0]
      %vm784 = vcmask 1043456
      %v785 = vrot.slane %v772, 4
      %v786 = vrot.slane %v676, 4
      %v787 = vsel %vm784, %v785, %v786
      %v788 = vrot.slane %v773, 4
      %v789 = vrot.slane %v678, 4
      %v790 = vsel %vm784, %v788, %v789
      %v791 = vrot.slane %v774, 4
      %v792 = vrot.slane %v680, 4
      %v793 = vsel %vm784, %v791, %v792
      %v794 = vrot.slane %v775, 4
      %v795 = vrot.slane %v682, 4
      %v796 = vsel %vm784, %v794, %v795
      %s801 = scalar_lea.vmem %s3, 64
      %v802 = vld [vmem:[%s801] sm:$0xf]
      %v803 = vld [vmem:[%s801 + $0x4] sm:$0xf]
      %v804 = vld [vmem:[%s801 + $0x8] sm:$0xf]
      %v805 = vld [vmem:[%s801 + $0xc] sm:$0xf]
      %v806 = vld [vmem:[%s801 + $0x10] sm:$0xf]
      %v807 = vld [vmem:[%s801 + $0x14] sm:$0xf]
      %v808 = vld [vmem:[%s801 + $0x18] sm:$0xf]
      %v809 = vld [vmem:[%s801 + $0x1c] sm:$0xf]
      %v810 = vld [vmem:[%s801 + $0x20] sm:$0xf]
      %v811 = vld [vmem:[%s801 + $0x24] sm:$0xf]
      %v812 = vld [vmem:[%s801 + $0x28] sm:$0xf]
      %v813 = vld [vmem:[%s801 + $0x2c] sm:$0xf]
      %v814 = vld [vmem:[%s801 + $0x30] sm:$0xf]
      %v815 = vld [vmem:[%s801 + $0x34] sm:$0xf]
      %v816 = vld [vmem:[%s801 + $0x38] sm:$0xf]
      %v817 = vld [vmem:[%s801 + $0x3c] sm:$0xf]
      %v834 = vunpack.c.l.b16 %v802
      %v835 = vunpack.c.l.b16 %v803
      %v836 = vunpack.c.l.b16 %v804
      %v837 = vunpack.c.l.b16 %v805
      %v838 = vunpack.c.l.b16 %v806
      %v839 = vunpack.c.l.b16 %v807
      %v840 = vunpack.c.l.b16 %v808
      %v841 = vunpack.c.l.b16 %v809
      %v842 = vunpack.c.l.b16 %v810
      %v843 = vunpack.c.l.b16 %v811
      %v844 = vunpack.c.l.b16 %v812
      %v845 = vunpack.c.l.b16 %v813
      %v846 = vunpack.c.l.b16 %v814
      %v847 = vunpack.c.l.b16 %v815
      %v848 = vunpack.c.l.b16 %v816
      %v849 = vunpack.c.l.b16 %v817
      %v850 = vpack.c.b16 %v835, %v834
      %v851 = vpack.c.b16 %v837, %v836
      %v852 = vpack.c.b16 %v839, %v838
      %v853 = vpack.c.b16 %v841, %v840
      %v854 = vpack.c.b16 %v843, %v842
      %v855 = vpack.c.b16 %v845, %v844
      %v856 = vpack.c.b16 %v847, %v846
      %v857 = vpack.c.b16 %v849, %v848
      %866 = vmatprep.subr.bf16.mxu0 0
      %867 = vmatpush1.bf16.msra.mxu0 %v850
      %868 = vmatprep.subr.bf16.mxu0 0
      %869 = vmatpush1.bf16.msra.mxu0 %v851
      %870 = vmatprep.subr.bf16.mxu0 0
      %871 = vmatpush1.bf16.msra.mxu0 %v852
      %872 = vmatprep.subr.bf16.mxu0 0
      %873 = vmatpush1.bf16.msra.mxu0 %v853
      %874 = vmatprep.subr.bf16.mxu0 0
      %875 = vmatpush1.bf16.msra.mxu0 %v854
      %876 = vmatprep.subr.bf16.mxu0 0
      %877 = vmatpush1.bf16.msra.mxu0 %v855
      %878 = vmatprep.subr.bf16.mxu0 0
      %879 = vmatpush1.bf16.msra.mxu0 %v856
      %880 = vmatprep.subr.bf16.mxu0 0
      %881 = vmatpush1.bf16.msra.mxu0 %v857
      %882 = vmatprep.subr.bf16.mxu0 0
      %883 = vmatpush1.bf16.msra.mxu0 0
      %884 = vmatprep.subr.bf16.mxu0 0
      %885 = vmatpush1.bf16.msra.mxu0 0
      %886 = vmatprep.subr.bf16.mxu0 0
      %887 = vmatpush1.bf16.msra.mxu0 0
      %888 = vmatprep.subr.bf16.mxu0 0
      %889 = vmatpush1.bf16.msra.mxu0 0
      %890 = vmatprep.subr.bf16.mxu0 0
      %891 = vmatpush1.bf16.msra.mxu0 0
      %892 = vmatprep.subr.bf16.mxu0 0
      %893 = vmatpush1.bf16.msra.mxu0 0
      %894 = vmatprep.subr.bf16.mxu0 0
      %895 = vmatpush1.bf16.msra.mxu0 0
      %896 = vmatprep.subr.bf16.mxu0 0
      %897 = vmatpush1.bf16.msra.mxu0 0
      %898 = vmatprep.mubr.bf16.mxu0 0
      %899 = vmatmul.mubr.bf16.gmra.mrb[0].mxu0 %v787
      %v900 = vpop.f32.mrb[0].mxu0
      %v901 = vadd.f32 0.0, %v900
      %v902 = vpop.f32.mrb[0].mxu0
      %v903 = vpop.f32.mrb[0].mxu0
      %v904 = vadd.f32 0.0, %v903
      %v905 = vpop.f32.mrb[0].mxu0
      %906 = vmatprep.mubr.bf16.mxu0 0
      %907 = vmatmul.mubr.bf16.gmra.mrb[0].mxu0 %v790
      %v908 = vpop.f32.mrb[0].mxu0
      %v909 = vadd.f32 0.0, %v908
      %v910 = vpop.f32.mrb[0].mxu0
      %v911 = vpop.f32.mrb[0].mxu0
      %v912 = vadd.f32 0.0, %v911
      %v913 = vpop.f32.mrb[0].mxu0
      %914 = vmatprep.mubr.bf16.mxu0 0
      %915 = vmatmul.mubr.bf16.gmra.mrb[0].mxu0 %v793
      %v916 = vpop.f32.mrb[0].mxu0
      %v917 = vadd.f32 0.0, %v916
      %v918 = vpop.f32.mrb[0].mxu0
      %v919 = vpop.f32.mrb[0].mxu0
      %v920 = vadd.f32 0.0, %v919
      %v921 = vpop.f32.mrb[0].mxu0
      %922 = vmatprep.mubr.bf16.mxu0 0
      %923 = vmatmul.mubr.bf16.gmra.mrb[0].mxu0 %v796
      %v924 = vpop.f32.mrb[0].mxu0
      %v925 = vadd.f32 0.0, %v924
      %v926 = vpop.f32.mrb[0].mxu0
      %v927 = vpop.f32.mrb[0].mxu0
      %v928 = vadd.f32 0.0, %v927
      %v929 = vpop.f32.mrb[0].mxu0
      %930 = vdwg.mxu0
      %v947 = vunpack.c.l.b16 %v756
      %v948 = vunpack.c.l.b16 %v757
      %v949 = vunpack.c.l.b16 %v758
      %v950 = vunpack.c.l.b16 %v759
      %v951 = vunpack.c.l.b16 %v760
      %v952 = vunpack.c.l.b16 %v761
      %v953 = vunpack.c.l.b16 %v762
      %v954 = vunpack.c.l.b16 %v763
      %v955 = vunpack.c.l.b16 %v764
      %v956 = vunpack.c.l.b16 %v765
      %v957 = vunpack.c.l.b16 %v766
      %v958 = vunpack.c.l.b16 %v767
      %v959 = vunpack.c.l.b16 %v768
      %v960 = vunpack.c.l.b16 %v769
      %v961 = vunpack.c.l.b16 %v770
      %v962 = vunpack.c.l.b16 %v771
      %v963 = vpack.c.b16 %v948, %v947
      %v964 = vpack.c.b16 %v950, %v949
      %v965 = vpack.c.b16 %v952, %v951
      %v966 = vpack.c.b16 %v954, %v953
      %v967 = vpack.c.b16 %v956, %v955
      %v968 = vpack.c.b16 %v958, %v957
      %v969 = vpack.c.b16 %v960, %v959
      %v970 = vpack.c.b16 %v962, %v961
      %979 = vmatprep.subr.bf16.mxu0 0
      %980 = vmatpush1.bf16.msra.mxu0 %v963
      %981 = vmatprep.subr.bf16.mxu0 0
      %982 = vmatpush1.bf16.msra.mxu0 %v964
      %983 = vmatprep.subr.bf16.mxu0 0
      %984 = vmatpush1.bf16.msra.mxu0 %v965
      %985 = vmatprep.subr.bf16.mxu0 0
      %986 = vmatpush1.bf16.msra.mxu0 %v966
      %987 = vmatprep.subr.bf16.mxu0 0
      %988 = vmatpush1.bf16.msra.mxu0 %v967
      %989 = vmatprep.subr.bf16.mxu0 0
      %990 = vmatpush1.bf16.msra.mxu0 %v968
      %991 = vmatprep.subr.bf16.mxu0 0
      %992 = vmatpush1.bf16.msra.mxu0 %v969
      %993 = vmatprep.subr.bf16.mxu0 0
      %994 = vmatpush1.bf16.msra.mxu0 %v970
      %995 = vmatprep.subr.bf16.mxu0 0
      %996 = vmatpush1.bf16.msra.mxu0 0
      %997 = vmatprep.subr.bf16.mxu0 0
      %998 = vmatpush1.bf16.msra.mxu0 0
      %999 = vmatprep.subr.bf16.mxu0 0
      %1000 = vmatpush1.bf16.msra.mxu0 0
      %1001 = vmatprep.subr.bf16.mxu0 0
      %1002 = vmatpush1.bf16.msra.mxu0 0
      %1003 = vmatprep.subr.bf16.mxu0 0
      %1004 = vmatpush1.bf16.msra.mxu0 0
      %1005 = vmatprep.subr.bf16.mxu0 0
      %1006 = vmatpush1.bf16.msra.mxu0 0
      %1007 = vmatprep.subr.bf16.mxu0 0
      %1008 = vmatpush1.bf16.msra.mxu0 0
      %1009 = vmatprep.subr.bf16.mxu0 0
      %1010 = vmatpush1.bf16.msra.mxu0 0
      %1011 = vmatprep.mubr.bf16.mxu0 0
      %1012 = vmatmul.mubr.bf16.gmra.mrb[0].mxu0 %v700
      %v1013 = vpop.f32.mrb[0].mxu0
      %v1014 = vadd.f32 %v901, %v1013
      %v1015 = vpop.f32.mrb[0].mxu0
      %v1016 = vpop.f32.mrb[0].mxu0
      %v1017 = vadd.f32 %v904, %v1016
      %v1018 = vpop.f32.mrb[0].mxu0
      %1019 = vmatprep.mubr.bf16.mxu0 0
      %1020 = vmatmul.mubr.bf16.gmra.mrb[0].mxu0 %v717
      %v1021 = vpop.f32.mrb[0].mxu0
      %v1022 = vadd.f32 %v909, %v1021
      %v1023 = vpop.f32.mrb[0].mxu0
      %v1024 = vpop.f32.mrb[0].mxu0
      %v1025 = vadd.f32 %v912, %v1024
      %v1026 = vpop.f32.mrb[0].mxu0
      %1027 = vmatprep.mubr.bf16.mxu0 0
      %1028 = vmatmul.mubr.bf16.gmra.mrb[0].mxu0 %v734
      %v1029 = vpop.f32.mrb[0].mxu0
      %v1030 = vadd.f32 %v917, %v1029
      %v1031 = vpop.f32.mrb[0].mxu0
      %v1032 = vpop.f32.mrb[0].mxu0
      %v1033 = vadd.f32 %v920, %v1032
      %v1034 = vpop.f32.mrb[0].mxu0
      %1035 = vmatprep.mubr.bf16.mxu0 0
      %1036 = vmatmul.mubr.bf16.gmra.mrb[0].mxu0 %v751
      %v1037 = vpop.f32.mrb[0].mxu0
      %v1038 = vadd.f32 %v925, %v1037
      %v1039 = vpop.f32.mrb[0].mxu0
      %v1040 = vpop.f32.mrb[0].mxu0
      %v1041 = vadd.f32 %v928, %v1040
      %v1042 = vpop.f32.mrb[0].mxu0
      %1043 = vdwg.mxu0
      %v1044 = vld [vmem:[#allocation2 + $0x8] sm:$0x1f]
      %v1045 = vld [vmem:[#allocation2 + $0x18] sm:$0x1f]
      %v1046 = vld [vmem:[#allocation2 + $0x28] sm:$0x1f]
      %v1047 = vld [vmem:[#allocation2 + $0x38] sm:$0x1f]
      %vm1048 = vsmask.f32 3328
      %v1050 = vshrl.u32 %v772, 16
      %v1052 = vrot.slane %v1050, 4
      %v1053 = vshll.u32 %v772, 16
      %v1055 = vrot.slane %v1053, 5
      %v1056 = vor.u32 %v1052, %v1055
      %v1058 = vshrl.u32 %v1044, 16
      %v1060 = vrot.slane %v1058, 4
      %v1061 = vshll.u32 %v1044, 16
      %v1063 = vrot.slane %v1061, 5
      %v1064 = vor.u32 %v1060, %v1063
      %v1065 = vsel %vm1048, %v1056, %v1064
      %v1067 = vshrl.u32 %v773, 16
      %v1069 = vrot.slane %v1067, 4
      %v1070 = vshll.u32 %v773, 16
      %v1072 = vrot.slane %v1070, 5
      %v1073 = vor.u32 %v1069, %v1072
      %v1075 = vshrl.u32 %v1045, 16
      %v1077 = vrot.slane %v1075, 4
      %v1078 = vshll.u32 %v1045, 16
      %v1080 = vrot.slane %v1078, 5
      %v1081 = vor.u32 %v1077, %v1080
      %v1082 = vsel %vm1048, %v1073, %v1081
      %v1084 = vshrl.u32 %v774, 16
      %v1086 = vrot.slane %v1084, 4
      %v1087 = vshll.u32 %v774, 16
      %v1089 = vrot.slane %v1087, 5
      %v1090 = vor.u32 %v1086, %v1089
      %v1092 = vshrl.u32 %v1046, 16
      %v1094 = vrot.slane %v1092, 4
      %v1095 = vshll.u32 %v1046, 16
      %v1097 = vrot.slane %v1095, 5
      %v1098 = vor.u32 %v1094, %v1097
      %v1099 = vsel %vm1048, %v1090, %v1098
      %v1101 = vshrl.u32 %v775, 16
      %v1103 = vrot.slane %v1101, 4
      %v1104 = vshll.u32 %v775, 16
      %v1106 = vrot.slane %v1104, 5
      %v1107 = vor.u32 %v1103, %v1106
      %v1109 = vshrl.u32 %v1047, 16
      %v1111 = vrot.slane %v1109, 4
      %v1112 = vshll.u32 %v1047, 16
      %v1114 = vrot.slane %v1112, 5
      %v1115 = vor.u32 %v1111, %v1114
      %v1116 = vsel %vm1048, %v1107, %v1115
      %s1121 = scalar_lea.vmem %s3, 128
      %v1122 = vld [vmem:[%s1121] sm:$0xf]
      %v1123 = vld [vmem:[%s1121 + $0x4] sm:$0xf]
      %v1124 = vld [vmem:[%s1121 + $0x8] sm:$0xf]
      %v1125 = vld [vmem:[%s1121 + $0xc] sm:$0xf]
      %v1126 = vld [vmem:[%s1121 + $0x10] sm:$0xf]
      %v1127 = vld [vmem:[%s1121 + $0x14] sm:$0xf]
      %v1128 = vld [vmem:[%s1121 + $0x18] sm:$0xf]
      %v1129 = vld [vmem:[%s1121 + $0x1c] sm:$0xf]
      %v1130 = vld [vmem:[%s1121 + $0x20] sm:$0xf]
      %v1131 = vld [vmem:[%s1121 + $0x24] sm:$0xf]
      %v1132 = vld [vmem:[%s1121 + $0x28] sm:$0xf]
      %v1133 = vld [vmem:[%s1121 + $0x2c] sm:$0xf]
      %v1134 = vld [vmem:[%s1121 + $0x30] sm:$0xf]
      %v1135 = vld [vmem:[%s1121 + $0x34] sm:$0xf]
      %v1136 = vld [vmem:[%s1121 + $0x38] sm:$0xf]
      %v1137 = vld [vmem:[%s1121 + $0x3c] sm:$0xf]
      %v1154 = vunpack.c.l.b16 %v1122
      %v1155 = vunpack.c.l.b16 %v1123
      %v1156 = vunpack.c.l.b16 %v1124
      %v1157 = vunpack.c.l.b16 %v1125
      %v1158 = vunpack.c.l.b16 %v1126
      %v1159 = vunpack.c.l.b16 %v1127
      %v1160 = vunpack.c.l.b16 %v1128
      %v1161 = vunpack.c.l.b16 %v1129
      %v1162 = vunpack.c.l.b16 %v1130
      %v1163 = vunpack.c.l.b16 %v1131
      %v1164 = vunpack.c.l.b16 %v1132
      %v1165 = vunpack.c.l.b16 %v1133
      %v1166 = vunpack.c.l.b16 %v1134
      %v1167 = vunpack.c.l.b16 %v1135
      %v1168 = vunpack.c.l.b16 %v1136
      %v1169 = vunpack.c.l.b16 %v1137
      %v1170 = vpack.c.b16 %v1155, %v1154
      %v1171 = vpack.c.b16 %v1157, %v1156
      %v1172 = vpack.c.b16 %v1159, %v1158
      %v1173 = vpack.c.b16 %v1161, %v1160
      %v1174 = vpack.c.b16 %v1163, %v1162
      %v1175 = vpack.c.b16 %v1165, %v1164
      %v1176 = vpack.c.b16 %v1167, %v1166
      %v1177 = vpack.c.b16 %v1169, %v1168
      %1186 = vmatprep.subr.bf16.mxu0 0
      %1187 = vmatpush1.bf16.msra.mxu0 %v1170
      %1188 = vmatprep.subr.bf16.mxu0 0
      %1189 = vmatpush1.bf16.msra.mxu0 %v1171
      %1190 = vmatprep.subr.bf16.mxu0 0
      %1191 = vmatpush1.bf16.msra.mxu0 %v1172
      %1192 = vmatprep.subr.bf16.mxu0 0
      %1193 = vmatpush1.bf16.msra.mxu0 %v1173
      %1194 = vmatprep.subr.bf16.mxu0 0
      %1195 = vmatpush1.bf16.msra.mxu0 %v1174
      %1196 = vmatprep.subr.bf16.mxu0 0
      %1197 = vmatpush1.bf16.msra.mxu0 %v1175
      %1198 = vmatprep.subr.bf16.mxu0 0
      %1199 = vmatpush1.bf16.msra.mxu0 %v1176
      %1200 = vmatprep.subr.bf16.mxu0 0
      %1201 = vmatpush1.bf16.msra.mxu0 %v1177
      %1202 = vmatprep.subr.bf16.mxu0 0
      %1203 = vmatpush1.bf16.msra.mxu0 0
      %1204 = vmatprep.subr.bf16.mxu0 0
      %1205 = vmatpush1.bf16.msra.mxu0 0
      %1206 = vmatprep.subr.bf16.mxu0 0
      %1207 = vmatpush1.bf16.msra.mxu0 0
      %1208 = vmatprep.subr.bf16.mxu0 0
      %1209 = vmatpush1.bf16.msra.mxu0 0
      %1210 = vmatprep.subr.bf16.mxu0 0
      %1211 = vmatpush1.bf16.msra.mxu0 0
      %1212 = vmatprep.subr.bf16.mxu0 0
      %1213 = vmatpush1.bf16.msra.mxu0 0
      %1214 = vmatprep.subr.bf16.mxu0 0
      %1215 = vmatpush1.bf16.msra.mxu0 0
      %1216 = vmatprep.subr.bf16.mxu0 0
      %1217 = vmatpush1.bf16.msra.mxu0 0
      %1218 = vmatprep.mubr.bf16.mxu0 0
      %1219 = vmatmul.mubr.bf16.gmra.mrb[0].mxu0 %v1065
      %v1220 = vpop.f32.mrb[0].mxu0
      %v1221 = vadd.f32 0.0, %v1220
      %v1222 = vpop.f32.mrb[0].mxu0
      %v1223 = vpop.f32.mrb[0].mxu0
      %v1224 = vadd.f32 0.0, %v1223
      %v1225 = vpop.f32.mrb[0].mxu0
      %1226 = vmatprep.mubr.bf16.mxu0 0
      %1227 = vmatmul.mubr.bf16.gmra.mrb[0].mxu0 %v1082
      %v1228 = vpop.f32.mrb[0].mxu0
      %v1229 = vadd.f32 0.0, %v1228
      %v1230 = vpop.f32.mrb[0].mxu0
      %v1231 = vpop.f32.mrb[0].mxu0
      %v1232 = vadd.f32 0.0, %v1231
      %v1233 = vpop.f32.mrb[0].mxu0
      %1234 = vmatprep.mubr.bf16.mxu0 0
      %1235 = vmatmul.mubr.bf16.gmra.mrb[0].mxu0 %v1099
      %v1236 = vpop.f32.mrb[0].mxu0
      %v1237 = vadd.f32 0.0, %v1236
      %v1238 = vpop.f32.mrb[0].mxu0
      %v1239 = vpop.f32.mrb[0].mxu0
      %v1240 = vadd.f32 0.0, %v1239
      %v1241 = vpop.f32.mrb[0].mxu0
      %1242 = vmatprep.mubr.bf16.mxu0 0
      %1243 = vmatmul.mubr.bf16.gmra.mrb[0].mxu0 %v1116
      %v1244 = vpop.f32.mrb[0].mxu0
      %v1245 = vadd.f32 0.0, %v1244
      %v1246 = vpop.f32.mrb[0].mxu0
      %v1247 = vpop.f32.mrb[0].mxu0
      %v1248 = vadd.f32 0.0, %v1247
      %v1249 = vpop.f32.mrb[0].mxu0
      %1250 = vdwg.mxu0
      %v1251 = vadd.f32 %v1014, %v1221
      %v1252 = vadd.f32 %v1017, %v1224
      %v1253 = vadd.f32 %v1022, %v1229
      %v1254 = vadd.f32 %v1025, %v1232
      %v1255 = vadd.f32 %v1030, %v1237
      %v1256 = vadd.f32 %v1033, %v1240
      %v1257 = vadd.f32 %v1038, %v1245
      %v1258 = vadd.f32 %v1041, %v1248
      %v1259 = vld [vmem:[%s652] sm:$0xf8]
      %v1260 = vld [vmem:[%s652 + $0x8] sm:$0xf]
      %v1261 = vld [vmem:[%s652 + $0x10] sm:$0xf8]
      %v1262 = vld [vmem:[%s652 + $0x18] sm:$0xf]
      %v1263 = vld [vmem:[%s652 + $0x20] sm:$0xf8]
      %v1264 = vld [vmem:[%s652 + $0x28] sm:$0xf]
      %v1265 = vld [vmem:[%s652 + $0x30] sm:$0xf8]
      %v1266 = vld [vmem:[%s652 + $0x38] sm:$0xf]
      %v1268 = vshrl.u32 %v1259, 16
      %v1270 = vrot.slane %v1268, 3
      %v1271 = vshll.u32 %v1259, 16
      %v1273 = vrot.slane %v1271, 4
      %v1274 = vor.u32 %v1270, %v1273
      %v1276 = vshrl.u32 %v1260, 16
      %v1278 = vrot.slane %v1276, 3
      %v1279 = vshll.u32 %v1260, 16
      %v1281 = vrot.slane %v1279, 4
      %v1282 = vor.u32 %v1278, %v1281
      %v1283 = vsel %vm683, %v1274, %v1282
      %v1285 = vshrl.u32 %v1261, 16
      %v1287 = vrot.slane %v1285, 3
      %v1288 = vshll.u32 %v1261, 16
      %v1290 = vrot.slane %v1288, 4
      %v1291 = vor.u32 %v1287, %v1290
      %v1293 = vshrl.u32 %v1262, 16
      %v1295 = vrot.slane %v1293, 3
      %v1296 = vshll.u32 %v1262, 16
      %v1298 = vrot.slane %v1296, 4
      %v1299 = vor.u32 %v1295, %v1298
      %v1300 = vsel %vm683, %v1291, %v1299
      %v1302 = vshrl.u32 %v1263, 16
      %v1304 = vrot.slane %v1302, 3
      %v1305 = vshll.u32 %v1263, 16
      %v1307 = vrot.slane %v1305, 4
      %v1308 = vor.u32 %v1304, %v1307
      %v1310 = vshrl.u32 %v1264, 16
      %v1312 = vrot.slane %v1310, 3
      %v1313 = vshll.u32 %v1264, 16
      %v1315 = vrot.slane %v1313, 4
      %v1316 = vor.u32 %v1312, %v1315
      %v1317 = vsel %vm683, %v1308, %v1316
      %v1319 = vshrl.u32 %v1265, 16
      %v1321 = vrot.slane %v1319, 3
      %v1322 = vshll.u32 %v1265, 16
      %v1324 = vrot.slane %v1322, 4
      %v1325 = vor.u32 %v1321, %v1324
      %v1327 = vshrl.u32 %v1266, 16
      %v1329 = vrot.slane %v1327, 3
      %v1330 = vshll.u32 %v1266, 16
      %v1332 = vrot.slane %v1330, 4
      %v1333 = vor.u32 %v1329, %v1332
      %v1334 = vsel %vm683, %v1325, %v1333
      %s1339 = scalar_lea.vmem %s3, 192
      %v1340 = vld [vmem:[%s1339] sm:$0xf]
      %v1341 = vld [vmem:[%s1339 + $0x4] sm:$0xf]
      %v1342 = vld [vmem:[%s1339 + $0x8] sm:$0xf]
      %v1343 = vld [vmem:[%s1339 + $0xc] sm:$0xf]
      %v1344 = vld [vmem:[%s1339 + $0x10] sm:$0xf]
      %v1345 = vld [vmem:[%s1339 + $0x14] sm:$0xf]
      %v1346 = vld [vmem:[%s1339 + $0x18] sm:$0xf]
      %v1347 = vld [vmem:[%s1339 + $0x1c] sm:$0xf]
      %v1348 = vld [vmem:[%s1339 + $0x20] sm:$0xf]
      %v1349 = vld [vmem:[%s1339 + $0x24] sm:$0xf]
      %v1350 = vld [vmem:[%s1339 + $0x28] sm:$0xf]
      %v1351 = vld [vmem:[%s1339 + $0x2c] sm:$0xf]
      %v1352 = vld [vmem:[%s1339 + $0x30] sm:$0xf]
      %v1353 = vld [vmem:[%s1339 + $0x34] sm:$0xf]
      %v1354 = vld [vmem:[%s1339 + $0x38] sm:$0xf]
      %v1355 = vld [vmem:[%s1339 + $0x3c] sm:$0xf]
      %v1372 = vunpack.c.l.b16 %v1340
      %v1373 = vunpack.c.l.b16 %v1341
      %v1374 = vunpack.c.l.b16 %v1342
      %v1375 = vunpack.c.l.b16 %v1343
      %v1376 = vunpack.c.l.b16 %v1344
      %v1377 = vunpack.c.l.b16 %v1345
      %v1378 = vunpack.c.l.b16 %v1346
      %v1379 = vunpack.c.l.b16 %v1347
      %v1380 = vunpack.c.l.b16 %v1348
      %v1381 = vunpack.c.l.b16 %v1349
      %v1382 = vunpack.c.l.b16 %v1350
      %v1383 = vunpack.c.l.b16 %v1351
      %v1384 = vunpack.c.l.b16 %v1352
      %v1385 = vunpack.c.l.b16 %v1353
      %v1386 = vunpack.c.l.b16 %v1354
      %v1387 = vunpack.c.l.b16 %v1355
      %v1388 = vpack.c.b16 %v1373, %v1372
      %v1389 = vpack.c.b16 %v1375, %v1374
      %v1390 = vpack.c.b16 %v1377, %v1376
      %v1391 = vpack.c.b16 %v1379, %v1378
      %v1392 = vpack.c.b16 %v1381, %v1380
      %v1393 = vpack.c.b16 %v1383, %v1382
      %v1394 = vpack.c.b16 %v1385, %v1384
      %v1395 = vpack.c.b16 %v1387, %v1386
      %1404 = vmatprep.subr.bf16.mxu0 0
      %1405 = vmatpush1.bf16.msra.mxu0 %v1388
      %1406 = vmatprep.subr.bf16.mxu0 0
      %1407 = vmatpush1.bf16.msra.mxu0 %v1389
      %1408 = vmatprep.subr.bf16.mxu0 0
      %1409 = vmatpush1.bf16.msra.mxu0 %v1390
      %1410 = vmatprep.subr.bf16.mxu0 0
      %1411 = vmatpush1.bf16.msra.mxu0 %v1391
      %1412 = vmatprep.subr.bf16.mxu0 0
      %1413 = vmatpush1.bf16.msra.mxu0 %v1392
      %1414 = vmatprep.subr.bf16.mxu0 0
      %1415 = vmatpush1.bf16.msra.mxu0 %v1393
      %1416 = vmatprep.subr.bf16.mxu0 0
      %1417 = vmatpush1.bf16.msra.mxu0 %v1394
      %1418 = vmatprep.subr.bf16.mxu0 0
      %1419 = vmatpush1.bf16.msra.mxu0 %v1395
      %1420 = vmatprep.subr.bf16.mxu0 0
      %1421 = vmatpush1.bf16.msra.mxu0 0
      %1422 = vmatprep.subr.bf16.mxu0 0
      %1423 = vmatpush1.bf16.msra.mxu0 0
      %1424 = vmatprep.subr.bf16.mxu0 0
      %1425 = vmatpush1.bf16.msra.mxu0 0
      %1426 = vmatprep.subr.bf16.mxu0 0
      %1427 = vmatpush1.bf16.msra.mxu0 0
      %1428 = vmatprep.subr.bf16.mxu0 0
      %1429 = vmatpush1.bf16.msra.mxu0 0
      %1430 = vmatprep.subr.bf16.mxu0 0
      %1431 = vmatpush1.bf16.msra.mxu0 0
      %1432 = vmatprep.subr.bf16.mxu0 0
      %1433 = vmatpush1.bf16.msra.mxu0 0
      %1434 = vmatprep.subr.bf16.mxu0 0
      %1435 = vmatpush1.bf16.msra.mxu0 0
      %1436 = vmatprep.mubr.bf16.mxu0 0
      %1437 = vmatmul.mubr.bf16.gmra.mrb[0].mxu0 %v1283
      %v1438 = vpop.f32.mrb[0].mxu0
      %v1439 = vadd.f32 0.0, %v1438
      %v1440 = vpop.f32.mrb[0].mxu0
      %v1441 = vpop.f32.mrb[0].mxu0
      %v1442 = vadd.f32 0.0, %v1441
      %v1443 = vpop.f32.mrb[0].mxu0
      %1444 = vmatprep.mubr.bf16.mxu0 0
      %1445 = vmatmul.mubr.bf16.gmra.mrb[0].mxu0 %v1300
      %v1446 = vpop.f32.mrb[0].mxu0
      %v1447 = vadd.f32 0.0, %v1446
      %v1448 = vpop.f32.mrb[0].mxu0
      %v1449 = vpop.f32.mrb[0].mxu0
      %v1450 = vadd.f32 0.0, %v1449
      %v1451 = vpop.f32.mrb[0].mxu0
      %1452 = vmatprep.mubr.bf16.mxu0 0
      %1453 = vmatmul.mubr.bf16.gmra.mrb[0].mxu0 %v1317
      %v1454 = vpop.f32.mrb[0].mxu0
      %v1455 = vadd.f32 0.0, %v1454
      %v1456 = vpop.f32.mrb[0].mxu0
      %v1457 = vpop.f32.mrb[0].mxu0
      %v1458 = vadd.f32 0.0, %v1457
      %v1459 = vpop.f32.mrb[0].mxu0
      %1460 = vmatprep.mubr.bf16.mxu0 0
      %1461 = vmatmul.mubr.bf16.gmra.mrb[0].mxu0 %v1334
      %v1462 = vpop.f32.mrb[0].mxu0
      %v1463 = vadd.f32 0.0, %v1462
      %v1464 = vpop.f32.mrb[0].mxu0
      %v1465 = vpop.f32.mrb[0].mxu0
      %v1466 = vadd.f32 0.0, %v1465
      %v1467 = vpop.f32.mrb[0].mxu0
      %1468 = vdwg.mxu0
      %v1469 = vadd.f32 %v1251, %v1439
      %v1470 = vadd.f32 %v1252, %v1442
      %v1471 = vadd.f32 %v1253, %v1447
      %v1472 = vadd.f32 %v1254, %v1450
      %v1473 = vadd.f32 %v1255, %v1455
      %v1474 = vadd.f32 %v1256, %v1458
      %v1475 = vadd.f32 %v1257, %v1463
      %v1476 = vadd.f32 %v1258, %v1466
      %v1477 = vld [vmem:[%s652] sm:$0xf0]
      %v1478 = vld [vmem:[%s652 + $0x10] sm:$0xf0]
      %v1479 = vld [vmem:[%s652 + $0x20] sm:$0xf0]
      %v1480 = vld [vmem:[%s652 + $0x30] sm:$0xf0]
      %v1489 = vrot.slane %v1477, 4
      %v1490 = vrot.slane %v1260, 4
      %v1491 = vsel %vm784, %v1489, %v1490
      %v1492 = vrot.slane %v1478, 4
      %v1493 = vrot.slane %v1262, 4
      %v1494 = vsel %vm784, %v1492, %v1493
      %v1495 = vrot.slane %v1479, 4
      %v1496 = vrot.slane %v1264, 4
      %v1497 = vsel %vm784, %v1495, %v1496
      %v1498 = vrot.slane %v1480, 4
      %v1499 = vrot.slane %v1266, 4
      %v1500 = vsel %vm784, %v1498, %v1499
      %s1505 = scalar_lea.vmem %s3, 256
      %v1506 = vld [vmem:[%s1505] sm:$0xf]
      %v1507 = vld [vmem:[%s1505 + $0x4] sm:$0xf]
      %v1508 = vld [vmem:[%s1505 + $0x8] sm:$0xf]
      %v1509 = vld [vmem:[%s1505 + $0xc] sm:$0xf]
      %v1510 = vld [vmem:[%s1505 + $0x10] sm:$0xf]
      %v1511 = vld [vmem:[%s1505 + $0x14] sm:$0xf]
      %v1512 = vld [vmem:[%s1505 + $0x18] sm:$0xf]
      %v1513 = vld [vmem:[%s1505 + $0x1c] sm:$0xf]
      %v1514 = vld [vmem:[%s1505 + $0x20] sm:$0xf]
      %v1515 = vld [vmem:[%s1505 + $0x24] sm:$0xf]
      %v1516 = vld [vmem:[%s1505 + $0x28] sm:$0xf]
      %v1517 = vld [vmem:[%s1505 + $0x2c] sm:$0xf]
      %v1518 = vld [vmem:[%s1505 + $0x30] sm:$0xf]
      %v1519 = vld [vmem:[%s1505 + $0x34] sm:$0xf]
      %v1520 = vld [vmem:[%s1505 + $0x38] sm:$0xf]
      %v1521 = vld [vmem:[%s1505 + $0x3c] sm:$0xf]
      %v1538 = vunpack.c.l.b16 %v1506
      %v1539 = vunpack.c.l.b16 %v1507
      %v1540 = vunpack.c.l.b16 %v1508
      %v1541 = vunpack.c.l.b16 %v1509
      %v1542 = vunpack.c.l.b16 %v1510
      %v1543 = vunpack.c.l.b16 %v1511
      %v1544 = vunpack.c.l.b16 %v1512
      %v1545 = vunpack.c.l.b16 %v1513
      %v1546 = vunpack.c.l.b16 %v1514
      %v1547 = vunpack.c.l.b16 %v1515
      %v1548 = vunpack.c.l.b16 %v1516
      %v1549 = vunpack.c.l.b16 %v1517
      %v1550 = vunpack.c.l.b16 %v1518
      %v1551 = vunpack.c.l.b16 %v1519
      %v1552 = vunpack.c.l.b16 %v1520
      %v1553 = vunpack.c.l.b16 %v1521
      %v1554 = vpack.c.b16 %v1539, %v1538
      %v1555 = vpack.c.b16 %v1541, %v1540
      %v1556 = vpack.c.b16 %v1543, %v1542
      %v1557 = vpack.c.b16 %v1545, %v1544
      %v1558 = vpack.c.b16 %v1547, %v1546
      %v1559 = vpack.c.b16 %v1549, %v1548
      %v1560 = vpack.c.b16 %v1551, %v1550
      %v1561 = vpack.c.b16 %v1553, %v1552
      %1570 = vmatprep.subr.bf16.mxu0 0
      %1571 = vmatpush1.bf16.msra.mxu0 %v1554
      %1572 = vmatprep.subr.bf16.mxu0 0
      %1573 = vmatpush1.bf16.msra.mxu0 %v1555
      %1574 = vmatprep.subr.bf16.mxu0 0
      %1575 = vmatpush1.bf16.msra.mxu0 %v1556
      %1576 = vmatprep.subr.bf16.mxu0 0
      %1577 = vmatpush1.bf16.msra.mxu0 %v1557
      %1578 = vmatprep.subr.bf16.mxu0 0
      %1579 = vmatpush1.bf16.msra.mxu0 %v1558
      %1580 = vmatprep.subr.bf16.mxu0 0
      %1581 = vmatpush1.bf16.msra.mxu0 %v1559
      %1582 = vmatprep.subr.bf16.mxu0 0
      %1583 = vmatpush1.bf16.msra.mxu0 %v1560
      %1584 = vmatprep.subr.bf16.mxu0 0
      %1585 = vmatpush1.bf16.msra.mxu0 %v1561
      %1586 = vmatprep.subr.bf16.mxu0 0
      %1587 = vmatpush1.bf16.msra.mxu0 0
      %1588 = vmatprep.subr.bf16.mxu0 0
      %1589 = vmatpush1.bf16.msra.mxu0 0
      %1590 = vmatprep.subr.bf16.mxu0 0
      %1591 = vmatpush1.bf16.msra.mxu0 0
      %1592 = vmatprep.subr.bf16.mxu0 0
      %1593 = vmatpush1.bf16.msra.mxu0 0
      %1594 = vmatprep.subr.bf16.mxu0 0
      %1595 = vmatpush1.bf16.msra.mxu0 0
      %1596 = vmatprep.subr.bf16.mxu0 0
      %1597 = vmatpush1.bf16.msra.mxu0 0
      %1598 = vmatprep.subr.bf16.mxu0 0
      %1599 = vmatpush1.bf16.msra.mxu0 0
      %1600 = vmatprep.subr.bf16.mxu0 0
      %1601 = vmatpush1.bf16.msra.mxu0 0
      %1602 = vmatprep.mubr.bf16.mxu0 0
      %1603 = vmatmul.mubr.bf16.gmra.mrb[0].mxu0 %v1491
      %v1604 = vpop.f32.mrb[0].mxu0
      %v1605 = vadd.f32 0.0, %v1604
      %v1606 = vpop.f32.mrb[0].mxu0
      %v1607 = vpop.f32.mrb[0].mxu0
      %v1608 = vadd.f32 0.0, %v1607
      %v1609 = vpop.f32.mrb[0].mxu0
      %1610 = vmatprep.mubr.bf16.mxu0 0
      %1611 = vmatmul.mubr.bf16.gmra.mrb[0].mxu0 %v1494
      %v1612 = vpop.f32.mrb[0].mxu0
      %v1613 = vadd.f32 0.0, %v1612
      %v1614 = vpop.f32.mrb[0].mxu0
      %v1615 = vpop.f32.mrb[0].mxu0
      %v1616 = vadd.f32 0.0, %v1615
      %v1617 = vpop.f32.mrb[0].mxu0
      %1618 = vmatprep.mubr.bf16.mxu0 0
      %1619 = vmatmul.mubr.bf16.gmra.mrb[0].mxu0 %v1497
      %v1620 = vpop.f32.mrb[0].mxu0
      %v1621 = vadd.f32 0.0, %v1620
      %v1622 = vpop.f32.mrb[0].mxu0
      %v1623 = vpop.f32.mrb[0].mxu0
      %v1624 = vadd.f32 0.0, %v1623
      %v1625 = vpop.f32.mrb[0].mxu0
      %1626 = vmatprep.mubr.bf16.mxu0 0
      %1627 = vmatmul.mubr.bf16.gmra.mrb[0].mxu0 %v1500
      %v1628 = vpop.f32.mrb[0].mxu0
      %v1629 = vadd.f32 0.0, %v1628
      %v1630 = vpop.f32.mrb[0].mxu0
      %v1631 = vpop.f32.mrb[0].mxu0
      %v1632 = vadd.f32 0.0, %v1631
      %v1633 = vpop.f32.mrb[0].mxu0
      %1634 = vdwg.mxu0
      %v1635 = vadd.f32 %v1469, %v1605
      %v1636 = vadd.f32 %v1470, %v1608
      %v1637 = vadd.f32 %v1471, %v1613
      %v1638 = vadd.f32 %v1472, %v1616
      %v1639 = vadd.f32 %v1473, %v1621
      %v1640 = vadd.f32 %v1474, %v1624
      %v1641 = vadd.f32 %v1475, %v1629
      %v1642 = vadd.f32 %v1476, %v1632
      %v1643 = vld [vmem:[%s652 + $0x8] sm:$0x1f]
      %v1644 = vld [vmem:[%s652 + $0x18] sm:$0x1f]
      %v1645 = vld [vmem:[%s652 + $0x28] sm:$0x1f]
      %v1646 = vld [vmem:[%s652 + $0x38] sm:$0x1f]
      %v1648 = vshrl.u32 %v1477, 16
      %v1650 = vrot.slane %v1648, 4
      %v1651 = vshll.u32 %v1477, 16
      %v1653 = vrot.slane %v1651, 5
      %v1654 = vor.u32 %v1650, %v1653
      %v1656 = vshrl.u32 %v1643, 16
      %v1658 = vrot.slane %v1656, 4
      %v1659 = vshll.u32 %v1643, 16
      %v1661 = vrot.slane %v1659, 5
      %v1662 = vor.u32 %v1658, %v1661
      %v1663 = vsel %vm1048, %v1654, %v1662
      %v1665 = vshrl.u32 %v1478, 16
      %v1667 = vrot.slane %v1665, 4
      %v1668 = vshll.u32 %v1478, 16
      %v1670 = vrot.slane %v1668, 5
      %v1671 = vor.u32 %v1667, %v1670
      %v1673 = vshrl.u32 %v1644, 16
      %v1675 = vrot.slane %v1673, 4
      %v1676 = vshll.u32 %v1644, 16
      %v1678 = vrot.slane %v1676, 5
      %v1679 = vor.u32 %v1675, %v1678
      %v1680 = vsel %vm1048, %v1671, %v1679
      %v1682 = vshrl.u32 %v1479, 16
      %v1684 = vrot.slane %v1682, 4
      %v1685 = vshll.u32 %v1479, 16
      %v1687 = vrot.slane %v1685, 5
      %v1688 = vor.u32 %v1684, %v1687
      %v1690 = vshrl.u32 %v1645, 16
      %v1692 = vrot.slane %v1690, 4
      %v1693 = vshll.u32 %v1645, 16
      %v1695 = vrot.slane %v1693, 5
      %v1696 = vor.u32 %v1692, %v1695
      %v1697 = vsel %vm1048, %v1688, %v1696
      %v1699 = vshrl.u32 %v1480, 16
      %v1701 = vrot.slane %v1699, 4
      %v1702 = vshll.u32 %v1480, 16
      %v1704 = vrot.slane %v1702, 5
      %v1705 = vor.u32 %v1701, %v1704
      %v1707 = vshrl.u32 %v1646, 16
      %v1709 = vrot.slane %v1707, 4
      %v1710 = vshll.u32 %v1646, 16
      %v1712 = vrot.slane %v1710, 5
      %v1713 = vor.u32 %v1709, %v1712
      %v1714 = vsel %vm1048, %v1705, %v1713
      %s1719 = scalar_lea.vmem %s3, 320
      %v1720 = vld [vmem:[%s1719] sm:$0xf]
      %v1721 = vld [vmem:[%s1719 + $0x4] sm:$0xf]
      %v1722 = vld [vmem:[%s1719 + $0x8] sm:$0xf]
      %v1723 = vld [vmem:[%s1719 + $0xc] sm:$0xf]
      %v1724 = vld [vmem:[%s1719 + $0x10] sm:$0xf]
      %v1725 = vld [vmem:[%s1719 + $0x14] sm:$0xf]
      %v1726 = vld [vmem:[%s1719 + $0x18] sm:$0xf]
      %v1727 = vld [vmem:[%s1719 + $0x1c] sm:$0xf]
      %v1728 = vld [vmem:[%s1719 + $0x20] sm:$0xf]
      %v1729 = vld [vmem:[%s1719 + $0x24] sm:$0xf]
      %v1730 = vld [vmem:[%s1719 + $0x28] sm:$0xf]
      %v1731 = vld [vmem:[%s1719 + $0x2c] sm:$0xf]
      %v1732 = vld [vmem:[%s1719 + $0x30] sm:$0xf]
      %v1733 = vld [vmem:[%s1719 + $0x34] sm:$0xf]
      %v1734 = vld [vmem:[%s1719 + $0x38] sm:$0xf]
      %v1735 = vld [vmem:[%s1719 + $0x3c] sm:$0xf]
      %v1752 = vunpack.c.l.b16 %v1720
      %v1753 = vunpack.c.l.b16 %v1721
      %v1754 = vunpack.c.l.b16 %v1722
      %v1755 = vunpack.c.l.b16 %v1723
      %v1756 = vunpack.c.l.b16 %v1724
      %v1757 = vunpack.c.l.b16 %v1725
      %v1758 = vunpack.c.l.b16 %v1726
      %v1759 = vunpack.c.l.b16 %v1727
      %v1760 = vunpack.c.l.b16 %v1728
      %v1761 = vunpack.c.l.b16 %v1729
      %v1762 = vunpack.c.l.b16 %v1730
      %v1763 = vunpack.c.l.b16 %v1731
      %v1764 = vunpack.c.l.b16 %v1732
      %v1765 = vunpack.c.l.b16 %v1733
      %v1766 = vunpack.c.l.b16 %v1734
      %v1767 = vunpack.c.l.b16 %v1735
      %v1768 = vpack.c.b16 %v1753, %v1752
      %v1769 = vpack.c.b16 %v1755, %v1754
      %v1770 = vpack.c.b16 %v1757, %v1756
      %v1771 = vpack.c.b16 %v1759, %v1758
      %v1772 = vpack.c.b16 %v1761, %v1760
      %v1773 = vpack.c.b16 %v1763, %v1762
      %v1774 = vpack.c.b16 %v1765, %v1764
      %v1775 = vpack.c.b16 %v1767, %v1766
      %1784 = vmatprep.subr.bf16.mxu0 0
      %1785 = vmatpush1.bf16.msra.mxu0 %v1768
      %1786 = vmatprep.subr.bf16.mxu0 0
      %1787 = vmatpush1.bf16.msra.mxu0 %v1769
      %1788 = vmatprep.subr.bf16.mxu0 0
      %1789 = vmatpush1.bf16.msra.mxu0 %v1770
      %1790 = vmatprep.subr.bf16.mxu0 0
      %1791 = vmatpush1.bf16.msra.mxu0 %v1771
      %1792 = vmatprep.subr.bf16.mxu0 0
      %1793 = vmatpush1.bf16.msra.mxu0 %v1772
      %1794 = vmatprep.subr.bf16.mxu0 0
      %1795 = vmatpush1.bf16.msra.mxu0 %v1773
      %1796 = vmatprep.subr.bf16.mxu0 0
      %1797 = vmatpush1.bf16.msra.mxu0 %v1774
      %1798 = vmatprep.subr.bf16.mxu0 0
      %1799 = vmatpush1.bf16.msra.mxu0 %v1775
      %1800 = vmatprep.subr.bf16.mxu0 0
      %1801 = vmatpush1.bf16.msra.mxu0 0
      %1802 = vmatprep.subr.bf16.mxu0 0
      %1803 = vmatpush1.bf16.msra.mxu0 0
      %1804 = vmatprep.subr.bf16.mxu0 0
      %1805 = vmatpush1.bf16.msra.mxu0 0
      %1806 = vmatprep.subr.bf16.mxu0 0
      %1807 = vmatpush1.bf16.msra.mxu0 0
      %1808 = vmatprep.subr.bf16.mxu0 0
      %1809 = vmatpush1.bf16.msra.mxu0 0
      %1810 = vmatprep.subr.bf16.mxu0 0
      %1811 = vmatpush1.bf16.msra.mxu0 0
      %1812 = vmatprep.subr.bf16.mxu0 0
      %1813 = vmatpush1.bf16.msra.mxu0 0
      %1814 = vmatprep.subr.bf16.mxu0 0
      %1815 = vmatpush1.bf16.msra.mxu0 0
      %1816 = vmatprep.mubr.bf16.mxu0 0
      %1817 = vmatmul.mubr.bf16.gmra.mrb[0].mxu0 %v1663
      %v1818 = vpop.f32.mrb[0].mxu0
      %v1819 = vadd.f32 0.0, %v1818
      %v1820 = vpop.f32.mrb[0].mxu0
      %v1821 = vpop.f32.mrb[0].mxu0
      %v1822 = vadd.f32 0.0, %v1821
      %v1823 = vpop.f32.mrb[0].mxu0
      %1824 = vmatprep.mubr.bf16.mxu0 0
      %1825 = vmatmul.mubr.bf16.gmra.mrb[0].mxu0 %v1680
      %v1826 = vpop.f32.mrb[0].mxu0
      %v1827 = vadd.f32 0.0, %v1826
      %v1828 = vpop.f32.mrb[0].mxu0
      %v1829 = vpop.f32.mrb[0].mxu0
      %v1830 = vadd.f32 0.0, %v1829
      %v1831 = vpop.f32.mrb[0].mxu0
      %1832 = vmatprep.mubr.bf16.mxu0 0
      %1833 = vmatmul.mubr.bf16.gmra.mrb[0].mxu0 %v1697
      %v1834 = vpop.f32.mrb[0].mxu0
      %v1835 = vadd.f32 0.0, %v1834
      %v1836 = vpop.f32.mrb[0].mxu0
      %v1837 = vpop.f32.mrb[0].mxu0
      %v1838 = vadd.f32 0.0, %v1837
      %v1839 = vpop.f32.mrb[0].mxu0
      %1840 = vmatprep.mubr.bf16.mxu0 0
      %1841 = vmatmul.mubr.bf16.gmra.mrb[0].mxu0 %v1714
      %v1842 = vpop.f32.mrb[0].mxu0
      %v1843 = vadd.f32 0.0, %v1842
      %v1844 = vpop.f32.mrb[0].mxu0
      %v1845 = vpop.f32.mrb[0].mxu0
      %v1846 = vadd.f32 0.0, %v1845
      %v1847 = vpop.f32.mrb[0].mxu0
      %1848 = vdwg.mxu0
      %v1849 = vadd.f32 %v1635, %v1819
      %v1850 = vadd.f32 %v1636, %v1822
      %v1851 = vadd.f32 %v1637, %v1827
      %v1852 = vadd.f32 %v1638, %v1830
      %v1853 = vadd.f32 %v1639, %v1835
      %v1854 = vadd.f32 %v1640, %v1838
      %v1855 = vadd.f32 %v1641, %v1843
      %v1856 = vadd.f32 %v1642, %v1846
      %s1857 = scalar_lea.vmem [#allocation2], 32
      %v1858 = vld [vmem:[%s1857] sm:$0xf8]
      %v1859 = vld [vmem:[%s1857 + $0x8] sm:$0xf]
      %v1860 = vld [vmem:[%s1857 + $0x10] sm:$0xf8]
      %v1861 = vld [vmem:[%s1857 + $0x18] sm:$0xf]
      %v1862 = vld [vmem:[%s1857 + $0x20] sm:$0xf8]
      %v1863 = vld [vmem:[%s1857 + $0x28] sm:$0xf]
      %v1864 = vld [vmem:[%s1857 + $0x30] sm:$0xf8]
      %v1865 = vld [vmem:[%s1857 + $0x38] sm:$0xf]
      %v1867 = vshrl.u32 %v1858, 16
      %v1869 = vrot.slane %v1867, 3
      %v1870 = vshll.u32 %v1858, 16
      %v1872 = vrot.slane %v1870, 4
      %v1873 = vor.u32 %v1869, %v1872
      %v1875 = vshrl.u32 %v1859, 16
      %v1877 = vrot.slane %v1875, 3
      %v1878 = vshll.u32 %v1859, 16
      %v1880 = vrot.slane %v1878, 4
      %v1881 = vor.u32 %v1877, %v1880
      %v1882 = vsel %vm683, %v1873, %v1881
      %v1884 = vshrl.u32 %v1860, 16
      %v1886 = vrot.slane %v1884, 3
      %v1887 = vshll.u32 %v1860, 16
      %v1889 = vrot.slane %v1887, 4
      %v1890 = vor.u32 %v1886, %v1889
      %v1892 = vshrl.u32 %v1861, 16
      %v1894 = vrot.slane %v1892, 3
      %v1895 = vshll.u32 %v1861, 16
      %v1897 = vrot.slane %v1895, 4
      %v1898 = vor.u32 %v1894, %v1897
      %v1899 = vsel %vm683, %v1890, %v1898
      %v1901 = vshrl.u32 %v1862, 16
      %v1903 = vrot.slane %v1901, 3
      %v1904 = vshll.u32 %v1862, 16
      %v1906 = vrot.slane %v1904, 4
      %v1907 = vor.u32 %v1903, %v1906
      %v1909 = vshrl.u32 %v1863, 16
      %v1911 = vrot.slane %v1909, 3
      %v1912 = vshll.u32 %v1863, 16
      %v1914 = vrot.slane %v1912, 4
      %v1915 = vor.u32 %v1911, %v1914
      %v1916 = vsel %vm683, %v1907, %v1915
      %v1918 = vshrl.u32 %v1864, 16
      %v1920 = vrot.slane %v1918, 3
      %v1921 = vshll.u32 %v1864, 16
      %v1923 = vrot.slane %v1921, 4
      %v1924 = vor.u32 %v1920, %v1923
      %v1926 = vshrl.u32 %v1865, 16
      %v1928 = vrot.slane %v1926, 3
      %v1929 = vshll.u32 %v1865, 16
      %v1931 = vrot.slane %v1929, 4
      %v1932 = vor.u32 %v1928, %v1931
      %v1933 = vsel %vm683, %v1924, %v1932
      %s1938 = scalar_lea.vmem %s3, 384
      %v1939 = vld [vmem:[%s1938] sm:$0xf]
      %v1940 = vld [vmem:[%s1938 + $0x4] sm:$0xf]
      %v1941 = vld [vmem:[%s1938 + $0x8] sm:$0xf]
      %v1942 = vld [vmem:[%s1938 + $0xc] sm:$0xf]
      %v1943 = vld [vmem:[%s1938 + $0x10] sm:$0xf]
      %v1944 = vld [vmem:[%s1938 + $0x14] sm:$0xf]
      %v1945 = vld [vmem:[%s1938 + $0x18] sm:$0xf]
      %v1946 = vld [vmem:[%s1938 + $0x1c] sm:$0xf]
      %v1947 = vld [vmem:[%s1938 + $0x20] sm:$0xf]
      %v1948 = vld [vmem:[%s1938 + $0x24] sm:$0xf]
      %v1949 = vld [vmem:[%s1938 + $0x28] sm:$0xf]
      %v1950 = vld [vmem:[%s1938 + $0x2c] sm:$0xf]
      %v1951 = vld [vmem:[%s1938 + $0x30] sm:$0xf]
      %v1952 = vld [vmem:[%s1938 + $0x34] sm:$0xf]
      %v1953 = vld [vmem:[%s1938 + $0x38] sm:$0xf]
      %v1954 = vld [vmem:[%s1938 + $0x3c] sm:$0xf]
      %v1971 = vunpack.c.l.b16 %v1939
      %v1972 = vunpack.c.l.b16 %v1940
      %v1973 = vunpack.c.l.b16 %v1941
      %v1974 = vunpack.c.l.b16 %v1942
      %v1975 = vunpack.c.l.b16 %v1943
      %v1976 = vunpack.c.l.b16 %v1944
      %v1977 = vunpack.c.l.b16 %v1945
      %v1978 = vunpack.c.l.b16 %v1946
      %v1979 = vunpack.c.l.b16 %v1947
      %v1980 = vunpack.c.l.b16 %v1948
      %v1981 = vunpack.c.l.b16 %v1949
      %v1982 = vunpack.c.l.b16 %v1950
      %v1983 = vunpack.c.l.b16 %v1951
      %v1984 = vunpack.c.l.b16 %v1952
      %v1985 = vunpack.c.l.b16 %v1953
      %v1986 = vunpack.c.l.b16 %v1954
      %v1987 = vpack.c.b16 %v1972, %v1971
      %v1988 = vpack.c.b16 %v1974, %v1973
      %v1989 = vpack.c.b16 %v1976, %v1975
      %v1990 = vpack.c.b16 %v1978, %v1977
      %v1991 = vpack.c.b16 %v1980, %v1979
      %v1992 = vpack.c.b16 %v1982, %v1981
      %v1993 = vpack.c.b16 %v1984, %v1983
      %v1994 = vpack.c.b16 %v1986, %v1985
      %2003 = vmatprep.subr.bf16.mxu0 0
      %2004 = vmatpush1.bf16.msra.mxu0 %v1987
      %2005 = vmatprep.subr.bf16.mxu0 0
      %2006 = vmatpush1.bf16.msra.mxu0 %v1988
      %2007 = vmatprep.subr.bf16.mxu0 0
      %2008 = vmatpush1.bf16.msra.mxu0 %v1989
      %2009 = vmatprep.subr.bf16.mxu0 0
      %2010 = vmatpush1.bf16.msra.mxu0 %v1990
      %2011 = vmatprep.subr.bf16.mxu0 0
      %2012 = vmatpush1.bf16.msra.mxu0 %v1991
      %2013 = vmatprep.subr.bf16.mxu0 0
      %2014 = vmatpush1.bf16.msra.mxu0 %v1992
      %2015 = vmatprep.subr.bf16.mxu0 0
      %2016 = vmatpush1.bf16.msra.mxu0 %v1993
      %2017 = vmatprep.subr.bf16.mxu0 0
      %2018 = vmatpush1.bf16.msra.mxu0 %v1994
      %2019 = vmatprep.subr.bf16.mxu0 0
      %2020 = vmatpush1.bf16.msra.mxu0 0
      %2021 = vmatprep.subr.bf16.mxu0 0
      %2022 = vmatpush1.bf16.msra.mxu0 0
      %2023 = vmatprep.subr.bf16.mxu0 0
      %2024 = vmatpush1.bf16.msra.mxu0 0
      %2025 = vmatprep.subr.bf16.mxu0 0
      %2026 = vmatpush1.bf16.msra.mxu0 0
      %2027 = vmatprep.subr.bf16.mxu0 0
      %2028 = vmatpush1.bf16.msra.mxu0 0
      %2029 = vmatprep.subr.bf16.mxu0 0
      %2030 = vmatpush1.bf16.msra.mxu0 0
      %2031 = vmatprep.subr.bf16.mxu0 0
      %2032 = vmatpush1.bf16.msra.mxu0 0
      %2033 = vmatprep.subr.bf16.mxu0 0
      %2034 = vmatpush1.bf16.msra.mxu0 0
      %2035 = vmatprep.mubr.bf16.mxu0 0
      %2036 = vmatmul.mubr.bf16.gmra.mrb[0].mxu0 %v1882
      %v2037 = vpop.f32.mrb[0].mxu0
      %v2038 = vadd.f32 0.0, %v2037
      %v2039 = vpop.f32.mrb[0].mxu0
      %v2040 = vpop.f32.mrb[0].mxu0
      %v2041 = vadd.f32 0.0, %v2040
      %v2042 = vpop.f32.mrb[0].mxu0
      %2043 = vmatprep.mubr.bf16.mxu0 0
      %2044 = vmatmul.mubr.bf16.gmra.mrb[0].mxu0 %v1899
      %v2045 = vpop.f32.mrb[0].mxu0
      %v2046 = vadd.f32 0.0, %v2045
      %v2047 = vpop.f32.mrb[0].mxu0
      %v2048 = vpop.f32.mrb[0].mxu0
      %v2049 = vadd.f32 0.0, %v2048
      %v2050 = vpop.f32.mrb[0].mxu0
      %2051 = vmatprep.mubr.bf16.mxu0 0
      %2052 = vmatmul.mubr.bf16.gmra.mrb[0].mxu0 %v1916
      %v2053 = vpop.f32.mrb[0].mxu0
      %v2054 = vadd.f32 0.0, %v2053
      %v2055 = vpop.f32.mrb[0].mxu0
      %v2056 = vpop.f32.mrb[0].mxu0
      %v2057 = vadd.f32 0.0, %v2056
      %v2058 = vpop.f32.mrb[0].mxu0
      %2059 = vmatprep.mubr.bf16.mxu0 0
      %2060 = vmatmul.mubr.bf16.gmra.mrb[0].mxu0 %v1933
      %v2061 = vpop.f32.mrb[0].mxu0
      %v2062 = vadd.f32 0.0, %v2061
      %v2063 = vpop.f32.mrb[0].mxu0
      %v2064 = vpop.f32.mrb[0].mxu0
      %v2065 = vadd.f32 0.0, %v2064
      %v2066 = vpop.f32.mrb[0].mxu0
      %2067 = vdwg.mxu0
      %v2068 = vadd.f32 %v1849, %v2038
      %v2069 = vadd.f32 %v1850, %v2041
      %v2070 = vadd.f32 %v1851, %v2046
      %v2071 = vadd.f32 %v1852, %v2049
      %v2072 = vadd.f32 %v1853, %v2054
      %v2073 = vadd.f32 %v1854, %v2057
      %v2074 = vadd.f32 %v1855, %v2062
      %v2075 = vadd.f32 %v1856, %v2065
      %v2076 = vld [vmem:[%s1857] sm:$0xf0]
      %v2077 = vld [vmem:[%s1857 + $0x10] sm:$0xf0]
      %v2078 = vld [vmem:[%s1857 + $0x20] sm:$0xf0]
      %v2079 = vld [vmem:[%s1857 + $0x30] sm:$0xf0]
      %v2088 = vrot.slane %v2076, 4
      %v2089 = vrot.slane %v1859, 4
      %v2090 = vsel %vm784, %v2088, %v2089
      %v2091 = vrot.slane %v2077, 4
      %v2092 = vrot.slane %v1861, 4
      %v2093 = vsel %vm784, %v2091, %v2092
      %v2094 = vrot.slane %v2078, 4
      %v2095 = vrot.slane %v1863, 4
      %v2096 = vsel %vm784, %v2094, %v2095
      %v2097 = vrot.slane %v2079, 4
      %v2098 = vrot.slane %v1865, 4
      %v2099 = vsel %vm784, %v2097, %v2098
      %s2104 = scalar_lea.vmem %s3, 448
      %v2105 = vld [vmem:[%s2104] sm:$0xf]
      %v2106 = vld [vmem:[%s2104 + $0x4] sm:$0xf]
      %v2107 = vld [vmem:[%s2104 + $0x8] sm:$0xf]
      %v2108 = vld [vmem:[%s2104 + $0xc] sm:$0xf]
      %v2109 = vld [vmem:[%s2104 + $0x10] sm:$0xf]
      %v2110 = vld [vmem:[%s2104 + $0x14] sm:$0xf]
      %v2111 = vld [vmem:[%s2104 + $0x18] sm:$0xf]
      %v2112 = vld [vmem:[%s2104 + $0x1c] sm:$0xf]
      %v2113 = vld [vmem:[%s2104 + $0x20] sm:$0xf]
      %v2114 = vld [vmem:[%s2104 + $0x24] sm:$0xf]
      %v2115 = vld [vmem:[%s2104 + $0x28] sm:$0xf]
      %v2116 = vld [vmem:[%s2104 + $0x2c] sm:$0xf]
      %v2117 = vld [vmem:[%s2104 + $0x30] sm:$0xf]
      %v2118 = vld [vmem:[%s2104 + $0x34] sm:$0xf]
      %v2119 = vld [vmem:[%s2104 + $0x38] sm:$0xf]
      %v2120 = vld [vmem:[%s2104 + $0x3c] sm:$0xf]
      %v2137 = vunpack.c.l.b16 %v2105
      %v2138 = vunpack.c.l.b16 %v2106
      %v2139 = vunpack.c.l.b16 %v2107
      %v2140 = vunpack.c.l.b16 %v2108
      %v2141 = vunpack.c.l.b16 %v2109
      %v2142 = vunpack.c.l.b16 %v2110
      %v2143 = vunpack.c.l.b16 %v2111
      %v2144 = vunpack.c.l.b16 %v2112
      %v2145 = vunpack.c.l.b16 %v2113
      %v2146 = vunpack.c.l.b16 %v2114
      %v2147 = vunpack.c.l.b16 %v2115
      %v2148 = vunpack.c.l.b16 %v2116
      %v2149 = vunpack.c.l.b16 %v2117
      %v2150 = vunpack.c.l.b16 %v2118
      %v2151 = vunpack.c.l.b16 %v2119
      %v2152 = vunpack.c.l.b16 %v2120
      %v2153 = vpack.c.b16 %v2138, %v2137
      %v2154 = vpack.c.b16 %v2140, %v2139
      %v2155 = vpack.c.b16 %v2142, %v2141
      %v2156 = vpack.c.b16 %v2144, %v2143
      %v2157 = vpack.c.b16 %v2146, %v2145
      %v2158 = vpack.c.b16 %v2148, %v2147
      %v2159 = vpack.c.b16 %v2150, %v2149
      %v2160 = vpack.c.b16 %v2152, %v2151
      %2169 = vmatprep.subr.bf16.mxu0 0
      %2170 = vmatpush1.bf16.msra.mxu0 %v2153
      %2171 = vmatprep.subr.bf16.mxu0 0
      %2172 = vmatpush1.bf16.msra.mxu0 %v2154
      %2173 = vmatprep.subr.bf16.mxu0 0
      %2174 = vmatpush1.bf16.msra.mxu0 %v2155
      %2175 = vmatprep.subr.bf16.mxu0 0
      %2176 = vmatpush1.bf16.msra.mxu0 %v2156
      %2177 = vmatprep.subr.bf16.mxu0 0
      %2178 = vmatpush1.bf16.msra.mxu0 %v2157
      %2179 = vmatprep.subr.bf16.mxu0 0
      %2180 = vmatpush1.bf16.msra.mxu0 %v2158
      %2181 = vmatprep.subr.bf16.mxu0 0
      %2182 = vmatpush1.bf16.msra.mxu0 %v2159
      %2183 = vmatprep.subr.bf16.mxu0 0
      %2184 = vmatpush1.bf16.msra.mxu0 %v2160
      %2185 = vmatprep.subr.bf16.mxu0 0
      %2186 = vmatpush1.bf16.msra.mxu0 0
      %2187 = vmatprep.subr.bf16.mxu0 0
      %2188 = vmatpush1.bf16.msra.mxu0 0
      %2189 = vmatprep.subr.bf16.mxu0 0
      %2190 = vmatpush1.bf16.msra.mxu0 0
      %2191 = vmatprep.subr.bf16.mxu0 0
      %2192 = vmatpush1.bf16.msra.mxu0 0
      %2193 = vmatprep.subr.bf16.mxu0 0
      %2194 = vmatpush1.bf16.msra.mxu0 0
      %2195 = vmatprep.subr.bf16.mxu0 0
      %2196 = vmatpush1.bf16.msra.mxu0 0
      %2197 = vmatprep.subr.bf16.mxu0 0
      %2198 = vmatpush1.bf16.msra.mxu0 0
      %2199 = vmatprep.subr.bf16.mxu0 0
      %2200 = vmatpush1.bf16.msra.mxu0 0
      %2201 = vmatprep.mubr.bf16.mxu0 0
      %2202 = vmatmul.mubr.bf16.gmra.mrb[0].mxu0 %v2090
      %v2203 = vpop.f32.mrb[0].mxu0
      %v2204 = vadd.f32 0.0, %v2203
      %v2205 = vpop.f32.mrb[0].mxu0
      %v2206 = vpop.f32.mrb[0].mxu0
      %v2207 = vadd.f32 0.0, %v2206
      %v2208 = vpop.f32.mrb[0].mxu0
      %2209 = vmatprep.mubr.bf16.mxu0 0
      %2210 = vmatmul.mubr.bf16.gmra.mrb[0].mxu0 %v2093
      %v2211 = vpop.f32.mrb[0].mxu0
      %v2212 = vadd.f32 0.0, %v2211
      %v2213 = vpop.f32.mrb[0].mxu0
      %v2214 = vpop.f32.mrb[0].mxu0
      %v2215 = vadd.f32 0.0, %v2214
      %v2216 = vpop.f32.mrb[0].mxu0
      %2217 = vmatprep.mubr.bf16.mxu0 0
      %2218 = vmatmul.mubr.bf16.gmra.mrb[0].mxu0 %v2096
      %v2219 = vpop.f32.mrb[0].mxu0
      %v2220 = vadd.f32 0.0, %v2219
      %v2221 = vpop.f32.mrb[0].mxu0
      %v2222 = vpop.f32.mrb[0].mxu0
      %v2223 = vadd.f32 0.0, %v2222
      %v2224 = vpop.f32.mrb[0].mxu0
      %2225 = vmatprep.mubr.bf16.mxu0 0
      %2226 = vmatmul.mubr.bf16.gmra.mrb[0].mxu0 %v2099
      %v2227 = vpop.f32.mrb[0].mxu0
      %v2228 = vadd.f32 0.0, %v2227
      %v2229 = vpop.f32.mrb[0].mxu0
      %v2230 = vpop.f32.mrb[0].mxu0
      %v2231 = vadd.f32 0.0, %v2230
      %v2232 = vpop.f32.mrb[0].mxu0
      %2233 = vdwg.mxu0
      %v2234 = vadd.f32 %v2068, %v2204
      %v2235 = vadd.f32 %v2069, %v2207
      %v2236 = vadd.f32 %v2070, %v2212
      %v2237 = vadd.f32 %v2071, %v2215
      %v2238 = vadd.f32 %v2072, %v2220
      %v2239 = vadd.f32 %v2073, %v2223
      %v2240 = vadd.f32 %v2074, %v2228
      %v2241 = vadd.f32 %v2075, %v2231
      %v2242 = vld [vmem:[%s1857 + $0x8] sm:$0x1f]
      %v2243 = vld [vmem:[%s1857 + $0x18] sm:$0x1f]
      %v2244 = vld [vmem:[%s1857 + $0x28] sm:$0x1f]
      %v2245 = vld [vmem:[%s1857 + $0x38] sm:$0x1f]
      %v2247 = vshrl.u32 %v2076, 16
      %v2249 = vrot.slane %v2247, 4
      %v2250 = vshll.u32 %v2076, 16
      %v2252 = vrot.slane %v2250, 5
      %v2253 = vor.u32 %v2249, %v2252
      %v2255 = vshrl.u32 %v2242, 16
      %v2257 = vrot.slane %v2255, 4
      %v2258 = vshll.u32 %v2242, 16
      %v2260 = vrot.slane %v2258, 5
      %v2261 = vor.u32 %v2257, %v2260
      %v2262 = vsel %vm1048, %v2253, %v2261
      %v2264 = vshrl.u32 %v2077, 16
      %v2266 = vrot.slane %v2264, 4
      %v2267 = vshll.u32 %v2077, 16
      %v2269 = vrot.slane %v2267, 5
      %v2270 = vor.u32 %v2266, %v2269
      %v2272 = vshrl.u32 %v2243, 16
      %v2274 = vrot.slane %v2272, 4
      %v2275 = vshll.u32 %v2243, 16
      %v2277 = vrot.slane %v2275, 5
      %v2278 = vor.u32 %v2274, %v2277
      %v2279 = vsel %vm1048, %v2270, %v2278
      %v2281 = vshrl.u32 %v2078, 16
      %v2283 = vrot.slane %v2281, 4
      %v2284 = vshll.u32 %v2078, 16
      %v2286 = vrot.slane %v2284, 5
      %v2287 = vor.u32 %v2283, %v2286
      %v2289 = vshrl.u32 %v2244, 16
      %v2291 = vrot.slane %v2289, 4
      %v2292 = vshll.u32 %v2244, 16
      %v2294 = vrot.slane %v2292, 5
      %v2295 = vor.u32 %v2291, %v2294
      %v2296 = vsel %vm1048, %v2287, %v2295
      %v2298 = vshrl.u32 %v2079, 16
      %v2300 = vrot.slane %v2298, 4
      %v2301 = vshll.u32 %v2079, 16
      %v2303 = vrot.slane %v2301, 5
      %v2304 = vor.u32 %v2300, %v2303
      %v2306 = vshrl.u32 %v2245, 16
      %v2308 = vrot.slane %v2306, 4
      %v2309 = vshll.u32 %v2245, 16
      %v2311 = vrot.slane %v2309, 5
      %v2312 = vor.u32 %v2308, %v2311
      %v2313 = vsel %vm1048, %v2304, %v2312
      %s2318 = scalar_lea.vmem %s3, 512
      %v2319 = vld [vmem:[%s2318] sm:$0xf]
      %v2320 = vld [vmem:[%s2318 + $0x4] sm:$0xf]
      %v2321 = vld [vmem:[%s2318 + $0x8] sm:$0xf]
      %v2322 = vld [vmem:[%s2318 + $0xc] sm:$0xf]
      %v2323 = vld [vmem:[%s2318 + $0x10] sm:$0xf]
      %v2324 = vld [vmem:[%s2318 + $0x14] sm:$0xf]
      %v2325 = vld [vmem:[%s2318 + $0x18] sm:$0xf]
      %v2326 = vld [vmem:[%s2318 + $0x1c] sm:$0xf]
      %v2327 = vld [vmem:[%s2318 + $0x20] sm:$0xf]
      %v2328 = vld [vmem:[%s2318 + $0x24] sm:$0xf]
      %v2329 = vld [vmem:[%s2318 + $0x28] sm:$0xf]
      %v2330 = vld [vmem:[%s2318 + $0x2c] sm:$0xf]
      %v2331 = vld [vmem:[%s2318 + $0x30] sm:$0xf]
      %v2332 = vld [vmem:[%s2318 + $0x34] sm:$0xf]
      %v2333 = vld [vmem:[%s2318 + $0x38] sm:$0xf]
      %v2334 = vld [vmem:[%s2318 + $0x3c] sm:$0xf]
      %v2351 = vunpack.c.l.b16 %v2319
      %v2352 = vunpack.c.l.b16 %v2320
      %v2353 = vunpack.c.l.b16 %v2321
      %v2354 = vunpack.c.l.b16 %v2322
      %v2355 = vunpack.c.l.b16 %v2323
      %v2356 = vunpack.c.l.b16 %v2324
      %v2357 = vunpack.c.l.b16 %v2325
      %v2358 = vunpack.c.l.b16 %v2326
      %v2359 = vunpack.c.l.b16 %v2327
      %v2360 = vunpack.c.l.b16 %v2328
      %v2361 = vunpack.c.l.b16 %v2329
      %v2362 = vunpack.c.l.b16 %v2330
      %v2363 = vunpack.c.l.b16 %v2331
      %v2364 = vunpack.c.l.b16 %v2332
      %v2365 = vunpack.c.l.b16 %v2333
      %v2366 = vunpack.c.l.b16 %v2334
      %v2367 = vpack.c.b16 %v2352, %v2351
      %v2368 = vpack.c.b16 %v2354, %v2353
      %v2369 = vpack.c.b16 %v2356, %v2355
      %v2370 = vpack.c.b16 %v2358, %v2357
      %v2371 = vpack.c.b16 %v2360, %v2359
      %v2372 = vpack.c.b16 %v2362, %v2361
      %v2373 = vpack.c.b16 %v2364, %v2363
      %v2374 = vpack.c.b16 %v2366, %v2365
      %2383 = vmatprep.subr.bf16.mxu0 0
      %2384 = vmatpush1.bf16.msra.mxu0 %v2367
      %2385 = vmatprep.subr.bf16.mxu0 0
      %2386 = vmatpush1.bf16.msra.mxu0 %v2368
      %2387 = vmatprep.subr.bf16.mxu0 0
      %2388 = vmatpush1.bf16.msra.mxu0 %v2369
      %2389 = vmatprep.subr.bf16.mxu0 0
      %2390 = vmatpush1.bf16.msra.mxu0 %v2370
      %2391 = vmatprep.subr.bf16.mxu0 0
      %2392 = vmatpush1.bf16.msra.mxu0 %v2371
      %2393 = vmatprep.subr.bf16.mxu0 0
      %2394 = vmatpush1.bf16.msra.mxu0 %v2372
      %2395 = vmatprep.subr.bf16.mxu0 0
      %2396 = vmatpush1.bf16.msra.mxu0 %v2373
      %2397 = vmatprep.subr.bf16.mxu0 0
      %2398 = vmatpush1.bf16.msra.mxu0 %v2374
      %2399 = vmatprep.subr.bf16.mxu0 0
      %2400 = vmatpush1.bf16.msra.mxu0 0
      %2401 = vmatprep.subr.bf16.mxu0 0
      %2402 = vmatpush1.bf16.msra.mxu0 0
      %2403 = vmatprep.subr.bf16.mxu0 0
      %2404 = vmatpush1.bf16.msra.mxu0 0
      %2405 = vmatprep.subr.bf16.mxu0 0
      %2406 = vmatpush1.bf16.msra.mxu0 0
      %2407 = vmatprep.subr.bf16.mxu0 0
      %2408 = vmatpush1.bf16.msra.mxu0 0
      %2409 = vmatprep.subr.bf16.mxu0 0
      %2410 = vmatpush1.bf16.msra.mxu0 0
      %2411 = vmatprep.subr.bf16.mxu0 0
      %2412 = vmatpush1.bf16.msra.mxu0 0
      %2413 = vmatprep.subr.bf16.mxu0 0
      %2414 = vmatpush1.bf16.msra.mxu0 0
      %2415 = vmatprep.mubr.bf16.mxu0 0
      %2416 = vmatmul.mubr.bf16.gmra.mrb[0].mxu0 %v2262
      %v2417 = vpop.f32.mrb[0].mxu0
      %v2418 = vadd.f32 0.0, %v2417
      %v2419 = vpop.f32.mrb[0].mxu0
      %v2420 = vpop.f32.mrb[0].mxu0
      %v2421 = vadd.f32 0.0, %v2420
      %v2422 = vpop.f32.mrb[0].mxu0
      %2423 = vmatprep.mubr.bf16.mxu0 0
      %2424 = vmatmul.mubr.bf16.gmra.mrb[0].mxu0 %v2279
      %v2425 = vpop.f32.mrb[0].mxu0
      %v2426 = vadd.f32 0.0, %v2425
      %v2427 = vpop.f32.mrb[0].mxu0
      %v2428 = vpop.f32.mrb[0].mxu0
      %v2429 = vadd.f32 0.0, %v2428
      %v2430 = vpop.f32.mrb[0].mxu0
      %2431 = vmatprep.mubr.bf16.mxu0 0
      %2432 = vmatmul.mubr.bf16.gmra.mrb[0].mxu0 %v2296
      %v2433 = vpop.f32.mrb[0].mxu0
      %v2434 = vadd.f32 0.0, %v2433
      %v2435 = vpop.f32.mrb[0].mxu0
      %v2436 = vpop.f32.mrb[0].mxu0
      %v2437 = vadd.f32 0.0, %v2436
      %v2438 = vpop.f32.mrb[0].mxu0
      %2439 = vmatprep.mubr.bf16.mxu0 0
      %2440 = vmatmul.mubr.bf16.gmra.mrb[0].mxu0 %v2313
      %v2441 = vpop.f32.mrb[0].mxu0
      %v2442 = vadd.f32 0.0, %v2441
      %v2443 = vpop.f32.mrb[0].mxu0
      %v2444 = vpop.f32.mrb[0].mxu0
      %v2445 = vadd.f32 0.0, %v2444
      %v2446 = vpop.f32.mrb[0].mxu0
      %2447 = vdwg.mxu0
      %v2448 = vadd.f32 %v2234, %v2418
      %v2449 = vadd.f32 %v2235, %v2421
      %v2450 = vadd.f32 %v2236, %v2426
      %v2451 = vadd.f32 %v2237, %v2429
      %v2452 = vadd.f32 %v2238, %v2434
      %v2453 = vadd.f32 %v2239, %v2437
      %v2454 = vadd.f32 %v2240, %v2442
      %v2455 = vadd.f32 %v2241, %v2445
      %v2456 = vpack.c.bf16 %v2449, %v2448
      %v2457 = vpack.c.bf16 %v2451, %v2450
      %v2458 = vpack.c.bf16 %v2453, %v2452
      %v2459 = vpack.c.bf16 %v2455, %v2454
      %v2464 = vunpack.c.l.b16 %v2456
      %v2465 = vunpack.c.h.b16 %v2456
      %v2466 = vunpack.c.l.b16 %v2457
      %v2467 = vunpack.c.h.b16 %v2457
      %v2468 = vunpack.c.l.b16 %v2458
      %v2469 = vunpack.c.h.b16 %v2458
      %v2470 = vunpack.c.l.b16 %v2459
      %v2471 = vunpack.c.h.b16 %v2459
      %v2472 = vpack.c.b16 %v2464, %v2464
      %v2473 = vpack.c.b16 %v2465, %v2465
      %v2474 = vpack.c.b16 %v2466, %v2466
      %v2475 = vpack.c.b16 %v2467, %v2467
      %v2476 = vpack.c.b16 %v2468, %v2468
      %v2477 = vpack.c.b16 %v2469, %v2469
      %v2478 = vpack.c.b16 %v2470, %v2470
      %v2479 = vpack.c.b16 %v2471, %v2471
      %2488 = vst [vmem:[%s458] sm:$0xf] %v2472
      %2489 = vst [vmem:[%s458 + $0x4] sm:$0xf] %v2473
      %2490 = vst [vmem:[%s458 + $0x8] sm:$0xf] %v2474
      %2491 = vst [vmem:[%s458 + $0xc] sm:$0xf] %v2475
      %2492 = vst [vmem:[%s458 + $0x10] sm:$0xf] %v2476
      %2493 = vst [vmem:[%s458 + $0x14] sm:$0xf] %v2477
      %2494 = vst [vmem:[%s458 + $0x18] sm:$0xf] %v2478
      %2495 = vst [vmem:[%s458 + $0x1c] sm:$0xf] %v2479
      %v2496 = vadd.f32 %v2448, %v2449
      %v2497 = vadd.f32 %v2496, %v2450
      %v2498 = vadd.f32 %v2497, %v2451
      %v2499 = vadd.f32 %v2498, %v2452
      %v2500 = vadd.f32 %v2499, %v2453
      %v2501 = vadd.f32 %v2500, %v2454
      %v2502 = vadd.f32 %v2501, %v2455
      %v2503 = vrot.slane %v2502, 4
      %v2504 = vadd.f32 %v2502, %v2503
      %v2505 = vrot.slane %v2504, 2
      %v2506 = vadd.f32 %v2504, %v2505
      %v2507 = vrot.slane %v2506, 1
      %v2508 = vadd.f32 %v2506, %v2507
      %v2509 = vadd.f32 %v2508, 0.0
      %v2510 = vmul.f32 %v2448, %v2448
      %v2511 = vmul.f32 %v2449, %v2449
      %v2512 = vmul.f32 %v2450, %v2450
      %v2513 = vmul.f32 %v2451, %v2451
      %v2514 = vmul.f32 %v2452, %v2452
      %v2515 = vmul.f32 %v2453, %v2453
      %v2516 = vmul.f32 %v2454, %v2454
      %v2517 = vmul.f32 %v2455, %v2455
      %v2518 = vadd.f32 %v2510, %v2511
      %v2519 = vadd.f32 %v2518, %v2512
      %v2520 = vadd.f32 %v2519, %v2513
      %v2521 = vadd.f32 %v2520, %v2514
      %v2522 = vadd.f32 %v2521, %v2515
      %v2523 = vadd.f32 %v2522, %v2516
      %v2524 = vadd.f32 %v2523, %v2517
      %v2525 = vrot.slane %v2524, 4
      %v2526 = vadd.f32 %v2524, %v2525
      %v2527 = vrot.slane %v2526, 2
      %v2528 = vadd.f32 %v2526, %v2527
      %v2529 = vrot.slane %v2528, 1
      %v2530 = vadd.f32 %v2528, %v2529
      %v2531 = vadd.f32 %v2530, 0.0
      %s2532 = scalar_lea.vmem [#allocation2], 64
      %v2533 = vld [vmem:[%s2532] sm:$0xf8]
      %v2534 = vld [vmem:[%s2532 + $0x8] sm:$0xf]
      %v2535 = vld [vmem:[%s2532 + $0x10] sm:$0xf8]
      %v2536 = vld [vmem:[%s2532 + $0x18] sm:$0xf]
      %v2537 = vld [vmem:[%s2532 + $0x20] sm:$0xf8]
      %v2538 = vld [vmem:[%s2532 + $0x28] sm:$0xf]
      %v2539 = vld [vmem:[%s2532 + $0x30] sm:$0xf8]
      %v2540 = vld [vmem:[%s2532 + $0x38] sm:$0xf]
      %v2542 = vshrl.u32 %v2533, 16
      %v2544 = vrot.slane %v2542, 3
      %v2545 = vshll.u32 %v2533, 16
      %v2547 = vrot.slane %v2545, 4
      %v2548 = vor.u32 %v2544, %v2547
      %v2550 = vshrl.u32 %v2534, 16
      %v2552 = vrot.slane %v2550, 3
      %v2553 = vshll.u32 %v2534, 16
      %v2555 = vrot.slane %v2553, 4
      %v2556 = vor.u32 %v2552, %v2555
      %v2557 = vsel %vm683, %v2548, %v2556
      %v2559 = vshrl.u32 %v2535, 16
      %v2561 = vrot.slane %v2559, 3
      %v2562 = vshll.u32 %v2535, 16
      %v2564 = vrot.slane %v2562, 4
      %v2565 = vor.u32 %v2561, %v2564
      %v2567 = vshrl.u32 %v2536, 16
      %v2569 = vrot.slane %v2567, 3
      %v2570 = vshll.u32 %v2536, 16
      %v2572 = vrot.slane %v2570, 4
      %v2573 = vor.u32 %v2569, %v2572
      %v2574 = vsel %vm683, %v2565, %v2573
      %v2576 = vshrl.u32 %v2537, 16
      %v2578 = vrot.slane %v2576, 3
      %v2579 = vshll.u32 %v2537, 16
      %v2581 = vrot.slane %v2579, 4
      %v2582 = vor.u32 %v2578, %v2581
      %v2584 = vshrl.u32 %v2538, 16
      %v2586 = vrot.slane %v2584, 3
      %v2587 = vshll.u32 %v2538, 16
      %v2589 = vrot.slane %v2587, 4
      %v2590 = vor.u32 %v2586, %v2589
      %v2591 = vsel %vm683, %v2582, %v2590
      %v2593 = vshrl.u32 %v2539, 16
      %v2595 = vrot.slane %v2593, 3
      %v2596 = vshll.u32 %v2539, 16
      %v2598 = vrot.slane %v2596, 4
      %v2599 = vor.u32 %v2595, %v2598
      %v2601 = vshrl.u32 %v2540, 16
      %v2603 = vrot.slane %v2601, 3
      %v2604 = vshll.u32 %v2540, 16
      %v2606 = vrot.slane %v2604, 4
      %v2607 = vor.u32 %v2603, %v2606
      %v2608 = vsel %vm683, %v2599, %v2607
      %v2613 = vld [vmem:[%s3] sm:$0xf]
      %v2614 = vld [vmem:[%s3 + $0x4] sm:$0xf]
      %v2615 = vld [vmem:[%s3 + $0x8] sm:$0xf]
      %v2616 = vld [vmem:[%s3 + $0xc] sm:$0xf]
      %v2617 = vld [vmem:[%s3 + $0x10] sm:$0xf]
      %v2618 = vld [vmem:[%s3 + $0x14] sm:$0xf]
      %v2619 = vld [vmem:[%s3 + $0x18] sm:$0xf]
      %v2620 = vld [vmem:[%s3 + $0x1c] sm:$0xf]
      %v2621 = vld [vmem:[%s3 + $0x20] sm:$0xf]
      %v2622 = vld [vmem:[%s3 + $0x24] sm:$0xf]
      %v2623 = vld [vmem:[%s3 + $0x28] sm:$0xf]
      %v2624 = vld [vmem:[%s3 + $0x2c] sm:$0xf]
      %v2625 = vld [vmem:[%s3 + $0x30] sm:$0xf]
      %v2626 = vld [vmem:[%s3 + $0x34] sm:$0xf]
      %v2627 = vld [vmem:[%s3 + $0x38] sm:$0xf]
      %v2628 = vld [vmem:[%s3 + $0x3c] sm:$0xf]
      %v2629 = vld [vmem:[%s2532] sm:$0xf0]
      %v2630 = vld [vmem:[%s2532 + $0x10] sm:$0xf0]
      %v2631 = vld [vmem:[%s2532 + $0x20] sm:$0xf0]
      %v2632 = vld [vmem:[%s2532 + $0x30] sm:$0xf0]
      %v2641 = vrot.slane %v2629, 4
      %v2642 = vrot.slane %v2534, 4
      %v2643 = vsel %vm784, %v2641, %v2642
      %v2644 = vrot.slane %v2630, 4
      %v2645 = vrot.slane %v2536, 4
      %v2646 = vsel %vm784, %v2644, %v2645
      %v2647 = vrot.slane %v2631, 4
      %v2648 = vrot.slane %v2538, 4
      %v2649 = vsel %vm784, %v2647, %v2648
      %v2650 = vrot.slane %v2632, 4
      %v2651 = vrot.slane %v2540, 4
      %v2652 = vsel %vm784, %v2650, %v2651
      %v2657 = vld [vmem:[%s801] sm:$0xf]
      %v2658 = vld [vmem:[%s801 + $0x4] sm:$0xf]
      %v2659 = vld [vmem:[%s801 + $0x8] sm:$0xf]
      %v2660 = vld [vmem:[%s801 + $0xc] sm:$0xf]
      %v2661 = vld [vmem:[%s801 + $0x10] sm:$0xf]
      %v2662 = vld [vmem:[%s801 + $0x14] sm:$0xf]
      %v2663 = vld [vmem:[%s801 + $0x18] sm:$0xf]
      %v2664 = vld [vmem:[%s801 + $0x1c] sm:$0xf]
      %v2665 = vld [vmem:[%s801 + $0x20] sm:$0xf]
      %v2666 = vld [vmem:[%s801 + $0x24] sm:$0xf]
      %v2667 = vld [vmem:[%s801 + $0x28] sm:$0xf]
      %v2668 = vld [vmem:[%s801 + $0x2c] sm:$0xf]
      %v2669 = vld [vmem:[%s801 + $0x30] sm:$0xf]
      %v2670 = vld [vmem:[%s801 + $0x34] sm:$0xf]
      %v2671 = vld [vmem:[%s801 + $0x38] sm:$0xf]
      %v2672 = vld [vmem:[%s801 + $0x3c] sm:$0xf]
      %v2689 = vunpack.c.l.b16 %v2657
      %v2690 = vunpack.c.l.b16 %v2658
      %v2691 = vunpack.c.l.b16 %v2659
      %v2692 = vunpack.c.l.b16 %v2660
      %v2693 = vunpack.c.l.b16 %v2661
      %v2694 = vunpack.c.l.b16 %v2662
      %v2695 = vunpack.c.l.b16 %v2663
      %v2696 = vunpack.c.l.b16 %v2664
      %v2697 = vunpack.c.l.b16 %v2665
      %v2698 = vunpack.c.l.b16 %v2666
      %v2699 = vunpack.c.l.b16 %v2667
      %v2700 = vunpack.c.l.b16 %v2668
      %v2701 = vunpack.c.l.b16 %v2669
      %v2702 = vunpack.c.l.b16 %v2670
      %v2703 = vunpack.c.l.b16 %v2671
      %v2704 = vunpack.c.l.b16 %v2672
      %v2705 = vpack.c.b16 %v2690, %v2689
      %v2706 = vpack.c.b16 %v2692, %v2691
      %v2707 = vpack.c.b16 %v2694, %v2693
      %v2708 = vpack.c.b16 %v2696, %v2695
      %v2709 = vpack.c.b16 %v2698, %v2697
      %v2710 = vpack.c.b16 %v2700, %v2699
      %v2711 = vpack.c.b16 %v2702, %v2701
      %v2712 = vpack.c.b16 %v2704, %v2703
      %2721 = vmatprep.subr.bf16.mxu0 0
      %2722 = vmatpush1.bf16.msra.mxu0 %v2705
      %2723 = vmatprep.subr.bf16.mxu0 0
      %2724 = vmatpush1.bf16.msra.mxu0 %v2706
      %2725 = vmatprep.subr.bf16.mxu0 0
      %2726 = vmatpush1.bf16.msra.mxu0 %v2707
      %2727 = vmatprep.subr.bf16.mxu0 0
      %2728 = vmatpush1.bf16.msra.mxu0 %v2708
      %2729 = vmatprep.subr.bf16.mxu0 0
      %2730 = vmatpush1.bf16.msra.mxu0 %v2709
      %2731 = vmatprep.subr.bf16.mxu0 0
      %2732 = vmatpush1.bf16.msra.mxu0 %v2710
      %2733 = vmatprep.subr.bf16.mxu0 0
      %2734 = vmatpush1.bf16.msra.mxu0 %v2711
      %2735 = vmatprep.subr.bf16.mxu0 0
      %2736 = vmatpush1.bf16.msra.mxu0 %v2712
      %2737 = vmatprep.subr.bf16.mxu0 0
      %2738 = vmatpush1.bf16.msra.mxu0 0
      %2739 = vmatprep.subr.bf16.mxu0 0
      %2740 = vmatpush1.bf16.msra.mxu0 0
      %2741 = vmatprep.subr.bf16.mxu0 0
      %2742 = vmatpush1.bf16.msra.mxu0 0
      %2743 = vmatprep.subr.bf16.mxu0 0
      %2744 = vmatpush1.bf16.msra.mxu0 0
      %2745 = vmatprep.subr.bf16.mxu0 0
      %2746 = vmatpush1.bf16.msra.mxu0 0
      %2747 = vmatprep.subr.bf16.mxu0 0
      %2748 = vmatpush1.bf16.msra.mxu0 0
      %2749 = vmatprep.subr.bf16.mxu0 0
      %2750 = vmatpush1.bf16.msra.mxu0 0
      %2751 = vmatprep.subr.bf16.mxu0 0
      %2752 = vmatpush1.bf16.msra.mxu0 0
      %2753 = vmatprep.mubr.bf16.mxu0 0
      %2754 = vmatmul.mubr.bf16.gmra.mrb[0].mxu0 %v2643
      %v2755 = vpop.f32.mrb[0].mxu0
      %v2756 = vadd.f32 0.0, %v2755
      %v2757 = vpop.f32.mrb[0].mxu0
      %v2758 = vpop.f32.mrb[0].mxu0
      %v2759 = vadd.f32 0.0, %v2758
      %v2760 = vpop.f32.mrb[0].mxu0
      %2761 = vmatprep.mubr.bf16.mxu0 0
      %2762 = vmatmul.mubr.bf16.gmra.mrb[0].mxu0 %v2646
      %v2763 = vpop.f32.mrb[0].mxu0
      %v2764 = vadd.f32 0.0, %v2763
      %v2765 = vpop.f32.mrb[0].mxu0
      %v2766 = vpop.f32.mrb[0].mxu0
      %v2767 = vadd.f32 0.0, %v2766
      %v2768 = vpop.f32.mrb[0].mxu0
      %2769 = vmatprep.mubr.bf16.mxu0 0
      %2770 = vmatmul.mubr.bf16.gmra.mrb[0].mxu0 %v2649
      %v2771 = vpop.f32.mrb[0].mxu0
      %v2772 = vadd.f32 0.0, %v2771
      %v2773 = vpop.f32.mrb[0].mxu0
      %v2774 = vpop.f32.mrb[0].mxu0
      %v2775 = vadd.f32 0.0, %v2774
      %v2776 = vpop.f32.mrb[0].mxu0
      %2777 = vmatprep.mubr.bf16.mxu0 0
      %2778 = vmatmul.mubr.bf16.gmra.mrb[0].mxu0 %v2652
      %v2779 = vpop.f32.mrb[0].mxu0
      %v2780 = vadd.f32 0.0, %v2779
      %v2781 = vpop.f32.mrb[0].mxu0
      %v2782 = vpop.f32.mrb[0].mxu0
      %v2783 = vadd.f32 0.0, %v2782
      %v2784 = vpop.f32.mrb[0].mxu0
      %2785 = vdwg.mxu0
      %v2802 = vunpack.c.l.b16 %v2613
      %v2803 = vunpack.c.l.b16 %v2614
      %v2804 = vunpack.c.l.b16 %v2615
      %v2805 = vunpack.c.l.b16 %v2616
      %v2806 = vunpack.c.l.b16 %v2617
      %v2807 = vunpack.c.l.b16 %v2618
      %v2808 = vunpack.c.l.b16 %v2619
      %v2809 = vunpack.c.l.b16 %v2620
      %v2810 = vunpack.c.l.b16 %v2621
      %v2811 = vunpack.c.l.b16 %v2622
      %v2812 = vunpack.c.l.b16 %v2623
      %v2813 = vunpack.c.l.b16 %v2624
      %v2814 = vunpack.c.l.b16 %v2625
      %v2815 = vunpack.c.l.b16 %v2626
      %v2816 = vunpack.c.l.b16 %v2627
      %v2817 = vunpack.c.l.b16 %v2628
      %v2818 = vpack.c.b16 %v2803, %v2802
      %v2819 = vpack.c.b16 %v2805, %v2804
      %v2820 = vpack.c.b16 %v2807, %v2806
      %v2821 = vpack.c.b16 %v2809, %v2808
      %v2822 = vpack.c.b16 %v2811, %v2810
      %v2823 = vpack.c.b16 %v2813, %v2812
      %v2824 = vpack.c.b16 %v2815, %v2814
      %v2825 = vpack.c.b16 %v2817, %v2816
      %2834 = vmatprep.subr.bf16.mxu0 0
      %2835 = vmatpush1.bf16.msra.mxu0 %v2818
      %2836 = vmatprep.subr.bf16.mxu0 0
      %2837 = vmatpush1.bf16.msra.mxu0 %v2819
      %2838 = vmatprep.subr.bf16.mxu0 0
      %2839 = vmatpush1.bf16.msra.mxu0 %v2820
      %2840 = vmatprep.subr.bf16.mxu0 0
      %2841 = vmatpush1.bf16.msra.mxu0 %v2821
      %2842 = vmatprep.subr.bf16.mxu0 0
      %2843 = vmatpush1.bf16.msra.mxu0 %v2822
      %2844 = vmatprep.subr.bf16.mxu0 0
      %2845 = vmatpush1.bf16.msra.mxu0 %v2823
      %2846 = vmatprep.subr.bf16.mxu0 0
      %2847 = vmatpush1.bf16.msra.mxu0 %v2824
      %2848 = vmatprep.subr.bf16.mxu0 0
      %2849 = vmatpush1.bf16.msra.mxu0 %v2825
      %2850 = vmatprep.subr.bf16.mxu0 0
      %2851 = vmatpush1.bf16.msra.mxu0 0
      %2852 = vmatprep.subr.bf16.mxu0 0
      %2853 = vmatpush1.bf16.msra.mxu0 0
      %2854 = vmatprep.subr.bf16.mxu0 0
      %2855 = vmatpush1.bf16.msra.mxu0 0
      %2856 = vmatprep.subr.bf16.mxu0 0
      %2857 = vmatpush1.bf16.msra.mxu0 0
      %2858 = vmatprep.subr.bf16.mxu0 0
      %2859 = vmatpush1.bf16.msra.mxu0 0
      %2860 = vmatprep.subr.bf16.mxu0 0
      %2861 = vmatpush1.bf16.msra.mxu0 0
      %2862 = vmatprep.subr.bf16.mxu0 0
      %2863 = vmatpush1.bf16.msra.mxu0 0
      %2864 = vmatprep.subr.bf16.mxu0 0
      %2865 = vmatpush1.bf16.msra.mxu0 0
      %2866 = vmatprep.mubr.bf16.mxu0 0
      %2867 = vmatmul.mubr.bf16.gmra.mrb[0].mxu0 %v2557
      %v2868 = vpop.f32.mrb[0].mxu0
      %v2869 = vadd.f32 %v2756, %v2868
      %v2870 = vpop.f32.mrb[0].mxu0
      %v2871 = vpop.f32.mrb[0].mxu0
      %v2872 = vadd.f32 %v2759, %v2871
      %v2873 = vpop.f32.mrb[0].mxu0
      %2874 = vmatprep.mubr.bf16.mxu0 0
      %2875 = vmatmul.mubr.bf16.gmra.mrb[0].mxu0 %v2574
      %v2876 = vpop.f32.mrb[0].mxu0
      %v2877 = vadd.f32 %v2764, %v2876
      %v2878 = vpop.f32.mrb[0].mxu0
      %v2879 = vpop.f32.mrb[0].mxu0
      %v2880 = vadd.f32 %v2767, %v2879
      %v2881 = vpop.f32.mrb[0].mxu0
      %2882 = vmatprep.mubr.bf16.mxu0 0
      %2883 = vmatmul.mubr.bf16.gmra.mrb[0].mxu0 %v2591
      %v2884 = vpop.f32.mrb[0].mxu0
      %v2885 = vadd.f32 %v2772, %v2884
      %v2886 = vpop.f32.mrb[0].mxu0
      %v2887 = vpop.f32.mrb[0].mxu0
      %v2888 = vadd.f32 %v2775, %v2887
      %v2889 = vpop.f32.mrb[0].mxu0
      %2890 = vmatprep.mubr.bf16.mxu0 0
      %2891 = vmatmul.mubr.bf16.gmra.mrb[0].mxu0 %v2608
      %v2892 = vpop.f32.mrb[0].mxu0
      %v2893 = vadd.f32 %v2780, %v2892
      %v2894 = vpop.f32.mrb[0].mxu0
      %v2895 = vpop.f32.mrb[0].mxu0
      %v2896 = vadd.f32 %v2783, %v2895
      %v2897 = vpop.f32.mrb[0].mxu0
      %2898 = vdwg.mxu0
      %v2899 = vld [vmem:[%s2532 + $0x8] sm:$0x1f]
      %v2900 = vld [vmem:[%s2532 + $0x18] sm:$0x1f]
      %v2901 = vld [vmem:[%s2532 + $0x28] sm:$0x1f]
      %v2902 = vld [vmem:[%s2532 + $0x38] sm:$0x1f]
      %v2904 = vshrl.u32 %v2629, 16
      %v2906 = vrot.slane %v2904, 4
      %v2907 = vshll.u32 %v2629, 16
      %v2909 = vrot.slane %v2907, 5
      %v2910 = vor.u32 %v2906, %v2909
      %v2912 = vshrl.u32 %v2899, 16
      %v2914 = vrot.slane %v2912, 4
      %v2915 = vshll.u32 %v2899, 16
      %v2917 = vrot.slane %v2915, 5
      %v2918 = vor.u32 %v2914, %v2917
      %v2919 = vsel %vm1048, %v2910, %v2918
      %v2921 = vshrl.u32 %v2630, 16
      %v2923 = vrot.slane %v2921, 4
      %v2924 = vshll.u32 %v2630, 16
      %v2926 = vrot.slane %v2924, 5
      %v2927 = vor.u32 %v2923, %v2926
      %v2929 = vshrl.u32 %v2900, 16
      %v2931 = vrot.slane %v2929, 4
      %v2932 = vshll.u32 %v2900, 16
      %v2934 = vrot.slane %v2932, 5
      %v2935 = vor.u32 %v2931, %v2934
      %v2936 = vsel %vm1048, %v2927, %v2935
      %v2938 = vshrl.u32 %v2631, 16
      %v2940 = vrot.slane %v2938, 4
      %v2941 = vshll.u32 %v2631, 16
      %v2943 = vrot.slane %v2941, 5
      %v2944 = vor.u32 %v2940, %v2943
      %v2946 = vshrl.u32 %v2901, 16
      %v2948 = vrot.slane %v2946, 4
      %v2949 = vshll.u32 %v2901, 16
      %v2951 = vrot.slane %v2949, 5
      %v2952 = vor.u32 %v2948, %v2951
      %v2953 = vsel %vm1048, %v2944, %v2952
      %v2955 = vshrl.u32 %v2632, 16
      %v2957 = vrot.slane %v2955, 4
      %v2958 = vshll.u32 %v2632, 16
      %v2960 = vrot.slane %v2958, 5
      %v2961 = vor.u32 %v2957, %v2960
      %v2963 = vshrl.u32 %v2902, 16
      %v2965 = vrot.slane %v2963, 4
      %v2966 = vshll.u32 %v2902, 16
      %v2968 = vrot.slane %v2966, 5
      %v2969 = vor.u32 %v2965, %v2968
      %v2970 = vsel %vm1048, %v2961, %v2969
      %v2975 = vld [vmem:[%s1121] sm:$0xf]
      %v2976 = vld [vmem:[%s1121 + $0x4] sm:$0xf]
      %v2977 = vld [vmem:[%s1121 + $0x8] sm:$0xf]
      %v2978 = vld [vmem:[%s1121 + $0xc] sm:$0xf]
      %v2979 = vld [vmem:[%s1121 + $0x10] sm:$0xf]
      %v2980 = vld [vmem:[%s1121 + $0x14] sm:$0xf]
      %v2981 = vld [vmem:[%s1121 + $0x18] sm:$0xf]
      %v2982 = vld [vmem:[%s1121 + $0x1c] sm:$0xf]
      %v2983 = vld [vmem:[%s1121 + $0x20] sm:$0xf]
      %v2984 = vld [vmem:[%s1121 + $0x24] sm:$0xf]
      %v2985 = vld [vmem:[%s1121 + $0x28] sm:$0xf]
      %v2986 = vld [vmem:[%s1121 + $0x2c] sm:$0xf]
      %v2987 = vld [vmem:[%s1121 + $0x30] sm:$0xf]
      %v2988 = vld [vmem:[%s1121 + $0x34] sm:$0xf]
      %v2989 = vld [vmem:[%s1121 + $0x38] sm:$0xf]
      %v2990 = vld [vmem:[%s1121 + $0x3c] sm:$0xf]
      %v3007 = vunpack.c.l.b16 %v2975
      %v3008 = vunpack.c.l.b16 %v2976
      %v3009 = vunpack.c.l.b16 %v2977
      %v3010 = vunpack.c.l.b16 %v2978
      %v3011 = vunpack.c.l.b16 %v2979
      %v3012 = vunpack.c.l.b16 %v2980
      %v3013 = vunpack.c.l.b16 %v2981
      %v3014 = vunpack.c.l.b16 %v2982
      %v3015 = vunpack.c.l.b16 %v2983
      %v3016 = vunpack.c.l.b16 %v2984
      %v3017 = vunpack.c.l.b16 %v2985
      %v3018 = vunpack.c.l.b16 %v2986
      %v3019 = vunpack.c.l.b16 %v2987
      %v3020 = vunpack.c.l.b16 %v2988
      %v3021 = vunpack.c.l.b16 %v2989
      %v3022 = vunpack.c.l.b16 %v2990
      %v3023 = vpack.c.b16 %v3008, %v3007
      %v3024 = vpack.c.b16 %v3010, %v3009
      %v3025 = vpack.c.b16 %v3012, %v3011
      %v3026 = vpack.c.b16 %v3014, %v3013
      %v3027 = vpack.c.b16 %v3016, %v3015
      %v3028 = vpack.c.b16 %v3018, %v3017
      %v3029 = vpack.c.b16 %v3020, %v3019
      %v3030 = vpack.c.b16 %v3022, %v3021
      %3039 = vmatprep.subr.bf16.mxu0 0
      %3040 = vmatpush1.bf16.msra.mxu0 %v3023
      %3041 = vmatprep.subr.bf16.mxu0 0
      %3042 = vmatpush1.bf16.msra.mxu0 %v3024
      %3043 = vmatprep.subr.bf16.mxu0 0
      %3044 = vmatpush1.bf16.msra.mxu0 %v3025
      %3045 = vmatprep.subr.bf16.mxu0 0
      %3046 = vmatpush1.bf16.msra.mxu0 %v3026
      %3047 = vmatprep.subr.bf16.mxu0 0
      %3048 = vmatpush1.bf16.msra.mxu0 %v3027
      %3049 = vmatprep.subr.bf16.mxu0 0
      %3050 = vmatpush1.bf16.msra.mxu0 %v3028
      %3051 = vmatprep.subr.bf16.mxu0 0
      %3052 = vmatpush1.bf16.msra.mxu0 %v3029
      %3053 = vmatprep.subr.bf16.mxu0 0
      %3054 = vmatpush1.bf16.msra.mxu0 %v3030
      %3055 = vmatprep.subr.bf16.mxu0 0
      %3056 = vmatpush1.bf16.msra.mxu0 0
      %3057 = vmatprep.subr.bf16.mxu0 0
      %3058 = vmatpush1.bf16.msra.mxu0 0
      %3059 = vmatprep.subr.bf16.mxu0 0
      %3060 = vmatpush1.bf16.msra.mxu0 0
      %3061 = vmatprep.subr.bf16.mxu0 0
      %3062 = vmatpush1.bf16.msra.mxu0 0
      %3063 = vmatprep.subr.bf16.mxu0 0
      %3064 = vmatpush1.bf16.msra.mxu0 0
      %3065 = vmatprep.subr.bf16.mxu0 0
      %3066 = vmatpush1.bf16.msra.mxu0 0
      %3067 = vmatprep.subr.bf16.mxu0 0
      %3068 = vmatpush1.bf16.msra.mxu0 0
      %3069 = vmatprep.subr.bf16.mxu0 0
      %3070 = vmatpush1.bf16.msra.mxu0 0
      %3071 = vmatprep.mubr.bf16.mxu0 0
      %3072 = vmatmul.mubr.bf16.gmra.mrb[0].mxu0 %v2919
      %v3073 = vpop.f32.mrb[0].mxu0
      %v3074 = vadd.f32 0.0, %v3073
      %v3075 = vpop.f32.mrb[0].mxu0
      %v3076 = vpop.f32.mrb[0].mxu0
      %v3077 = vadd.f32 0.0, %v3076
      %v3078 = vpop.f32.mrb[0].mxu0
      %3079 = vmatprep.mubr.bf16.mxu0 0
      %3080 = vmatmul.mubr.bf16.gmra.mrb[0].mxu0 %v2936
      %v3081 = vpop.f32.mrb[0].mxu0
      %v3082 = vadd.f32 0.0, %v3081
      %v3083 = vpop.f32.mrb[0].mxu0
      %v3084 = vpop.f32.mrb[0].mxu0
      %v3085 = vadd.f32 0.0, %v3084
      %v3086 = vpop.f32.mrb[0].mxu0
      %3087 = vmatprep.mubr.bf16.mxu0 0
      %3088 = vmatmul.mubr.bf16.gmra.mrb[0].mxu0 %v2953
      %v3089 = vpop.f32.mrb[0].mxu0
      %v3090 = vadd.f32 0.0, %v3089
      %v3091 = vpop.f32.mrb[0].mxu0
      %v3092 = vpop.f32.mrb[0].mxu0
      %v3093 = vadd.f32 0.0, %v3092
      %v3094 = vpop.f32.mrb[0].mxu0
      %3095 = vmatprep.mubr.bf16.mxu0 0
      %3096 = vmatmul.mubr.bf16.gmra.mrb[0].mxu0 %v2970
      %v3097 = vpop.f32.mrb[0].mxu0
      %v3098 = vadd.f32 0.0, %v3097
      %v3099 = vpop.f32.mrb[0].mxu0
      %v3100 = vpop.f32.mrb[0].mxu0
      %v3101 = vadd.f32 0.0, %v3100
      %v3102 = vpop.f32.mrb[0].mxu0
      %3103 = vdwg.mxu0
      %v3104 = vadd.f32 %v2869, %v3074
      %v3105 = vadd.f32 %v2872, %v3077
      %v3106 = vadd.f32 %v2877, %v3082
      %v3107 = vadd.f32 %v2880, %v3085
      %v3108 = vadd.f32 %v2885, %v3090
      %v3109 = vadd.f32 %v2888, %v3093
      %v3110 = vadd.f32 %v2893, %v3098
      %v3111 = vadd.f32 %v2896, %v3101
      %s3112 = scalar_lea.vmem [#allocation2], 80
      %v3113 = vld [vmem:[%s3112] sm:$0xf8]
      %v3114 = vld [vmem:[%s3112 + $0x8] sm:$0xf]
      %v3115 = vld [vmem:[%s3112 + $0x10] sm:$0xf8]
      %v3116 = vld [vmem:[%s3112 + $0x18] sm:$0xf]
      %v3117 = vld [vmem:[%s3112 + $0x20] sm:$0xf8]
      %v3118 = vld [vmem:[%s3112 + $0x28] sm:$0xf]
      %v3119 = vld [vmem:[%s3112 + $0x30] sm:$0xf8]
      %v3120 = vld [vmem:[%s3112 + $0x38] sm:$0xf]
      %v3122 = vshrl.u32 %v3113, 16
      %v3124 = vrot.slane %v3122, 3
      %v3125 = vshll.u32 %v3113, 16
      %v3127 = vrot.slane %v3125, 4
      %v3128 = vor.u32 %v3124, %v3127
      %v3130 = vshrl.u32 %v3114, 16
      %v3132 = vrot.slane %v3130, 3
      %v3133 = vshll.u32 %v3114, 16
      %v3135 = vrot.slane %v3133, 4
      %v3136 = vor.u32 %v3132, %v3135
      %v3137 = vsel %vm683, %v3128, %v3136
      %v3139 = vshrl.u32 %v3115, 16
      %v3141 = vrot.slane %v3139, 3
      %v3142 = vshll.u32 %v3115, 16
      %v3144 = vrot.slane %v3142, 4
      %v3145 = vor.u32 %v3141, %v3144
      %v3147 = vshrl.u32 %v3116, 16
      %v3149 = vrot.slane %v3147, 3
      %v3150 = vshll.u32 %v3116, 16
      %v3152 = vrot.slane %v3150, 4
      %v3153 = vor.u32 %v3149, %v3152
      %v3154 = vsel %vm683, %v3145, %v3153
      %v3156 = vshrl.u32 %v3117, 16
      %v3158 = vrot.slane %v3156, 3
      %v3159 = vshll.u32 %v3117, 16
      %v3161 = vrot.slane %v3159, 4
      %v3162 = vor.u32 %v3158, %v3161
      %v3164 = vshrl.u32 %v3118, 16
      %v3166 = vrot.slane %v3164, 3
      %v3167 = vshll.u32 %v3118, 16
      %v3169 = vrot.slane %v3167, 4
      %v3170 = vor.u32 %v3166, %v3169
      %v3171 = vsel %vm683, %v3162, %v3170
      %v3173 = vshrl.u32 %v3119, 16
      %v3175 = vrot.slane %v3173, 3
      %v3176 = vshll.u32 %v3119, 16
      %v3178 = vrot.slane %v3176, 4
      %v3179 = vor.u32 %v3175, %v3178
      %v3181 = vshrl.u32 %v3120, 16
      %v3183 = vrot.slane %v3181, 3
      %v3184 = vshll.u32 %v3120, 16
      %v3186 = vrot.slane %v3184, 4
      %v3187 = vor.u32 %v3183, %v3186
      %v3188 = vsel %vm683, %v3179, %v3187
      %v3193 = vld [vmem:[%s1339] sm:$0xf]
      %v3194 = vld [vmem:[%s1339 + $0x4] sm:$0xf]
      %v3195 = vld [vmem:[%s1339 + $0x8] sm:$0xf]
      %v3196 = vld [vmem:[%s1339 + $0xc] sm:$0xf]
      %v3197 = vld [vmem:[%s1339 + $0x10] sm:$0xf]
      %v3198 = vld [vmem:[%s1339 + $0x14] sm:$0xf]
      %v3199 = vld [vmem:[%s1339 + $0x18] sm:$0xf]
      %v3200 = vld [vmem:[%s1339 + $0x1c] sm:$0xf]
      %v3201 = vld [vmem:[%s1339 + $0x20] sm:$0xf]
      %v3202 = vld [vmem:[%s1339 + $0x24] sm:$0xf]
      %v3203 = vld [vmem:[%s1339 + $0x28] sm:$0xf]
      %v3204 = vld [vmem:[%s1339 + $0x2c] sm:$0xf]
      %v3205 = vld [vmem:[%s1339 + $0x30] sm:$0xf]
      %v3206 = vld [vmem:[%s1339 + $0x34] sm:$0xf]
      %v3207 = vld [vmem:[%s1339 + $0x38] sm:$0xf]
      %v3208 = vld [vmem:[%s1339 + $0x3c] sm:$0xf]
      %v3225 = vunpack.c.l.b16 %v3193
      %v3226 = vunpack.c.l.b16 %v3194
      %v3227 = vunpack.c.l.b16 %v3195
      %v3228 = vunpack.c.l.b16 %v3196
      %v3229 = vunpack.c.l.b16 %v3197
      %v3230 = vunpack.c.l.b16 %v3198
      %v3231 = vunpack.c.l.b16 %v3199
      %v3232 = vunpack.c.l.b16 %v3200
      %v3233 = vunpack.c.l.b16 %v3201
      %v3234 = vunpack.c.l.b16 %v3202
      %v3235 = vunpack.c.l.b16 %v3203
      %v3236 = vunpack.c.l.b16 %v3204
      %v3237 = vunpack.c.l.b16 %v3205
      %v3238 = vunpack.c.l.b16 %v3206
      %v3239 = vunpack.c.l.b16 %v3207
      %v3240 = vunpack.c.l.b16 %v3208
      %v3241 = vpack.c.b16 %v3226, %v3225
      %v3242 = vpack.c.b16 %v3228, %v3227
      %v3243 = vpack.c.b16 %v3230, %v3229
      %v3244 = vpack.c.b16 %v3232, %v3231
      %v3245 = vpack.c.b16 %v3234, %v3233
      %v3246 = vpack.c.b16 %v3236, %v3235
      %v3247 = vpack.c.b16 %v3238, %v3237
      %v3248 = vpack.c.b16 %v3240, %v3239
      %3257 = vmatprep.subr.bf16.mxu0 0
      %3258 = vmatpush1.bf16.msra.mxu0 %v3241
      %3259 = vmatprep.subr.bf16.mxu0 0
      %3260 = vmatpush1.bf16.msra.mxu0 %v3242
      %3261 = vmatprep.subr.bf16.mxu0 0
      %3262 = vmatpush1.bf16.msra.mxu0 %v3243
      %3263 = vmatprep.subr.bf16.mxu0 0
      %3264 = vmatpush1.bf16.msra.mxu0 %v3244
      %3265 = vmatprep.subr.bf16.mxu0 0
      %3266 = vmatpush1.bf16.msra.mxu0 %v3245
      %3267 = vmatprep.subr.bf16.mxu0 0
      %3268 = vmatpush1.bf16.msra.mxu0 %v3246
      %3269 = vmatprep.subr.bf16.mxu0 0
      %3270 = vmatpush1.bf16.msra.mxu0 %v3247
      %3271 = vmatprep.subr.bf16.mxu0 0
      %3272 = vmatpush1.bf16.msra.mxu0 %v3248
      %3273 = vmatprep.subr.bf16.mxu0 0
      %3274 = vmatpush1.bf16.msra.mxu0 0
      %3275 = vmatprep.subr.bf16.mxu0 0
      %3276 = vmatpush1.bf16.msra.mxu0 0
      %3277 = vmatprep.subr.bf16.mxu0 0
      %3278 = vmatpush1.bf16.msra.mxu0 0
      %3279 = vmatprep.subr.bf16.mxu0 0
      %3280 = vmatpush1.bf16.msra.mxu0 0
      %3281 = vmatprep.subr.bf16.mxu0 0
      %3282 = vmatpush1.bf16.msra.mxu0 0
      %3283 = vmatprep.subr.bf16.mxu0 0
      %3284 = vmatpush1.bf16.msra.mxu0 0
      %3285 = vmatprep.subr.bf16.mxu0 0
      %3286 = vmatpush1.bf16.msra.mxu0 0
      %3287 = vmatprep.subr.bf16.mxu0 0
      %3288 = vmatpush1.bf16.msra.mxu0 0
      %3289 = vmatprep.mubr.bf16.mxu0 0
      %3290 = vmatmul.mubr.bf16.gmra.mrb[0].mxu0 %v3137
      %v3291 = vpop.f32.mrb[0].mxu0
      %v3292 = vadd.f32 0.0, %v3291
      %v3293 = vpop.f32.mrb[0].mxu0
      %v3294 = vpop.f32.mrb[0].mxu0
      %v3295 = vadd.f32 0.0, %v3294
      %v3296 = vpop.f32.mrb[0].mxu0
      %3297 = vmatprep.mubr.bf16.mxu0 0
      %3298 = vmatmul.mubr.bf16.gmra.mrb[0].mxu0 %v3154
      %v3299 = vpop.f32.mrb[0].mxu0
      %v3300 = vadd.f32 0.0, %v3299
      %v3301 = vpop.f32.mrb[0].mxu0
      %v3302 = vpop.f32.mrb[0].mxu0
      %v3303 = vadd.f32 0.0, %v3302
      %v3304 = vpop.f32.mrb[0].mxu0
      %3305 = vmatprep.mubr.bf16.mxu0 0
      %3306 = vmatmul.mubr.bf16.gmra.mrb[0].mxu0 %v3171
      %v3307 = vpop.f32.mrb[0].mxu0
      %v3308 = vadd.f32 0.0, %v3307
      %v3309 = vpop.f32.mrb[0].mxu0
      %v3310 = vpop.f32.mrb[0].mxu0
      %v3311 = vadd.f32 0.0, %v3310
      %v3312 = vpop.f32.mrb[0].mxu0
      %3313 = vmatprep.mubr.bf16.mxu0 0
      %3314 = vmatmul.mubr.bf16.gmra.mrb[0].mxu0 %v3188
      %v3315 = vpop.f32.mrb[0].mxu0
      %v3316 = vadd.f32 0.0, %v3315
      %v3317 = vpop.f32.mrb[0].mxu0
      %v3318 = vpop.f32.mrb[0].mxu0
      %v3319 = vadd.f32 0.0, %v3318
      %v3320 = vpop.f32.mrb[0].mxu0
      %3321 = vdwg.mxu0
      %v3322 = vadd.f32 %v3104, %v3292
      %v3323 = vadd.f32 %v3105, %v3295
      %v3324 = vadd.f32 %v3106, %v3300
      %v3325 = vadd.f32 %v3107, %v3303
      %v3326 = vadd.f32 %v3108, %v3308
      %v3327 = vadd.f32 %v3109, %v3311
      %v3328 = vadd.f32 %v3110, %v3316
      %v3329 = vadd.f32 %v3111, %v3319
      %v3330 = vld [vmem:[%s3112] sm:$0xf0]
      %v3331 = vld [vmem:[%s3112 + $0x10] sm:$0xf0]
      %v3332 = vld [vmem:[%s3112 + $0x20] sm:$0xf0]
      %v3333 = vld [vmem:[%s3112 + $0x30] sm:$0xf0]
      %v3342 = vrot.slane %v3330, 4
      %v3343 = vrot.slane %v3114, 4
      %v3344 = vsel %vm784, %v3342, %v3343
      %v3345 = vrot.slane %v3331, 4
      %v3346 = vrot.slane %v3116, 4
      %v3347 = vsel %vm784, %v3345, %v3346
      %v3348 = vrot.slane %v3332, 4
      %v3349 = vrot.slane %v3118, 4
      %v3350 = vsel %vm784, %v3348, %v3349
      %v3351 = vrot.slane %v3333, 4
      %v3352 = vrot.slane %v3120, 4
      %v3353 = vsel %vm784, %v3351, %v3352
      %v3358 = vld [vmem:[%s1505] sm:$0xf]
      %v3359 = vld [vmem:[%s1505 + $0x4] sm:$0xf]
      %v3360 = vld [vmem:[%s1505 + $0x8] sm:$0xf]
      %v3361 = vld [vmem:[%s1505 + $0xc] sm:$0xf]
      %v3362 = vld [vmem:[%s1505 + $0x10] sm:$0xf]
      %v3363 = vld [vmem:[%s1505 + $0x14] sm:$0xf]
      %v3364 = vld [vmem:[%s1505 + $0x18] sm:$0xf]
      %v3365 = vld [vmem:[%s1505 + $0x1c] sm:$0xf]
      %v3366 = vld [vmem:[%s1505 + $0x20] sm:$0xf]
      %v3367 = vld [vmem:[%s1505 + $0x24] sm:$0xf]
      %v3368 = vld [vmem:[%s1505 + $0x28] sm:$0xf]
      %v3369 = vld [vmem:[%s1505 + $0x2c] sm:$0xf]
      %v3370 = vld [vmem:[%s1505 + $0x30] sm:$0xf]
      %v3371 = vld [vmem:[%s1505 + $0x34] sm:$0xf]
      %v3372 = vld [vmem:[%s1505 + $0x38] sm:$0xf]
      %v3373 = vld [vmem:[%s1505 + $0x3c] sm:$0xf]
      %v3390 = vunpack.c.l.b16 %v3358
      %v3391 = vunpack.c.l.b16 %v3359
      %v3392 = vunpack.c.l.b16 %v3360
      %v3393 = vunpack.c.l.b16 %v3361
      %v3394 = vunpack.c.l.b16 %v3362
      %v3395 = vunpack.c.l.b16 %v3363
      %v3396 = vunpack.c.l.b16 %v3364
      %v3397 = vunpack.c.l.b16 %v3365
      %v3398 = vunpack.c.l.b16 %v3366
      %v3399 = vunpack.c.l.b16 %v3367
      %v3400 = vunpack.c.l.b16 %v3368
      %v3401 = vunpack.c.l.b16 %v3369
      %v3402 = vunpack.c.l.b16 %v3370
      %v3403 = vunpack.c.l.b16 %v3371
      %v3404 = vunpack.c.l.b16 %v3372
      %v3405 = vunpack.c.l.b16 %v3373
      %v3406 = vpack.c.b16 %v3391, %v3390
      %v3407 = vpack.c.b16 %v3393, %v3392
      %v3408 = vpack.c.b16 %v3395, %v3394
      %v3409 = vpack.c.b16 %v3397, %v3396
      %v3410 = vpack.c.b16 %v3399, %v3398
      %v3411 = vpack.c.b16 %v3401, %v3400
      %v3412 = vpack.c.b16 %v3403, %v3402
      %v3413 = vpack.c.b16 %v3405, %v3404
      %3422 = vmatprep.subr.bf16.mxu0 0
      %3423 = vmatpush1.bf16.msra.mxu0 %v3406
      %3424 = vmatprep.subr.bf16.mxu0 0
      %3425 = vmatpush1.bf16.msra.mxu0 %v3407
      %3426 = vmatprep.subr.bf16.mxu0 0
      %3427 = vmatpush1.bf16.msra.mxu0 %v3408
      %3428 = vmatprep.subr.bf16.mxu0 0
      %3429 = vmatpush1.bf16.msra.mxu0 %v3409
      %3430 = vmatprep.subr.bf16.mxu0 0
      %3431 = vmatpush1.bf16.msra.mxu0 %v3410
      %3432 = vmatprep.subr.bf16.mxu0 0
      %3433 = vmatpush1.bf16.msra.mxu0 %v3411
      %3434 = vmatprep.subr.bf16.mxu0 0
      %3435 = vmatpush1.bf16.msra.mxu0 %v3412
      %3436 = vmatprep.subr.bf16.mxu0 0
      %3437 = vmatpush1.bf16.msra.mxu0 %v3413
      %3438 = vmatprep.subr.bf16.mxu0 0
      %3439 = vmatpush1.bf16.msra.mxu0 0
      %3440 = vmatprep.subr.bf16.mxu0 0
      %3441 = vmatpush1.bf16.msra.mxu0 0
      %3442 = vmatprep.subr.bf16.mxu0 0
      %3443 = vmatpush1.bf16.msra.mxu0 0
      %3444 = vmatprep.subr.bf16.mxu0 0
      %3445 = vmatpush1.bf16.msra.mxu0 0
      %3446 = vmatprep.subr.bf16.mxu0 0
      %3447 = vmatpush1.bf16.msra.mxu0 0
      %3448 = vmatprep.subr.bf16.mxu0 0
      %3449 = vmatpush1.bf16.msra.mxu0 0
      %3450 = vmatprep.subr.bf16.mxu0 0
      %3451 = vmatpush1.bf16.msra.mxu0 0
      %3452 = vmatprep.subr.bf16.mxu0 0
      %3453 = vmatpush1.bf16.msra.mxu0 0
      %3454 = vmatprep.mubr.bf16.mxu0 0
      %3455 = vmatmul.mubr.bf16.gmra.mrb[0].mxu0 %v3344
      %v3456 = vpop.f32.mrb[0].mxu0
      %v3457 = vadd.f32 0.0, %v3456
      %v3458 = vpop.f32.mrb[0].mxu0
      %v3459 = vpop.f32.mrb[0].mxu0
      %v3460 = vadd.f32 0.0, %v3459
      %v3461 = vpop.f32.mrb[0].mxu0
      %3462 = vmatprep.mubr.bf16.mxu0 0
      %3463 = vmatmul.mubr.bf16.gmra.mrb[0].mxu0 %v3347
      %v3464 = vpop.f32.mrb[0].mxu0
      %v3465 = vadd.f32 0.0, %v3464
      %v3466 = vpop.f32.mrb[0].mxu0
      %v3467 = vpop.f32.mrb[0].mxu0
      %v3468 = vadd.f32 0.0, %v3467
      %v3469 = vpop.f32.mrb[0].mxu0
      %3470 = vmatprep.mubr.bf16.mxu0 0
      %3471 = vmatmul.mubr.bf16.gmra.mrb[0].mxu0 %v3350
      %v3472 = vpop.f32.mrb[0].mxu0
      %v3473 = vadd.f32 0.0, %v3472
      %v3474 = vpop.f32.mrb[0].mxu0
      %v3475 = vpop.f32.mrb[0].mxu0
      %v3476 = vadd.f32 0.0, %v3475
      %v3477 = vpop.f32.mrb[0].mxu0
      %3478 = vmatprep.mubr.bf16.mxu0 0
      %3479 = vmatmul.mubr.bf16.gmra.mrb[0].mxu0 %v3353
      %v3480 = vpop.f32.mrb[0].mxu0
      %v3481 = vadd.f32 0.0, %v3480
      %v3482 = vpop.f32.mrb[0].mxu0
      %v3483 = vpop.f32.mrb[0].mxu0
      %v3484 = vadd.f32 0.0, %v3483
      %v3485 = vpop.f32.mrb[0].mxu0
      %3486 = vdwg.mxu0
      %v3487 = vadd.f32 %v3322, %v3457
      %v3488 = vadd.f32 %v3323, %v3460
      %v3489 = vadd.f32 %v3324, %v3465
      %v3490 = vadd.f32 %v3325, %v3468
      %v3491 = vadd.f32 %v3326, %v3473
      %v3492 = vadd.f32 %v3327, %v3476
      %v3493 = vadd.f32 %v3328, %v3481
      %v3494 = vadd.f32 %v3329, %v3484
      %v3495 = vld [vmem:[%s3112 + $0x8] sm:$0x1f]
      %v3496 = vld [vmem:[%s3112 + $0x18] sm:$0x1f]
      %v3497 = vld [vmem:[%s3112 + $0x28] sm:$0x1f]
      %v3498 = vld [vmem:[%s3112 + $0x38] sm:$0x1f]
      %v3500 = vshrl.u32 %v3330, 16
      %v3502 = vrot.slane %v3500, 4
      %v3503 = vshll.u32 %v3330, 16
      %v3505 = vrot.slane %v3503, 5
      %v3506 = vor.u32 %v3502, %v3505
      %v3508 = vshrl.u32 %v3495, 16
      %v3510 = vrot.slane %v3508, 4
      %v3511 = vshll.u32 %v3495, 16
      %v3513 = vrot.slane %v3511, 5
      %v3514 = vor.u32 %v3510, %v3513
      %v3515 = vsel %vm1048, %v3506, %v3514
      %v3517 = vshrl.u32 %v3331, 16
      %v3519 = vrot.slane %v3517, 4
      %v3520 = vshll.u32 %v3331, 16
      %v3522 = vrot.slane %v3520, 5
      %v3523 = vor.u32 %v3519, %v3522
      %v3525 = vshrl.u32 %v3496, 16
      %v3527 = vrot.slane %v3525, 4
      %v3528 = vshll.u32 %v3496, 16
      %v3530 = vrot.slane %v3528, 5
      %v3531 = vor.u32 %v3527, %v3530
      %v3532 = vsel %vm1048, %v3523, %v3531
      %v3534 = vshrl.u32 %v3332, 16
      %v3536 = vrot.slane %v3534, 4
      %v3537 = vshll.u32 %v3332, 16
      %v3539 = vrot.slane %v3537, 5
      %v3540 = vor.u32 %v3536, %v3539
      %v3542 = vshrl.u32 %v3497, 16
      %v3544 = vrot.slane %v3542, 4
      %v3545 = vshll.u32 %v3497, 16
      %v3547 = vrot.slane %v3545, 5
      %v3548 = vor.u32 %v3544, %v3547
      %v3549 = vsel %vm1048, %v3540, %v3548
      %v3551 = vshrl.u32 %v3333, 16
      %v3553 = vrot.slane %v3551, 4
      %v3554 = vshll.u32 %v3333, 16
      %v3556 = vrot.slane %v3554, 5
      %v3557 = vor.u32 %v3553, %v3556
      %v3559 = vshrl.u32 %v3498, 16
      %v3561 = vrot.slane %v3559, 4
      %v3562 = vshll.u32 %v3498, 16
      %v3564 = vrot.slane %v3562, 5
      %v3565 = vor.u32 %v3561, %v3564
      %v3566 = vsel %vm1048, %v3557, %v3565
      %v3571 = vld [vmem:[%s1719] sm:$0xf]
      %v3572 = vld [vmem:[%s1719 + $0x4] sm:$0xf]
      %v3573 = vld [vmem:[%s1719 + $0x8] sm:$0xf]
      %v3574 = vld [vmem:[%s1719 + $0xc] sm:$0xf]
      %v3575 = vld [vmem:[%s1719 + $0x10] sm:$0xf]
      %v3576 = vld [vmem:[%s1719 + $0x14] sm:$0xf]
      %v3577 = vld [vmem:[%s1719 + $0x18] sm:$0xf]
      %v3578 = vld [vmem:[%s1719 + $0x1c] sm:$0xf]
      %v3579 = vld [vmem:[%s1719 + $0x20] sm:$0xf]
      %v3580 = vld [vmem:[%s1719 + $0x24] sm:$0xf]
      %v3581 = vld [vmem:[%s1719 + $0x28] sm:$0xf]
      %v3582 = vld [vmem:[%s1719 + $0x2c] sm:$0xf]
      %v3583 = vld [vmem:[%s1719 + $0x30] sm:$0xf]
      %v3584 = vld [vmem:[%s1719 + $0x34] sm:$0xf]
      %v3585 = vld [vmem:[%s1719 + $0x38] sm:$0xf]
      %v3586 = vld [vmem:[%s1719 + $0x3c] sm:$0xf]
      %v3603 = vunpack.c.l.b16 %v3571
      %v3604 = vunpack.c.l.b16 %v3572
      %v3605 = vunpack.c.l.b16 %v3573
      %v3606 = vunpack.c.l.b16 %v3574
      %v3607 = vunpack.c.l.b16 %v3575
      %v3608 = vunpack.c.l.b16 %v3576
      %v3609 = vunpack.c.l.b16 %v3577
      %v3610 = vunpack.c.l.b16 %v3578
      %v3611 = vunpack.c.l.b16 %v3579
      %v3612 = vunpack.c.l.b16 %v3580
      %v3613 = vunpack.c.l.b16 %v3581
      %v3614 = vunpack.c.l.b16 %v3582
      %v3615 = vunpack.c.l.b16 %v3583
      %v3616 = vunpack.c.l.b16 %v3584
      %v3617 = vunpack.c.l.b16 %v3585
      %v3618 = vunpack.c.l.b16 %v3586
      %v3619 = vpack.c.b16 %v3604, %v3603
      %v3620 = vpack.c.b16 %v3606, %v3605
      %v3621 = vpack.c.b16 %v3608, %v3607
      %v3622 = vpack.c.b16 %v3610, %v3609
      %v3623 = vpack.c.b16 %v3612, %v3611
      %v3624 = vpack.c.b16 %v3614, %v3613
      %v3625 = vpack.c.b16 %v3616, %v3615
      %v3626 = vpack.c.b16 %v3618, %v3617
      %3635 = vmatprep.subr.bf16.mxu0 0
      %3636 = vmatpush1.bf16.msra.mxu0 %v3619
      %3637 = vmatprep.subr.bf16.mxu0 0
      %3638 = vmatpush1.bf16.msra.mxu0 %v3620
      %3639 = vmatprep.subr.bf16.mxu0 0
      %3640 = vmatpush1.bf16.msra.mxu0 %v3621
      %3641 = vmatprep.subr.bf16.mxu0 0
      %3642 = vmatpush1.bf16.msra.mxu0 %v3622
      %3643 = vmatprep.subr.bf16.mxu0 0
      %3644 = vmatpush1.bf16.msra.mxu0 %v3623
      %3645 = vmatprep.subr.bf16.mxu0 0
      %3646 = vmatpush1.bf16.msra.mxu0 %v3624
      %3647 = vmatprep.subr.bf16.mxu0 0
      %3648 = vmatpush1.bf16.msra.mxu0 %v3625
      %3649 = vmatprep.subr.bf16.mxu0 0
      %3650 = vmatpush1.bf16.msra.mxu0 %v3626
      %3651 = vmatprep.subr.bf16.mxu0 0
      %3652 = vmatpush1.bf16.msra.mxu0 0
      %3653 = vmatprep.subr.bf16.mxu0 0
      %3654 = vmatpush1.bf16.msra.mxu0 0
      %3655 = vmatprep.subr.bf16.mxu0 0
      %3656 = vmatpush1.bf16.msra.mxu0 0
      %3657 = vmatprep.subr.bf16.mxu0 0
      %3658 = vmatpush1.bf16.msra.mxu0 0
      %3659 = vmatprep.subr.bf16.mxu0 0
      %3660 = vmatpush1.bf16.msra.mxu0 0
      %3661 = vmatprep.subr.bf16.mxu0 0
      %3662 = vmatpush1.bf16.msra.mxu0 0
      %3663 = vmatprep.subr.bf16.mxu0 0
      %3664 = vmatpush1.bf16.msra.mxu0 0
      %3665 = vmatprep.subr.bf16.mxu0 0
      %3666 = vmatpush1.bf16.msra.mxu0 0
      %3667 = vmatprep.mubr.bf16.mxu0 0
      %3668 = vmatmul.mubr.bf16.gmra.mrb[0].mxu0 %v3515
      %v3669 = vpop.f32.mrb[0].mxu0
      %v3670 = vadd.f32 0.0, %v3669
      %v3671 = vpop.f32.mrb[0].mxu0
      %v3672 = vpop.f32.mrb[0].mxu0
      %v3673 = vadd.f32 0.0, %v3672
      %v3674 = vpop.f32.mrb[0].mxu0
      %3675 = vmatprep.mubr.bf16.mxu0 0
      %3676 = vmatmul.mubr.bf16.gmra.mrb[0].mxu0 %v3532
      %v3677 = vpop.f32.mrb[0].mxu0
      %v3678 = vadd.f32 0.0, %v3677
      %v3679 = vpop.f32.mrb[0].mxu0
      %v3680 = vpop.f32.mrb[0].mxu0
      %v3681 = vadd.f32 0.0, %v3680
      %v3682 = vpop.f32.mrb[0].mxu0
      %3683 = vmatprep.mubr.bf16.mxu0 0
      %3684 = vmatmul.mubr.bf16.gmra.mrb[0].mxu0 %v3549
      %v3685 = vpop.f32.mrb[0].mxu0
      %v3686 = vadd.f32 0.0, %v3685
      %v3687 = vpop.f32.mrb[0].mxu0
      %v3688 = vpop.f32.mrb[0].mxu0
      %v3689 = vadd.f32 0.0, %v3688
      %v3690 = vpop.f32.mrb[0].mxu0
      %3691 = vmatprep.mubr.bf16.mxu0 0
      %3692 = vmatmul.mubr.bf16.gmra.mrb[0].mxu0 %v3566
      %v3693 = vpop.f32.mrb[0].mxu0
      %v3694 = vadd.f32 0.0, %v3693
      %v3695 = vpop.f32.mrb[0].mxu0
      %v3696 = vpop.f32.mrb[0].mxu0
      %v3697 = vadd.f32 0.0, %v3696
      %v3698 = vpop.f32.mrb[0].mxu0
      %3699 = vdwg.mxu0
      %v3700 = vadd.f32 %v3487, %v3670
      %v3701 = vadd.f32 %v3488, %v3673
      %v3702 = vadd.f32 %v3489, %v3678
      %v3703 = vadd.f32 %v3490, %v3681
      %v3704 = vadd.f32 %v3491, %v3686
      %v3705 = vadd.f32 %v3492, %v3689
      %v3706 = vadd.f32 %v3493, %v3694
      %v3707 = vadd.f32 %v3494, %v3697
      %s3708 = scalar_lea.vmem [#allocation2], 96
      %v3709 = vld [vmem:[%s3708] sm:$0xf8]
      %v3710 = vld [vmem:[%s3708 + $0x8] sm:$0xf]
      %v3711 = vld [vmem:[%s3708 + $0x10] sm:$0xf8]
      %v3712 = vld [vmem:[%s3708 + $0x18] sm:$0xf]
      %v3713 = vld [vmem:[%s3708 + $0x20] sm:$0xf8]
      %v3714 = vld [vmem:[%s3708 + $0x28] sm:$0xf]
      %v3715 = vld [vmem:[%s3708 + $0x30] sm:$0xf8]
      %v3716 = vld [vmem:[%s3708 + $0x38] sm:$0xf]
      %v3718 = vshrl.u32 %v3709, 16
      %v3720 = vrot.slane %v3718, 3
      %v3721 = vshll.u32 %v3709, 16
      %v3723 = vrot.slane %v3721, 4
      %v3724 = vor.u32 %v3720, %v3723
      %v3726 = vshrl.u32 %v3710, 16
      %v3728 = vrot.slane %v3726, 3
      %v3729 = vshll.u32 %v3710, 16
      %v3731 = vrot.slane %v3729, 4
      %v3732 = vor.u32 %v3728, %v3731
      %v3733 = vsel %vm683, %v3724, %v3732
      %v3735 = vshrl.u32 %v3711, 16
      %v3737 = vrot.slane %v3735, 3
      %v3738 = vshll.u32 %v3711, 16
      %v3740 = vrot.slane %v3738, 4
      %v3741 = vor.u32 %v3737, %v3740
      %v3743 = vshrl.u32 %v3712, 16
      %v3745 = vrot.slane %v3743, 3
      %v3746 = vshll.u32 %v3712, 16
      %v3748 = vrot.slane %v3746, 4
      %v3749 = vor.u32 %v3745, %v3748
      %v3750 = vsel %vm683, %v3741, %v3749
      %v3752 = vshrl.u32 %v3713, 16
      %v3754 = vrot.slane %v3752, 3
      %v3755 = vshll.u32 %v3713, 16
      %v3757 = vrot.slane %v3755, 4
      %v3758 = vor.u32 %v3754, %v3757
      %v3760 = vshrl.u32 %v3714, 16
      %v3762 = vrot.slane %v3760, 3
      %v3763 = vshll.u32 %v3714, 16
      %v3765 = vrot.slane %v3763, 4
      %v3766 = vor.u32 %v3762, %v3765
      %v3767 = vsel %vm683, %v3758, %v3766
      %v3769 = vshrl.u32 %v3715, 16
      %v3771 = vrot.slane %v3769, 3
      %v3772 = vshll.u32 %v3715, 16
      %v3774 = vrot.slane %v3772, 4
      %v3775 = vor.u32 %v3771, %v3774
      %v3777 = vshrl.u32 %v3716, 16
      %v3779 = vrot.slane %v3777, 3
      %v3780 = vshll.u32 %v3716, 16
      %v3782 = vrot.slane %v3780, 4
      %v3783 = vor.u32 %v3779, %v3782
      %v3784 = vsel %vm683, %v3775, %v3783
      %v3789 = vld [vmem:[%s1938] sm:$0xf]
      %v3790 = vld [vmem:[%s1938 + $0x4] sm:$0xf]
      %v3791 = vld [vmem:[%s1938 + $0x8] sm:$0xf]
      %v3792 = vld [vmem:[%s1938 + $0xc] sm:$0xf]
      %v3793 = vld [vmem:[%s1938 + $0x10] sm:$0xf]
      %v3794 = vld [vmem:[%s1938 + $0x14] sm:$0xf]
      %v3795 = vld [vmem:[%s1938 + $0x18] sm:$0xf]
      %v3796 = vld [vmem:[%s1938 + $0x1c] sm:$0xf]
      %v3797 = vld [vmem:[%s1938 + $0x20] sm:$0xf]
      %v3798 = vld [vmem:[%s1938 + $0x24] sm:$0xf]
      %v3799 = vld [vmem:[%s1938 + $0x28] sm:$0xf]
      %v3800 = vld [vmem:[%s1938 + $0x2c] sm:$0xf]
      %v3801 = vld [vmem:[%s1938 + $0x30] sm:$0xf]
      %v3802 = vld [vmem:[%s1938 + $0x34] sm:$0xf]
      %v3803 = vld [vmem:[%s1938 + $0x38] sm:$0xf]
      %v3804 = vld [vmem:[%s1938 + $0x3c] sm:$0xf]
      %v3821 = vunpack.c.l.b16 %v3789
      %v3822 = vunpack.c.l.b16 %v3790
      %v3823 = vunpack.c.l.b16 %v3791
      %v3824 = vunpack.c.l.b16 %v3792
      %v3825 = vunpack.c.l.b16 %v3793
      %v3826 = vunpack.c.l.b16 %v3794
      %v3827 = vunpack.c.l.b16 %v3795
      %v3828 = vunpack.c.l.b16 %v3796
      %v3829 = vunpack.c.l.b16 %v3797
      %v3830 = vunpack.c.l.b16 %v3798
      %v3831 = vunpack.c.l.b16 %v3799
      %v3832 = vunpack.c.l.b16 %v3800
      %v3833 = vunpack.c.l.b16 %v3801
      %v3834 = vunpack.c.l.b16 %v3802
      %v3835 = vunpack.c.l.b16 %v3803
      %v3836 = vunpack.c.l.b16 %v3804
      %v3837 = vpack.c.b16 %v3822, %v3821
      %v3838 = vpack.c.b16 %v3824, %v3823
      %v3839 = vpack.c.b16 %v3826, %v3825
      %v3840 = vpack.c.b16 %v3828, %v3827
      %v3841 = vpack.c.b16 %v3830, %v3829
      %v3842 = vpack.c.b16 %v3832, %v3831
      %v3843 = vpack.c.b16 %v3834, %v3833
      %v3844 = vpack.c.b16 %v3836, %v3835
      %3853 = vmatprep.subr.bf16.mxu0 0
      %3854 = vmatpush1.bf16.msra.mxu0 %v3837
      %3855 = vmatprep.subr.bf16.mxu0 0
      %3856 = vmatpush1.bf16.msra.mxu0 %v3838
      %3857 = vmatprep.subr.bf16.mxu0 0
      %3858 = vmatpush1.bf16.msra.mxu0 %v3839
      %3859 = vmatprep.subr.bf16.mxu0 0
      %3860 = vmatpush1.bf16.msra.mxu0 %v3840
      %3861 = vmatprep.subr.bf16.mxu0 0
      %3862 = vmatpush1.bf16.msra.mxu0 %v3841
      %3863 = vmatprep.subr.bf16.mxu0 0
      %3864 = vmatpush1.bf16.msra.mxu0 %v3842
      %3865 = vmatprep.subr.bf16.mxu0 0
      %3866 = vmatpush1.bf16.msra.mxu0 %v3843
      %3867 = vmatprep.subr.bf16.mxu0 0
      %3868 = vmatpush1.bf16.msra.mxu0 %v3844
      %3869 = vmatprep.subr.bf16.mxu0 0
      %3870 = vmatpush1.bf16.msra.mxu0 0
      %3871 = vmatprep.subr.bf16.mxu0 0
      %3872 = vmatpush1.bf16.msra.mxu0 0
      %3873 = vmatprep.subr.bf16.mxu0 0
      %3874 = vmatpush1.bf16.msra.mxu0 0
      %3875 = vmatprep.subr.bf16.mxu0 0
      %3876 = vmatpush1.bf16.msra.mxu0 0
      %3877 = vmatprep.subr.bf16.mxu0 0
      %3878 = vmatpush1.bf16.msra.mxu0 0
      %3879 = vmatprep.subr.bf16.mxu0 0
      %3880 = vmatpush1.bf16.msra.mxu0 0
      %3881 = vmatprep.subr.bf16.mxu0 0
      %3882 = vmatpush1.bf16.msra.mxu0 0
      %3883 = vmatprep.subr.bf16.mxu0 0
      %3884 = vmatpush1.bf16.msra.mxu0 0
      %3885 = vmatprep.mubr.bf16.mxu0 0
      %3886 = vmatmul.mubr.bf16.gmra.mrb[0].mxu0 %v3733
      %v3887 = vpop.f32.mrb[0].mxu0
      %v3888 = vadd.f32 0.0, %v3887
      %v3889 = vpop.f32.mrb[0].mxu0
      %v3890 = vpop.f32.mrb[0].mxu0
      %v3891 = vadd.f32 0.0, %v3890
      %v3892 = vpop.f32.mrb[0].mxu0
      %3893 = vmatprep.mubr.bf16.mxu0 0
      %3894 = vmatmul.mubr.bf16.gmra.mrb[0].mxu0 %v3750
      %v3895 = vpop.f32.mrb[0].mxu0
      %v3896 = vadd.f32 0.0, %v3895
      %v3897 = vpop.f32.mrb[0].mxu0
      %v3898 = vpop.f32.mrb[0].mxu0
      %v3899 = vadd.f32 0.0, %v3898
      %v3900 = vpop.f32.mrb[0].mxu0
      %3901 = vmatprep.mubr.bf16.mxu0 0
      %3902 = vmatmul.mubr.bf16.gmra.mrb[0].mxu0 %v3767
      %v3903 = vpop.f32.mrb[0].mxu0
      %v3904 = vadd.f32 0.0, %v3903
      %v3905 = vpop.f32.mrb[0].mxu0
      %v3906 = vpop.f32.mrb[0].mxu0
      %v3907 = vadd.f32 0.0, %v3906
      %v3908 = vpop.f32.mrb[0].mxu0
      %3909 = vmatprep.mubr.bf16.mxu0 0
      %3910 = vmatmul.mubr.bf16.gmra.mrb[0].mxu0 %v3784
      %v3911 = vpop.f32.mrb[0].mxu0
      %v3912 = vadd.f32 0.0, %v3911
      %v3913 = vpop.f32.mrb[0].mxu0
      %v3914 = vpop.f32.mrb[0].mxu0
      %v3915 = vadd.f32 0.0, %v3914
      %v3916 = vpop.f32.mrb[0].mxu0
      %3917 = vdwg.mxu0
      %v3918 = vadd.f32 %v3700, %v3888
      %v3919 = vadd.f32 %v3701, %v3891
      %v3920 = vadd.f32 %v3702, %v3896
      %v3921 = vadd.f32 %v3703, %v3899
      %v3922 = vadd.f32 %v3704, %v3904
      %v3923 = vadd.f32 %v3705, %v3907
      %v3924 = vadd.f32 %v3706, %v3912
      %v3925 = vadd.f32 %v3707, %v3915
      %v3926 = vld [vmem:[%s3708] sm:$0xf0]
      %v3927 = vld [vmem:[%s3708 + $0x10] sm:$0xf0]
      %v3928 = vld [vmem:[%s3708 + $0x20] sm:$0xf0]
      %v3929 = vld [vmem:[%s3708 + $0x30] sm:$0xf0]
      %v3938 = vrot.slane %v3926, 4
      %v3939 = vrot.slane %v3710, 4
      %v3940 = vsel %vm784, %v3938, %v3939
      %v3941 = vrot.slane %v3927, 4
      %v3942 = vrot.slane %v3712, 4
      %v3943 = vsel %vm784, %v3941, %v3942
      %v3944 = vrot.slane %v3928, 4
      %v3945 = vrot.slane %v3714, 4
      %v3946 = vsel %vm784, %v3944, %v3945
      %v3947 = vrot.slane %v3929, 4
      %v3948 = vrot.slane %v3716, 4
      %v3949 = vsel %vm784, %v3947, %v3948
      %v3954 = vld [vmem:[%s2104] sm:$0xf]
      %v3955 = vld [vmem:[%s2104 + $0x4] sm:$0xf]
      %v3956 = vld [vmem:[%s2104 + $0x8] sm:$0xf]
      %v3957 = vld [vmem:[%s2104 + $0xc] sm:$0xf]
      %v3958 = vld [vmem:[%s2104 + $0x10] sm:$0xf]
      %v3959 = vld [vmem:[%s2104 + $0x14] sm:$0xf]
      %v3960 = vld [vmem:[%s2104 + $0x18] sm:$0xf]
      %v3961 = vld [vmem:[%s2104 + $0x1c] sm:$0xf]
      %v3962 = vld [vmem:[%s2104 + $0x20] sm:$0xf]
      %v3963 = vld [vmem:[%s2104 + $0x24] sm:$0xf]
      %v3964 = vld [vmem:[%s2104 + $0x28] sm:$0xf]
      %v3965 = vld [vmem:[%s2104 + $0x2c] sm:$0xf]
      %v3966 = vld [vmem:[%s2104 + $0x30] sm:$0xf]
      %v3967 = vld [vmem:[%s2104 + $0x34] sm:$0xf]
      %v3968 = vld [vmem:[%s2104 + $0x38] sm:$0xf]
      %v3969 = vld [vmem:[%s2104 + $0x3c] sm:$0xf]
      %v3986 = vunpack.c.l.b16 %v3954
      %v3987 = vunpack.c.l.b16 %v3955
      %v3988 = vunpack.c.l.b16 %v3956
      %v3989 = vunpack.c.l.b16 %v3957
      %v3990 = vunpack.c.l.b16 %v3958
      %v3991 = vunpack.c.l.b16 %v3959
      %v3992 = vunpack.c.l.b16 %v3960
      %v3993 = vunpack.c.l.b16 %v3961
      %v3994 = vunpack.c.l.b16 %v3962
      %v3995 = vunpack.c.l.b16 %v3963
      %v3996 = vunpack.c.l.b16 %v3964
      %v3997 = vunpack.c.l.b16 %v3965
      %v3998 = vunpack.c.l.b16 %v3966
      %v3999 = vunpack.c.l.b16 %v3967
      %v4000 = vunpack.c.l.b16 %v3968
      %v4001 = vunpack.c.l.b16 %v3969
      %v4002 = vpack.c.b16 %v3987, %v3986
      %v4003 = vpack.c.b16 %v3989, %v3988
      %v4004 = vpack.c.b16 %v3991, %v3990
      %v4005 = vpack.c.b16 %v3993, %v3992
      %v4006 = vpack.c.b16 %v3995, %v3994
      %v4007 = vpack.c.b16 %v3997, %v3996
      %v4008 = vpack.c.b16 %v3999, %v3998
      %v4009 = vpack.c.b16 %v4001, %v4000
      %4018 = vmatprep.subr.bf16.mxu0 0
      %4019 = vmatpush1.bf16.msra.mxu0 %v4002
      %4020 = vmatprep.subr.bf16.mxu0 0
      %4021 = vmatpush1.bf16.msra.mxu0 %v4003
      %4022 = vmatprep.subr.bf16.mxu0 0
      %4023 = vmatpush1.bf16.msra.mxu0 %v4004
      %4024 = vmatprep.subr.bf16.mxu0 0
      %4025 = vmatpush1.bf16.msra.mxu0 %v4005
      %4026 = vmatprep.subr.bf16.mxu0 0
      %4027 = vmatpush1.bf16.msra.mxu0 %v4006
      %4028 = vmatprep.subr.bf16.mxu0 0
      %4029 = vmatpush1.bf16.msra.mxu0 %v4007
      %4030 = vmatprep.subr.bf16.mxu0 0
      %4031 = vmatpush1.bf16.msra.mxu0 %v4008
      %4032 = vmatprep.subr.bf16.mxu0 0
      %4033 = vmatpush1.bf16.msra.mxu0 %v4009
      %4034 = vmatprep.subr.bf16.mxu0 0
      %4035 = vmatpush1.bf16.msra.mxu0 0
      %4036 = vmatprep.subr.bf16.mxu0 0
      %4037 = vmatpush1.bf16.msra.mxu0 0
      %4038 = vmatprep.subr.bf16.mxu0 0
      %4039 = vmatpush1.bf16.msra.mxu0 0
      %4040 = vmatprep.subr.bf16.mxu0 0
      %4041 = vmatpush1.bf16.msra.mxu0 0
      %4042 = vmatprep.subr.bf16.mxu0 0
      %4043 = vmatpush1.bf16.msra.mxu0 0
      %4044 = vmatprep.subr.bf16.mxu0 0
      %4045 = vmatpush1.bf16.msra.mxu0 0
      %4046 = vmatprep.subr.bf16.mxu0 0
      %4047 = vmatpush1.bf16.msra.mxu0 0
      %4048 = vmatprep.subr.bf16.mxu0 0
      %4049 = vmatpush1.bf16.msra.mxu0 0
      %4050 = vmatprep.mubr.bf16.mxu0 0
      %4051 = vmatmul.mubr.bf16.gmra.mrb[0].mxu0 %v3940
      %v4052 = vpop.f32.mrb[0].mxu0
      %v4053 = vadd.f32 0.0, %v4052
      %v4054 = vpop.f32.mrb[0].mxu0
      %v4055 = vpop.f32.mrb[0].mxu0
      %v4056 = vadd.f32 0.0, %v4055
      %v4057 = vpop.f32.mrb[0].mxu0
      %4058 = vmatprep.mubr.bf16.mxu0 0
      %4059 = vmatmul.mubr.bf16.gmra.mrb[0].mxu0 %v3943
      %v4060 = vpop.f32.mrb[0].mxu0
      %v4061 = vadd.f32 0.0, %v4060
      %v4062 = vpop.f32.mrb[0].mxu0
      %v4063 = vpop.f32.mrb[0].mxu0
      %v4064 = vadd.f32 0.0, %v4063
      %v4065 = vpop.f32.mrb[0].mxu0
      %4066 = vmatprep.mubr.bf16.mxu0 0
      %4067 = vmatmul.mubr.bf16.gmra.mrb[0].mxu0 %v3946
      %v4068 = vpop.f32.mrb[0].mxu0
      %v4069 = vadd.f32 0.0, %v4068
      %v4070 = vpop.f32.mrb[0].mxu0
      %v4071 = vpop.f32.mrb[0].mxu0
      %v4072 = vadd.f32 0.0, %v4071
      %v4073 = vpop.f32.mrb[0].mxu0
      %4074 = vmatprep.mubr.bf16.mxu0 0
      %4075 = vmatmul.mubr.bf16.gmra.mrb[0].mxu0 %v3949
      %v4076 = vpop.f32.mrb[0].mxu0
      %v4077 = vadd.f32 0.0, %v4076
      %v4078 = vpop.f32.mrb[0].mxu0
      %v4079 = vpop.f32.mrb[0].mxu0
      %v4080 = vadd.f32 0.0, %v4079
      %v4081 = vpop.f32.mrb[0].mxu0
      %4082 = vdwg.mxu0
      %v4083 = vadd.f32 %v3918, %v4053
      %v4084 = vadd.f32 %v3919, %v4056
      %v4085 = vadd.f32 %v3920, %v4061
      %v4086 = vadd.f32 %v3921, %v4064
      %v4087 = vadd.f32 %v3922, %v4069
      %v4088 = vadd.f32 %v3923, %v4072
      %v4089 = vadd.f32 %v3924, %v4077
      %v4090 = vadd.f32 %v3925, %v4080
      %v4091 = vld [vmem:[%s3708 + $0x8] sm:$0x1f]
      %v4092 = vld [vmem:[%s3708 + $0x18] sm:$0x1f]
      %v4093 = vld [vmem:[%s3708 + $0x28] sm:$0x1f]
      %v4094 = vld [vmem:[%s3708 + $0x38] sm:$0x1f]
      %v4096 = vshrl.u32 %v3926, 16
      %v4098 = vrot.slane %v4096, 4
      %v4099 = vshll.u32 %v3926, 16
      %v4101 = vrot.slane %v4099, 5
      %v4102 = vor.u32 %v4098, %v4101
      %v4104 = vshrl.u32 %v4091, 16
      %v4106 = vrot.slane %v4104, 4
      %v4107 = vshll.u32 %v4091, 16
      %v4109 = vrot.slane %v4107, 5
      %v4110 = vor.u32 %v4106, %v4109
      %v4111 = vsel %vm1048, %v4102, %v4110
      %v4113 = vshrl.u32 %v3927, 16
      %v4115 = vrot.slane %v4113, 4
      %v4116 = vshll.u32 %v3927, 16
      %v4118 = vrot.slane %v4116, 5
      %v4119 = vor.u32 %v4115, %v4118
      %v4121 = vshrl.u32 %v4092, 16
      %v4123 = vrot.slane %v4121, 4
      %v4124 = vshll.u32 %v4092, 16
      %v4126 = vrot.slane %v4124, 5
      %v4127 = vor.u32 %v4123, %v4126
      %v4128 = vsel %vm1048, %v4119, %v4127
      %v4130 = vshrl.u32 %v3928, 16
      %v4132 = vrot.slane %v4130, 4
      %v4133 = vshll.u32 %v3928, 16
      %v4135 = vrot.slane %v4133, 5
      %v4136 = vor.u32 %v4132, %v4135
      %v4138 = vshrl.u32 %v4093, 16
      %v4140 = vrot.slane %v4138, 4
      %v4141 = vshll.u32 %v4093, 16
      %v4143 = vrot.slane %v4141, 5
      %v4144 = vor.u32 %v4140, %v4143
      %v4145 = vsel %vm1048, %v4136, %v4144
      %v4147 = vshrl.u32 %v3929, 16
      %v4149 = vrot.slane %v4147, 4
      %v4150 = vshll.u32 %v3929, 16
      %v4152 = vrot.slane %v4150, 5
      %v4153 = vor.u32 %v4149, %v4152
      %v4155 = vshrl.u32 %v4094, 16
      %v4157 = vrot.slane %v4155, 4
      %v4158 = vshll.u32 %v4094, 16
      %v4160 = vrot.slane %v4158, 5
      %v4161 = vor.u32 %v4157, %v4160
      %v4162 = vsel %vm1048, %v4153, %v4161
      %v4167 = vld [vmem:[%s2318] sm:$0xf]
      %v4168 = vld [vmem:[%s2318 + $0x4] sm:$0xf]
      %v4169 = vld [vmem:[%s2318 + $0x8] sm:$0xf]
      %v4170 = vld [vmem:[%s2318 + $0xc] sm:$0xf]
      %v4171 = vld [vmem:[%s2318 + $0x10] sm:$0xf]
      %v4172 = vld [vmem:[%s2318 + $0x14] sm:$0xf]
      %v4173 = vld [vmem:[%s2318 + $0x18] sm:$0xf]
      %v4174 = vld [vmem:[%s2318 + $0x1c] sm:$0xf]
      %v4175 = vld [vmem:[%s2318 + $0x20] sm:$0xf]
      %v4176 = vld [vmem:[%s2318 + $0x24] sm:$0xf]
      %v4177 = vld [vmem:[%s2318 + $0x28] sm:$0xf]
      %v4178 = vld [vmem:[%s2318 + $0x2c] sm:$0xf]
      %v4179 = vld [vmem:[%s2318 + $0x30] sm:$0xf]
      %v4180 = vld [vmem:[%s2318 + $0x34] sm:$0xf]
      %v4181 = vld [vmem:[%s2318 + $0x38] sm:$0xf]
      %v4182 = vld [vmem:[%s2318 + $0x3c] sm:$0xf]
      %v4199 = vunpack.c.l.b16 %v4167
      %v4200 = vunpack.c.l.b16 %v4168
      %v4201 = vunpack.c.l.b16 %v4169
      %v4202 = vunpack.c.l.b16 %v4170
      %v4203 = vunpack.c.l.b16 %v4171
      %v4204 = vunpack.c.l.b16 %v4172
      %v4205 = vunpack.c.l.b16 %v4173
      %v4206 = vunpack.c.l.b16 %v4174
      %v4207 = vunpack.c.l.b16 %v4175
      %v4208 = vunpack.c.l.b16 %v4176
      %v4209 = vunpack.c.l.b16 %v4177
      %v4210 = vunpack.c.l.b16 %v4178
      %v4211 = vunpack.c.l.b16 %v4179
      %v4212 = vunpack.c.l.b16 %v4180
      %v4213 = vunpack.c.l.b16 %v4181
      %v4214 = vunpack.c.l.b16 %v4182
      %v4215 = vpack.c.b16 %v4200, %v4199
      %v4216 = vpack.c.b16 %v4202, %v4201
      %v4217 = vpack.c.b16 %v4204, %v4203
      %v4218 = vpack.c.b16 %v4206, %v4205
      %v4219 = vpack.c.b16 %v4208, %v4207
      %v4220 = vpack.c.b16 %v4210, %v4209
      %v4221 = vpack.c.b16 %v4212, %v4211
      %v4222 = vpack.c.b16 %v4214, %v4213
      %4231 = vmatprep.subr.bf16.mxu0 0
      %4232 = vmatpush1.bf16.msra.mxu0 %v4215
      %4233 = vmatprep.subr.bf16.mxu0 0
      %4234 = vmatpush1.bf16.msra.mxu0 %v4216
      %4235 = vmatprep.subr.bf16.mxu0 0
      %4236 = vmatpush1.bf16.msra.mxu0 %v4217
      %4237 = vmatprep.subr.bf16.mxu0 0
      %4238 = vmatpush1.bf16.msra.mxu0 %v4218
      %4239 = vmatprep.subr.bf16.mxu0 0
      %4240 = vmatpush1.bf16.msra.mxu0 %v4219
      %4241 = vmatprep.subr.bf16.mxu0 0
      %4242 = vmatpush1.bf16.msra.mxu0 %v4220
      %4243 = vmatprep.subr.bf16.mxu0 0
      %4244 = vmatpush1.bf16.msra.mxu0 %v4221
      %4245 = vmatprep.subr.bf16.mxu0 0
      %4246 = vmatpush1.bf16.msra.mxu0 %v4222
      %4247 = vmatprep.subr.bf16.mxu0 0
      %4248 = vmatpush1.bf16.msra.mxu0 0
      %4249 = vmatprep.subr.bf16.mxu0 0
      %4250 = vmatpush1.bf16.msra.mxu0 0
      %4251 = vmatprep.subr.bf16.mxu0 0
      %4252 = vmatpush1.bf16.msra.mxu0 0
      %4253 = vmatprep.subr.bf16.mxu0 0
      %4254 = vmatpush1.bf16.msra.mxu0 0
      %4255 = vmatprep.subr.bf16.mxu0 0
      %4256 = vmatpush1.bf16.msra.mxu0 0
      %4257 = vmatprep.subr.bf16.mxu0 0
      %4258 = vmatpush1.bf16.msra.mxu0 0
      %4259 = vmatprep.subr.bf16.mxu0 0
      %4260 = vmatpush1.bf16.msra.mxu0 0
      %4261 = vmatprep.subr.bf16.mxu0 0
      %4262 = vmatpush1.bf16.msra.mxu0 0
      %4263 = vmatprep.mubr.bf16.mxu0 0
      %4264 = vmatmul.mubr.bf16.gmra.mrb[0].mxu0 %v4111
      %v4265 = vpop.f32.mrb[0].mxu0
      %v4266 = vadd.f32 0.0, %v4265
      %v4267 = vpop.f32.mrb[0].mxu0
      %v4268 = vpop.f32.mrb[0].mxu0
      %v4269 = vadd.f32 0.0, %v4268
      %v4270 = vpop.f32.mrb[0].mxu0
      %4271 = vmatprep.mubr.bf16.mxu0 0
      %4272 = vmatmul.mubr.bf16.gmra.mrb[0].mxu0 %v4128
      %v4273 = vpop.f32.mrb[0].mxu0
      %v4274 = vadd.f32 0.0, %v4273
      %v4275 = vpop.f32.mrb[0].mxu0
      %v4276 = vpop.f32.mrb[0].mxu0
      %v4277 = vadd.f32 0.0, %v4276
      %v4278 = vpop.f32.mrb[0].mxu0
      %4279 = vmatprep.mubr.bf16.mxu0 0
      %4280 = vmatmul.mubr.bf16.gmra.mrb[0].mxu0 %v4145
      %v4281 = vpop.f32.mrb[0].mxu0
      %v4282 = vadd.f32 0.0, %v4281
      %v4283 = vpop.f32.mrb[0].mxu0
      %v4284 = vpop.f32.mrb[0].mxu0
      %v4285 = vadd.f32 0.0, %v4284
      %v4286 = vpop.f32.mrb[0].mxu0
      %4287 = vmatprep.mubr.bf16.mxu0 0
      %4288 = vmatmul.mubr.bf16.gmra.mrb[0].mxu0 %v4162
      %v4289 = vpop.f32.mrb[0].mxu0
      %v4290 = vadd.f32 0.0, %v4289
      %v4291 = vpop.f32.mrb[0].mxu0
      %v4292 = vpop.f32.mrb[0].mxu0
      %v4293 = vadd.f32 0.0, %v4292
      %v4294 = vpop.f32.mrb[0].mxu0
      %4295 = vdwg.mxu0
      %v4296 = vadd.f32 %v4083, %v4266
      %v4297 = vadd.f32 %v4084, %v4269
      %v4298 = vadd.f32 %v4085, %v4274
      %v4299 = vadd.f32 %v4086, %v4277
      %v4300 = vadd.f32 %v4087, %v4282
      %v4301 = vadd.f32 %v4088, %v4285
      %v4302 = vadd.f32 %v4089, %v4290
      %v4303 = vadd.f32 %v4090, %v4293
      %v4304 = vpack.c.bf16 %v4297, %v4296
      %v4305 = vpack.c.bf16 %v4299, %v4298
      %v4306 = vpack.c.bf16 %v4301, %v4300
      %v4307 = vpack.c.bf16 %v4303, %v4302
      %v4312 = vunpack.c.l.b16 %v4304
      %v4313 = vunpack.c.h.b16 %v4304
      %v4314 = vunpack.c.l.b16 %v4305
      %v4315 = vunpack.c.h.b16 %v4305
      %v4316 = vunpack.c.l.b16 %v4306
      %v4317 = vunpack.c.h.b16 %v4306
      %v4318 = vunpack.c.l.b16 %v4307
      %v4319 = vunpack.c.h.b16 %v4307
      %v4320 = vpack.c.b16 %v4312, %v4312
      %v4321 = vpack.c.b16 %v4313, %v4313
      %v4322 = vpack.c.b16 %v4314, %v4314
      %v4323 = vpack.c.b16 %v4315, %v4315
      %v4324 = vpack.c.b16 %v4316, %v4316
      %v4325 = vpack.c.b16 %v4317, %v4317
      %v4326 = vpack.c.b16 %v4318, %v4318
      %v4327 = vpack.c.b16 %v4319, %v4319
      %s4336 = scalar_lea.vmem %s458, 32
      %4337 = vst [vmem:[%s4336] sm:$0xf] %v4320
      %4338 = vst [vmem:[%s4336 + $0x4] sm:$0xf] %v4321
      %4339 = vst [vmem:[%s4336 + $0x8] sm:$0xf] %v4322
      %4340 = vst [vmem:[%s4336 + $0xc] sm:$0xf] %v4323
      %4341 = vst [vmem:[%s4336 + $0x10] sm:$0xf] %v4324
      %4342 = vst [vmem:[%s4336 + $0x14] sm:$0xf] %v4325
      %4343 = vst [vmem:[%s4336 + $0x18] sm:$0xf] %v4326
      %4344 = vst [vmem:[%s4336 + $0x1c] sm:$0xf] %v4327
      %v4345 = vadd.f32 %v4296, %v4297
      %v4346 = vadd.f32 %v4345, %v4298
      %v4347 = vadd.f32 %v4346, %v4299
      %v4348 = vadd.f32 %v4347, %v4300
      %v4349 = vadd.f32 %v4348, %v4301
      %v4350 = vadd.f32 %v4349, %v4302
      %v4351 = vadd.f32 %v4350, %v4303
      %v4352 = vrot.slane %v4351, 4
      %v4353 = vadd.f32 %v4351, %v4352
      %v4354 = vrot.slane %v4353, 2
      %v4355 = vadd.f32 %v4353, %v4354
      %v4356 = vrot.slane %v4355, 1
      %v4357 = vadd.f32 %v4355, %v4356
      %v4358 = vadd.f32 %v2509, %v4357
      %v4359 = vmul.f32 %v4296, %v4296
      %v4360 = vmul.f32 %v4297, %v4297
      %v4361 = vmul.f32 %v4298, %v4298
      %v4362 = vmul.f32 %v4299, %v4299
      %v4363 = vmul.f32 %v4300, %v4300
      %v4364 = vmul.f32 %v4301, %v4301
      %v4365 = vmul.f32 %v4302, %v4302
      %v4366 = vmul.f32 %v4303, %v4303
      %v4367 = vadd.f32 %v4359, %v4360
      %v4368 = vadd.f32 %v4367, %v4361
      %v4369 = vadd.f32 %v4368, %v4362
      %v4370 = vadd.f32 %v4369, %v4363
      %v4371 = vadd.f32 %v4370, %v4364
      %v4372 = vadd.f32 %v4371, %v4365
      %v4373 = vadd.f32 %v4372, %v4366
      %v4374 = vrot.slane %v4373, 4
      %v4375 = vadd.f32 %v4373, %v4374
      %v4376 = vrot.slane %v4375, 2
      %v4377 = vadd.f32 %v4375, %v4376
      %v4378 = vrot.slane %v4377, 1
      %v4379 = vadd.f32 %v4377, %v4378
      %v4380 = vadd.f32 %v2531, %v4379
      %vm4381 = vcmask 1040384
      %v4382 = vsel %vm4381, %v4358, %v4380
      %4383 = vst [vmem:[%s467] sm:$0x3] %v4382
      %s4384 = smul.u32 8, %s24
      %p4385 = scmp.lt.s32.totalorder %s23, 1
      %s4386 = scalar_select %p4385, %s23, 1
      %p4387 = scmp.lt.s32.totalorder %s4384, 15
      %s4388 = scalar_select %p4387, %s4384, 15
      %s4389 = smul.addr %s4388, 2
      %s4390 = smul.addr %s4386, 32
      %s4391 = sadd.s32 %s4389, %s4390
      %s4392 = smul.addr %s4391, 4
      %s4393 = scalar_lea.vmem %s6, %s4392
      %p4394 = scmp.lt.s32.totalorder %s23, 1
      %s4395 = scalar_select %p4394, %s23, 1
      %p4396 = scmp.lt.s32.totalorder %s24, 1
      %s4397 = scalar_select %p4396, %s24, 1
      %s4398 = smul.addr %s4395, 2
      %s4399 = sadd.s32 %s4397, %s4398
      %s4400 = smul.addr %s4399, 2
      %s4401 = scalar_lea.vmem %s7, %s4400
      // Predicated region
      $region45: #{bottleneck_forward.5} parent=43 // pred_check
        %p4402 = pneg %p214
      $region46: #{bottleneck_forward.5} parent=43 // pred_check_branch
        %4404 = sbr.rel (%p4402) target = $region48
      $region47: #{bottleneck_forward.5} parent=43 // pred_region
        %s4405 = smul.u32 8, %s24
      $region48: #{bottleneck_forward.5} parent=43 // pred_fallthru
        _
      // Predicated region
      $region49: #{bottleneck_forward.5} parent=43 // pred_check
        %p4406 = pneg %p242
      $region50: #{bottleneck_forward.5} parent=43 // pred_check_branch
        %4408 = sbr.rel (%p4406) target = $region52
      $region51: #{bottleneck_forward.5} parent=43 // pred_region
        _
      $region52: #{bottleneck_forward.5} parent=43 // pred_fallthru
        _
    $region44: #{bottleneck_forward.5} parent=5 // pred_fallthru
      _
    %p4409 = scmp.le.s32.totalorder 2, %s14
    // Predicated region
    $region53: #{bottleneck_forward.5} parent=5 // pred_check
      %p4410 = pneg %p4409
    $region54: #{bottleneck_forward.5} parent=5 // pred_check_branch
      %4412 = sbr.rel (%p4410) target = $region56
    $region55: #{bottleneck_forward.5} parent=5 // pred_region
      %s4413 = ssub.s32 %s14, 2
      // Predicated region
      $region57: #{bottleneck_forward.5} parent=55 // pred_check
        %p4414 = pneg %p220
      $region58: #{bottleneck_forward.5} parent=55 // pred_check_branch
        %4416 = sbr.rel (%p4414) target = $region60
      $region59: #{bottleneck_forward.5} parent=55 // pred_region
        %s4417 = smul.u32 8, %s26
        %p4418 = scmp.lt.s32.totalorder %s25, 1
        %s4419 = scalar_select %p4418, %s25, 1
        %p4420 = scmp.lt.s32.totalorder %s4417, 15
        %s4421 = scalar_select %p4420, %s4417, 15
        %s4422 = smul.addr %s4421, 2
        %s4423 = smul.addr %s4419, 32
        %s4424 = sadd.s32 %s4422, %s4423
        %s4425 = smul.addr %s4424, 4
        %s4426 = scalar_lea.vmem %s6, %s4425
      $region60: #{bottleneck_forward.5} parent=55 // pred_fallthru
        _
      // Predicated region
      $region61: #{bottleneck_forward.5} parent=55 // pred_check
        %p4427 = pneg %p248
      $region62: #{bottleneck_forward.5} parent=55 // pred_check_branch
        %4429 = sbr.rel (%p4427) target = $region64
      $region63: #{bottleneck_forward.5} parent=55 // pred_region
        %p4430 = scmp.lt.s32.totalorder %s25, 1
        %s4431 = scalar_select %p4430, %s25, 1
        %p4432 = scmp.lt.s32.totalorder %s26, 1
        %s4433 = scalar_select %p4432, %s26, 1
        %s4434 = smul.addr %s4431, 2
        %s4435 = sadd.s32 %s4433, %s4434
        %s4436 = smul.addr %s4435, 2
        %s4437 = scalar_lea.vmem %s7, %s4436
      $region64: #{bottleneck_forward.5} parent=55 // pred_fallthru
        _
    $region56: #{bottleneck_forward.5} parent=5 // pred_fallthru
      _
  $region6: #{bottleneck_forward.5} parent=0 // loop_footer
    %s18 = sadd.s32 1, %s14
  $region7: #{bottleneck_forward.5} parent=0 // loop_footer_branch
    %13 = sbr.rel target = $region3
  $region8: #{bottleneck_forward.5} parent=0 // loop_exit
    _

</llo_original>
